<compile_context>
chip_gen: v7x
topology: tpu7x:2x2x1
jax: 0.10.0
libtpu: 0.0.40
codegen_flags: <defaults>
</compile_context>

<pallas_src>
import jax
import jax.numpy as jnp
from jax.experimental import pallas as pl
from jax.experimental.pallas import tpu as pltpu

HIDDEN_SIZE = 96
INPUT_SIZE = 1
NUM_LAYERS = 2   # hard-coded as two explicit LSTM cells below


# --------------------------------------------------------------------------------------
# Kernel
# --------------------------------------------------------------------------------------
def _lstm_chunk_kernel(x_ref, wih0_ref, whh0_ref, b0_ref,
                       w1_ref, b1_ref, wlin_ref, blin_ref,
                       out_ref,
                       xg, hhist, h01, c0, c1):
    TT = x_ref.shape[0]
    I = x_ref.shape[-1]
    Hp = c0.shape[-1]

    # Zero the recurrent state (including pad lanes) at the first time chunk
    # (PyTorch default h0 = c0 = 0).
    @pl.when(pl.program_id(0) == 0)
    def _():
        h01[...] = jnp.zeros_like(h01)
        c0[...] = jnp.zeros_like(c0)
        c1[...] = jnp.zeros_like(c1)

    # Layer-0 input projection + bias, hoisted out of the recurrence for the whole
    # chunk. With I == 1 this is a pure VPU broadcast multiply (no MXU on the serial
    # path); pad gate lanes stay 0 because the pad weight/bias lanes are 0.
    if I == 1:
        xg[...] = x_ref[...] * wih0_ref[...] + b0_ref[...]     # (TT, B, 4Hp)

    def gate_act(gates):
        # PyTorch gate order [i | f | g | o], each occupying a 128-lane-aligned block.
        i = jax.nn.sigmoid(gates[:, 0 * Hp:1 * Hp])
        f = jax.nn.sigmoid(gates[:, 1 * Hp:2 * Hp])
        g = jnp.tanh(gates[:, 2 * Hp:3 * Hp])
        o = jax.nn.sigmoid(gates[:, 3 * Hp:4 * Hp])
        return i, f, g, o

    def step(t, carry):
        # ---- layer 0 ------------------------------------------------------------
        if I == 1:
            g0_in = xg[t]                                      # (B, 4Hp), precomputed
        else:
            g0_in = (jnp.dot(x_ref[t], wih0_ref[...],
                             preferred_element_type=jnp.float32) + b0_ref[...])
        gates0 = g0_in + jnp.dot(h01[:, :Hp], whh0_ref[...],
                                 preferred_element_type=jnp.float32)
        i0, f0, g0, o0 = gate_act(gates0)
        c0_new = f0 * c0[...] + i0 * g0
        h0_new = o0 * jnp.tanh(c0_new)
        c0[...] = c0_new
        h01[:, :Hp] = h0_new                  # h01 now holds [h0_new | h1_prev]

        # ---- layer 1: fused input+recurrent matmul over packed [h0 | h1] ---------
        gates1 = (jnp.dot(h01[...], w1_ref[...],
                          preferred_element_type=jnp.float32) + b1_ref[...])
        i1, f1, g1, o1 = gate_act(gates1)
        c1_new = f1 * c1[...] + i1 * g1
        h1_new = o1 * jnp.tanh(c1_new)
        c1[...] = c1_new
        h01[:, Hp:] = h1_new
        hhist[t] = h1_new                     # chunk history for the batched head
        return carry

    jax.lax.fori_loop(0, TT, step, 0, unroll=(TT <= 32))

    # Linear(H -> 1) head, batched over the whole chunk (off the recurrent path).
    # Pad lanes of wlin and of h1 are zero, so the Hp-wide reduce equals the H-wide dot.
    out_ref[...] = jnp.sum(hhist[...] * wlin_ref[...], axis=-1) + blin_ref[...]


# --------------------------------------------------------------------------------------
# Parameter packing (PyTorch layout -> padded, lane-aligned kernel layout)
# --------------------------------------------------------------------------------------
def _pad_gate_rows(w, H, Hp):
    # w: (4H, K) with gate blocks [i|f|g|o] stacked along rows -> (4Hp, K), pad rows zero.
    parts = [jnp.pad(w[g * H:(g + 1) * H, :], ((0, Hp - H), (0, 0))) for g in range(4)]
    return jnp.concatenate(parts, axis=0)


def _pad_gate_vec(b, H, Hp):
    parts = [jnp.pad(b[g * H:(g + 1) * H], (0, Hp - H)) for g in range(4)]
    return jnp.concatenate(parts, axis=0)


def _pack_params(params, H, Hp):
    wih0 = _pad_gate_rows(params["w_ih_l0"], H, Hp).T                               # (I, 4Hp)
    whh0 = jnp.pad(_pad_gate_rows(params["w_hh_l0"], H, Hp),
                   ((0, 0), (0, Hp - H))).T                                         # (Hp, 4Hp)
    b0 = (_pad_gate_vec(params["b_ih_l0"], H, Hp)
          + _pad_gate_vec(params["b_hh_l0"], H, Hp))[None, :]                       # (1, 4Hp)

    wih1 = jnp.pad(_pad_gate_rows(params["w_ih_l1"], H, Hp),
                   ((0, 0), (0, Hp - H))).T                                         # (Hp, 4Hp)
    whh1 = jnp.pad(_pad_gate_rows(params["w_hh_l1"], H, Hp),
                   ((0, 0), (0, Hp - H))).T                                         # (Hp, 4Hp)
    w1 = jnp.concatenate([wih1, whh1], axis=0)                                      # (2Hp, 4Hp)
    b1 = (_pad_gate_vec(params["b_ih_l1"], H, Hp)
          + _pad_gate_vec(params["b_hh_l1"], H, Hp))[None, :]                       # (1, 4Hp)

    wlin = jnp.pad(params["w_lin"], ((0, 0), (0, Hp - H)))                          # (1, Hp)
    blin = params["b_lin"].reshape(1, 1)                                            # (1, 1)
    return wih0, whh0, b0, w1, b1, wlin, blin


# --------------------------------------------------------------------------------------
# Public wrapper
# --------------------------------------------------------------------------------------
def lstm_model_forward(x, params, *, time_chunk=None):
    """x: (B, T, I) float32. Returns (B, T, 1) float32 == linear(lstm(x)[0])."""
    x = jnp.asarray(x, jnp.float32)
    B, T, I = x.shape
    H = params["w_hh_l0"].shape[1]
    Hp = ((H + 127) // 128) * 128            # hidden padded to a 128-lane multiple per gate

    TT = time_chunk if time_chunk is not None else min(T, 128)
    n_chunks = pl.cdiv(T, TT)
    T_pad = n_chunks * TT

    wih0, whh0, b0, w1, b1, wlin, blin = _pack_params(params, H, Hp)

    x_tbi = jnp.transpose(x, (1, 0, 2))      # (T, B, I): grid walks time chunks
    if T_pad != T:
        # Zero-pad time; padded steps only affect outputs past T, which are sliced off.
        x_tbi = jnp.pad(x_tbi, ((0, T_pad - T), (0, 0), (0, 0)))

    def const(shape):
        return pl.BlockSpec(shape, lambda i: (0,) * len(shape))

    out_tb = pl.pallas_call(
        _lstm_chunk_kernel,
        out_shape=jax.ShapeDtypeStruct((T_pad, B), jnp.float32),
        grid_spec=pltpu.PrefetchScalarGridSpec(
            num_scalar_prefetch=0,
            grid=(n_chunks,),
            in_specs=[
                pl.BlockSpec((TT, B, I), lambda i: (i, 0, 0)),   # x time-chunk
                const((I, 4 * Hp)),                              # W_ih layer 0 (padded, T)
                const((Hp, 4 * Hp)),                             # W_hh layer 0 (padded, T)
                const((1, 4 * Hp)),                              # b_ih + b_hh layer 0
                const((2 * Hp, 4 * Hp)),                         # fused [W_ih1; W_hh1]
                const((1, 4 * Hp)),                              # b_ih + b_hh layer 1
                const((1, Hp)),                                  # linear weight row (padded)
                const((1, 1)),                                   # linear bias
            ],
            out_specs=pl.BlockSpec((TT, B), lambda i: (i, 0)),   # one output slab per chunk
            scratch_shapes=[
                pltpu.VMEM((TT, B, 4 * Hp), jnp.float32),        # hoisted layer-0 gate inputs
                pltpu.VMEM((TT, B, Hp), jnp.float32),            # h1 history for the chunk
                pltpu.VMEM((B, 2 * Hp), jnp.float32),            # packed [h0 | h1] state
                pltpu.VMEM((B, Hp), jnp.float32),                # c0
                pltpu.VMEM((B, Hp), jnp.float32),                # c1
            ],
        ),
        compiler_params=pltpu.CompilerParams(
            dimension_semantics=("arbitrary",)),                 # recurrence: sequential in time
    )(x_tbi, wih0, whh0, b0, w1, b1, wlin, blin)

    return jnp.transpose(out_tb[:T], (1, 0))[:, :, None]         # (B, T, 1)


# --------------------------------------------------------------------------------------
# Init + pure-JAX reference (PyTorch-shaped parameters)
# --------------------------------------------------------------------------------------
def init_params(key, input_size=INPUT_SIZE, hidden_size=HIDDEN_SIZE):
    """PyTorch-shaped parameters (same shapes / init range as nn.LSTM + nn.Linear)."""
    H, I = hidden_size, input_size
    k = 1.0 / jnp.sqrt(jnp.float32(H))
    keys = jax.random.split(key, 10)
    u = lambda kk, shape: jax.random.uniform(kk, shape, jnp.float32, -k, k)
    return {
        "w_ih_l0": u(keys[0], (4 * H, I)),
        "w_hh_l0": u(keys[1], (4 * H, H)),
        "b_ih_l0": u(keys[2], (4 * H,)),
        "b_hh_l0": u(keys[3], (4 * H,)),
        "w_ih_l1": u(keys[4], (4 * H, H)),
        "w_hh_l1": u(keys[5], (4 * H, H)),
        "b_ih_l1": u(keys[6], (4 * H,)),
        "b_hh_l1": u(keys[7], (4 * H,)),
        "w_lin":   u(keys[8], (1, H)),
        "b_lin":   u(keys[9], (1,)),
    }


def reference_forward(x, params):
    """Pure-JAX (lax.scan) reference matching PyTorch nn.LSTM + nn.Linear semantics."""
    B, T, I = x.shape
    H = params["w_hh_l0"].shape[1]

    def cell(inp, h, c, w_ih, w_hh, b_ih, b_hh):
        gates = inp @ w_ih.T + h @ w_hh.T + b_ih + b_hh
        i, f, g, o = jnp.split(gates, 4, axis=-1)
        c_new = jax.nn.sigmoid(f) * c + jax.nn.sigmoid(i) * jnp.tanh(g)
        h_new = jax.nn.sigmoid(o) * jnp.tanh(c_new)
        return h_new, c_new

    def step(carry, x_t):
        h0, c0, h1, c1 = carry
        h0, c0 = cell(x_t, h0, c0, params["w_ih_l0"], params["w_hh_l0"],
                      params["b_ih_l0"], params["b_hh_l0"])
        h1, c1 = cell(h0, h1, c1, params["w_ih_l1"], params["w_hh_l1"],
                      params["b_ih_l1"], params["b_hh_l1"])
        y = h1 @ params["w_lin"].T + params["b_lin"]
        return (h0, c0, h1, c1), y

    init = tuple(jnp.zeros((B, H), jnp.float32) for _ in range(4))
    _, ys = jax.lax.scan(step, init, jnp.transpose(x, (1, 0, 2)))
    return jnp.transpose(ys, (1, 0, 2))


if __name__ == "__main__":
    key = jax.random.PRNGKey(0)
    k_params, k_x = jax.random.split(key)

    B, T = 2, 8
    params = init_params(k_params, INPUT_SIZE, HIDDEN_SIZE)
    x = jax.random.normal(k_x, (B, T, INPUT_SIZE), jnp.float32)

    out = jax.block_until_ready(lstm_model_forward(x, params))
    ref = jax.block_until_ready(reference_forward(x, params))

    assert out.shape == (B, T, 1), out.shape
    assert jnp.allclose(out, ref, rtol=2e-5, atol=2e-5), (
        "Pallas output mismatch vs reference, max abs err = "
        f"{float(jnp.max(jnp.abs(out - ref)))}")

    print("KERNEL_OK")
</pallas_src>

<mosaic_0001>
module attributes {stable_mosaic.version = 11 : i64} {
  func.func @_lstm_chunk_kernel(%arg0: i32, %arg1: memref<8x2x1xf32, #tpu.memory_space<vmem>>, %arg2: memref<1x512xf32, #tpu.memory_space<vmem>>, %arg3: memref<128x512xf32, #tpu.memory_space<vmem>>, %arg4: memref<1x512xf32, #tpu.memory_space<vmem>>, %arg5: memref<256x512xf32, #tpu.memory_space<vmem>>, %arg6: memref<1x512xf32, #tpu.memory_space<vmem>>, %arg7: memref<1x128xf32, #tpu.memory_space<vmem>>, %arg8: memref<1x1xf32, #tpu.memory_space<vmem>>, %arg9: memref<8x2xf32, #tpu.memory_space<vmem>>, %arg10: memref<8x2x512xf32, #tpu.memory_space<vmem>>, %arg11: memref<8x2x128xf32, #tpu.memory_space<vmem>>, %arg12: memref<2x256xf32, #tpu.memory_space<vmem>>, %arg13: memref<2x128xf32, #tpu.memory_space<vmem>>, %arg14: memref<2x128xf32, #tpu.memory_space<vmem>>) attributes {dimension_semantics = [#tpu.dimension_semantics<arbitrary>], iteration_bounds = array<i64: 1>, scalar_prefetch = 0 : i64, scratch_operands = 5 : i64, tpu.core_type = #tpu.core_type<tc>, window_params = [{transform_indices = @transform_0, window_bounds = array<i64: 8, 2, 1>}, {pipeline_mode = #tpu.pipeline_mode<synchronous>, transform_indices = @transform_1, window_bounds = array<i64: 1, 512>}, {pipeline_mode = #tpu.pipeline_mode<synchronous>, transform_indices = @transform_2, window_bounds = array<i64: 128, 512>}, {pipeline_mode = #tpu.pipeline_mode<synchronous>, transform_indices = @transform_3, window_bounds = array<i64: 1, 512>}, {pipeline_mode = #tpu.pipeline_mode<synchronous>, transform_indices = @transform_4, window_bounds = array<i64: 256, 512>}, {pipeline_mode = #tpu.pipeline_mode<synchronous>, transform_indices = @transform_5, window_bounds = array<i64: 1, 512>}, {pipeline_mode = #tpu.pipeline_mode<synchronous>, transform_indices = @transform_6, window_bounds = array<i64: 1, 128>}, {pipeline_mode = #tpu.pipeline_mode<synchronous>, transform_indices = @transform_7, window_bounds = array<i64: 1, 1>}, {transform_indices = @transform_8, window_bounds = array<i64: 8, 2>}]} {
    %c0_i32 = arith.constant 0 : i32
    %0 = arith.cmpi eq, %arg0, %c0_i32 : i32
    %1 = arith.extui %0 : i1 to i32
    %c0_i32_0 = arith.constant 0 : i32
    %2 = arith.cmpi ne, %1, %c0_i32_0 : i32
    scf.if %2 {
      %cst_291 = arith.constant 0.000000e+00 : f32
      %608 = vector.broadcast %cst_291 : f32 to vector<2x256xf32>
      %c0_292 = arith.constant 0 : index
      %c0_293 = arith.constant 0 : index
      %609 = vector.load %arg12[%c0_292, %c0_293] : memref<2x256xf32, #tpu.memory_space<vmem>>, vector<2x256xf32>
      tpu.vector_store %arg12[%c0_292, %c0_293], %608 {strides = array<i32>} : memref<2x256xf32, #tpu.memory_space<vmem>>, vector<2x256xf32>,
      %cst_294 = arith.constant 0.000000e+00 : f32
      %610 = vector.broadcast %cst_294 : f32 to vector<2x128xf32>
      %c0_295 = arith.constant 0 : index
      %c0_296 = arith.constant 0 : index
      %611 = vector.load %arg13[%c0_295, %c0_296] : memref<2x128xf32, #tpu.memory_space<vmem>>, vector<2x128xf32>
      tpu.vector_store %arg13[%c0_295, %c0_296], %610 {strides = array<i32>} : memref<2x128xf32, #tpu.memory_space<vmem>>, vector<2x128xf32>,
      %cst_297 = arith.constant 0.000000e+00 : f32
      %612 = vector.broadcast %cst_297 : f32 to vector<2x128xf32>
      %c0_298 = arith.constant 0 : index
      %c0_299 = arith.constant 0 : index
      %613 = vector.load %arg14[%c0_298, %c0_299] : memref<2x128xf32, #tpu.memory_space<vmem>>, vector<2x128xf32>
      tpu.vector_store %arg14[%c0_298, %c0_299], %612 {strides = array<i32>} : memref<2x128xf32, #tpu.memory_space<vmem>>, vector<2x128xf32>,
    } else {
    }
    %c0 = arith.constant 0 : index
    %c0_1 = arith.constant 0 : index
    %c0_2 = arith.constant 0 : index
    %3 = vector.load %arg1[%c0, %c0_1, %c0_2] : memref<8x2x1xf32, #tpu.memory_space<vmem>>, vector<8x2x1xf32>
    %c0_3 = arith.constant 0 : index
    %c0_4 = arith.constant 0 : index
    %4 = vector.load %arg2[%c0_3, %c0_4] : memref<1x512xf32, #tpu.memory_space<vmem>>, vector<1x512xf32>
    %5 = vector.shape_cast %4 : vector<1x512xf32> to vector<1x1x512xf32>
    %6 = vector.broadcast %3 : vector<8x2x1xf32> to vector<8x2x512xf32>
    %7 = vector.broadcast %5 : vector<1x1x512xf32> to vector<8x2x512xf32>
    %8 = arith.mulf %6, %7 : vector<8x2x512xf32>
    %c0_5 = arith.constant 0 : index
    %c0_6 = arith.constant 0 : index
    %9 = vector.load %arg4[%c0_5, %c0_6] : memref<1x512xf32, #tpu.memory_space<vmem>>, vector<1x512xf32>
    %10 = vector.shape_cast %9 : vector<1x512xf32> to vector<1x1x512xf32>
    %11 = vector.broadcast %10 : vector<1x1x512xf32> to vector<8x2x512xf32>
    %12 = arith.addf %8, %11 : vector<8x2x512xf32>
    %c0_7 = arith.constant 0 : index
    %c0_8 = arith.constant 0 : index
    %c0_9 = arith.constant 0 : index
    %13 = vector.load %arg10[%c0_7, %c0_8, %c0_9] : memref<8x2x512xf32, #tpu.memory_space<vmem>>, vector<8x2x512xf32>
    tpu.vector_store %arg10[%c0_7, %c0_8, %c0_9], %12 {strides = array<i32>} : memref<8x2x512xf32, #tpu.memory_space<vmem>>, vector<8x2x512xf32>,
    %c0_i32_10 = arith.constant 0 : i32
    %14 = arith.index_cast %c0_i32_10 : i32 to index
    %c0_11 = arith.constant 0 : index
    %c0_12 = arith.constant 0 : index
    %15 = vector.load %arg10[%14, %c0_11, %c0_12] : memref<8x2x512xf32, #tpu.memory_space<vmem>>, vector<1x2x512xf32>
    %16 = vector.shape_cast %15 : vector<1x2x512xf32> to vector<2x512xf32>
    %c0_13 = arith.constant 0 : index
    %c0_14 = arith.constant 0 : index
    %17 = vector.load %arg12[%c0_13, %c0_14] : memref<2x256xf32, #tpu.memory_space<vmem>>, vector<2x128xf32>
    %c0_15 = arith.constant 0 : index
    %c0_16 = arith.constant 0 : index
    %18 = vector.load %arg3[%c0_15, %c0_16] : memref<128x512xf32, #tpu.memory_space<vmem>>, vector<128x512xf32>
    %cst = arith.constant dense<0.000000e+00> : vector<2x512xf32>
    %19 = tpu.matmul %17, %18, %cst {dimension_numbers = #tpu.dot_dimension_numbers<[1], [0], [0], [1], [0, 0, 1, 1], [], []>} : vector<2x128xf32>, vector<128x512xf32>, vector<2x512xf32> -> vector<2x512xf32>
    %20 = arith.addf %16, %19 : vector<2x512xf32>
    %21 = vector.extract_strided_slice %20 {offsets = [0, 0], sizes = [2, 128], strides = [1, 1]} : vector<2x512xf32> to vector<2x128xf32>
    %22 = arith.negf %21 : vector<2x128xf32>
    %23 = math.exp %22 : vector<2x128xf32>
    %cst_17 = arith.constant 1.000000e+00 : f32
    %24 = vector.broadcast %cst_17 : f32 to vector<2x128xf32>
    %25 = arith.addf %24, %23 : vector<2x128xf32>
    %26 = arith.divf %24, %25 : vector<2x128xf32>
    %27 = vector.extract_strided_slice %20 {offsets = [0, 128], sizes = [2, 128], strides = [1, 1]} : vector<2x512xf32> to vector<2x128xf32>
    %28 = arith.negf %27 : vector<2x128xf32>
    %29 = math.exp %28 : vector<2x128xf32>
    %cst_18 = arith.constant 1.000000e+00 : f32
    %30 = vector.broadcast %cst_18 : f32 to vector<2x128xf32>
    %31 = arith.addf %30, %29 : vector<2x128xf32>
    %32 = arith.divf %30, %31 : vector<2x128xf32>
    %33 = vector.extract_strided_slice %20 {offsets = [0, 256], sizes = [2, 128], strides = [1, 1]} : vector<2x512xf32> to vector<2x128xf32>
    %34 = math.tanh %33 : vector<2x128xf32>
    %35 = vector.extract_strided_slice %20 {offsets = [0, 384], sizes = [2, 128], strides = [1, 1]} : vector<2x512xf32> to vector<2x128xf32>
    %36 = arith.negf %35 : vector<2x128xf32>
    %37 = math.exp %36 : vector<2x128xf32>
    %cst_19 = arith.constant 1.000000e+00 : f32
    %38 = vector.broadcast %cst_19 : f32 to vector<2x128xf32>
    %39 = arith.addf %38, %37 : vector<2x128xf32>
    %40 = arith.divf %38, %39 : vector<2x128xf32>
    %c0_20 = arith.constant 0 : index
    %c0_21 = arith.constant 0 : index
    %41 = vector.load %arg13[%c0_20, %c0_21] : memref<2x128xf32, #tpu.memory_space<vmem>>, vector<2x128xf32>
    %42 = arith.mulf %32, %41 : vector<2x128xf32>
    %43 = arith.mulf %26, %34 : vector<2x128xf32>
    %44 = arith.addf %42, %43 : vector<2x128xf32>
    %45 = math.tanh %44 : vector<2x128xf32>
    %46 = arith.mulf %40, %45 : vector<2x128xf32>
    %c0_22 = arith.constant 0 : index
    %c0_23 = arith.constant 0 : index
    %47 = vector.load %arg13[%c0_22, %c0_23] : memref<2x128xf32, #tpu.memory_space<vmem>>, vector<2x128xf32>
    tpu.vector_store %arg13[%c0_22, %c0_23], %44 {strides = array<i32>} : memref<2x128xf32, #tpu.memory_space<vmem>>, vector<2x128xf32>,
    %c0_24 = arith.constant 0 : index
    %c0_25 = arith.constant 0 : index
    %48 = vector.load %arg12[%c0_24, %c0_25] : memref<2x256xf32, #tpu.memory_space<vmem>>, vector<2x128xf32>
    tpu.vector_store %arg12[%c0_24, %c0_25], %46 {strides = array<i32>} : memref<2x256xf32, #tpu.memory_space<vmem>>, vector<2x128xf32>,
    %c0_26 = arith.constant 0 : index
    %c0_27 = arith.constant 0 : index
    %49 = vector.load %arg12[%c0_26, %c0_27] : memref<2x256xf32, #tpu.memory_space<vmem>>, vector<2x256xf32>
    %c0_28 = arith.constant 0 : index
    %c0_29 = arith.constant 0 : index
    %50 = vector.load %arg5[%c0_28, %c0_29] : memref<256x512xf32, #tpu.memory_space<vmem>>, vector<256x512xf32>
    %cst_30 = arith.constant dense<0.000000e+00> : vector<2x512xf32>
    %51 = tpu.matmul %49, %50, %cst_30 {dimension_numbers = #tpu.dot_dimension_numbers<[1], [0], [0], [1], [0, 0, 1, 1], [], []>} : vector<2x256xf32>, vector<256x512xf32>, vector<2x512xf32> -> vector<2x512xf32>
    %c0_31 = arith.constant 0 : index
    %c0_32 = arith.constant 0 : index
    %52 = vector.load %arg6[%c0_31, %c0_32] : memref<1x512xf32, #tpu.memory_space<vmem>>, vector<1x512xf32>
    %53 = vector.broadcast %52 : vector<1x512xf32> to vector<2x512xf32>
    %54 = arith.addf %51, %53 : vector<2x512xf32>
    %55 = vector.extract_strided_slice %54 {offsets = [0, 0], sizes = [2, 128], strides = [1, 1]} : vector<2x512xf32> to vector<2x128xf32>
    %56 = arith.negf %55 : vector<2x128xf32>
    %57 = math.exp %56 : vector<2x128xf32>
    %cst_33 = arith.constant 1.000000e+00 : f32
    %58 = vector.broadcast %cst_33 : f32 to vector<2x128xf32>
    %59 = arith.addf %58, %57 : vector<2x128xf32>
    %60 = arith.divf %58, %59 : vector<2x128xf32>
    %61 = vector.extract_strided_slice %54 {offsets = [0, 128], sizes = [2, 128], strides = [1, 1]} : vector<2x512xf32> to vector<2x128xf32>
    %62 = arith.negf %61 : vector<2x128xf32>
    %63 = math.exp %62 : vector<2x128xf32>
    %cst_34 = arith.constant 1.000000e+00 : f32
    %64 = vector.broadcast %cst_34 : f32 to vector<2x128xf32>
    %65 = arith.addf %64, %63 : vector<2x128xf32>
    %66 = arith.divf %64, %65 : vector<2x128xf32>
    %67 = vector.extract_strided_slice %54 {offsets = [0, 256], sizes = [2, 128], strides = [1, 1]} : vector<2x512xf32> to vector<2x128xf32>
    %68 = math.tanh %67 : vector<2x128xf32>
    %69 = vector.extract_strided_slice %54 {offsets = [0, 384], sizes = [2, 128], strides = [1, 1]} : vector<2x512xf32> to vector<2x128xf32>
    %70 = arith.negf %69 : vector<2x128xf32>
    %71 = math.exp %70 : vector<2x128xf32>
    %cst_35 = arith.constant 1.000000e+00 : f32
    %72 = vector.broadcast %cst_35 : f32 to vector<2x128xf32>
    %73 = arith.addf %72, %71 : vector<2x128xf32>
    %74 = arith.divf %72, %73 : vector<2x128xf32>
    %c0_36 = arith.constant 0 : index
    %c0_37 = arith.constant 0 : index
    %75 = vector.load %arg14[%c0_36, %c0_37] : memref<2x128xf32, #tpu.memory_space<vmem>>, vector<2x128xf32>
    %76 = arith.mulf %66, %75 : vector<2x128xf32>
    %77 = arith.mulf %60, %68 : vector<2x128xf32>
    %78 = arith.addf %76, %77 : vector<2x128xf32>
    %79 = math.tanh %78 : vector<2x128xf32>
    %80 = arith.mulf %74, %79 : vector<2x128xf32>
    %c0_38 = arith.constant 0 : index
    %c0_39 = arith.constant 0 : index
    %81 = vector.load %arg14[%c0_38, %c0_39] : memref<2x128xf32, #tpu.memory_space<vmem>>, vector<2x128xf32>
    tpu.vector_store %arg14[%c0_38, %c0_39], %78 {strides = array<i32>} : memref<2x128xf32, #tpu.memory_space<vmem>>, vector<2x128xf32>,
    %c0_40 = arith.constant 0 : index
    %c128 = arith.constant 128 : index
    %82 = vector.load %arg12[%c0_40, %c128] : memref<2x256xf32, #tpu.memory_space<vmem>>, vector<2x128xf32>
    tpu.vector_store %arg12[%c0_40, %c128], %80 {strides = array<i32>} : memref<2x256xf32, #tpu.memory_space<vmem>>, vector<2x128xf32>,
    %83 = arith.index_cast %c0_i32_10 : i32 to index
    %c0_41 = arith.constant 0 : index
    %c0_42 = arith.constant 0 : index
    %84 = vector.load %arg11[%83, %c0_41, %c0_42] : memref<8x2x128xf32, #tpu.memory_space<vmem>>, vector<1x2x128xf32>
    %85 = vector.shape_cast %84 : vector<1x2x128xf32> to vector<2x128xf32>
    %86 = vector.shape_cast %80 : vector<2x128xf32> to vector<1x2x128xf32>
    tpu.vector_store %arg11[%83, %c0_41, %c0_42], %86 {strides = array<i32>} : memref<8x2x128xf32, #tpu.memory_space<vmem>>, vector<1x2x128xf32>,
    %c1_i32 = arith.constant 1 : i32
    %87 = arith.index_cast %c1_i32 : i32 to index
    %c0_43 = arith.constant 0 : index
    %c0_44 = arith.constant 0 : index
    %88 = vector.load %arg10[%87, %c0_43, %c0_44] : memref<8x2x512xf32, #tpu.memory_space<vmem>>, vector<1x2x512xf32>
    %89 = vector.shape_cast %88 : vector<1x2x512xf32> to vector<2x512xf32>
    %c0_45 = arith.constant 0 : index
    %c0_46 = arith.constant 0 : index
    %90 = vector.load %arg12[%c0_45, %c0_46] : memref<2x256xf32, #tpu.memory_space<vmem>>, vector<2x128xf32>
    %c0_47 = arith.constant 0 : index
    %c0_48 = arith.constant 0 : index
    %91 = vector.load %arg3[%c0_47, %c0_48] : memref<128x512xf32, #tpu.memory_space<vmem>>, vector<128x512xf32>
    %cst_49 = arith.constant dense<0.000000e+00> : vector<2x512xf32>
    %92 = tpu.matmul %90, %91, %cst_49 {dimension_numbers = #tpu.dot_dimension_numbers<[1], [0], [0], [1], [0, 0, 1, 1], [], []>} : vector<2x128xf32>, vector<128x512xf32>, vector<2x512xf32> -> vector<2x512xf32>
    %93 = arith.addf %89, %92 : vector<2x512xf32>
    %94 = vector.extract_strided_slice %93 {offsets = [0, 0], sizes = [2, 128], strides = [1, 1]} : vector<2x512xf32> to vector<2x128xf32>
    %95 = arith.negf %94 : vector<2x128xf32>
    %96 = math.exp %95 : vector<2x128xf32>
    %cst_50 = arith.constant 1.000000e+00 : f32
    %97 = vector.broadcast %cst_50 : f32 to vector<2x128xf32>
    %98 = arith.addf %97, %96 : vector<2x128xf32>
    %99 = arith.divf %97, %98 : vector<2x128xf32>
    %100 = vector.extract_strided_slice %93 {offsets = [0, 128], sizes = [2, 128], strides = [1, 1]} : vector<2x512xf32> to vector<2x128xf32>
    %101 = arith.negf %100 : vector<2x128xf32>
    %102 = math.exp %101 : vector<2x128xf32>
    %cst_51 = arith.constant 1.000000e+00 : f32
    %103 = vector.broadcast %cst_51 : f32 to vector<2x128xf32>
    %104 = arith.addf %103, %102 : vector<2x128xf32>
    %105 = arith.divf %103, %104 : vector<2x128xf32>
    %106 = vector.extract_strided_slice %93 {offsets = [0, 256], sizes = [2, 128], strides = [1, 1]} : vector<2x512xf32> to vector<2x128xf32>
    %107 = math.tanh %106 : vector<2x128xf32>
    %108 = vector.extract_strided_slice %93 {offsets = [0, 384], sizes = [2, 128], strides = [1, 1]} : vector<2x512xf32> to vector<2x128xf32>
    %109 = arith.negf %108 : vector<2x128xf32>
    %110 = math.exp %109 : vector<2x128xf32>
    %cst_52 = arith.constant 1.000000e+00 : f32
    %111 = vector.broadcast %cst_52 : f32 to vector<2x128xf32>
    %112 = arith.addf %111, %110 : vector<2x128xf32>
    %113 = arith.divf %111, %112 : vector<2x128xf32>
    %c0_53 = arith.constant 0 : index
    %c0_54 = arith.constant 0 : index
    %114 = vector.load %arg13[%c0_53, %c0_54] : memref<2x128xf32, #tpu.memory_space<vmem>>, vector<2x128xf32>
    %115 = arith.mulf %105, %114 : vector<2x128xf32>
    %116 = arith.mulf %99, %107 : vector<2x128xf32>
    %117 = arith.addf %115, %116 : vector<2x128xf32>
    %118 = math.tanh %117 : vector<2x128xf32>
    %119 = arith.mulf %113, %118 : vector<2x128xf32>
    %c0_55 = arith.constant 0 : index
    %c0_56 = arith.constant 0 : index
    %120 = vector.load %arg13[%c0_55, %c0_56] : memref<2x128xf32, #tpu.memory_space<vmem>>, vector<2x128xf32>
    tpu.vector_store %arg13[%c0_55, %c0_56], %117 {strides = array<i32>} : memref<2x128xf32, #tpu.memory_space<vmem>>, vector<2x128xf32>,
    %c0_57 = arith.constant 0 : index
    %c0_58 = arith.constant 0 : index
    %121 = vector.load %arg12[%c0_57, %c0_58] : memref<2x256xf32, #tpu.memory_space<vmem>>, vector<2x128xf32>
    tpu.vector_store %arg12[%c0_57, %c0_58], %119 {strides = array<i32>} : memref<2x256xf32, #tpu.memory_space<vmem>>, vector<2x128xf32>,
    %c0_59 = arith.constant 0 : index
    %c0_60 = arith.constant 0 : index
    %122 = vector.load %arg12[%c0_59, %c0_60] : memref<2x256xf32, #tpu.memory_space<vmem>>, vector<2x256xf32>
    %c0_61 = arith.constant 0 : index
    %c0_62 = arith.constant 0 : index
    %123 = vector.load %arg5[%c0_61, %c0_62] : memref<256x512xf32, #tpu.memory_space<vmem>>, vector<256x512xf32>
    %cst_63 = arith.constant dense<0.000000e+00> : vector<2x512xf32>
    %124 = tpu.matmul %122, %123, %cst_63 {dimension_numbers = #tpu.dot_dimension_numbers<[1], [0], [0], [1], [0, 0, 1, 1], [], []>} : vector<2x256xf32>, vector<256x512xf32>, vector<2x512xf32> -> vector<2x512xf32>
    %c0_64 = arith.constant 0 : index
    %c0_65 = arith.constant 0 : index
    %125 = vector.load %arg6[%c0_64, %c0_65] : memref<1x512xf32, #tpu.memory_space<vmem>>, vector<1x512xf32>
    %126 = vector.broadcast %125 : vector<1x512xf32> to vector<2x512xf32>
    %127 = arith.addf %124, %126 : vector<2x512xf32>
    %128 = vector.extract_strided_slice %127 {offsets = [0, 0], sizes = [2, 128], strides = [1, 1]} : vector<2x512xf32> to vector<2x128xf32>
    %129 = arith.negf %128 : vector<2x128xf32>
    %130 = math.exp %129 : vector<2x128xf32>
    %cst_66 = arith.constant 1.000000e+00 : f32
    %131 = vector.broadcast %cst_66 : f32 to vector<2x128xf32>
    %132 = arith.addf %131, %130 : vector<2x128xf32>
    %133 = arith.divf %131, %132 : vector<2x128xf32>
    %134 = vector.extract_strided_slice %127 {offsets = [0, 128], sizes = [2, 128], strides = [1, 1]} : vector<2x512xf32> to vector<2x128xf32>
    %135 = arith.negf %134 : vector<2x128xf32>
    %136 = math.exp %135 : vector<2x128xf32>
    %cst_67 = arith.constant 1.000000e+00 : f32
    %137 = vector.broadcast %cst_67 : f32 to vector<2x128xf32>
    %138 = arith.addf %137, %136 : vector<2x128xf32>
    %139 = arith.divf %137, %138 : vector<2x128xf32>
    %140 = vector.extract_strided_slice %127 {offsets = [0, 256], sizes = [2, 128], strides = [1, 1]} : vector<2x512xf32> to vector<2x128xf32>
    %141 = math.tanh %140 : vector<2x128xf32>
    %142 = vector.extract_strided_slice %127 {offsets = [0, 384], sizes = [2, 128], strides = [1, 1]} : vector<2x512xf32> to vector<2x128xf32>
    %143 = arith.negf %142 : vector<2x128xf32>
    %144 = math.exp %143 : vector<2x128xf32>
    %cst_68 = arith.constant 1.000000e+00 : f32
    %145 = vector.broadcast %cst_68 : f32 to vector<2x128xf32>
    %146 = arith.addf %145, %144 : vector<2x128xf32>
    %147 = arith.divf %145, %146 : vector<2x128xf32>
    %c0_69 = arith.constant 0 : index
    %c0_70 = arith.constant 0 : index
    %148 = vector.load %arg14[%c0_69, %c0_70] : memref<2x128xf32, #tpu.memory_space<vmem>>, vector<2x128xf32>
    %149 = arith.mulf %139, %148 : vector<2x128xf32>
    %150 = arith.mulf %133, %141 : vector<2x128xf32>
    %151 = arith.addf %149, %150 : vector<2x128xf32>
    %152 = math.tanh %151 : vector<2x128xf32>
    %153 = arith.mulf %147, %152 : vector<2x128xf32>
    %c0_71 = arith.constant 0 : index
    %c0_72 = arith.constant 0 : index
    %154 = vector.load %arg14[%c0_71, %c0_72] : memref<2x128xf32, #tpu.memory_space<vmem>>, vector<2x128xf32>
    tpu.vector_store %arg14[%c0_71, %c0_72], %151 {strides = array<i32>} : memref<2x128xf32, #tpu.memory_space<vmem>>, vector<2x128xf32>,
    %c0_73 = arith.constant 0 : index
    %c128_74 = arith.constant 128 : index
    %155 = vector.load %arg12[%c0_73, %c128_74] : memref<2x256xf32, #tpu.memory_space<vmem>>, vector<2x128xf32>
    tpu.vector_store %arg12[%c0_73, %c128_74], %153 {strides = array<i32>} : memref<2x256xf32, #tpu.memory_space<vmem>>, vector<2x128xf32>,
    %156 = arith.index_cast %c1_i32 : i32 to index
    %c0_75 = arith.constant 0 : index
    %c0_76 = arith.constant 0 : index
    %157 = vector.load %arg11[%156, %c0_75, %c0_76] : memref<8x2x128xf32, #tpu.memory_space<vmem>>, vector<1x2x128xf32>
    %158 = vector.shape_cast %157 : vector<1x2x128xf32> to vector<2x128xf32>
    %159 = vector.shape_cast %153 : vector<2x128xf32> to vector<1x2x128xf32>
    tpu.vector_store %arg11[%156, %c0_75, %c0_76], %159 {strides = array<i32>} : memref<8x2x128xf32, #tpu.memory_space<vmem>>, vector<1x2x128xf32>,
    %c2_i32 = arith.constant 2 : i32
    %160 = arith.index_cast %c2_i32 : i32 to index
    %c0_77 = arith.constant 0 : index
    %c0_78 = arith.constant 0 : index
    %161 = vector.load %arg10[%160, %c0_77, %c0_78] : memref<8x2x512xf32, #tpu.memory_space<vmem>>, vector<1x2x512xf32>
    %162 = vector.shape_cast %161 : vector<1x2x512xf32> to vector<2x512xf32>
    %c0_79 = arith.constant 0 : index
    %c0_80 = arith.constant 0 : index
    %163 = vector.load %arg12[%c0_79, %c0_80] : memref<2x256xf32, #tpu.memory_space<vmem>>, vector<2x128xf32>
    %c0_81 = arith.constant 0 : index
    %c0_82 = arith.constant 0 : index
    %164 = vector.load %arg3[%c0_81, %c0_82] : memref<128x512xf32, #tpu.memory_space<vmem>>, vector<128x512xf32>
    %cst_83 = arith.constant dense<0.000000e+00> : vector<2x512xf32>
    %165 = tpu.matmul %163, %164, %cst_83 {dimension_numbers = #tpu.dot_dimension_numbers<[1], [0], [0], [1], [0, 0, 1, 1], [], []>} : vector<2x128xf32>, vector<128x512xf32>, vector<2x512xf32> -> vector<2x512xf32>
    %166 = arith.addf %162, %165 : vector<2x512xf32>
    %167 = vector.extract_strided_slice %166 {offsets = [0, 0], sizes = [2, 128], strides = [1, 1]} : vector<2x512xf32> to vector<2x128xf32>
    %168 = arith.negf %167 : vector<2x128xf32>
    %169 = math.exp %168 : vector<2x128xf32>
    %cst_84 = arith.constant 1.000000e+00 : f32
    %170 = vector.broadcast %cst_84 : f32 to vector<2x128xf32>
    %171 = arith.addf %170, %169 : vector<2x128xf32>
    %172 = arith.divf %170, %171 : vector<2x128xf32>
    %173 = vector.extract_strided_slice %166 {offsets = [0, 128], sizes = [2, 128], strides = [1, 1]} : vector<2x512xf32> to vector<2x128xf32>
    %174 = arith.negf %173 : vector<2x128xf32>
    %175 = math.exp %174 : vector<2x128xf32>
    %cst_85 = arith.constant 1.000000e+00 : f32
    %176 = vector.broadcast %cst_85 : f32 to vector<2x128xf32>
    %177 = arith.addf %176, %175 : vector<2x128xf32>
    %178 = arith.divf %176, %177 : vector<2x128xf32>
    %179 = vector.extract_strided_slice %166 {offsets = [0, 256], sizes = [2, 128], strides = [1, 1]} : vector<2x512xf32> to vector<2x128xf32>
    %180 = math.tanh %179 : vector<2x128xf32>
    %181 = vector.extract_strided_slice %166 {offsets = [0, 384], sizes = [2, 128], strides = [1, 1]} : vector<2x512xf32> to vector<2x128xf32>
    %182 = arith.negf %181 : vector<2x128xf32>
    %183 = math.exp %182 : vector<2x128xf32>
    %cst_86 = arith.constant 1.000000e+00 : f32
    %184 = vector.broadcast %cst_86 : f32 to vector<2x128xf32>
    %185 = arith.addf %184, %183 : vector<2x128xf32>
    %186 = arith.divf %184, %185 : vector<2x128xf32>
    %c0_87 = arith.constant 0 : index
    %c0_88 = arith.constant 0 : index
    %187 = vector.load %arg13[%c0_87, %c0_88] : memref<2x128xf32, #tpu.memory_space<vmem>>, vector<2x128xf32>
    %188 = arith.mulf %178, %187 : vector<2x128xf32>
    %189 = arith.mulf %172, %180 : vector<2x128xf32>
    %190 = arith.addf %188, %189 : vector<2x128xf32>
    %191 = math.tanh %190 : vector<2x128xf32>
    %192 = arith.mulf %186, %191 : vector<2x128xf32>
    %c0_89 = arith.constant 0 : index
    %c0_90 = arith.constant 0 : index
    %193 = vector.load %arg13[%c0_89, %c0_90] : memref<2x128xf32, #tpu.memory_space<vmem>>, vector<2x128xf32>
    tpu.vector_store %arg13[%c0_89, %c0_90], %190 {strides = array<i32>} : memref<2x128xf32, #tpu.memory_space<vmem>>, vector<2x128xf32>,
    %c0_91 = arith.constant 0 : index
    %c0_92 = arith.constant 0 : index
    %194 = vector.load %arg12[%c0_91, %c0_92] : memref<2x256xf32, #tpu.memory_space<vmem>>, vector<2x128xf32>
    tpu.vector_store %arg12[%c0_91, %c0_92], %192 {strides = array<i32>} : memref<2x256xf32, #tpu.memory_space<vmem>>, vector<2x128xf32>,
    %c0_93 = arith.constant 0 : index
    %c0_94 = arith.constant 0 : index
    %195 = vector.load %arg12[%c0_93, %c0_94] : memref<2x256xf32, #tpu.memory_space<vmem>>, vector<2x256xf32>
    %c0_95 = arith.constant 0 : index
    %c0_96 = arith.constant 0 : index
    %196 = vector.load %arg5[%c0_95, %c0_96] : memref<256x512xf32, #tpu.memory_space<vmem>>, vector<256x512xf32>
    %cst_97 = arith.constant dense<0.000000e+00> : vector<2x512xf32>
    %197 = tpu.matmul %195, %196, %cst_97 {dimension_numbers = #tpu.dot_dimension_numbers<[1], [0], [0], [1], [0, 0, 1, 1], [], []>} : vector<2x256xf32>, vector<256x512xf32>, vector<2x512xf32> -> vector<2x512xf32>
    %c0_98 = arith.constant 0 : index
    %c0_99 = arith.constant 0 : index
    %198 = vector.load %arg6[%c0_98, %c0_99] : memref<1x512xf32, #tpu.memory_space<vmem>>, vector<1x512xf32>
    %199 = vector.broadcast %198 : vector<1x512xf32> to vector<2x512xf32>
    %200 = arith.addf %197, %199 : vector<2x512xf32>
    %201 = vector.extract_strided_slice %200 {offsets = [0, 0], sizes = [2, 128], strides = [1, 1]} : vector<2x512xf32> to vector<2x128xf32>
    %202 = arith.negf %201 : vector<2x128xf32>
    %203 = math.exp %202 : vector<2x128xf32>
    %cst_100 = arith.constant 1.000000e+00 : f32
    %204 = vector.broadcast %cst_100 : f32 to vector<2x128xf32>
    %205 = arith.addf %204, %203 : vector<2x128xf32>
    %206 = arith.divf %204, %205 : vector<2x128xf32>
    %207 = vector.extract_strided_slice %200 {offsets = [0, 128], sizes = [2, 128], strides = [1, 1]} : vector<2x512xf32> to vector<2x128xf32>
    %208 = arith.negf %207 : vector<2x128xf32>
    %209 = math.exp %208 : vector<2x128xf32>
    %cst_101 = arith.constant 1.000000e+00 : f32
    %210 = vector.broadcast %cst_101 : f32 to vector<2x128xf32>
    %211 = arith.addf %210, %209 : vector<2x128xf32>
    %212 = arith.divf %210, %211 : vector<2x128xf32>
    %213 = vector.extract_strided_slice %200 {offsets = [0, 256], sizes = [2, 128], strides = [1, 1]} : vector<2x512xf32> to vector<2x128xf32>
    %214 = math.tanh %213 : vector<2x128xf32>
    %215 = vector.extract_strided_slice %200 {offsets = [0, 384], sizes = [2, 128], strides = [1, 1]} : vector<2x512xf32> to vector<2x128xf32>
    %216 = arith.negf %215 : vector<2x128xf32>
    %217 = math.exp %216 : vector<2x128xf32>
    %cst_102 = arith.constant 1.000000e+00 : f32
    %218 = vector.broadcast %cst_102 : f32 to vector<2x128xf32>
    %219 = arith.addf %218, %217 : vector<2x128xf32>
    %220 = arith.divf %218, %219 : vector<2x128xf32>
    %c0_103 = arith.constant 0 : index
    %c0_104 = arith.constant 0 : index
    %221 = vector.load %arg14[%c0_103, %c0_104] : memref<2x128xf32, #tpu.memory_space<vmem>>, vector<2x128xf32>
    %222 = arith.mulf %212, %221 : vector<2x128xf32>
    %223 = arith.mulf %206, %214 : vector<2x128xf32>
    %224 = arith.addf %222, %223 : vector<2x128xf32>
    %225 = math.tanh %224 : vector<2x128xf32>
    %226 = arith.mulf %220, %225 : vector<2x128xf32>
    %c0_105 = arith.constant 0 : index
    %c0_106 = arith.constant 0 : index
    %227 = vector.load %arg14[%c0_105, %c0_106] : memref<2x128xf32, #tpu.memory_space<vmem>>, vector<2x128xf32>
    tpu.vector_store %arg14[%c0_105, %c0_106], %224 {strides = array<i32>} : memref<2x128xf32, #tpu.memory_space<vmem>>, vector<2x128xf32>,
    %c0_107 = arith.constant 0 : index
    %c128_108 = arith.constant 128 : index
    %228 = vector.load %arg12[%c0_107, %c128_108] : memref<2x256xf32, #tpu.memory_space<vmem>>, vector<2x128xf32>
    tpu.vector_store %arg12[%c0_107, %c128_108], %226 {strides = array<i32>} : memref<2x256xf32, #tpu.memory_space<vmem>>, vector<2x128xf32>,
    %229 = arith.index_cast %c2_i32 : i32 to index
    %c0_109 = arith.constant 0 : index
    %c0_110 = arith.constant 0 : index
    %230 = vector.load %arg11[%229, %c0_109, %c0_110] : memref<8x2x128xf32, #tpu.memory_space<vmem>>, vector<1x2x128xf32>
    %231 = vector.shape_cast %230 : vector<1x2x128xf32> to vector<2x128xf32>
    %232 = vector.shape_cast %226 : vector<2x128xf32> to vector<1x2x128xf32>
    tpu.vector_store %arg11[%229, %c0_109, %c0_110], %232 {strides = array<i32>} : memref<8x2x128xf32, #tpu.memory_space<vmem>>, vector<1x2x128xf32>,
    %c3_i32 = arith.constant 3 : i32
    %233 = arith.index_cast %c3_i32 : i32 to index
    %c0_111 = arith.constant 0 : index
    %c0_112 = arith.constant 0 : index
    %234 = vector.load %arg10[%233, %c0_111, %c0_112] : memref<8x2x512xf32, #tpu.memory_space<vmem>>, vector<1x2x512xf32>
    %235 = vector.shape_cast %234 : vector<1x2x512xf32> to vector<2x512xf32>
    %c0_113 = arith.constant 0 : index
    %c0_114 = arith.constant 0 : index
    %236 = vector.load %arg12[%c0_113, %c0_114] : memref<2x256xf32, #tpu.memory_space<vmem>>, vector<2x128xf32>
    %c0_115 = arith.constant 0 : index
    %c0_116 = arith.constant 0 : index
    %237 = vector.load %arg3[%c0_115, %c0_116] : memref<128x512xf32, #tpu.memory_space<vmem>>, vector<128x512xf32>
    %cst_117 = arith.constant dense<0.000000e+00> : vector<2x512xf32>
    %238 = tpu.matmul %236, %237, %cst_117 {dimension_numbers = #tpu.dot_dimension_numbers<[1], [0], [0], [1], [0, 0, 1, 1], [], []>} : vector<2x128xf32>, vector<128x512xf32>, vector<2x512xf32> -> vector<2x512xf32>
    %239 = arith.addf %235, %238 : vector<2x512xf32>
    %240 = vector.extract_strided_slice %239 {offsets = [0, 0], sizes = [2, 128], strides = [1, 1]} : vector<2x512xf32> to vector<2x128xf32>
    %241 = arith.negf %240 : vector<2x128xf32>
    %242 = math.exp %241 : vector<2x128xf32>
    %cst_118 = arith.constant 1.000000e+00 : f32
    %243 = vector.broadcast %cst_118 : f32 to vector<2x128xf32>
    %244 = arith.addf %243, %242 : vector<2x128xf32>
    %245 = arith.divf %243, %244 : vector<2x128xf32>
    %246 = vector.extract_strided_slice %239 {offsets = [0, 128], sizes = [2, 128], strides = [1, 1]} : vector<2x512xf32> to vector<2x128xf32>
    %247 = arith.negf %246 : vector<2x128xf32>
    %248 = math.exp %247 : vector<2x128xf32>
    %cst_119 = arith.constant 1.000000e+00 : f32
    %249 = vector.broadcast %cst_119 : f32 to vector<2x128xf32>
    %250 = arith.addf %249, %248 : vector<2x128xf32>
    %251 = arith.divf %249, %250 : vector<2x128xf32>
    %252 = vector.extract_strided_slice %239 {offsets = [0, 256], sizes = [2, 128], strides = [1, 1]} : vector<2x512xf32> to vector<2x128xf32>
    %253 = math.tanh %252 : vector<2x128xf32>
    %254 = vector.extract_strided_slice %239 {offsets = [0, 384], sizes = [2, 128], strides = [1, 1]} : vector<2x512xf32> to vector<2x128xf32>
    %255 = arith.negf %254 : vector<2x128xf32>
    %256 = math.exp %255 : vector<2x128xf32>
    %cst_120 = arith.constant 1.000000e+00 : f32
    %257 = vector.broadcast %cst_120 : f32 to vector<2x128xf32>
    %258 = arith.addf %257, %256 : vector<2x128xf32>
    %259 = arith.divf %257, %258 : vector<2x128xf32>
    %c0_121 = arith.constant 0 : index
    %c0_122 = arith.constant 0 : index
    %260 = vector.load %arg13[%c0_121, %c0_122] : memref<2x128xf32, #tpu.memory_space<vmem>>, vector<2x128xf32>
    %261 = arith.mulf %251, %260 : vector<2x128xf32>
    %262 = arith.mulf %245, %253 : vector<2x128xf32>
    %263 = arith.addf %261, %262 : vector<2x128xf32>
    %264 = math.tanh %263 : vector<2x128xf32>
    %265 = arith.mulf %259, %264 : vector<2x128xf32>
    %c0_123 = arith.constant 0 : index
    %c0_124 = arith.constant 0 : index
    %266 = vector.load %arg13[%c0_123, %c0_124] : memref<2x128xf32, #tpu.memory_space<vmem>>, vector<2x128xf32>
    tpu.vector_store %arg13[%c0_123, %c0_124], %263 {strides = array<i32>} : memref<2x128xf32, #tpu.memory_space<vmem>>, vector<2x128xf32>,
    %c0_125 = arith.constant 0 : index
    %c0_126 = arith.constant 0 : index
    %267 = vector.load %arg12[%c0_125, %c0_126] : memref<2x256xf32, #tpu.memory_space<vmem>>, vector<2x128xf32>
    tpu.vector_store %arg12[%c0_125, %c0_126], %265 {strides = array<i32>} : memref<2x256xf32, #tpu.memory_space<vmem>>, vector<2x128xf32>,
    %c0_127 = arith.constant 0 : index
    %c0_128 = arith.constant 0 : index
    %268 = vector.load %arg12[%c0_127, %c0_128] : memref<2x256xf32, #tpu.memory_space<vmem>>, vector<2x256xf32>
    %c0_129 = arith.constant 0 : index
    %c0_130 = arith.constant 0 : index
    %269 = vector.load %arg5[%c0_129, %c0_130] : memref<256x512xf32, #tpu.memory_space<vmem>>, vector<256x512xf32>
    %cst_131 = arith.constant dense<0.000000e+00> : vector<2x512xf32>
    %270 = tpu.matmul %268, %269, %cst_131 {dimension_numbers = #tpu.dot_dimension_numbers<[1], [0], [0], [1], [0, 0, 1, 1], [], []>} : vector<2x256xf32>, vector<256x512xf32>, vector<2x512xf32> -> vector<2x512xf32>
    %c0_132 = arith.constant 0 : index
    %c0_133 = arith.constant 0 : index
    %271 = vector.load %arg6[%c0_132, %c0_133] : memref<1x512xf32, #tpu.memory_space<vmem>>, vector<1x512xf32>
    %272 = vector.broadcast %271 : vector<1x512xf32> to vector<2x512xf32>
    %273 = arith.addf %270, %272 : vector<2x512xf32>
    %274 = vector.extract_strided_slice %273 {offsets = [0, 0], sizes = [2, 128], strides = [1, 1]} : vector<2x512xf32> to vector<2x128xf32>
    %275 = arith.negf %274 : vector<2x128xf32>
    %276 = math.exp %275 : vector<2x128xf32>
    %cst_134 = arith.constant 1.000000e+00 : f32
    %277 = vector.broadcast %cst_134 : f32 to vector<2x128xf32>
    %278 = arith.addf %277, %276 : vector<2x128xf32>
    %279 = arith.divf %277, %278 : vector<2x128xf32>
    %280 = vector.extract_strided_slice %273 {offsets = [0, 128], sizes = [2, 128], strides = [1, 1]} : vector<2x512xf32> to vector<2x128xf32>
    %281 = arith.negf %280 : vector<2x128xf32>
    %282 = math.exp %281 : vector<2x128xf32>
    %cst_135 = arith.constant 1.000000e+00 : f32
    %283 = vector.broadcast %cst_135 : f32 to vector<2x128xf32>
    %284 = arith.addf %283, %282 : vector<2x128xf32>
    %285 = arith.divf %283, %284 : vector<2x128xf32>
    %286 = vector.extract_strided_slice %273 {offsets = [0, 256], sizes = [2, 128], strides = [1, 1]} : vector<2x512xf32> to vector<2x128xf32>
    %287 = math.tanh %286 : vector<2x128xf32>
    %288 = vector.extract_strided_slice %273 {offsets = [0, 384], sizes = [2, 128], strides = [1, 1]} : vector<2x512xf32> to vector<2x128xf32>
    %289 = arith.negf %288 : vector<2x128xf32>
    %290 = math.exp %289 : vector<2x128xf32>
    %cst_136 = arith.constant 1.000000e+00 : f32
    %291 = vector.broadcast %cst_136 : f32 to vector<2x128xf32>
    %292 = arith.addf %291, %290 : vector<2x128xf32>
    %293 = arith.divf %291, %292 : vector<2x128xf32>
    %c0_137 = arith.constant 0 : index
    %c0_138 = arith.constant 0 : index
    %294 = vector.load %arg14[%c0_137, %c0_138] : memref<2x128xf32, #tpu.memory_space<vmem>>, vector<2x128xf32>
    %295 = arith.mulf %285, %294 : vector<2x128xf32>
    %296 = arith.mulf %279, %287 : vector<2x128xf32>
    %297 = arith.addf %295, %296 : vector<2x128xf32>
    %298 = math.tanh %297 : vector<2x128xf32>
    %299 = arith.mulf %293, %298 : vector<2x128xf32>
    %c0_139 = arith.constant 0 : index
    %c0_140 = arith.constant 0 : index
    %300 = vector.load %arg14[%c0_139, %c0_140] : memref<2x128xf32, #tpu.memory_space<vmem>>, vector<2x128xf32>
    tpu.vector_store %arg14[%c0_139, %c0_140], %297 {strides = array<i32>} : memref<2x128xf32, #tpu.memory_space<vmem>>, vector<2x128xf32>,
    %c0_141 = arith.constant 0 : index
    %c128_142 = arith.constant 128 : index
    %301 = vector.load %arg12[%c0_141, %c128_142] : memref<2x256xf32, #tpu.memory_space<vmem>>, vector<2x128xf32>
    tpu.vector_store %arg12[%c0_141, %c128_142], %299 {strides = array<i32>} : memref<2x256xf32, #tpu.memory_space<vmem>>, vector<2x128xf32>,
    %302 = arith.index_cast %c3_i32 : i32 to index
    %c0_143 = arith.constant 0 : index
    %c0_144 = arith.constant 0 : index
    %303 = vector.load %arg11[%302, %c0_143, %c0_144] : memref<8x2x128xf32, #tpu.memory_space<vmem>>, vector<1x2x128xf32>
    %304 = vector.shape_cast %303 : vector<1x2x128xf32> to vector<2x128xf32>
    %305 = vector.shape_cast %299 : vector<2x128xf32> to vector<1x2x128xf32>
    tpu.vector_store %arg11[%302, %c0_143, %c0_144], %305 {strides = array<i32>} : memref<8x2x128xf32, #tpu.memory_space<vmem>>, vector<1x2x128xf32>,
    %c4_i32 = arith.constant 4 : i32
    %306 = arith.index_cast %c4_i32 : i32 to index
    %c0_145 = arith.constant 0 : index
    %c0_146 = arith.constant 0 : index
    %307 = vector.load %arg10[%306, %c0_145, %c0_146] : memref<8x2x512xf32, #tpu.memory_space<vmem>>, vector<1x2x512xf32>
    %308 = vector.shape_cast %307 : vector<1x2x512xf32> to vector<2x512xf32>
    %c0_147 = arith.constant 0 : index
    %c0_148 = arith.constant 0 : index
    %309 = vector.load %arg12[%c0_147, %c0_148] : memref<2x256xf32, #tpu.memory_space<vmem>>, vector<2x128xf32>
    %c0_149 = arith.constant 0 : index
    %c0_150 = arith.constant 0 : index
    %310 = vector.load %arg3[%c0_149, %c0_150] : memref<128x512xf32, #tpu.memory_space<vmem>>, vector<128x512xf32>
    %cst_151 = arith.constant dense<0.000000e+00> : vector<2x512xf32>
    %311 = tpu.matmul %309, %310, %cst_151 {dimension_numbers = #tpu.dot_dimension_numbers<[1], [0], [0], [1], [0, 0, 1, 1], [], []>} : vector<2x128xf32>, vector<128x512xf32>, vector<2x512xf32> -> vector<2x512xf32>
    %312 = arith.addf %308, %311 : vector<2x512xf32>
    %313 = vector.extract_strided_slice %312 {offsets = [0, 0], sizes = [2, 128], strides = [1, 1]} : vector<2x512xf32> to vector<2x128xf32>
    %314 = arith.negf %313 : vector<2x128xf32>
    %315 = math.exp %314 : vector<2x128xf32>
    %cst_152 = arith.constant 1.000000e+00 : f32
    %316 = vector.broadcast %cst_152 : f32 to vector<2x128xf32>
    %317 = arith.addf %316, %315 : vector<2x128xf32>
    %318 = arith.divf %316, %317 : vector<2x128xf32>
    %319 = vector.extract_strided_slice %312 {offsets = [0, 128], sizes = [2, 128], strides = [1, 1]} : vector<2x512xf32> to vector<2x128xf32>
    %320 = arith.negf %319 : vector<2x128xf32>
    %321 = math.exp %320 : vector<2x128xf32>
    %cst_153 = arith.constant 1.000000e+00 : f32
    %322 = vector.broadcast %cst_153 : f32 to vector<2x128xf32>
    %323 = arith.addf %322, %321 : vector<2x128xf32>
    %324 = arith.divf %322, %323 : vector<2x128xf32>
    %325 = vector.extract_strided_slice %312 {offsets = [0, 256], sizes = [2, 128], strides = [1, 1]} : vector<2x512xf32> to vector<2x128xf32>
    %326 = math.tanh %325 : vector<2x128xf32>
    %327 = vector.extract_strided_slice %312 {offsets = [0, 384], sizes = [2, 128], strides = [1, 1]} : vector<2x512xf32> to vector<2x128xf32>
    %328 = arith.negf %327 : vector<2x128xf32>
    %329 = math.exp %328 : vector<2x128xf32>
    %cst_154 = arith.constant 1.000000e+00 : f32
    %330 = vector.broadcast %cst_154 : f32 to vector<2x128xf32>
    %331 = arith.addf %330, %329 : vector<2x128xf32>
    %332 = arith.divf %330, %331 : vector<2x128xf32>
    %c0_155 = arith.constant 0 : index
    %c0_156 = arith.constant 0 : index
    %333 = vector.load %arg13[%c0_155, %c0_156] : memref<2x128xf32, #tpu.memory_space<vmem>>, vector<2x128xf32>
    %334 = arith.mulf %324, %333 : vector<2x128xf32>
    %335 = arith.mulf %318, %326 : vector<2x128xf32>
    %336 = arith.addf %334, %335 : vector<2x128xf32>
    %337 = math.tanh %336 : vector<2x128xf32>
    %338 = arith.mulf %332, %337 : vector<2x128xf32>
    %c0_157 = arith.constant 0 : index
    %c0_158 = arith.constant 0 : index
    %339 = vector.load %arg13[%c0_157, %c0_158] : memref<2x128xf32, #tpu.memory_space<vmem>>, vector<2x128xf32>
    tpu.vector_store %arg13[%c0_157, %c0_158], %336 {strides = array<i32>} : memref<2x128xf32, #tpu.memory_space<vmem>>, vector<2x128xf32>,
    %c0_159 = arith.constant 0 : index
    %c0_160 = arith.constant 0 : index
    %340 = vector.load %arg12[%c0_159, %c0_160] : memref<2x256xf32, #tpu.memory_space<vmem>>, vector<2x128xf32>
    tpu.vector_store %arg12[%c0_159, %c0_160], %338 {strides = array<i32>} : memref<2x256xf32, #tpu.memory_space<vmem>>, vector<2x128xf32>,
    %c0_161 = arith.constant 0 : index
    %c0_162 = arith.constant 0 : index
    %341 = vector.load %arg12[%c0_161, %c0_162] : memref<2x256xf32, #tpu.memory_space<vmem>>, vector<2x256xf32>
    %c0_163 = arith.constant 0 : index
    %c0_164 = arith.constant 0 : index
    %342 = vector.load %arg5[%c0_163, %c0_164] : memref<256x512xf32, #tpu.memory_space<vmem>>, vector<256x512xf32>
    %cst_165 = arith.constant dense<0.000000e+00> : vector<2x512xf32>
    %343 = tpu.matmul %341, %342, %cst_165 {dimension_numbers = #tpu.dot_dimension_numbers<[1], [0], [0], [1], [0, 0, 1, 1], [], []>} : vector<2x256xf32>, vector<256x512xf32>, vector<2x512xf32> -> vector<2x512xf32>
    %c0_166 = arith.constant 0 : index
    %c0_167 = arith.constant 0 : index
    %344 = vector.load %arg6[%c0_166, %c0_167] : memref<1x512xf32, #tpu.memory_space<vmem>>, vector<1x512xf32>
    %345 = vector.broadcast %344 : vector<1x512xf32> to vector<2x512xf32>
    %346 = arith.addf %343, %345 : vector<2x512xf32>
    %347 = vector.extract_strided_slice %346 {offsets = [0, 0], sizes = [2, 128], strides = [1, 1]} : vector<2x512xf32> to vector<2x128xf32>
    %348 = arith.negf %347 : vector<2x128xf32>
    %349 = math.exp %348 : vector<2x128xf32>
    %cst_168 = arith.constant 1.000000e+00 : f32
    %350 = vector.broadcast %cst_168 : f32 to vector<2x128xf32>
    %351 = arith.addf %350, %349 : vector<2x128xf32>
    %352 = arith.divf %350, %351 : vector<2x128xf32>
    %353 = vector.extract_strided_slice %346 {offsets = [0, 128], sizes = [2, 128], strides = [1, 1]} : vector<2x512xf32> to vector<2x128xf32>
    %354 = arith.negf %353 : vector<2x128xf32>
    %355 = math.exp %354 : vector<2x128xf32>
    %cst_169 = arith.constant 1.000000e+00 : f32
    %356 = vector.broadcast %cst_169 : f32 to vector<2x128xf32>
    %357 = arith.addf %356, %355 : vector<2x128xf32>
    %358 = arith.divf %356, %357 : vector<2x128xf32>
    %359 = vector.extract_strided_slice %346 {offsets = [0, 256], sizes = [2, 128], strides = [1, 1]} : vector<2x512xf32> to vector<2x128xf32>
    %360 = math.tanh %359 : vector<2x128xf32>
    %361 = vector.extract_strided_slice %346 {offsets = [0, 384], sizes = [2, 128], strides = [1, 1]} : vector<2x512xf32> to vector<2x128xf32>
    %362 = arith.negf %361 : vector<2x128xf32>
    %363 = math.exp %362 : vector<2x128xf32>
    %cst_170 = arith.constant 1.000000e+00 : f32
    %364 = vector.broadcast %cst_170 : f32 to vector<2x128xf32>
    %365 = arith.addf %364, %363 : vector<2x128xf32>
    %366 = arith.divf %364, %365 : vector<2x128xf32>
    %c0_171 = arith.constant 0 : index
    %c0_172 = arith.constant 0 : index
    %367 = vector.load %arg14[%c0_171, %c0_172] : memref<2x128xf32, #tpu.memory_space<vmem>>, vector<2x128xf32>
    %368 = arith.mulf %358, %367 : vector<2x128xf32>
    %369 = arith.mulf %352, %360 : vector<2x128xf32>
    %370 = arith.addf %368, %369 : vector<2x128xf32>
    %371 = math.tanh %370 : vector<2x128xf32>
    %372 = arith.mulf %366, %371 : vector<2x128xf32>
    %c0_173 = arith.constant 0 : index
    %c0_174 = arith.constant 0 : index
    %373 = vector.load %arg14[%c0_173, %c0_174] : memref<2x128xf32, #tpu.memory_space<vmem>>, vector<2x128xf32>
    tpu.vector_store %arg14[%c0_173, %c0_174], %370 {strides = array<i32>} : memref<2x128xf32, #tpu.memory_space<vmem>>, vector<2x128xf32>,
    %c0_175 = arith.constant 0 : index
    %c128_176 = arith.constant 128 : index
    %374 = vector.load %arg12[%c0_175, %c128_176] : memref<2x256xf32, #tpu.memory_space<vmem>>, vector<2x128xf32>
    tpu.vector_store %arg12[%c0_175, %c128_176], %372 {strides = array<i32>} : memref<2x256xf32, #tpu.memory_space<vmem>>, vector<2x128xf32>,
    %375 = arith.index_cast %c4_i32 : i32 to index
    %c0_177 = arith.constant 0 : index
    %c0_178 = arith.constant 0 : index
    %376 = vector.load %arg11[%375, %c0_177, %c0_178] : memref<8x2x128xf32, #tpu.memory_space<vmem>>, vector<1x2x128xf32>
    %377 = vector.shape_cast %376 : vector<1x2x128xf32> to vector<2x128xf32>
    %378 = vector.shape_cast %372 : vector<2x128xf32> to vector<1x2x128xf32>
    tpu.vector_store %arg11[%375, %c0_177, %c0_178], %378 {strides = array<i32>} : memref<8x2x128xf32, #tpu.memory_space<vmem>>, vector<1x2x128xf32>,
    %c5_i32 = arith.constant 5 : i32
    %379 = arith.index_cast %c5_i32 : i32 to index
    %c0_179 = arith.constant 0 : index
    %c0_180 = arith.constant 0 : index
    %380 = vector.load %arg10[%379, %c0_179, %c0_180] : memref<8x2x512xf32, #tpu.memory_space<vmem>>, vector<1x2x512xf32>
    %381 = vector.shape_cast %380 : vector<1x2x512xf32> to vector<2x512xf32>
    %c0_181 = arith.constant 0 : index
    %c0_182 = arith.constant 0 : index
    %382 = vector.load %arg12[%c0_181, %c0_182] : memref<2x256xf32, #tpu.memory_space<vmem>>, vector<2x128xf32>
    %c0_183 = arith.constant 0 : index
    %c0_184 = arith.constant 0 : index
    %383 = vector.load %arg3[%c0_183, %c0_184] : memref<128x512xf32, #tpu.memory_space<vmem>>, vector<128x512xf32>
    %cst_185 = arith.constant dense<0.000000e+00> : vector<2x512xf32>
    %384 = tpu.matmul %382, %383, %cst_185 {dimension_numbers = #tpu.dot_dimension_numbers<[1], [0], [0], [1], [0, 0, 1, 1], [], []>} : vector<2x128xf32>, vector<128x512xf32>, vector<2x512xf32> -> vector<2x512xf32>
    %385 = arith.addf %381, %384 : vector<2x512xf32>
    %386 = vector.extract_strided_slice %385 {offsets = [0, 0], sizes = [2, 128], strides = [1, 1]} : vector<2x512xf32> to vector<2x128xf32>
    %387 = arith.negf %386 : vector<2x128xf32>
    %388 = math.exp %387 : vector<2x128xf32>
    %cst_186 = arith.constant 1.000000e+00 : f32
    %389 = vector.broadcast %cst_186 : f32 to vector<2x128xf32>
    %390 = arith.addf %389, %388 : vector<2x128xf32>
    %391 = arith.divf %389, %390 : vector<2x128xf32>
    %392 = vector.extract_strided_slice %385 {offsets = [0, 128], sizes = [2, 128], strides = [1, 1]} : vector<2x512xf32> to vector<2x128xf32>
    %393 = arith.negf %392 : vector<2x128xf32>
    %394 = math.exp %393 : vector<2x128xf32>
    %cst_187 = arith.constant 1.000000e+00 : f32
    %395 = vector.broadcast %cst_187 : f32 to vector<2x128xf32>
    %396 = arith.addf %395, %394 : vector<2x128xf32>
    %397 = arith.divf %395, %396 : vector<2x128xf32>
    %398 = vector.extract_strided_slice %385 {offsets = [0, 256], sizes = [2, 128], strides = [1, 1]} : vector<2x512xf32> to vector<2x128xf32>
    %399 = math.tanh %398 : vector<2x128xf32>
    %400 = vector.extract_strided_slice %385 {offsets = [0, 384], sizes = [2, 128], strides = [1, 1]} : vector<2x512xf32> to vector<2x128xf32>
    %401 = arith.negf %400 : vector<2x128xf32>
    %402 = math.exp %401 : vector<2x128xf32>
    %cst_188 = arith.constant 1.000000e+00 : f32
    %403 = vector.broadcast %cst_188 : f32 to vector<2x128xf32>
    %404 = arith.addf %403, %402 : vector<2x128xf32>
    %405 = arith.divf %403, %404 : vector<2x128xf32>
    %c0_189 = arith.constant 0 : index
    %c0_190 = arith.constant 0 : index
    %406 = vector.load %arg13[%c0_189, %c0_190] : memref<2x128xf32, #tpu.memory_space<vmem>>, vector<2x128xf32>
    %407 = arith.mulf %397, %406 : vector<2x128xf32>
    %408 = arith.mulf %391, %399 : vector<2x128xf32>
    %409 = arith.addf %407, %408 : vector<2x128xf32>
    %410 = math.tanh %409 : vector<2x128xf32>
    %411 = arith.mulf %405, %410 : vector<2x128xf32>
    %c0_191 = arith.constant 0 : index
    %c0_192 = arith.constant 0 : index
    %412 = vector.load %arg13[%c0_191, %c0_192] : memref<2x128xf32, #tpu.memory_space<vmem>>, vector<2x128xf32>
    tpu.vector_store %arg13[%c0_191, %c0_192], %409 {strides = array<i32>} : memref<2x128xf32, #tpu.memory_space<vmem>>, vector<2x128xf32>,
    %c0_193 = arith.constant 0 : index
    %c0_194 = arith.constant 0 : index
    %413 = vector.load %arg12[%c0_193, %c0_194] : memref<2x256xf32, #tpu.memory_space<vmem>>, vector<2x128xf32>
    tpu.vector_store %arg12[%c0_193, %c0_194], %411 {strides = array<i32>} : memref<2x256xf32, #tpu.memory_space<vmem>>, vector<2x128xf32>,
    %c0_195 = arith.constant 0 : index
    %c0_196 = arith.constant 0 : index
    %414 = vector.load %arg12[%c0_195, %c0_196] : memref<2x256xf32, #tpu.memory_space<vmem>>, vector<2x256xf32>
    %c0_197 = arith.constant 0 : index
    %c0_198 = arith.constant 0 : index
    %415 = vector.load %arg5[%c0_197, %c0_198] : memref<256x512xf32, #tpu.memory_space<vmem>>, vector<256x512xf32>
    %cst_199 = arith.constant dense<0.000000e+00> : vector<2x512xf32>
    %416 = tpu.matmul %414, %415, %cst_199 {dimension_numbers = #tpu.dot_dimension_numbers<[1], [0], [0], [1], [0, 0, 1, 1], [], []>} : vector<2x256xf32>, vector<256x512xf32>, vector<2x512xf32> -> vector<2x512xf32>
    %c0_200 = arith.constant 0 : index
    %c0_201 = arith.constant 0 : index
    %417 = vector.load %arg6[%c0_200, %c0_201] : memref<1x512xf32, #tpu.memory_space<vmem>>, vector<1x512xf32>
    %418 = vector.broadcast %417 : vector<1x512xf32> to vector<2x512xf32>
    %419 = arith.addf %416, %418 : vector<2x512xf32>
    %420 = vector.extract_strided_slice %419 {offsets = [0, 0], sizes = [2, 128], strides = [1, 1]} : vector<2x512xf32> to vector<2x128xf32>
    %421 = arith.negf %420 : vector<2x128xf32>
    %422 = math.exp %421 : vector<2x128xf32>
    %cst_202 = arith.constant 1.000000e+00 : f32
    %423 = vector.broadcast %cst_202 : f32 to vector<2x128xf32>
    %424 = arith.addf %423, %422 : vector<2x128xf32>
    %425 = arith.divf %423, %424 : vector<2x128xf32>
    %426 = vector.extract_strided_slice %419 {offsets = [0, 128], sizes = [2, 128], strides = [1, 1]} : vector<2x512xf32> to vector<2x128xf32>
    %427 = arith.negf %426 : vector<2x128xf32>
    %428 = math.exp %427 : vector<2x128xf32>
    %cst_203 = arith.constant 1.000000e+00 : f32
    %429 = vector.broadcast %cst_203 : f32 to vector<2x128xf32>
    %430 = arith.addf %429, %428 : vector<2x128xf32>
    %431 = arith.divf %429, %430 : vector<2x128xf32>
    %432 = vector.extract_strided_slice %419 {offsets = [0, 256], sizes = [2, 128], strides = [1, 1]} : vector<2x512xf32> to vector<2x128xf32>
    %433 = math.tanh %432 : vector<2x128xf32>
    %434 = vector.extract_strided_slice %419 {offsets = [0, 384], sizes = [2, 128], strides = [1, 1]} : vector<2x512xf32> to vector<2x128xf32>
    %435 = arith.negf %434 : vector<2x128xf32>
    %436 = math.exp %435 : vector<2x128xf32>
    %cst_204 = arith.constant 1.000000e+00 : f32
    %437 = vector.broadcast %cst_204 : f32 to vector<2x128xf32>
    %438 = arith.addf %437, %436 : vector<2x128xf32>
    %439 = arith.divf %437, %438 : vector<2x128xf32>
    %c0_205 = arith.constant 0 : index
    %c0_206 = arith.constant 0 : index
    %440 = vector.load %arg14[%c0_205, %c0_206] : memref<2x128xf32, #tpu.memory_space<vmem>>, vector<2x128xf32>
    %441 = arith.mulf %431, %440 : vector<2x128xf32>
    %442 = arith.mulf %425, %433 : vector<2x128xf32>
    %443 = arith.addf %441, %442 : vector<2x128xf32>
    %444 = math.tanh %443 : vector<2x128xf32>
    %445 = arith.mulf %439, %444 : vector<2x128xf32>
    %c0_207 = arith.constant 0 : index
    %c0_208 = arith.constant 0 : index
    %446 = vector.load %arg14[%c0_207, %c0_208] : memref<2x128xf32, #tpu.memory_space<vmem>>, vector<2x128xf32>
    tpu.vector_store %arg14[%c0_207, %c0_208], %443 {strides = array<i32>} : memref<2x128xf32, #tpu.memory_space<vmem>>, vector<2x128xf32>,
    %c0_209 = arith.constant 0 : index
    %c128_210 = arith.constant 128 : index
    %447 = vector.load %arg12[%c0_209, %c128_210] : memref<2x256xf32, #tpu.memory_space<vmem>>, vector<2x128xf32>
    tpu.vector_store %arg12[%c0_209, %c128_210], %445 {strides = array<i32>} : memref<2x256xf32, #tpu.memory_space<vmem>>, vector<2x128xf32>,
    %448 = arith.index_cast %c5_i32 : i32 to index
    %c0_211 = arith.constant 0 : index
    %c0_212 = arith.constant 0 : index
    %449 = vector.load %arg11[%448, %c0_211, %c0_212] : memref<8x2x128xf32, #tpu.memory_space<vmem>>, vector<1x2x128xf32>
    %450 = vector.shape_cast %449 : vector<1x2x128xf32> to vector<2x128xf32>
    %451 = vector.shape_cast %445 : vector<2x128xf32> to vector<1x2x128xf32>
    tpu.vector_store %arg11[%448, %c0_211, %c0_212], %451 {strides = array<i32>} : memref<8x2x128xf32, #tpu.memory_space<vmem>>, vector<1x2x128xf32>,
    %c6_i32 = arith.constant 6 : i32
    %452 = arith.index_cast %c6_i32 : i32 to index
    %c0_213 = arith.constant 0 : index
    %c0_214 = arith.constant 0 : index
    %453 = vector.load %arg10[%452, %c0_213, %c0_214] : memref<8x2x512xf32, #tpu.memory_space<vmem>>, vector<1x2x512xf32>
    %454 = vector.shape_cast %453 : vector<1x2x512xf32> to vector<2x512xf32>
    %c0_215 = arith.constant 0 : index
    %c0_216 = arith.constant 0 : index
    %455 = vector.load %arg12[%c0_215, %c0_216] : memref<2x256xf32, #tpu.memory_space<vmem>>, vector<2x128xf32>
    %c0_217 = arith.constant 0 : index
    %c0_218 = arith.constant 0 : index
    %456 = vector.load %arg3[%c0_217, %c0_218] : memref<128x512xf32, #tpu.memory_space<vmem>>, vector<128x512xf32>
    %cst_219 = arith.constant dense<0.000000e+00> : vector<2x512xf32>
    %457 = tpu.matmul %455, %456, %cst_219 {dimension_numbers = #tpu.dot_dimension_numbers<[1], [0], [0], [1], [0, 0, 1, 1], [], []>} : vector<2x128xf32>, vector<128x512xf32>, vector<2x512xf32> -> vector<2x512xf32>
    %458 = arith.addf %454, %457 : vector<2x512xf32>
    %459 = vector.extract_strided_slice %458 {offsets = [0, 0], sizes = [2, 128], strides = [1, 1]} : vector<2x512xf32> to vector<2x128xf32>
    %460 = arith.negf %459 : vector<2x128xf32>
    %461 = math.exp %460 : vector<2x128xf32>
    %cst_220 = arith.constant 1.000000e+00 : f32
    %462 = vector.broadcast %cst_220 : f32 to vector<2x128xf32>
    %463 = arith.addf %462, %461 : vector<2x128xf32>
    %464 = arith.divf %462, %463 : vector<2x128xf32>
    %465 = vector.extract_strided_slice %458 {offsets = [0, 128], sizes = [2, 128], strides = [1, 1]} : vector<2x512xf32> to vector<2x128xf32>
    %466 = arith.negf %465 : vector<2x128xf32>
    %467 = math.exp %466 : vector<2x128xf32>
    %cst_221 = arith.constant 1.000000e+00 : f32
    %468 = vector.broadcast %cst_221 : f32 to vector<2x128xf32>
    %469 = arith.addf %468, %467 : vector<2x128xf32>
    %470 = arith.divf %468, %469 : vector<2x128xf32>
    %471 = vector.extract_strided_slice %458 {offsets = [0, 256], sizes = [2, 128], strides = [1, 1]} : vector<2x512xf32> to vector<2x128xf32>
    %472 = math.tanh %471 : vector<2x128xf32>
    %473 = vector.extract_strided_slice %458 {offsets = [0, 384], sizes = [2, 128], strides = [1, 1]} : vector<2x512xf32> to vector<2x128xf32>
    %474 = arith.negf %473 : vector<2x128xf32>
    %475 = math.exp %474 : vector<2x128xf32>
    %cst_222 = arith.constant 1.000000e+00 : f32
    %476 = vector.broadcast %cst_222 : f32 to vector<2x128xf32>
    %477 = arith.addf %476, %475 : vector<2x128xf32>
    %478 = arith.divf %476, %477 : vector<2x128xf32>
    %c0_223 = arith.constant 0 : index
    %c0_224 = arith.constant 0 : index
    %479 = vector.load %arg13[%c0_223, %c0_224] : memref<2x128xf32, #tpu.memory_space<vmem>>, vector<2x128xf32>
    %480 = arith.mulf %470, %479 : vector<2x128xf32>
    %481 = arith.mulf %464, %472 : vector<2x128xf32>
    %482 = arith.addf %480, %481 : vector<2x128xf32>
    %483 = math.tanh %482 : vector<2x128xf32>
    %484 = arith.mulf %478, %483 : vector<2x128xf32>
    %c0_225 = arith.constant 0 : index
    %c0_226 = arith.constant 0 : index
    %485 = vector.load %arg13[%c0_225, %c0_226] : memref<2x128xf32, #tpu.memory_space<vmem>>, vector<2x128xf32>
    tpu.vector_store %arg13[%c0_225, %c0_226], %482 {strides = array<i32>} : memref<2x128xf32, #tpu.memory_space<vmem>>, vector<2x128xf32>,
    %c0_227 = arith.constant 0 : index
    %c0_228 = arith.constant 0 : index
    %486 = vector.load %arg12[%c0_227, %c0_228] : memref<2x256xf32, #tpu.memory_space<vmem>>, vector<2x128xf32>
    tpu.vector_store %arg12[%c0_227, %c0_228], %484 {strides = array<i32>} : memref<2x256xf32, #tpu.memory_space<vmem>>, vector<2x128xf32>,
    %c0_229 = arith.constant 0 : index
    %c0_230 = arith.constant 0 : index
    %487 = vector.load %arg12[%c0_229, %c0_230] : memref<2x256xf32, #tpu.memory_space<vmem>>, vector<2x256xf32>
    %c0_231 = arith.constant 0 : index
    %c0_232 = arith.constant 0 : index
    %488 = vector.load %arg5[%c0_231, %c0_232] : memref<256x512xf32, #tpu.memory_space<vmem>>, vector<256x512xf32>
    %cst_233 = arith.constant dense<0.000000e+00> : vector<2x512xf32>
    %489 = tpu.matmul %487, %488, %cst_233 {dimension_numbers = #tpu.dot_dimension_numbers<[1], [0], [0], [1], [0, 0, 1, 1], [], []>} : vector<2x256xf32>, vector<256x512xf32>, vector<2x512xf32> -> vector<2x512xf32>
    %c0_234 = arith.constant 0 : index
    %c0_235 = arith.constant 0 : index
    %490 = vector.load %arg6[%c0_234, %c0_235] : memref<1x512xf32, #tpu.memory_space<vmem>>, vector<1x512xf32>
    %491 = vector.broadcast %490 : vector<1x512xf32> to vector<2x512xf32>
    %492 = arith.addf %489, %491 : vector<2x512xf32>
    %493 = vector.extract_strided_slice %492 {offsets = [0, 0], sizes = [2, 128], strides = [1, 1]} : vector<2x512xf32> to vector<2x128xf32>
    %494 = arith.negf %493 : vector<2x128xf32>
    %495 = math.exp %494 : vector<2x128xf32>
    %cst_236 = arith.constant 1.000000e+00 : f32
    %496 = vector.broadcast %cst_236 : f32 to vector<2x128xf32>
    %497 = arith.addf %496, %495 : vector<2x128xf32>
    %498 = arith.divf %496, %497 : vector<2x128xf32>
    %499 = vector.extract_strided_slice %492 {offsets = [0, 128], sizes = [2, 128], strides = [1, 1]} : vector<2x512xf32> to vector<2x128xf32>
    %500 = arith.negf %499 : vector<2x128xf32>
    %501 = math.exp %500 : vector<2x128xf32>
    %cst_237 = arith.constant 1.000000e+00 : f32
    %502 = vector.broadcast %cst_237 : f32 to vector<2x128xf32>
    %503 = arith.addf %502, %501 : vector<2x128xf32>
    %504 = arith.divf %502, %503 : vector<2x128xf32>
    %505 = vector.extract_strided_slice %492 {offsets = [0, 256], sizes = [2, 128], strides = [1, 1]} : vector<2x512xf32> to vector<2x128xf32>
    %506 = math.tanh %505 : vector<2x128xf32>
    %507 = vector.extract_strided_slice %492 {offsets = [0, 384], sizes = [2, 128], strides = [1, 1]} : vector<2x512xf32> to vector<2x128xf32>
    %508 = arith.negf %507 : vector<2x128xf32>
    %509 = math.exp %508 : vector<2x128xf32>
    %cst_238 = arith.constant 1.000000e+00 : f32
    %510 = vector.broadcast %cst_238 : f32 to vector<2x128xf32>
    %511 = arith.addf %510, %509 : vector<2x128xf32>
    %512 = arith.divf %510, %511 : vector<2x128xf32>
    %c0_239 = arith.constant 0 : index
    %c0_240 = arith.constant 0 : index
    %513 = vector.load %arg14[%c0_239, %c0_240] : memref<2x128xf32, #tpu.memory_space<vmem>>, vector<2x128xf32>
    %514 = arith.mulf %504, %513 : vector<2x128xf32>
    %515 = arith.mulf %498, %506 : vector<2x128xf32>
    %516 = arith.addf %514, %515 : vector<2x128xf32>
    %517 = math.tanh %516 : vector<2x128xf32>
    %518 = arith.mulf %512, %517 : vector<2x128xf32>
    %c0_241 = arith.constant 0 : index
    %c0_242 = arith.constant 0 : index
    %519 = vector.load %arg14[%c0_241, %c0_242] : memref<2x128xf32, #tpu.memory_space<vmem>>, vector<2x128xf32>
    tpu.vector_store %arg14[%c0_241, %c0_242], %516 {strides = array<i32>} : memref<2x128xf32, #tpu.memory_space<vmem>>, vector<2x128xf32>,
    %c0_243 = arith.constant 0 : index
    %c128_244 = arith.constant 128 : index
    %520 = vector.load %arg12[%c0_243, %c128_244] : memref<2x256xf32, #tpu.memory_space<vmem>>, vector<2x128xf32>
    tpu.vector_store %arg12[%c0_243, %c128_244], %518 {strides = array<i32>} : memref<2x256xf32, #tpu.memory_space<vmem>>, vector<2x128xf32>,
    %521 = arith.index_cast %c6_i32 : i32 to index
    %c0_245 = arith.constant 0 : index
    %c0_246 = arith.constant 0 : index
    %522 = vector.load %arg11[%521, %c0_245, %c0_246] : memref<8x2x128xf32, #tpu.memory_space<vmem>>, vector<1x2x128xf32>
    %523 = vector.shape_cast %522 : vector<1x2x128xf32> to vector<2x128xf32>
    %524 = vector.shape_cast %518 : vector<2x128xf32> to vector<1x2x128xf32>
    tpu.vector_store %arg11[%521, %c0_245, %c0_246], %524 {strides = array<i32>} : memref<8x2x128xf32, #tpu.memory_space<vmem>>, vector<1x2x128xf32>,
    %c7_i32 = arith.constant 7 : i32
    %525 = arith.index_cast %c7_i32 : i32 to index
    %c0_247 = arith.constant 0 : index
    %c0_248 = arith.constant 0 : index
    %526 = vector.load %arg10[%525, %c0_247, %c0_248] : memref<8x2x512xf32, #tpu.memory_space<vmem>>, vector<1x2x512xf32>
    %527 = vector.shape_cast %526 : vector<1x2x512xf32> to vector<2x512xf32>
    %c0_249 = arith.constant 0 : index
    %c0_250 = arith.constant 0 : index
    %528 = vector.load %arg12[%c0_249, %c0_250] : memref<2x256xf32, #tpu.memory_space<vmem>>, vector<2x128xf32>
    %c0_251 = arith.constant 0 : index
    %c0_252 = arith.constant 0 : index
    %529 = vector.load %arg3[%c0_251, %c0_252] : memref<128x512xf32, #tpu.memory_space<vmem>>, vector<128x512xf32>
    %cst_253 = arith.constant dense<0.000000e+00> : vector<2x512xf32>
    %530 = tpu.matmul %528, %529, %cst_253 {dimension_numbers = #tpu.dot_dimension_numbers<[1], [0], [0], [1], [0, 0, 1, 1], [], []>} : vector<2x128xf32>, vector<128x512xf32>, vector<2x512xf32> -> vector<2x512xf32>
    %531 = arith.addf %527, %530 : vector<2x512xf32>
    %532 = vector.extract_strided_slice %531 {offsets = [0, 0], sizes = [2, 128], strides = [1, 1]} : vector<2x512xf32> to vector<2x128xf32>
    %533 = arith.negf %532 : vector<2x128xf32>
    %534 = math.exp %533 : vector<2x128xf32>
    %cst_254 = arith.constant 1.000000e+00 : f32
    %535 = vector.broadcast %cst_254 : f32 to vector<2x128xf32>
    %536 = arith.addf %535, %534 : vector<2x128xf32>
    %537 = arith.divf %535, %536 : vector<2x128xf32>
    %538 = vector.extract_strided_slice %531 {offsets = [0, 128], sizes = [2, 128], strides = [1, 1]} : vector<2x512xf32> to vector<2x128xf32>
    %539 = arith.negf %538 : vector<2x128xf32>
    %540 = math.exp %539 : vector<2x128xf32>
    %cst_255 = arith.constant 1.000000e+00 : f32
    %541 = vector.broadcast %cst_255 : f32 to vector<2x128xf32>
    %542 = arith.addf %541, %540 : vector<2x128xf32>
    %543 = arith.divf %541, %542 : vector<2x128xf32>
    %544 = vector.extract_strided_slice %531 {offsets = [0, 256], sizes = [2, 128], strides = [1, 1]} : vector<2x512xf32> to vector<2x128xf32>
    %545 = math.tanh %544 : vector<2x128xf32>
    %546 = vector.extract_strided_slice %531 {offsets = [0, 384], sizes = [2, 128], strides = [1, 1]} : vector<2x512xf32> to vector<2x128xf32>
    %547 = arith.negf %546 : vector<2x128xf32>
    %548 = math.exp %547 : vector<2x128xf32>
    %cst_256 = arith.constant 1.000000e+00 : f32
    %549 = vector.broadcast %cst_256 : f32 to vector<2x128xf32>
    %550 = arith.addf %549, %548 : vector<2x128xf32>
    %551 = arith.divf %549, %550 : vector<2x128xf32>
    %c0_257 = arith.constant 0 : index
    %c0_258 = arith.constant 0 : index
    %552 = vector.load %arg13[%c0_257, %c0_258] : memref<2x128xf32, #tpu.memory_space<vmem>>, vector<2x128xf32>
    %553 = arith.mulf %543, %552 : vector<2x128xf32>
    %554 = arith.mulf %537, %545 : vector<2x128xf32>
    %555 = arith.addf %553, %554 : vector<2x128xf32>
    %556 = math.tanh %555 : vector<2x128xf32>
    %557 = arith.mulf %551, %556 : vector<2x128xf32>
    %c0_259 = arith.constant 0 : index
    %c0_260 = arith.constant 0 : index
    %558 = vector.load %arg13[%c0_259, %c0_260] : memref<2x128xf32, #tpu.memory_space<vmem>>, vector<2x128xf32>
    tpu.vector_store %arg13[%c0_259, %c0_260], %555 {strides = array<i32>} : memref<2x128xf32, #tpu.memory_space<vmem>>, vector<2x128xf32>,
    %c0_261 = arith.constant 0 : index
    %c0_262 = arith.constant 0 : index
    %559 = vector.load %arg12[%c0_261, %c0_262] : memref<2x256xf32, #tpu.memory_space<vmem>>, vector<2x128xf32>
    tpu.vector_store %arg12[%c0_261, %c0_262], %557 {strides = array<i32>} : memref<2x256xf32, #tpu.memory_space<vmem>>, vector<2x128xf32>,
    %c0_263 = arith.constant 0 : index
    %c0_264 = arith.constant 0 : index
    %560 = vector.load %arg12[%c0_263, %c0_264] : memref<2x256xf32, #tpu.memory_space<vmem>>, vector<2x256xf32>
    %c0_265 = arith.constant 0 : index
    %c0_266 = arith.constant 0 : index
    %561 = vector.load %arg5[%c0_265, %c0_266] : memref<256x512xf32, #tpu.memory_space<vmem>>, vector<256x512xf32>
    %cst_267 = arith.constant dense<0.000000e+00> : vector<2x512xf32>
    %562 = tpu.matmul %560, %561, %cst_267 {dimension_numbers = #tpu.dot_dimension_numbers<[1], [0], [0], [1], [0, 0, 1, 1], [], []>} : vector<2x256xf32>, vector<256x512xf32>, vector<2x512xf32> -> vector<2x512xf32>
    %c0_268 = arith.constant 0 : index
    %c0_269 = arith.constant 0 : index
    %563 = vector.load %arg6[%c0_268, %c0_269] : memref<1x512xf32, #tpu.memory_space<vmem>>, vector<1x512xf32>
    %564 = vector.broadcast %563 : vector<1x512xf32> to vector<2x512xf32>
    %565 = arith.addf %562, %564 : vector<2x512xf32>
    %566 = vector.extract_strided_slice %565 {offsets = [0, 0], sizes = [2, 128], strides = [1, 1]} : vector<2x512xf32> to vector<2x128xf32>
    %567 = arith.negf %566 : vector<2x128xf32>
    %568 = math.exp %567 : vector<2x128xf32>
    %cst_270 = arith.constant 1.000000e+00 : f32
    %569 = vector.broadcast %cst_270 : f32 to vector<2x128xf32>
    %570 = arith.addf %569, %568 : vector<2x128xf32>
    %571 = arith.divf %569, %570 : vector<2x128xf32>
    %572 = vector.extract_strided_slice %565 {offsets = [0, 128], sizes = [2, 128], strides = [1, 1]} : vector<2x512xf32> to vector<2x128xf32>
    %573 = arith.negf %572 : vector<2x128xf32>
    %574 = math.exp %573 : vector<2x128xf32>
    %cst_271 = arith.constant 1.000000e+00 : f32
    %575 = vector.broadcast %cst_271 : f32 to vector<2x128xf32>
    %576 = arith.addf %575, %574 : vector<2x128xf32>
    %577 = arith.divf %575, %576 : vector<2x128xf32>
    %578 = vector.extract_strided_slice %565 {offsets = [0, 256], sizes = [2, 128], strides = [1, 1]} : vector<2x512xf32> to vector<2x128xf32>
    %579 = math.tanh %578 : vector<2x128xf32>
    %580 = vector.extract_strided_slice %565 {offsets = [0, 384], sizes = [2, 128], strides = [1, 1]} : vector<2x512xf32> to vector<2x128xf32>
    %581 = arith.negf %580 : vector<2x128xf32>
    %582 = math.exp %581 : vector<2x128xf32>
    %cst_272 = arith.constant 1.000000e+00 : f32
    %583 = vector.broadcast %cst_272 : f32 to vector<2x128xf32>
    %584 = arith.addf %583, %582 : vector<2x128xf32>
    %585 = arith.divf %583, %584 : vector<2x128xf32>
    %c0_273 = arith.constant 0 : index
    %c0_274 = arith.constant 0 : index
    %586 = vector.load %arg14[%c0_273, %c0_274] : memref<2x128xf32, #tpu.memory_space<vmem>>, vector<2x128xf32>
    %587 = arith.mulf %577, %586 : vector<2x128xf32>
    %588 = arith.mulf %571, %579 : vector<2x128xf32>
    %589 = arith.addf %587, %588 : vector<2x128xf32>
    %590 = math.tanh %589 : vector<2x128xf32>
    %591 = arith.mulf %585, %590 : vector<2x128xf32>
    %c0_275 = arith.constant 0 : index
    %c0_276 = arith.constant 0 : index
    %592 = vector.load %arg14[%c0_275, %c0_276] : memref<2x128xf32, #tpu.memory_space<vmem>>, vector<2x128xf32>
    tpu.vector_store %arg14[%c0_275, %c0_276], %589 {strides = array<i32>} : memref<2x128xf32, #tpu.memory_space<vmem>>, vector<2x128xf32>,
    %c0_277 = arith.constant 0 : index
    %c128_278 = arith.constant 128 : index
    %593 = vector.load %arg12[%c0_277, %c128_278] : memref<2x256xf32, #tpu.memory_space<vmem>>, vector<2x128xf32>
    tpu.vector_store %arg12[%c0_277, %c128_278], %591 {strides = array<i32>} : memref<2x256xf32, #tpu.memory_space<vmem>>, vector<2x128xf32>,
    %594 = arith.index_cast %c7_i32 : i32 to index
    %c0_279 = arith.constant 0 : index
    %c0_280 = arith.constant 0 : index
    %595 = vector.load %arg11[%594, %c0_279, %c0_280] : memref<8x2x128xf32, #tpu.memory_space<vmem>>, vector<1x2x128xf32>
    %596 = vector.shape_cast %595 : vector<1x2x128xf32> to vector<2x128xf32>
    %597 = vector.shape_cast %591 : vector<2x128xf32> to vector<1x2x128xf32>
    tpu.vector_store %arg11[%594, %c0_279, %c0_280], %597 {strides = array<i32>} : memref<8x2x128xf32, #tpu.memory_space<vmem>>, vector<1x2x128xf32>,
    %c8_i32 = arith.constant 8 : i32
    %c0_281 = arith.constant 0 : index
    %c0_282 = arith.constant 0 : index
    %c0_283 = arith.constant 0 : index
    %598 = vector.load %arg11[%c0_281, %c0_282, %c0_283] : memref<8x2x128xf32, #tpu.memory_space<vmem>>, vector<8x2x128xf32>
    %c0_284 = arith.constant 0 : index
    %c0_285 = arith.constant 0 : index
    %599 = vector.load %arg7[%c0_284, %c0_285] : memref<1x128xf32, #tpu.memory_space<vmem>>, vector<1x128xf32>
    %600 = vector.shape_cast %599 : vector<1x128xf32> to vector<1x1x128xf32>
    %601 = vector.broadcast %600 : vector<1x1x128xf32> to vector<8x2x128xf32>
    %602 = arith.mulf %598, %601 : vector<8x2x128xf32>
    %cst_286 = arith.constant dense<0.000000e+00> : vector<8x2xf32>
    %603 = vector.multi_reduction <add>, %602, %cst_286 [2] : vector<8x2x128xf32> to vector<8x2xf32>
    %c0_287 = arith.constant 0 : index
    %c0_288 = arith.constant 0 : index
    %604 = vector.load %arg8[%c0_287, %c0_288] : memref<1x1xf32, #tpu.memory_space<vmem>>, vector<1x1xf32>
    %605 = vector.broadcast %604 : vector<1x1xf32> to vector<8x2xf32>
    %606 = arith.addf %603, %605 : vector<8x2xf32>
    %c0_289 = arith.constant 0 : index
    %c0_290 = arith.constant 0 : index
    %607 = vector.load %arg9[%c0_289, %c0_290] : memref<8x2xf32, #tpu.memory_space<vmem>>, vector<8x2xf32>
    tpu.vector_store %arg9[%c0_289, %c0_290], %606 {strides = array<i32>} : memref<8x2xf32, #tpu.memory_space<vmem>>, vector<8x2xf32>,
    return
  }
  func.func @transform_0(%arg0: i32) -> (i32, i32, i32) {
    %c0_i32 = arith.constant 0 : i32
    %c0_i32_0 = arith.constant 0 : i32
    %c0_i32_1 = arith.constant 0 : i32
    return %arg0, %c0_i32, %c0_i32_0 : i32, i32, i32
  }
  func.func @transform_1(%arg0: i32) -> (i32, i32) {
    %c0_i32 = arith.constant 0 : i32
    %c0_i32_0 = arith.constant 0 : i32
    %c0_i32_1 = arith.constant 0 : i32
    return %c0_i32, %c0_i32_0 : i32, i32
  }
  func.func @transform_2(%arg0: i32) -> (i32, i32) {
    %c0_i32 = arith.constant 0 : i32
    %c0_i32_0 = arith.constant 0 : i32
    %c0_i32_1 = arith.constant 0 : i32
    return %c0_i32, %c0_i32_0 : i32, i32
  }
  func.func @transform_3(%arg0: i32) -> (i32, i32) {
    %c0_i32 = arith.constant 0 : i32
    %c0_i32_0 = arith.constant 0 : i32
    %c0_i32_1 = arith.constant 0 : i32
    return %c0_i32, %c0_i32_0 : i32, i32
  }
  func.func @transform_4(%arg0: i32) -> (i32, i32) {
    %c0_i32 = arith.constant 0 : i32
    %c0_i32_0 = arith.constant 0 : i32
    %c0_i32_1 = arith.constant 0 : i32
    return %c0_i32, %c0_i32_0 : i32, i32
  }
  func.func @transform_5(%arg0: i32) -> (i32, i32) {
    %c0_i32 = arith.constant 0 : i32
    %c0_i32_0 = arith.constant 0 : i32
    %c0_i32_1 = arith.constant 0 : i32
    return %c0_i32, %c0_i32_0 : i32, i32
  }
  func.func @transform_6(%arg0: i32) -> (i32, i32) {
    %c0_i32 = arith.constant 0 : i32
    %c0_i32_0 = arith.constant 0 : i32
    %c0_i32_1 = arith.constant 0 : i32
    return %c0_i32, %c0_i32_0 : i32, i32
  }
  func.func @transform_7(%arg0: i32) -> (i32, i32) {
    %c0_i32 = arith.constant 0 : i32
    %c0_i32_0 = arith.constant 0 : i32
    %c0_i32_1 = arith.constant 0 : i32
    return %c0_i32, %c0_i32_0 : i32, i32
  }
  func.func @transform_8(%arg0: i32) -> (i32, i32) {
    %c0_i32 = arith.constant 0 : i32
    %c0_i32_0 = arith.constant 0 : i32
    return %arg0, %c0_i32 : i32, i32
  }
}

</mosaic_0001>

<llo_original>
// kernel: tpu_custom_call.1
$region0: #{tpu_custom_call.1}
  #allocation0 [shape = 'u32[]', space=smem, size = 0x4, offset = 0x4, fixed_abs, tag = 'smem constant byte address 0x4 - core index']
  #allocation1 [shape = 'u32[144,128]{1,0:T(1,128)}', space=vmem, size = 0x12000, scoped, tag = 'internal scratch']
  #allocation2 [shape = 'f32[8,2,512]{2,1,0:T(2,128)}', space=vmem, size = 0x8000, scoped, tag = 'scratch operand']
  #allocation3 [shape = 'f32[8,2,128]{2,1,0:T(2,128)}', space=vmem, size = 0x2000, scoped, tag = 'scratch operand']
  #allocation4 [shape = 'f32[2,256]{1,0:T(2,128)}', space=vmem, size = 0x800, scoped, tag = 'scratch operand']
  #allocation5 [shape = 'f32[2,128]{1,0:T(2,128)}', space=vmem, size = 0x400, scoped, tag = 'scratch operand']
  #allocation6 [shape = 'f32[2,128]{1,0:T(2,128)}', space=vmem, size = 0x400, scoped, tag = 'scratch operand']
  #allocation7 [shape = 'f32[1,1]{1,0:T(1,128)S(1)}', space=vmem, size = 0x200, scoped, tag = 'scoped memory for tpu_custom_call.1']
  %s0 = inlined_call_operand.vmem [shape: f32[8,2,1], index: 0, kind: input, shape index: {}]
  %s1 = inlined_call_operand.vmem [shape: f32[1,512], index: 1, kind: input, shape index: {}]
  %s2 = inlined_call_operand.hbm [shape: f32[128,512], index: 2, kind: input, shape index: {}]
  %s3 = inlined_call_operand.vmem [shape: f32[1,512], index: 3, kind: input, shape index: {}]
  %s4 = inlined_call_operand.hbm [shape: f32[256,512], index: 4, kind: input, shape index: {}]
  %s5 = inlined_call_operand.vmem [shape: f32[1,512], index: 5, kind: input, shape index: {}]
  %s6 = inlined_call_operand.vmem [shape: f32[1,128], index: 6, kind: input, shape index: {}]
  %s7 = inlined_call_operand.<no memory space> [shape: f32[1,1], index: 7, kind: input, shape index: {}]
  %s8 = inlined_call_operand.vmem [shape: f32[8,2], index: 8, kind: output, shape index: {}]
  %s9 = sld [smem:[#allocation0]]
  $region54: #{tpu_custom_call.1} parent=0
    _
  %s11 = ssub.s32 1, %s9
  %s12 = scalar_select 0, %s11, %s9
  %v13 = vstv %s7
  %14 = vst [vmem:[#allocation7] sm:$0x1] %v13
  $region1: #{tpu_custom_call.1} parent=0
    #allocation8 [shape = 'u8[262144]{0}', space=vmem, size = 0x40000, scoped, tag = 'input window, operand 2, single buffered']
    #allocation9 [shape = 's32[1]{0}', space=sflag, size = 0x4, scoped, tag = 'scoped memory for tpu_custom_call.1']
    #allocation10 [shape = 'u8[524288]{0}', space=vmem, size = 0x80000, scoped, tag = 'input window, operand 4, single buffered']
    #allocation11 [shape = 's32[1]{0}', space=sflag, size = 0x4, scoped, tag = 'scoped memory for tpu_custom_call.1']
    %15 = vsyncpa [#allocation9], 0
    %16 = vsyncpa [#allocation11], 0
    // Predicated region
    $region2: #{tpu_custom_call.1} parent=1 // pred_check
      _
    $region3: #{tpu_custom_call.1} parent=1 // pred_check_branch
      %18 = sbr.rel (0) target = $region5
    $region4: #{tpu_custom_call.1} parent=1 // pred_region
      _
    $region5: #{tpu_custom_call.1} parent=1 // pred_fallthru
      _
    // Predicated region
    $region6: #{tpu_custom_call.1} parent=1 // pred_check
      _
    $region7: #{tpu_custom_call.1} parent=1 // pred_check_branch
      %20 = sbr.rel (0) target = $region9
    $region8: #{tpu_custom_call.1} parent=1 // pred_region
      _
    $region9: #{tpu_custom_call.1} parent=1 // pred_fallthru
      _
    // Predicated region
    $region10: #{tpu_custom_call.1} parent=1 // pred_check
      _
    $region11: #{tpu_custom_call.1} parent=1 // pred_check_branch
      %22 = sbr.rel (0) target = $region13
    $region12: #{tpu_custom_call.1} parent=1 // pred_region
      %s24 = ssub.s32 8192, 8192
      %25 = vsyncadd [#allocation9], %s24
      %s26 = sshll.u32 [#allocation8], 4
      %s27 = int_to_ptr.vmem [resolvable:$true] %s26
      %32 = dma.hbm_to_vmem [thread:$0]  %s2, 8192, %s27, [#allocation9], 512, 512, 32
    $region13: #{tpu_custom_call.1} parent=1 // pred_fallthru
      _
    // Predicated region
    $region14: #{tpu_custom_call.1} parent=1 // pred_check
      _
    $region15: #{tpu_custom_call.1} parent=1 // pred_check_branch
      %34 = sbr.rel (0) target = $region17
    $region16: #{tpu_custom_call.1} parent=1 // pred_region
      _
    $region17: #{tpu_custom_call.1} parent=1 // pred_fallthru
      _
    // Predicated region
    $region18: #{tpu_custom_call.1} parent=1 // pred_check
      _
    $region19: #{tpu_custom_call.1} parent=1 // pred_check_branch
      %36 = sbr.rel (0) target = $region21
    $region20: #{tpu_custom_call.1} parent=1 // pred_region
      %s38 = ssub.s32 16384, 16384
      %39 = vsyncadd [#allocation11], %s38
      %s40 = sshll.u32 [#allocation10], 4
      %s41 = int_to_ptr.vmem [resolvable:$true] %s40
      %46 = dma.hbm_to_vmem [thread:$0]  %s4, 16384, %s41, [#allocation11], 512, 512, 32
    $region21: #{tpu_custom_call.1} parent=1 // pred_fallthru
      _
    // Predicated region
    $region22: #{tpu_custom_call.1} parent=1 // pred_check
      _
    $region23: #{tpu_custom_call.1} parent=1 // pred_check_branch
      %48 = sbr.rel (0) target = $region25
    $region24: #{tpu_custom_call.1} parent=1 // pred_region
      _
    $region25: #{tpu_custom_call.1} parent=1 // pred_fallthru
      _
    // Predicated region
    $region26: #{tpu_custom_call.1} parent=1 // pred_check
      _
    $region27: #{tpu_custom_call.1} parent=1 // pred_check_branch
      %50 = sbr.rel (0) target = $region29
    $region28: #{tpu_custom_call.1} parent=1 // pred_region
      _
    $region29: #{tpu_custom_call.1} parent=1 // pred_fallthru
      _
    // Predicated region
    $region30: #{tpu_custom_call.1} parent=1 // pred_check
      _
    $region31: #{tpu_custom_call.1} parent=1 // pred_check_branch
      %52 = sbr.rel (0) target = $region33
    $region32: #{tpu_custom_call.1} parent=1 // pred_region
      _
    $region33: #{tpu_custom_call.1} parent=1 // pred_fallthru
      _
    // Predicated region
    $region34: #{tpu_custom_call.1} parent=1 // pred_check
      _
    $region35: #{tpu_custom_call.1} parent=1 // pred_check_branch
      %54 = sbr.rel (0) target = $region37
    $region36: #{tpu_custom_call.1} parent=1 // pred_region
      %55 = dma.done [#allocation9], 8192
    $region37: #{tpu_custom_call.1} parent=1 // pred_fallthru
      _
    // Predicated region
    $region38: #{tpu_custom_call.1} parent=1 // pred_check
      _
    $region39: #{tpu_custom_call.1} parent=1 // pred_check_branch
      %57 = sbr.rel (0) target = $region41
    $region40: #{tpu_custom_call.1} parent=1 // pred_region
      %58 = dma.done [#allocation11], 16384
    $region41: #{tpu_custom_call.1} parent=1 // pred_fallthru
      _
    %p59 = scmp.eq.s32.totalorder 0, 0
    // Predicated region
    $region42: #{tpu_custom_call.1} parent=1 // pred_check
      %p60 = pneg %p59
    $region43: #{tpu_custom_call.1} parent=1 // pred_check_branch
      %62 = sbr.rel (%p60) target = $region45
    $region44: #{tpu_custom_call.1} parent=1 // pred_region
      %63 = vst [vmem:[#allocation4] sm:$0xf] 0.0
      %64 = vst [vmem:[#allocation5] sm:$0x3] 0.0
      %65 = vst [vmem:[#allocation6] sm:$0x3] 0.0
    $region45: #{tpu_custom_call.1} parent=1 // pred_fallthru
      _
    %v66 = vld [vmem:[%s0] sm:$0x3]
    %v67 = vld [vmem:[%s0 + $0x2] sm:$0x3]
    %v68 = vld [vmem:[%s0 + $0x4] sm:$0x3]
    %v69 = vld [vmem:[%s0 + $0x6] sm:$0x3]
    %v70 = vld [vmem:[%s0 + $0x8] sm:$0x3]
    %v71 = vld [vmem:[%s0 + $0xa] sm:$0x3]
    %v72 = vld [vmem:[%s0 + $0xc] sm:$0x3]
    %v73 = vld [vmem:[%s0 + $0xe] sm:$0x3]
    %v74 = vld [vmem:[%s1] sm:$0xf]
    %76 = vset.pattern.permute.xlu0 0
    %77 = vperm.xlu0 %76, %v66
    %v78 = vpop.permute.xlu0 %77
    %81 = vset.pattern.permute.xlu0 0
    %82 = vperm.xlu0 %81, %v67
    %v83 = vpop.permute.xlu0 %82
    %86 = vset.pattern.permute.xlu0 0
    %87 = vperm.xlu0 %86, %v68
    %v88 = vpop.permute.xlu0 %87
    %91 = vset.pattern.permute.xlu0 0
    %92 = vperm.xlu0 %91, %v69
    %v93 = vpop.permute.xlu0 %92
    %96 = vset.pattern.permute.xlu0 0
    %97 = vperm.xlu0 %96, %v70
    %v98 = vpop.permute.xlu0 %97
    %101 = vset.pattern.permute.xlu0 0
    %102 = vperm.xlu0 %101, %v71
    %v103 = vpop.permute.xlu0 %102
    %106 = vset.pattern.permute.xlu0 0
    %107 = vperm.xlu0 %106, %v72
    %v108 = vpop.permute.xlu0 %107
    %111 = vset.pattern.permute.xlu0 0
    %112 = vperm.xlu0 %111, %v73
    %v113 = vpop.permute.xlu0 %112
    %v116 = vlaneseq
    %v117 = vshrl.u32 %v116, 7
    %v118 = vsub.s32 0, %v117
    %v119 = vrot.slane %v74, %v118
    %v120 = vlaneseq
    %v121 = vshrl.u32 %v120, 7
    %v122 = vsub.s32 1, %v121
    %v123 = vrot.slane %v74, %v122
    %v124 = vlaneseq
    %v125 = vshrl.u32 %v124, 7
    %v126 = vsub.s32 2, %v125
    %v127 = vrot.slane %v74, %v126
    %v128 = vlaneseq
    %v129 = vshrl.u32 %v128, 7
    %v130 = vsub.s32 3, %v129
    %v131 = vrot.slane %v74, %v130
    %v136 = vmul.f32 %v78, %v119
    %v137 = vmul.f32 %v78, %v123
    %v138 = vmul.f32 %v78, %v127
    %v139 = vmul.f32 %v78, %v131
    %v140 = vmul.f32 %v83, %v119
    %v141 = vmul.f32 %v83, %v123
    %v142 = vmul.f32 %v83, %v127
    %v143 = vmul.f32 %v83, %v131
    %v144 = vmul.f32 %v88, %v119
    %v145 = vmul.f32 %v88, %v123
    %v146 = vmul.f32 %v88, %v127
    %v147 = vmul.f32 %v88, %v131
    %v148 = vmul.f32 %v93, %v119
    %v149 = vmul.f32 %v93, %v123
    %v150 = vmul.f32 %v93, %v127
    %v151 = vmul.f32 %v93, %v131
    %v152 = vmul.f32 %v98, %v119
    %v153 = vmul.f32 %v98, %v123
    %v154 = vmul.f32 %v98, %v127
    %v155 = vmul.f32 %v98, %v131
    %v156 = vmul.f32 %v103, %v119
    %v157 = vmul.f32 %v103, %v123
    %v158 = vmul.f32 %v103, %v127
    %v159 = vmul.f32 %v103, %v131
    %v160 = vmul.f32 %v108, %v119
    %v161 = vmul.f32 %v108, %v123
    %v162 = vmul.f32 %v108, %v127
    %v163 = vmul.f32 %v108, %v131
    %v164 = vmul.f32 %v113, %v119
    %v165 = vmul.f32 %v113, %v123
    %v166 = vmul.f32 %v113, %v127
    %v167 = vmul.f32 %v113, %v131
    %v168 = vld [vmem:[%s3] sm:$0xf]
    %v170 = vlaneseq
    %v171 = vshrl.u32 %v170, 7
    %v172 = vsub.s32 0, %v171
    %v173 = vrot.slane %v168, %v172
    %v174 = vlaneseq
    %v175 = vshrl.u32 %v174, 7
    %v176 = vsub.s32 1, %v175
    %v177 = vrot.slane %v168, %v176
    %v178 = vlaneseq
    %v179 = vshrl.u32 %v178, 7
    %v180 = vsub.s32 2, %v179
    %v181 = vrot.slane %v168, %v180
    %v182 = vlaneseq
    %v183 = vshrl.u32 %v182, 7
    %v184 = vsub.s32 3, %v183
    %v185 = vrot.slane %v168, %v184
    %v190 = vadd.f32 %v136, %v173
    %v191 = vadd.f32 %v137, %v177
    %v192 = vadd.f32 %v138, %v181
    %v193 = vadd.f32 %v139, %v185
    %v194 = vadd.f32 %v140, %v173
    %v195 = vadd.f32 %v141, %v177
    %v196 = vadd.f32 %v142, %v181
    %v197 = vadd.f32 %v143, %v185
    %v198 = vadd.f32 %v144, %v173
    %v199 = vadd.f32 %v145, %v177
    %v200 = vadd.f32 %v146, %v181
    %v201 = vadd.f32 %v147, %v185
    %v202 = vadd.f32 %v148, %v173
    %v203 = vadd.f32 %v149, %v177
    %v204 = vadd.f32 %v150, %v181
    %v205 = vadd.f32 %v151, %v185
    %v206 = vadd.f32 %v152, %v173
    %v207 = vadd.f32 %v153, %v177
    %v208 = vadd.f32 %v154, %v181
    %v209 = vadd.f32 %v155, %v185
    %v210 = vadd.f32 %v156, %v173
    %v211 = vadd.f32 %v157, %v177
    %v212 = vadd.f32 %v158, %v181
    %v213 = vadd.f32 %v159, %v185
    %v214 = vadd.f32 %v160, %v173
    %v215 = vadd.f32 %v161, %v177
    %v216 = vadd.f32 %v162, %v181
    %v217 = vadd.f32 %v163, %v185
    %v218 = vadd.f32 %v164, %v173
    %v219 = vadd.f32 %v165, %v177
    %v220 = vadd.f32 %v166, %v181
    %v221 = vadd.f32 %v167, %v185
    %v254 = vcombine.low %v190, %v191
    %v255 = vcombine.low %v192, %v193
    %v257 = vunpack.c.l.s4 1983009808
    %v258 = vunpack.c.0.s8 %v257
    %v259 = vlaneseq
    %v260 = vshrl.u32 %v259, 7
    %v261 = vsub.s32 %v258, %v260
    %v262 = vrot.slane %v254, %v261
    %v264 = vunpack.c.l.s4 1983009808
    %v265 = vunpack.c.0.s8 %v264
    %v266 = vlaneseq
    %v267 = vshrl.u32 %v266, 7
    %v268 = vsub.s32 %v265, %v267
    %v269 = vrot.slane %v255, %v268
    %v270 = vcombine.low %v262, %v269
    %v271 = vcombine.low %v194, %v195
    %v272 = vcombine.low %v196, %v197
    %v274 = vunpack.c.l.s4 1983009808
    %v275 = vunpack.c.0.s8 %v274
    %v276 = vlaneseq
    %v277 = vshrl.u32 %v276, 7
    %v278 = vsub.s32 %v275, %v277
    %v279 = vrot.slane %v271, %v278
    %v281 = vunpack.c.l.s4 1983009808
    %v282 = vunpack.c.0.s8 %v281
    %v283 = vlaneseq
    %v284 = vshrl.u32 %v283, 7
    %v285 = vsub.s32 %v282, %v284
    %v286 = vrot.slane %v272, %v285
    %v287 = vcombine.low %v279, %v286
    %v288 = vcombine.low %v198, %v199
    %v289 = vcombine.low %v200, %v201
    %v291 = vunpack.c.l.s4 1983009808
    %v292 = vunpack.c.0.s8 %v291
    %v293 = vlaneseq
    %v294 = vshrl.u32 %v293, 7
    %v295 = vsub.s32 %v292, %v294
    %v296 = vrot.slane %v288, %v295
    %v298 = vunpack.c.l.s4 1983009808
    %v299 = vunpack.c.0.s8 %v298
    %v300 = vlaneseq
    %v301 = vshrl.u32 %v300, 7
    %v302 = vsub.s32 %v299, %v301
    %v303 = vrot.slane %v289, %v302
    %v304 = vcombine.low %v296, %v303
    %v305 = vcombine.low %v202, %v203
    %v306 = vcombine.low %v204, %v205
    %v308 = vunpack.c.l.s4 1983009808
    %v309 = vunpack.c.0.s8 %v308
    %v310 = vlaneseq
    %v311 = vshrl.u32 %v310, 7
    %v312 = vsub.s32 %v309, %v311
    %v313 = vrot.slane %v305, %v312
    %v315 = vunpack.c.l.s4 1983009808
    %v316 = vunpack.c.0.s8 %v315
    %v317 = vlaneseq
    %v318 = vshrl.u32 %v317, 7
    %v319 = vsub.s32 %v316, %v318
    %v320 = vrot.slane %v306, %v319
    %v321 = vcombine.low %v313, %v320
    %v322 = vcombine.low %v206, %v207
    %v323 = vcombine.low %v208, %v209
    %v325 = vunpack.c.l.s4 1983009808
    %v326 = vunpack.c.0.s8 %v325
    %v327 = vlaneseq
    %v328 = vshrl.u32 %v327, 7
    %v329 = vsub.s32 %v326, %v328
    %v330 = vrot.slane %v322, %v329
    %v332 = vunpack.c.l.s4 1983009808
    %v333 = vunpack.c.0.s8 %v332
    %v334 = vlaneseq
    %v335 = vshrl.u32 %v334, 7
    %v336 = vsub.s32 %v333, %v335
    %v337 = vrot.slane %v323, %v336
    %v338 = vcombine.low %v330, %v337
    %v339 = vcombine.low %v210, %v211
    %v340 = vcombine.low %v212, %v213
    %v342 = vunpack.c.l.s4 1983009808
    %v343 = vunpack.c.0.s8 %v342
    %v344 = vlaneseq
    %v345 = vshrl.u32 %v344, 7
    %v346 = vsub.s32 %v343, %v345
    %v347 = vrot.slane %v339, %v346
    %v349 = vunpack.c.l.s4 1983009808
    %v350 = vunpack.c.0.s8 %v349
    %v351 = vlaneseq
    %v352 = vshrl.u32 %v351, 7
    %v353 = vsub.s32 %v350, %v352
    %v354 = vrot.slane %v340, %v353
    %v355 = vcombine.low %v347, %v354
    %v356 = vcombine.low %v214, %v215
    %v357 = vcombine.low %v216, %v217
    %v359 = vunpack.c.l.s4 1983009808
    %v360 = vunpack.c.0.s8 %v359
    %v361 = vlaneseq
    %v362 = vshrl.u32 %v361, 7
    %v363 = vsub.s32 %v360, %v362
    %v364 = vrot.slane %v356, %v363
    %v366 = vunpack.c.l.s4 1983009808
    %v367 = vunpack.c.0.s8 %v366
    %v368 = vlaneseq
    %v369 = vshrl.u32 %v368, 7
    %v370 = vsub.s32 %v367, %v369
    %v371 = vrot.slane %v357, %v370
    %v372 = vcombine.low %v364, %v371
    %v373 = vcombine.low %v218, %v219
    %v374 = vcombine.low %v220, %v221
    %v376 = vunpack.c.l.s4 1983009808
    %v377 = vunpack.c.0.s8 %v376
    %v378 = vlaneseq
    %v379 = vshrl.u32 %v378, 7
    %v380 = vsub.s32 %v377, %v379
    %v381 = vrot.slane %v373, %v380
    %v383 = vunpack.c.l.s4 1983009808
    %v384 = vunpack.c.0.s8 %v383
    %v385 = vlaneseq
    %v386 = vshrl.u32 %v385, 7
    %v387 = vsub.s32 %v384, %v386
    %v388 = vrot.slane %v374, %v387
    %v389 = vcombine.low %v381, %v388
    %398 = vst [vmem:[#allocation2] sm:$0xff] %v270
    %399 = vst [vmem:[#allocation2 + $0x8] sm:$0xff] %v287
    %400 = vst [vmem:[#allocation2 + $0x10] sm:$0xff] %v304
    %401 = vst [vmem:[#allocation2 + $0x18] sm:$0xff] %v321
    %402 = vst [vmem:[#allocation2 + $0x20] sm:$0xff] %v338
    %403 = vst [vmem:[#allocation2 + $0x28] sm:$0xff] %v355
    %404 = vst [vmem:[#allocation2 + $0x30] sm:$0xff] %v372
    %405 = vst [vmem:[#allocation2 + $0x38] sm:$0xff] %v389
    %v406 = vld [vmem:[#allocation2] sm:$0xff]
    %v407 = vld [vmem:[#allocation4] sm:$0x3]
    %v408 = vld [vmem:[#allocation8] sm:$0xff]
    %v409 = vld [vmem:[#allocation8 + $0x8] sm:$0xff]
    %v410 = vld [vmem:[#allocation8 + $0x10] sm:$0xff]
    %v411 = vld [vmem:[#allocation8 + $0x18] sm:$0xff]
    %v412 = vld [vmem:[#allocation8 + $0x20] sm:$0xff]
    %v413 = vld [vmem:[#allocation8 + $0x28] sm:$0xff]
    %v414 = vld [vmem:[#allocation8 + $0x30] sm:$0xff]
    %v415 = vld [vmem:[#allocation8 + $0x38] sm:$0xff]
    %v416 = vld [vmem:[#allocation8 + $0x40] sm:$0xff]
    %v417 = vld [vmem:[#allocation8 + $0x48] sm:$0xff]
    %v418 = vld [vmem:[#allocation8 + $0x50] sm:$0xff]
    %v419 = vld [vmem:[#allocation8 + $0x58] sm:$0xff]
    %v420 = vld [vmem:[#allocation8 + $0x60] sm:$0xff]
    %v421 = vld [vmem:[#allocation8 + $0x68] sm:$0xff]
    %v422 = vld [vmem:[#allocation8 + $0x70] sm:$0xff]
    %v423 = vld [vmem:[#allocation8 + $0x78] sm:$0xff]
    %v424 = vld [vmem:[#allocation8 + $0x80] sm:$0xff]
    %v425 = vld [vmem:[#allocation8 + $0x88] sm:$0xff]
    %v426 = vld [vmem:[#allocation8 + $0x90] sm:$0xff]
    %v427 = vld [vmem:[#allocation8 + $0x98] sm:$0xff]
    %v428 = vld [vmem:[#allocation8 + $0xa0] sm:$0xff]
    %v429 = vld [vmem:[#allocation8 + $0xa8] sm:$0xff]
    %v430 = vld [vmem:[#allocation8 + $0xb0] sm:$0xff]
    %v431 = vld [vmem:[#allocation8 + $0xb8] sm:$0xff]
    %v432 = vld [vmem:[#allocation8 + $0xc0] sm:$0xff]
    %v433 = vld [vmem:[#allocation8 + $0xc8] sm:$0xff]
    %v434 = vld [vmem:[#allocation8 + $0xd0] sm:$0xff]
    %v435 = vld [vmem:[#allocation8 + $0xd8] sm:$0xff]
    %v436 = vld [vmem:[#allocation8 + $0xe0] sm:$0xff]
    %v437 = vld [vmem:[#allocation8 + $0xe8] sm:$0xff]
    %v438 = vld [vmem:[#allocation8 + $0xf0] sm:$0xff]
    %v439 = vld [vmem:[#allocation8 + $0xf8] sm:$0xff]
    %v440 = vld [vmem:[#allocation8 + $0x100] sm:$0xff]
    %v441 = vld [vmem:[#allocation8 + $0x108] sm:$0xff]
    %v442 = vld [vmem:[#allocation8 + $0x110] sm:$0xff]
    %v443 = vld [vmem:[#allocation8 + $0x118] sm:$0xff]
    %v444 = vld [vmem:[#allocation8 + $0x120] sm:$0xff]
    %v445 = vld [vmem:[#allocation8 + $0x128] sm:$0xff]
    %v446 = vld [vmem:[#allocation8 + $0x130] sm:$0xff]
    %v447 = vld [vmem:[#allocation8 + $0x138] sm:$0xff]
    %v448 = vld [vmem:[#allocation8 + $0x140] sm:$0xff]
    %v449 = vld [vmem:[#allocation8 + $0x148] sm:$0xff]
    %v450 = vld [vmem:[#allocation8 + $0x150] sm:$0xff]
    %v451 = vld [vmem:[#allocation8 + $0x158] sm:$0xff]
    %v452 = vld [vmem:[#allocation8 + $0x160] sm:$0xff]
    %v453 = vld [vmem:[#allocation8 + $0x168] sm:$0xff]
    %v454 = vld [vmem:[#allocation8 + $0x170] sm:$0xff]
    %v455 = vld [vmem:[#allocation8 + $0x178] sm:$0xff]
    %v456 = vld [vmem:[#allocation8 + $0x180] sm:$0xff]
    %v457 = vld [vmem:[#allocation8 + $0x188] sm:$0xff]
    %v458 = vld [vmem:[#allocation8 + $0x190] sm:$0xff]
    %v459 = vld [vmem:[#allocation8 + $0x198] sm:$0xff]
    %v460 = vld [vmem:[#allocation8 + $0x1a0] sm:$0xff]
    %v461 = vld [vmem:[#allocation8 + $0x1a8] sm:$0xff]
    %v462 = vld [vmem:[#allocation8 + $0x1b0] sm:$0xff]
    %v463 = vld [vmem:[#allocation8 + $0x1b8] sm:$0xff]
    %v464 = vld [vmem:[#allocation8 + $0x1c0] sm:$0xff]
    %v465 = vld [vmem:[#allocation8 + $0x1c8] sm:$0xff]
    %v466 = vld [vmem:[#allocation8 + $0x1d0] sm:$0xff]
    %v467 = vld [vmem:[#allocation8 + $0x1d8] sm:$0xff]
    %v468 = vld [vmem:[#allocation8 + $0x1e0] sm:$0xff]
    %v469 = vld [vmem:[#allocation8 + $0x1e8] sm:$0xff]
    %v470 = vld [vmem:[#allocation8 + $0x1f0] sm:$0xff]
    %v471 = vld [vmem:[#allocation8 + $0x1f8] sm:$0xff]
    %472 = vmatprep.subr.mxu0 %v409
    %473 = vmatpush1.msra.mxu0 %v408
    %474 = vmatprep.subr.mxu0 %v413
    %475 = vmatpush1.msra.mxu0 %v412
    %476 = vmatprep.subr.mxu0 %v417
    %477 = vmatpush1.msra.mxu0 %v416
    %478 = vmatprep.subr.mxu0 %v421
    %479 = vmatpush1.msra.mxu0 %v420
    %480 = vmatprep.subr.mxu0 %v425
    %481 = vmatpush1.msra.mxu0 %v424
    %482 = vmatprep.subr.mxu0 %v429
    %483 = vmatpush1.msra.mxu0 %v428
    %484 = vmatprep.subr.mxu0 %v433
    %485 = vmatpush1.msra.mxu0 %v432
    %486 = vmatprep.subr.mxu0 %v437
    %487 = vmatpush1.msra.mxu0 %v436
    %488 = vmatprep.subr.mxu0 %v441
    %489 = vmatpush1.msra.mxu0 %v440
    %490 = vmatprep.subr.mxu0 %v445
    %491 = vmatpush1.msra.mxu0 %v444
    %492 = vmatprep.subr.mxu0 %v449
    %493 = vmatpush1.msra.mxu0 %v448
    %494 = vmatprep.subr.mxu0 %v453
    %495 = vmatpush1.msra.mxu0 %v452
    %496 = vmatprep.subr.mxu0 %v457
    %497 = vmatpush1.msra.mxu0 %v456
    %498 = vmatprep.subr.mxu0 %v461
    %499 = vmatpush1.msra.mxu0 %v460
    %500 = vmatprep.subr.mxu0 %v465
    %501 = vmatpush1.msra.mxu0 %v464
    %502 = vmatprep.subr.mxu0 %v469
    %503 = vmatpush1.msra.mxu0 %v468
    %504 = vmatprep.subr.mxu0 0.0
    %505 = vmatpush1.msra.mxu0 0.0
    %506 = vmatprep.subr.mxu0 0.0
    %507 = vmatpush1.msra.mxu0 0.0
    %508 = vmatprep.subr.mxu0 0.0
    %509 = vmatpush1.msra.mxu0 0.0
    %510 = vmatprep.subr.mxu0 0.0
    %511 = vmatpush1.msra.mxu0 0.0
    %512 = vmatprep.subr.mxu0 0.0
    %513 = vmatpush1.msra.mxu0 0.0
    %514 = vmatprep.subr.mxu0 0.0
    %515 = vmatpush1.msra.mxu0 0.0
    %516 = vmatprep.subr.mxu0 0.0
    %517 = vmatpush1.msra.mxu0 0.0
    %518 = vmatprep.subr.mxu0 0.0
    %519 = vmatpush1.msra.mxu0 0.0
    %520 = vmatprep.subr.mxu0 0.0
    %521 = vmatpush1.msra.mxu0 0.0
    %522 = vmatprep.subr.mxu0 0.0
    %523 = vmatpush1.msra.mxu0 0.0
    %524 = vmatprep.subr.mxu0 0.0
    %525 = vmatpush1.msra.mxu0 0.0
    %526 = vmatprep.subr.mxu0 0.0
    %527 = vmatpush1.msra.mxu0 0.0
    %528 = vmatprep.subr.mxu0 0.0
    %529 = vmatpush1.msra.mxu0 0.0
    %530 = vmatprep.subr.mxu0 0.0
    %531 = vmatpush1.msra.mxu0 0.0
    %532 = vmatprep.subr.mxu0 0.0
    %533 = vmatpush1.msra.mxu0 0.0
    %534 = vmatprep.subr.mxu0 0.0
    %535 = vmatpush1.msra.mxu0 0.0
    %536 = vmatprep.mubr.f32.mxu0 0.0
    %537 = vmatmul.mubr.f32.gmra.mrb[0].mxu0 %v407
    %v538 = vpop.f32.mrb[0].mxu0
    %v539 = vadd.f32 0.0, %v538
    %v540 = vpop.f32.mrb[0].mxu0
    %v541 = vadd.f32 0.0, %v540
    %542 = vdwg.mxu0
    %543 = vmatprep.subr.mxu0 %v411
    %544 = vmatpush1.msra.mxu0 %v410
    %545 = vmatprep.subr.mxu0 %v415
    %546 = vmatpush1.msra.mxu0 %v414
    %547 = vmatprep.subr.mxu0 %v419
    %548 = vmatpush1.msra.mxu0 %v418
    %549 = vmatprep.subr.mxu0 %v423
    %550 = vmatpush1.msra.mxu0 %v422
    %551 = vmatprep.subr.mxu0 %v427
    %552 = vmatpush1.msra.mxu0 %v426
    %553 = vmatprep.subr.mxu0 %v431
    %554 = vmatpush1.msra.mxu0 %v430
    %555 = vmatprep.subr.mxu0 %v435
    %556 = vmatpush1.msra.mxu0 %v434
    %557 = vmatprep.subr.mxu0 %v439
    %558 = vmatpush1.msra.mxu0 %v438
    %559 = vmatprep.subr.mxu0 %v443
    %560 = vmatpush1.msra.mxu0 %v442
    %561 = vmatprep.subr.mxu0 %v447
    %562 = vmatpush1.msra.mxu0 %v446
    %563 = vmatprep.subr.mxu0 %v451
    %564 = vmatpush1.msra.mxu0 %v450
    %565 = vmatprep.subr.mxu0 %v455
    %566 = vmatpush1.msra.mxu0 %v454
    %567 = vmatprep.subr.mxu0 %v459
    %568 = vmatpush1.msra.mxu0 %v458
    %569 = vmatprep.subr.mxu0 %v463
    %570 = vmatpush1.msra.mxu0 %v462
    %571 = vmatprep.subr.mxu0 %v467
    %572 = vmatpush1.msra.mxu0 %v466
    %573 = vmatprep.subr.mxu0 %v471
    %574 = vmatpush1.msra.mxu0 %v470
    %575 = vmatprep.subr.mxu0 0.0
    %576 = vmatpush1.msra.mxu0 0.0
    %577 = vmatprep.subr.mxu0 0.0
    %578 = vmatpush1.msra.mxu0 0.0
    %579 = vmatprep.subr.mxu0 0.0
    %580 = vmatpush1.msra.mxu0 0.0
    %581 = vmatprep.subr.mxu0 0.0
    %582 = vmatpush1.msra.mxu0 0.0
    %583 = vmatprep.subr.mxu0 0.0
    %584 = vmatpush1.msra.mxu0 0.0
    %585 = vmatprep.subr.mxu0 0.0
    %586 = vmatpush1.msra.mxu0 0.0
    %587 = vmatprep.subr.mxu0 0.0
    %588 = vmatpush1.msra.mxu0 0.0
    %589 = vmatprep.subr.mxu0 0.0
    %590 = vmatpush1.msra.mxu0 0.0
    %591 = vmatprep.subr.mxu0 0.0
    %592 = vmatpush1.msra.mxu0 0.0
    %593 = vmatprep.subr.mxu0 0.0
    %594 = vmatpush1.msra.mxu0 0.0
    %595 = vmatprep.subr.mxu0 0.0
    %596 = vmatpush1.msra.mxu0 0.0
    %597 = vmatprep.subr.mxu0 0.0
    %598 = vmatpush1.msra.mxu0 0.0
    %599 = vmatprep.subr.mxu0 0.0
    %600 = vmatpush1.msra.mxu0 0.0
    %601 = vmatprep.subr.mxu0 0.0
    %602 = vmatpush1.msra.mxu0 0.0
    %603 = vmatprep.subr.mxu0 0.0
    %604 = vmatpush1.msra.mxu0 0.0
    %605 = vmatprep.subr.mxu0 0.0
    %606 = vmatpush1.msra.mxu0 0.0
    %607 = vmatprep.mubr.f32.mxu0 0.0
    %608 = vmatmul.mubr.f32.gmra.mrb[0].mxu0 %v407
    %v609 = vpop.f32.mrb[0].mxu0
    %v610 = vadd.f32 0.0, %v609
    %v611 = vpop.f32.mrb[0].mxu0
    %v612 = vadd.f32 0.0, %v611
    %613 = vdwg.mxu0
    %v618 = vcombine.low %v539, %v541
    %v619 = vcombine.low %v610, %v612
    %v621 = vunpack.c.l.s4 1983009808
    %v622 = vunpack.c.0.s8 %v621
    %v623 = vlaneseq
    %v624 = vshrl.u32 %v623, 7
    %v625 = vsub.s32 %v622, %v624
    %v626 = vrot.slane %v618, %v625
    %v628 = vunpack.c.l.s4 1983009808
    %v629 = vunpack.c.0.s8 %v628
    %v630 = vlaneseq
    %v631 = vshrl.u32 %v630, 7
    %v632 = vsub.s32 %v629, %v631
    %v633 = vrot.slane %v619, %v632
    %v634 = vcombine.low %v626, %v633
    %v636 = vadd.f32 %v406, %v634
    %v637 = vxor.u32 %v636, 2147483648
    %v638 = vmul.f32 %v637, 1.442695
    %v639 = vpow.pop %v638
    %v640 = vadd.f32 %v639, 1.0
    %v641 = vrcp.pop %v640
    %v642 = vmul.f32 1.0, %v641
    %v644 = vrot.slane %v636, 2
    %v646 = vxor.u32 %v644, 2147483648
    %v647 = vmul.f32 %v646, 1.442695
    %v648 = vpow.pop %v647
    %v649 = vadd.f32 %v648, 1.0
    %v650 = vrcp.pop %v649
    %v651 = vmul.f32 1.0, %v650
    %v652 = vrot.slane %v636, 4
    %v654 = vtanh.pop %v652
    %v655 = vrot.slane %v636, 6
    %v657 = vxor.u32 %v655, 2147483648
    %v658 = vmul.f32 %v657, 1.442695
    %v659 = vpow.pop %v658
    %v660 = vadd.f32 %v659, 1.0
    %v661 = vrcp.pop %v660
    %v662 = vmul.f32 1.0, %v661
    %v663 = vld [vmem:[#allocation5] sm:$0x3]
    %v664 = vmul.f32 %v651, %v663
    %v665 = vmul.f32 %v642, %v654
    %v666 = vadd.f32 %v664, %v665
    %v667 = vtanh.pop %v666
    %v668 = vmul.f32 %v662, %v667
    %669 = vst [vmem:[#allocation5] sm:$0x3] %v666
    %670 = vst [vmem:[#allocation4] sm:$0x3] %v668
    %v671 = vld [vmem:[#allocation4] sm:$0xf]
    %v672 = vld [vmem:[#allocation10] sm:$0xff]
    %v673 = vld [vmem:[#allocation10 + $0x8] sm:$0xff]
    %v674 = vld [vmem:[#allocation10 + $0x10] sm:$0xff]
    %v675 = vld [vmem:[#allocation10 + $0x18] sm:$0xff]
    %v676 = vld [vmem:[#allocation10 + $0x20] sm:$0xff]
    %v677 = vld [vmem:[#allocation10 + $0x28] sm:$0xff]
    %v678 = vld [vmem:[#allocation10 + $0x30] sm:$0xff]
    %v679 = vld [vmem:[#allocation10 + $0x38] sm:$0xff]
    %v680 = vld [vmem:[#allocation10 + $0x40] sm:$0xff]
    %v681 = vld [vmem:[#allocation10 + $0x48] sm:$0xff]
    %v682 = vld [vmem:[#allocation10 + $0x50] sm:$0xff]
    %v683 = vld [vmem:[#allocation10 + $0x58] sm:$0xff]
    %v684 = vld [vmem:[#allocation10 + $0x60] sm:$0xff]
    %v685 = vld [vmem:[#allocation10 + $0x68] sm:$0xff]
    %v686 = vld [vmem:[#allocation10 + $0x70] sm:$0xff]
    %v687 = vld [vmem:[#allocation10 + $0x78] sm:$0xff]
    %v688 = vld [vmem:[#allocation10 + $0x80] sm:$0xff]
    %v689 = vld [vmem:[#allocation10 + $0x88] sm:$0xff]
    %v690 = vld [vmem:[#allocation10 + $0x90] sm:$0xff]
    %v691 = vld [vmem:[#allocation10 + $0x98] sm:$0xff]
    %v692 = vld [vmem:[#allocation10 + $0xa0] sm:$0xff]
    %v693 = vld [vmem:[#allocation10 + $0xa8] sm:$0xff]
    %v694 = vld [vmem:[#allocation10 + $0xb0] sm:$0xff]
    %v695 = vld [vmem:[#allocation10 + $0xb8] sm:$0xff]
    %v696 = vld [vmem:[#allocation10 + $0xc0] sm:$0xff]
    %v697 = vld [vmem:[#allocation10 + $0xc8] sm:$0xff]
    %v698 = vld [vmem:[#allocation10 + $0xd0] sm:$0xff]
    %v699 = vld [vmem:[#allocation10 + $0xd8] sm:$0xff]
    %v700 = vld [vmem:[#allocation10 + $0xe0] sm:$0xff]
    %v701 = vld [vmem:[#allocation10 + $0xe8] sm:$0xff]
    %v702 = vld [vmem:[#allocation10 + $0xf0] sm:$0xff]
    %v703 = vld [vmem:[#allocation10 + $0xf8] sm:$0xff]
    %v704 = vld [vmem:[#allocation10 + $0x100] sm:$0xff]
    %v705 = vld [vmem:[#allocation10 + $0x108] sm:$0xff]
    %v706 = vld [vmem:[#allocation10 + $0x110] sm:$0xff]
    %v707 = vld [vmem:[#allocation10 + $0x118] sm:$0xff]
    %v708 = vld [vmem:[#allocation10 + $0x120] sm:$0xff]
    %v709 = vld [vmem:[#allocation10 + $0x128] sm:$0xff]
    %v710 = vld [vmem:[#allocation10 + $0x130] sm:$0xff]
    %v711 = vld [vmem:[#allocation10 + $0x138] sm:$0xff]
    %v712 = vld [vmem:[#allocation10 + $0x140] sm:$0xff]
    %v713 = vld [vmem:[#allocation10 + $0x148] sm:$0xff]
    %v714 = vld [vmem:[#allocation10 + $0x150] sm:$0xff]
    %v715 = vld [vmem:[#allocation10 + $0x158] sm:$0xff]
    %v716 = vld [vmem:[#allocation10 + $0x160] sm:$0xff]
    %v717 = vld [vmem:[#allocation10 + $0x168] sm:$0xff]
    %v718 = vld [vmem:[#allocation10 + $0x170] sm:$0xff]
    %v719 = vld [vmem:[#allocation10 + $0x178] sm:$0xff]
    %v720 = vld [vmem:[#allocation10 + $0x180] sm:$0xff]
    %v721 = vld [vmem:[#allocation10 + $0x188] sm:$0xff]
    %v722 = vld [vmem:[#allocation10 + $0x190] sm:$0xff]
    %v723 = vld [vmem:[#allocation10 + $0x198] sm:$0xff]
    %v724 = vld [vmem:[#allocation10 + $0x1a0] sm:$0xff]
    %v725 = vld [vmem:[#allocation10 + $0x1a8] sm:$0xff]
    %v726 = vld [vmem:[#allocation10 + $0x1b0] sm:$0xff]
    %v727 = vld [vmem:[#allocation10 + $0x1b8] sm:$0xff]
    %v728 = vld [vmem:[#allocation10 + $0x1c0] sm:$0xff]
    %v729 = vld [vmem:[#allocation10 + $0x1c8] sm:$0xff]
    %v730 = vld [vmem:[#allocation10 + $0x1d0] sm:$0xff]
    %v731 = vld [vmem:[#allocation10 + $0x1d8] sm:$0xff]
    %v732 = vld [vmem:[#allocation10 + $0x1e0] sm:$0xff]
    %v733 = vld [vmem:[#allocation10 + $0x1e8] sm:$0xff]
    %v734 = vld [vmem:[#allocation10 + $0x1f0] sm:$0xff]
    %v735 = vld [vmem:[#allocation10 + $0x1f8] sm:$0xff]
    %v736 = vld [vmem:[#allocation10 + $0x200] sm:$0xff]
    %v737 = vld [vmem:[#allocation10 + $0x208] sm:$0xff]
    %v738 = vld [vmem:[#allocation10 + $0x210] sm:$0xff]
    %v739 = vld [vmem:[#allocation10 + $0x218] sm:$0xff]
    %v740 = vld [vmem:[#allocation10 + $0x220] sm:$0xff]
    %v741 = vld [vmem:[#allocation10 + $0x228] sm:$0xff]
    %v742 = vld [vmem:[#allocation10 + $0x230] sm:$0xff]
    %v743 = vld [vmem:[#allocation10 + $0x238] sm:$0xff]
    %v744 = vld [vmem:[#allocation10 + $0x240] sm:$0xff]
    %v745 = vld [vmem:[#allocation10 + $0x248] sm:$0xff]
    %v746 = vld [vmem:[#allocation10 + $0x250] sm:$0xff]
    %v747 = vld [vmem:[#allocation10 + $0x258] sm:$0xff]
    %v748 = vld [vmem:[#allocation10 + $0x260] sm:$0xff]
    %v749 = vld [vmem:[#allocation10 + $0x268] sm:$0xff]
    %v750 = vld [vmem:[#allocation10 + $0x270] sm:$0xff]
    %v751 = vld [vmem:[#allocation10 + $0x278] sm:$0xff]
    %v752 = vld [vmem:[#allocation10 + $0x280] sm:$0xff]
    %v753 = vld [vmem:[#allocation10 + $0x288] sm:$0xff]
    %v754 = vld [vmem:[#allocation10 + $0x290] sm:$0xff]
    %v755 = vld [vmem:[#allocation10 + $0x298] sm:$0xff]
    %v756 = vld [vmem:[#allocation10 + $0x2a0] sm:$0xff]
    %v757 = vld [vmem:[#allocation10 + $0x2a8] sm:$0xff]
    %v758 = vld [vmem:[#allocation10 + $0x2b0] sm:$0xff]
    %v759 = vld [vmem:[#allocation10 + $0x2b8] sm:$0xff]
    %v760 = vld [vmem:[#allocation10 + $0x2c0] sm:$0xff]
    %v761 = vld [vmem:[#allocation10 + $0x2c8] sm:$0xff]
    %v762 = vld [vmem:[#allocation10 + $0x2d0] sm:$0xff]
    %v763 = vld [vmem:[#allocation10 + $0x2d8] sm:$0xff]
    %v764 = vld [vmem:[#allocation10 + $0x2e0] sm:$0xff]
    %v765 = vld [vmem:[#allocation10 + $0x2e8] sm:$0xff]
    %v766 = vld [vmem:[#allocation10 + $0x2f0] sm:$0xff]
    %v767 = vld [vmem:[#allocation10 + $0x2f8] sm:$0xff]
    %v768 = vld [vmem:[#allocation10 + $0x300] sm:$0xff]
    %v769 = vld [vmem:[#allocation10 + $0x308] sm:$0xff]
    %v770 = vld [vmem:[#allocation10 + $0x310] sm:$0xff]
    %v771 = vld [vmem:[#allocation10 + $0x318] sm:$0xff]
    %v772 = vld [vmem:[#allocation10 + $0x320] sm:$0xff]
    %v773 = vld [vmem:[#allocation10 + $0x328] sm:$0xff]
    %v774 = vld [vmem:[#allocation10 + $0x330] sm:$0xff]
    %v775 = vld [vmem:[#allocation10 + $0x338] sm:$0xff]
    %v776 = vld [vmem:[#allocation10 + $0x340] sm:$0xff]
    %v777 = vld [vmem:[#allocation10 + $0x348] sm:$0xff]
    %v778 = vld [vmem:[#allocation10 + $0x350] sm:$0xff]
    %v779 = vld [vmem:[#allocation10 + $0x358] sm:$0xff]
    %v780 = vld [vmem:[#allocation10 + $0x360] sm:$0xff]
    %v781 = vld [vmem:[#allocation10 + $0x368] sm:$0xff]
    %v782 = vld [vmem:[#allocation10 + $0x370] sm:$0xff]
    %v783 = vld [vmem:[#allocation10 + $0x378] sm:$0xff]
    %v784 = vld [vmem:[#allocation10 + $0x380] sm:$0xff]
    %v785 = vld [vmem:[#allocation10 + $0x388] sm:$0xff]
    %v786 = vld [vmem:[#allocation10 + $0x390] sm:$0xff]
    %v787 = vld [vmem:[#allocation10 + $0x398] sm:$0xff]
    %v788 = vld [vmem:[#allocation10 + $0x3a0] sm:$0xff]
    %v789 = vld [vmem:[#allocation10 + $0x3a8] sm:$0xff]
    %v790 = vld [vmem:[#allocation10 + $0x3b0] sm:$0xff]
    %v791 = vld [vmem:[#allocation10 + $0x3b8] sm:$0xff]
    %v792 = vld [vmem:[#allocation10 + $0x3c0] sm:$0xff]
    %v793 = vld [vmem:[#allocation10 + $0x3c8] sm:$0xff]
    %v794 = vld [vmem:[#allocation10 + $0x3d0] sm:$0xff]
    %v795 = vld [vmem:[#allocation10 + $0x3d8] sm:$0xff]
    %v796 = vld [vmem:[#allocation10 + $0x3e0] sm:$0xff]
    %v797 = vld [vmem:[#allocation10 + $0x3e8] sm:$0xff]
    %v798 = vld [vmem:[#allocation10 + $0x3f0] sm:$0xff]
    %v799 = vld [vmem:[#allocation10 + $0x3f8] sm:$0xff]
    %v800 = vld [vmem:[%s5] sm:$0xf]
    %v802 = vlaneseq
    %v803 = vshrl.u32 %v802, 7
    %v804 = vsub.s32 0, %v803
    %v805 = vrot.slane %v800, %v804
    %v806 = vlaneseq
    %v807 = vshrl.u32 %v806, 7
    %v808 = vsub.s32 1, %v807
    %v809 = vrot.slane %v800, %v808
    %v810 = vlaneseq
    %v811 = vshrl.u32 %v810, 7
    %v812 = vsub.s32 2, %v811
    %v813 = vrot.slane %v800, %v812
    %v814 = vlaneseq
    %v815 = vshrl.u32 %v814, 7
    %v816 = vsub.s32 3, %v815
    %v817 = vrot.slane %v800, %v816
    %v824 = vunpack.c.l.s4 1983009808
    %v825 = vunpack.c.0.s8 %v824
    %v826 = vlaneseq
    %v827 = vshrl.u32 %v826, 7
    %v828 = vsub.s32 %v825, %v827
    %v829 = vrot.slane %v671, %v828
    %v830 = vcombine.high %v829, %v829
    %833 = vmatprep.subr.mxu0 %v673
    %834 = vmatpush1.msra.mxu0 %v672
    %835 = vmatprep.subr.mxu0 %v677
    %836 = vmatpush1.msra.mxu0 %v676
    %837 = vmatprep.subr.mxu0 %v681
    %838 = vmatpush1.msra.mxu0 %v680
    %839 = vmatprep.subr.mxu0 %v685
    %840 = vmatpush1.msra.mxu0 %v684
    %841 = vmatprep.subr.mxu0 %v689
    %842 = vmatpush1.msra.mxu0 %v688
    %843 = vmatprep.subr.mxu0 %v693
    %844 = vmatpush1.msra.mxu0 %v692
    %845 = vmatprep.subr.mxu0 %v697
    %846 = vmatpush1.msra.mxu0 %v696
    %847 = vmatprep.subr.mxu0 %v701
    %848 = vmatpush1.msra.mxu0 %v700
    %849 = vmatprep.subr.mxu0 %v705
    %850 = vmatpush1.msra.mxu0 %v704
    %851 = vmatprep.subr.mxu0 %v709
    %852 = vmatpush1.msra.mxu0 %v708
    %853 = vmatprep.subr.mxu0 %v713
    %854 = vmatpush1.msra.mxu0 %v712
    %855 = vmatprep.subr.mxu0 %v717
    %856 = vmatpush1.msra.mxu0 %v716
    %857 = vmatprep.subr.mxu0 %v721
    %858 = vmatpush1.msra.mxu0 %v720
    %859 = vmatprep.subr.mxu0 %v725
    %860 = vmatpush1.msra.mxu0 %v724
    %861 = vmatprep.subr.mxu0 %v729
    %862 = vmatpush1.msra.mxu0 %v728
    %863 = vmatprep.subr.mxu0 %v733
    %864 = vmatpush1.msra.mxu0 %v732
    %865 = vmatprep.subr.mxu0 %v737
    %866 = vmatpush1.msra.mxu0 %v736
    %867 = vmatprep.subr.mxu0 %v741
    %868 = vmatpush1.msra.mxu0 %v740
    %869 = vmatprep.subr.mxu0 %v745
    %870 = vmatpush1.msra.mxu0 %v744
    %871 = vmatprep.subr.mxu0 %v749
    %872 = vmatpush1.msra.mxu0 %v748
    %873 = vmatprep.subr.mxu0 %v753
    %874 = vmatpush1.msra.mxu0 %v752
    %875 = vmatprep.subr.mxu0 %v757
    %876 = vmatpush1.msra.mxu0 %v756
    %877 = vmatprep.subr.mxu0 %v761
    %878 = vmatpush1.msra.mxu0 %v760
    %879 = vmatprep.subr.mxu0 %v765
    %880 = vmatpush1.msra.mxu0 %v764
    %881 = vmatprep.subr.mxu0 %v769
    %882 = vmatpush1.msra.mxu0 %v768
    %883 = vmatprep.subr.mxu0 %v773
    %884 = vmatpush1.msra.mxu0 %v772
    %885 = vmatprep.subr.mxu0 %v777
    %886 = vmatpush1.msra.mxu0 %v776
    %887 = vmatprep.subr.mxu0 %v781
    %888 = vmatpush1.msra.mxu0 %v780
    %889 = vmatprep.subr.mxu0 %v785
    %890 = vmatpush1.msra.mxu0 %v784
    %891 = vmatprep.subr.mxu0 %v789
    %892 = vmatpush1.msra.mxu0 %v788
    %893 = vmatprep.subr.mxu0 %v793
    %894 = vmatpush1.msra.mxu0 %v792
    %895 = vmatprep.subr.mxu0 %v797
    %896 = vmatpush1.msra.mxu0 %v796
    %897 = vmatprep.mubr.f32.mxu0 %v830
    %898 = vmatmul.mubr.f32.gmra.mrb[0].mxu0 %v829
    %v899 = vpop.f32.mrb[0].mxu0
    %v900 = vadd.f32 %v805, %v899
    %v901 = vpop.f32.mrb[0].mxu0
    %v902 = vadd.f32 %v809, %v901
    %903 = vdwg.mxu0
    %904 = vmatprep.subr.mxu0 %v675
    %905 = vmatpush1.msra.mxu0 %v674
    %906 = vmatprep.subr.mxu0 %v679
    %907 = vmatpush1.msra.mxu0 %v678
    %908 = vmatprep.subr.mxu0 %v683
    %909 = vmatpush1.msra.mxu0 %v682
    %910 = vmatprep.subr.mxu0 %v687
    %911 = vmatpush1.msra.mxu0 %v686
    %912 = vmatprep.subr.mxu0 %v691
    %913 = vmatpush1.msra.mxu0 %v690
    %914 = vmatprep.subr.mxu0 %v695
    %915 = vmatpush1.msra.mxu0 %v694
    %916 = vmatprep.subr.mxu0 %v699
    %917 = vmatpush1.msra.mxu0 %v698
    %918 = vmatprep.subr.mxu0 %v703
    %919 = vmatpush1.msra.mxu0 %v702
    %920 = vmatprep.subr.mxu0 %v707
    %921 = vmatpush1.msra.mxu0 %v706
    %922 = vmatprep.subr.mxu0 %v711
    %923 = vmatpush1.msra.mxu0 %v710
    %924 = vmatprep.subr.mxu0 %v715
    %925 = vmatpush1.msra.mxu0 %v714
    %926 = vmatprep.subr.mxu0 %v719
    %927 = vmatpush1.msra.mxu0 %v718
    %928 = vmatprep.subr.mxu0 %v723
    %929 = vmatpush1.msra.mxu0 %v722
    %930 = vmatprep.subr.mxu0 %v727
    %931 = vmatpush1.msra.mxu0 %v726
    %932 = vmatprep.subr.mxu0 %v731
    %933 = vmatpush1.msra.mxu0 %v730
    %934 = vmatprep.subr.mxu0 %v735
    %935 = vmatpush1.msra.mxu0 %v734
    %936 = vmatprep.subr.mxu0 %v739
    %937 = vmatpush1.msra.mxu0 %v738
    %938 = vmatprep.subr.mxu0 %v743
    %939 = vmatpush1.msra.mxu0 %v742
    %940 = vmatprep.subr.mxu0 %v747
    %941 = vmatpush1.msra.mxu0 %v746
    %942 = vmatprep.subr.mxu0 %v751
    %943 = vmatpush1.msra.mxu0 %v750
    %944 = vmatprep.subr.mxu0 %v755
    %945 = vmatpush1.msra.mxu0 %v754
    %946 = vmatprep.subr.mxu0 %v759
    %947 = vmatpush1.msra.mxu0 %v758
    %948 = vmatprep.subr.mxu0 %v763
    %949 = vmatpush1.msra.mxu0 %v762
    %950 = vmatprep.subr.mxu0 %v767
    %951 = vmatpush1.msra.mxu0 %v766
    %952 = vmatprep.subr.mxu0 %v771
    %953 = vmatpush1.msra.mxu0 %v770
    %954 = vmatprep.subr.mxu0 %v775
    %955 = vmatpush1.msra.mxu0 %v774
    %956 = vmatprep.subr.mxu0 %v779
    %957 = vmatpush1.msra.mxu0 %v778
    %958 = vmatprep.subr.mxu0 %v783
    %959 = vmatpush1.msra.mxu0 %v782
    %960 = vmatprep.subr.mxu0 %v787
    %961 = vmatpush1.msra.mxu0 %v786
    %962 = vmatprep.subr.mxu0 %v791
    %963 = vmatpush1.msra.mxu0 %v790
    %964 = vmatprep.subr.mxu0 %v795
    %965 = vmatpush1.msra.mxu0 %v794
    %966 = vmatprep.subr.mxu0 %v799
    %967 = vmatpush1.msra.mxu0 %v798
    %968 = vmatprep.mubr.f32.mxu0 %v830
    %969 = vmatmul.mubr.f32.gmra.mrb[0].mxu0 %v829
    %v970 = vpop.f32.mrb[0].mxu0
    %v971 = vadd.f32 %v813, %v970
    %v972 = vpop.f32.mrb[0].mxu0
    %v973 = vadd.f32 %v817, %v972
    %974 = vdwg.mxu0
    %v975 = vxor.u32 %v900, 2147483648
    %v976 = vmul.f32 %v975, 1.442695
    %v977 = vpow.pop %v976
    %v978 = vadd.f32 %v977, 1.0
    %v979 = vrcp.pop %v978
    %v980 = vmul.f32 1.0, %v979
    %v981 = vxor.u32 %v902, 2147483648
    %v982 = vmul.f32 %v981, 1.442695
    %v983 = vpow.pop %v982
    %v984 = vadd.f32 %v983, 1.0
    %v985 = vrcp.pop %v984
    %v986 = vmul.f32 1.0, %v985
    %v987 = vtanh.pop %v971
    %v988 = vxor.u32 %v973, 2147483648
    %v989 = vmul.f32 %v988, 1.442695
    %v990 = vpow.pop %v989
    %v991 = vadd.f32 %v990, 1.0
    %v992 = vrcp.pop %v991
    %v993 = vmul.f32 1.0, %v992
    %v994 = vld [vmem:[#allocation6] sm:$0x3]
    %v995 = vmul.f32 %v986, %v994
    %v996 = vmul.f32 %v980, %v987
    %v997 = vadd.f32 %v995, %v996
    %v998 = vtanh.pop %v997
    %v999 = vmul.f32 %v993, %v998
    %1000 = vst [vmem:[#allocation6] sm:$0x3] %v997
    %1001 = vst [vmem:[#allocation4 + $0x2] sm:$0x3] %v999
    %1002 = vst [vmem:[#allocation3] sm:$0x3] %v999
    %s1003 = scalar_lea.vmem [#allocation2], 8
    %v1004 = vld [vmem:[%s1003] sm:$0xff]
    %v1005 = vld [vmem:[#allocation4] sm:$0x3]
    %v1006 = vld [vmem:[#allocation8] sm:$0xff]
    %v1007 = vld [vmem:[#allocation8 + $0x8] sm:$0xff]
    %v1008 = vld [vmem:[#allocation8 + $0x10] sm:$0xff]
    %v1009 = vld [vmem:[#allocation8 + $0x18] sm:$0xff]
    %v1010 = vld [vmem:[#allocation8 + $0x20] sm:$0xff]
    %v1011 = vld [vmem:[#allocation8 + $0x28] sm:$0xff]
    %v1012 = vld [vmem:[#allocation8 + $0x30] sm:$0xff]
    %v1013 = vld [vmem:[#allocation8 + $0x38] sm:$0xff]
    %v1014 = vld [vmem:[#allocation8 + $0x40] sm:$0xff]
    %v1015 = vld [vmem:[#allocation8 + $0x48] sm:$0xff]
    %v1016 = vld [vmem:[#allocation8 + $0x50] sm:$0xff]
    %v1017 = vld [vmem:[#allocation8 + $0x58] sm:$0xff]
    %v1018 = vld [vmem:[#allocation8 + $0x60] sm:$0xff]
    %v1019 = vld [vmem:[#allocation8 + $0x68] sm:$0xff]
    %v1020 = vld [vmem:[#allocation8 + $0x70] sm:$0xff]
    %v1021 = vld [vmem:[#allocation8 + $0x78] sm:$0xff]
    %v1022 = vld [vmem:[#allocation8 + $0x80] sm:$0xff]
    %v1023 = vld [vmem:[#allocation8 + $0x88] sm:$0xff]
    %v1024 = vld [vmem:[#allocation8 + $0x90] sm:$0xff]
    %v1025 = vld [vmem:[#allocation8 + $0x98] sm:$0xff]
    %v1026 = vld [vmem:[#allocation8 + $0xa0] sm:$0xff]
    %v1027 = vld [vmem:[#allocation8 + $0xa8] sm:$0xff]
    %v1028 = vld [vmem:[#allocation8 + $0xb0] sm:$0xff]
    %v1029 = vld [vmem:[#allocation8 + $0xb8] sm:$0xff]
    %v1030 = vld [vmem:[#allocation8 + $0xc0] sm:$0xff]
    %v1031 = vld [vmem:[#allocation8 + $0xc8] sm:$0xff]
    %v1032 = vld [vmem:[#allocation8 + $0xd0] sm:$0xff]
    %v1033 = vld [vmem:[#allocation8 + $0xd8] sm:$0xff]
    %v1034 = vld [vmem:[#allocation8 + $0xe0] sm:$0xff]
    %v1035 = vld [vmem:[#allocation8 + $0xe8] sm:$0xff]
    %v1036 = vld [vmem:[#allocation8 + $0xf0] sm:$0xff]
    %v1037 = vld [vmem:[#allocation8 + $0xf8] sm:$0xff]
    %v1038 = vld [vmem:[#allocation8 + $0x100] sm:$0xff]
    %v1039 = vld [vmem:[#allocation8 + $0x108] sm:$0xff]
    %v1040 = vld [vmem:[#allocation8 + $0x110] sm:$0xff]
    %v1041 = vld [vmem:[#allocation8 + $0x118] sm:$0xff]
    %v1042 = vld [vmem:[#allocation8 + $0x120] sm:$0xff]
    %v1043 = vld [vmem:[#allocation8 + $0x128] sm:$0xff]
    %v1044 = vld [vmem:[#allocation8 + $0x130] sm:$0xff]
    %v1045 = vld [vmem:[#allocation8 + $0x138] sm:$0xff]
    %v1046 = vld [vmem:[#allocation8 + $0x140] sm:$0xff]
    %v1047 = vld [vmem:[#allocation8 + $0x148] sm:$0xff]
    %v1048 = vld [vmem:[#allocation8 + $0x150] sm:$0xff]
    %v1049 = vld [vmem:[#allocation8 + $0x158] sm:$0xff]
    %v1050 = vld [vmem:[#allocation8 + $0x160] sm:$0xff]
    %v1051 = vld [vmem:[#allocation8 + $0x168] sm:$0xff]
    %v1052 = vld [vmem:[#allocation8 + $0x170] sm:$0xff]
    %v1053 = vld [vmem:[#allocation8 + $0x178] sm:$0xff]
    %v1054 = vld [vmem:[#allocation8 + $0x180] sm:$0xff]
    %v1055 = vld [vmem:[#allocation8 + $0x188] sm:$0xff]
    %v1056 = vld [vmem:[#allocation8 + $0x190] sm:$0xff]
    %v1057 = vld [vmem:[#allocation8 + $0x198] sm:$0xff]
    %v1058 = vld [vmem:[#allocation8 + $0x1a0] sm:$0xff]
    %v1059 = vld [vmem:[#allocation8 + $0x1a8] sm:$0xff]
    %v1060 = vld [vmem:[#allocation8 + $0x1b0] sm:$0xff]
    %v1061 = vld [vmem:[#allocation8 + $0x1b8] sm:$0xff]
    %v1062 = vld [vmem:[#allocation8 + $0x1c0] sm:$0xff]
    %v1063 = vld [vmem:[#allocation8 + $0x1c8] sm:$0xff]
    %v1064 = vld [vmem:[#allocation8 + $0x1d0] sm:$0xff]
    %v1065 = vld [vmem:[#allocation8 + $0x1d8] sm:$0xff]
    %v1066 = vld [vmem:[#allocation8 + $0x1e0] sm:$0xff]
    %v1067 = vld [vmem:[#allocation8 + $0x1e8] sm:$0xff]
    %v1068 = vld [vmem:[#allocation8 + $0x1f0] sm:$0xff]
    %v1069 = vld [vmem:[#allocation8 + $0x1f8] sm:$0xff]
    %1070 = vmatprep.subr.mxu0 %v1007
    %1071 = vmatpush1.msra.mxu0 %v1006
    %1072 = vmatprep.subr.mxu0 %v1011
    %1073 = vmatpush1.msra.mxu0 %v1010
    %1074 = vmatprep.subr.mxu0 %v1015
    %1075 = vmatpush1.msra.mxu0 %v1014
    %1076 = vmatprep.subr.mxu0 %v1019
    %1077 = vmatpush1.msra.mxu0 %v1018
    %1078 = vmatprep.subr.mxu0 %v1023
    %1079 = vmatpush1.msra.mxu0 %v1022
    %1080 = vmatprep.subr.mxu0 %v1027
    %1081 = vmatpush1.msra.mxu0 %v1026
    %1082 = vmatprep.subr.mxu0 %v1031
    %1083 = vmatpush1.msra.mxu0 %v1030
    %1084 = vmatprep.subr.mxu0 %v1035
    %1085 = vmatpush1.msra.mxu0 %v1034
    %1086 = vmatprep.subr.mxu0 %v1039
    %1087 = vmatpush1.msra.mxu0 %v1038
    %1088 = vmatprep.subr.mxu0 %v1043
    %1089 = vmatpush1.msra.mxu0 %v1042
    %1090 = vmatprep.subr.mxu0 %v1047
    %1091 = vmatpush1.msra.mxu0 %v1046
    %1092 = vmatprep.subr.mxu0 %v1051
    %1093 = vmatpush1.msra.mxu0 %v1050
    %1094 = vmatprep.subr.mxu0 %v1055
    %1095 = vmatpush1.msra.mxu0 %v1054
    %1096 = vmatprep.subr.mxu0 %v1059
    %1097 = vmatpush1.msra.mxu0 %v1058
    %1098 = vmatprep.subr.mxu0 %v1063
    %1099 = vmatpush1.msra.mxu0 %v1062
    %1100 = vmatprep.subr.mxu0 %v1067
    %1101 = vmatpush1.msra.mxu0 %v1066
    %1102 = vmatprep.subr.mxu0 0.0
    %1103 = vmatpush1.msra.mxu0 0.0
    %1104 = vmatprep.subr.mxu0 0.0
    %1105 = vmatpush1.msra.mxu0 0.0
    %1106 = vmatprep.subr.mxu0 0.0
    %1107 = vmatpush1.msra.mxu0 0.0
    %1108 = vmatprep.subr.mxu0 0.0
    %1109 = vmatpush1.msra.mxu0 0.0
    %1110 = vmatprep.subr.mxu0 0.0
    %1111 = vmatpush1.msra.mxu0 0.0
    %1112 = vmatprep.subr.mxu0 0.0
    %1113 = vmatpush1.msra.mxu0 0.0
    %1114 = vmatprep.subr.mxu0 0.0
    %1115 = vmatpush1.msra.mxu0 0.0
    %1116 = vmatprep.subr.mxu0 0.0
    %1117 = vmatpush1.msra.mxu0 0.0
    %1118 = vmatprep.subr.mxu0 0.0
    %1119 = vmatpush1.msra.mxu0 0.0
    %1120 = vmatprep.subr.mxu0 0.0
    %1121 = vmatpush1.msra.mxu0 0.0
    %1122 = vmatprep.subr.mxu0 0.0
    %1123 = vmatpush1.msra.mxu0 0.0
    %1124 = vmatprep.subr.mxu0 0.0
    %1125 = vmatpush1.msra.mxu0 0.0
    %1126 = vmatprep.subr.mxu0 0.0
    %1127 = vmatpush1.msra.mxu0 0.0
    %1128 = vmatprep.subr.mxu0 0.0
    %1129 = vmatpush1.msra.mxu0 0.0
    %1130 = vmatprep.subr.mxu0 0.0
    %1131 = vmatpush1.msra.mxu0 0.0
    %1132 = vmatprep.subr.mxu0 0.0
    %1133 = vmatpush1.msra.mxu0 0.0
    %1134 = vmatprep.mubr.f32.mxu0 0.0
    %1135 = vmatmul.mubr.f32.gmra.mrb[0].mxu0 %v1005
    %v1136 = vpop.f32.mrb[0].mxu0
    %v1137 = vadd.f32 0.0, %v1136
    %v1138 = vpop.f32.mrb[0].mxu0
    %v1139 = vadd.f32 0.0, %v1138
    %1140 = vdwg.mxu0
    %1141 = vmatprep.subr.mxu0 %v1009
    %1142 = vmatpush1.msra.mxu0 %v1008
    %1143 = vmatprep.subr.mxu0 %v1013
    %1144 = vmatpush1.msra.mxu0 %v1012
    %1145 = vmatprep.subr.mxu0 %v1017
    %1146 = vmatpush1.msra.mxu0 %v1016
    %1147 = vmatprep.subr.mxu0 %v1021
    %1148 = vmatpush1.msra.mxu0 %v1020
    %1149 = vmatprep.subr.mxu0 %v1025
    %1150 = vmatpush1.msra.mxu0 %v1024
    %1151 = vmatprep.subr.mxu0 %v1029
    %1152 = vmatpush1.msra.mxu0 %v1028
    %1153 = vmatprep.subr.mxu0 %v1033
    %1154 = vmatpush1.msra.mxu0 %v1032
    %1155 = vmatprep.subr.mxu0 %v1037
    %1156 = vmatpush1.msra.mxu0 %v1036
    %1157 = vmatprep.subr.mxu0 %v1041
    %1158 = vmatpush1.msra.mxu0 %v1040
    %1159 = vmatprep.subr.mxu0 %v1045
    %1160 = vmatpush1.msra.mxu0 %v1044
    %1161 = vmatprep.subr.mxu0 %v1049
    %1162 = vmatpush1.msra.mxu0 %v1048
    %1163 = vmatprep.subr.mxu0 %v1053
    %1164 = vmatpush1.msra.mxu0 %v1052
    %1165 = vmatprep.subr.mxu0 %v1057
    %1166 = vmatpush1.msra.mxu0 %v1056
    %1167 = vmatprep.subr.mxu0 %v1061
    %1168 = vmatpush1.msra.mxu0 %v1060
    %1169 = vmatprep.subr.mxu0 %v1065
    %1170 = vmatpush1.msra.mxu0 %v1064
    %1171 = vmatprep.subr.mxu0 %v1069
    %1172 = vmatpush1.msra.mxu0 %v1068
    %1173 = vmatprep.subr.mxu0 0.0
    %1174 = vmatpush1.msra.mxu0 0.0
    %1175 = vmatprep.subr.mxu0 0.0
    %1176 = vmatpush1.msra.mxu0 0.0
    %1177 = vmatprep.subr.mxu0 0.0
    %1178 = vmatpush1.msra.mxu0 0.0
    %1179 = vmatprep.subr.mxu0 0.0
    %1180 = vmatpush1.msra.mxu0 0.0
    %1181 = vmatprep.subr.mxu0 0.0
    %1182 = vmatpush1.msra.mxu0 0.0
    %1183 = vmatprep.subr.mxu0 0.0
    %1184 = vmatpush1.msra.mxu0 0.0
    %1185 = vmatprep.subr.mxu0 0.0
    %1186 = vmatpush1.msra.mxu0 0.0
    %1187 = vmatprep.subr.mxu0 0.0
    %1188 = vmatpush1.msra.mxu0 0.0
    %1189 = vmatprep.subr.mxu0 0.0
    %1190 = vmatpush1.msra.mxu0 0.0
    %1191 = vmatprep.subr.mxu0 0.0
    %1192 = vmatpush1.msra.mxu0 0.0
    %1193 = vmatprep.subr.mxu0 0.0
    %1194 = vmatpush1.msra.mxu0 0.0
    %1195 = vmatprep.subr.mxu0 0.0
    %1196 = vmatpush1.msra.mxu0 0.0
    %1197 = vmatprep.subr.mxu0 0.0
    %1198 = vmatpush1.msra.mxu0 0.0
    %1199 = vmatprep.subr.mxu0 0.0
    %1200 = vmatpush1.msra.mxu0 0.0
    %1201 = vmatprep.subr.mxu0 0.0
    %1202 = vmatpush1.msra.mxu0 0.0
    %1203 = vmatprep.subr.mxu0 0.0
    %1204 = vmatpush1.msra.mxu0 0.0
    %1205 = vmatprep.mubr.f32.mxu0 0.0
    %1206 = vmatmul.mubr.f32.gmra.mrb[0].mxu0 %v1005
    %v1207 = vpop.f32.mrb[0].mxu0
    %v1208 = vadd.f32 0.0, %v1207
    %v1209 = vpop.f32.mrb[0].mxu0
    %v1210 = vadd.f32 0.0, %v1209
    %1211 = vdwg.mxu0
    %v1216 = vcombine.low %v1137, %v1139
    %v1217 = vcombine.low %v1208, %v1210
    %v1219 = vunpack.c.l.s4 1983009808
    %v1220 = vunpack.c.0.s8 %v1219
    %v1221 = vlaneseq
    %v1222 = vshrl.u32 %v1221, 7
    %v1223 = vsub.s32 %v1220, %v1222
    %v1224 = vrot.slane %v1216, %v1223
    %v1226 = vunpack.c.l.s4 1983009808
    %v1227 = vunpack.c.0.s8 %v1226
    %v1228 = vlaneseq
    %v1229 = vshrl.u32 %v1228, 7
    %v1230 = vsub.s32 %v1227, %v1229
    %v1231 = vrot.slane %v1217, %v1230
    %v1232 = vcombine.low %v1224, %v1231
    %v1234 = vadd.f32 %v1004, %v1232
    %v1235 = vxor.u32 %v1234, 2147483648
    %v1236 = vmul.f32 %v1235, 1.442695
    %v1237 = vpow.pop %v1236
    %v1238 = vadd.f32 %v1237, 1.0
    %v1239 = vrcp.pop %v1238
    %v1240 = vmul.f32 1.0, %v1239
    %v1242 = vrot.slane %v1234, 2
    %v1244 = vxor.u32 %v1242, 2147483648
    %v1245 = vmul.f32 %v1244, 1.442695
    %v1246 = vpow.pop %v1245
    %v1247 = vadd.f32 %v1246, 1.0
    %v1248 = vrcp.pop %v1247
    %v1249 = vmul.f32 1.0, %v1248
    %v1250 = vrot.slane %v1234, 4
    %v1252 = vtanh.pop %v1250
    %v1253 = vrot.slane %v1234, 6
    %v1255 = vxor.u32 %v1253, 2147483648
    %v1256 = vmul.f32 %v1255, 1.442695
    %v1257 = vpow.pop %v1256
    %v1258 = vadd.f32 %v1257, 1.0
    %v1259 = vrcp.pop %v1258
    %v1260 = vmul.f32 1.0, %v1259
    %v1261 = vld [vmem:[#allocation5] sm:$0x3]
    %v1262 = vmul.f32 %v1249, %v1261
    %v1263 = vmul.f32 %v1240, %v1252
    %v1264 = vadd.f32 %v1262, %v1263
    %v1265 = vtanh.pop %v1264
    %v1266 = vmul.f32 %v1260, %v1265
    %1267 = vst [vmem:[#allocation5] sm:$0x3] %v1264
    %1268 = vst [vmem:[#allocation4] sm:$0x3] %v1266
    %v1269 = vld [vmem:[#allocation4] sm:$0xf]
    %v1270 = vld [vmem:[#allocation10] sm:$0xff]
    %v1271 = vld [vmem:[#allocation10 + $0x8] sm:$0xff]
    %v1272 = vld [vmem:[#allocation10 + $0x10] sm:$0xff]
    %v1273 = vld [vmem:[#allocation10 + $0x18] sm:$0xff]
    %v1274 = vld [vmem:[#allocation10 + $0x20] sm:$0xff]
    %v1275 = vld [vmem:[#allocation10 + $0x28] sm:$0xff]
    %v1276 = vld [vmem:[#allocation10 + $0x30] sm:$0xff]
    %v1277 = vld [vmem:[#allocation10 + $0x38] sm:$0xff]
    %v1278 = vld [vmem:[#allocation10 + $0x40] sm:$0xff]
    %v1279 = vld [vmem:[#allocation10 + $0x48] sm:$0xff]
    %v1280 = vld [vmem:[#allocation10 + $0x50] sm:$0xff]
    %v1281 = vld [vmem:[#allocation10 + $0x58] sm:$0xff]
    %v1282 = vld [vmem:[#allocation10 + $0x60] sm:$0xff]
    %v1283 = vld [vmem:[#allocation10 + $0x68] sm:$0xff]
    %v1284 = vld [vmem:[#allocation10 + $0x70] sm:$0xff]
    %v1285 = vld [vmem:[#allocation10 + $0x78] sm:$0xff]
    %v1286 = vld [vmem:[#allocation10 + $0x80] sm:$0xff]
    %v1287 = vld [vmem:[#allocation10 + $0x88] sm:$0xff]
    %v1288 = vld [vmem:[#allocation10 + $0x90] sm:$0xff]
    %v1289 = vld [vmem:[#allocation10 + $0x98] sm:$0xff]
    %v1290 = vld [vmem:[#allocation10 + $0xa0] sm:$0xff]
    %v1291 = vld [vmem:[#allocation10 + $0xa8] sm:$0xff]
    %v1292 = vld [vmem:[#allocation10 + $0xb0] sm:$0xff]
    %v1293 = vld [vmem:[#allocation10 + $0xb8] sm:$0xff]
    %v1294 = vld [vmem:[#allocation10 + $0xc0] sm:$0xff]
    %v1295 = vld [vmem:[#allocation10 + $0xc8] sm:$0xff]
    %v1296 = vld [vmem:[#allocation10 + $0xd0] sm:$0xff]
    %v1297 = vld [vmem:[#allocation10 + $0xd8] sm:$0xff]
    %v1298 = vld [vmem:[#allocation10 + $0xe0] sm:$0xff]
    %v1299 = vld [vmem:[#allocation10 + $0xe8] sm:$0xff]
    %v1300 = vld [vmem:[#allocation10 + $0xf0] sm:$0xff]
    %v1301 = vld [vmem:[#allocation10 + $0xf8] sm:$0xff]
    %v1302 = vld [vmem:[#allocation10 + $0x100] sm:$0xff]
    %v1303 = vld [vmem:[#allocation10 + $0x108] sm:$0xff]
    %v1304 = vld [vmem:[#allocation10 + $0x110] sm:$0xff]
    %v1305 = vld [vmem:[#allocation10 + $0x118] sm:$0xff]
    %v1306 = vld [vmem:[#allocation10 + $0x120] sm:$0xff]
    %v1307 = vld [vmem:[#allocation10 + $0x128] sm:$0xff]
    %v1308 = vld [vmem:[#allocation10 + $0x130] sm:$0xff]
    %v1309 = vld [vmem:[#allocation10 + $0x138] sm:$0xff]
    %v1310 = vld [vmem:[#allocation10 + $0x140] sm:$0xff]
    %v1311 = vld [vmem:[#allocation10 + $0x148] sm:$0xff]
    %v1312 = vld [vmem:[#allocation10 + $0x150] sm:$0xff]
    %v1313 = vld [vmem:[#allocation10 + $0x158] sm:$0xff]
    %v1314 = vld [vmem:[#allocation10 + $0x160] sm:$0xff]
    %v1315 = vld [vmem:[#allocation10 + $0x168] sm:$0xff]
    %v1316 = vld [vmem:[#allocation10 + $0x170] sm:$0xff]
    %v1317 = vld [vmem:[#allocation10 + $0x178] sm:$0xff]
    %v1318 = vld [vmem:[#allocation10 + $0x180] sm:$0xff]
    %v1319 = vld [vmem:[#allocation10 + $0x188] sm:$0xff]
    %v1320 = vld [vmem:[#allocation10 + $0x190] sm:$0xff]
    %v1321 = vld [vmem:[#allocation10 + $0x198] sm:$0xff]
    %v1322 = vld [vmem:[#allocation10 + $0x1a0] sm:$0xff]
    %v1323 = vld [vmem:[#allocation10 + $0x1a8] sm:$0xff]
    %v1324 = vld [vmem:[#allocation10 + $0x1b0] sm:$0xff]
    %v1325 = vld [vmem:[#allocation10 + $0x1b8] sm:$0xff]
    %v1326 = vld [vmem:[#allocation10 + $0x1c0] sm:$0xff]
    %v1327 = vld [vmem:[#allocation10 + $0x1c8] sm:$0xff]
    %v1328 = vld [vmem:[#allocation10 + $0x1d0] sm:$0xff]
    %v1329 = vld [vmem:[#allocation10 + $0x1d8] sm:$0xff]
    %v1330 = vld [vmem:[#allocation10 + $0x1e0] sm:$0xff]
    %v1331 = vld [vmem:[#allocation10 + $0x1e8] sm:$0xff]
    %v1332 = vld [vmem:[#allocation10 + $0x1f0] sm:$0xff]
    %v1333 = vld [vmem:[#allocation10 + $0x1f8] sm:$0xff]
    %v1334 = vld [vmem:[#allocation10 + $0x200] sm:$0xff]
    %v1335 = vld [vmem:[#allocation10 + $0x208] sm:$0xff]
    %v1336 = vld [vmem:[#allocation10 + $0x210] sm:$0xff]
    %v1337 = vld [vmem:[#allocation10 + $0x218] sm:$0xff]
    %v1338 = vld [vmem:[#allocation10 + $0x220] sm:$0xff]
    %v1339 = vld [vmem:[#allocation10 + $0x228] sm:$0xff]
    %v1340 = vld [vmem:[#allocation10 + $0x230] sm:$0xff]
    %v1341 = vld [vmem:[#allocation10 + $0x238] sm:$0xff]
    %v1342 = vld [vmem:[#allocation10 + $0x240] sm:$0xff]
    %v1343 = vld [vmem:[#allocation10 + $0x248] sm:$0xff]
    %v1344 = vld [vmem:[#allocation10 + $0x250] sm:$0xff]
    %v1345 = vld [vmem:[#allocation10 + $0x258] sm:$0xff]
    %v1346 = vld [vmem:[#allocation10 + $0x260] sm:$0xff]
    %v1347 = vld [vmem:[#allocation10 + $0x268] sm:$0xff]
    %v1348 = vld [vmem:[#allocation10 + $0x270] sm:$0xff]
    %v1349 = vld [vmem:[#allocation10 + $0x278] sm:$0xff]
    %v1350 = vld [vmem:[#allocation10 + $0x280] sm:$0xff]
    %v1351 = vld [vmem:[#allocation10 + $0x288] sm:$0xff]
    %v1352 = vld [vmem:[#allocation10 + $0x290] sm:$0xff]
    %v1353 = vld [vmem:[#allocation10 + $0x298] sm:$0xff]
    %v1354 = vld [vmem:[#allocation10 + $0x2a0] sm:$0xff]
    %v1355 = vld [vmem:[#allocation10 + $0x2a8] sm:$0xff]
    %v1356 = vld [vmem:[#allocation10 + $0x2b0] sm:$0xff]
    %v1357 = vld [vmem:[#allocation10 + $0x2b8] sm:$0xff]
    %v1358 = vld [vmem:[#allocation10 + $0x2c0] sm:$0xff]
    %v1359 = vld [vmem:[#allocation10 + $0x2c8] sm:$0xff]
    %v1360 = vld [vmem:[#allocation10 + $0x2d0] sm:$0xff]
    %v1361 = vld [vmem:[#allocation10 + $0x2d8] sm:$0xff]
    %v1362 = vld [vmem:[#allocation10 + $0x2e0] sm:$0xff]
    %v1363 = vld [vmem:[#allocation10 + $0x2e8] sm:$0xff]
    %v1364 = vld [vmem:[#allocation10 + $0x2f0] sm:$0xff]
    %v1365 = vld [vmem:[#allocation10 + $0x2f8] sm:$0xff]
    %v1366 = vld [vmem:[#allocation10 + $0x300] sm:$0xff]
    %v1367 = vld [vmem:[#allocation10 + $0x308] sm:$0xff]
    %v1368 = vld [vmem:[#allocation10 + $0x310] sm:$0xff]
    %v1369 = vld [vmem:[#allocation10 + $0x318] sm:$0xff]
    %v1370 = vld [vmem:[#allocation10 + $0x320] sm:$0xff]
    %v1371 = vld [vmem:[#allocation10 + $0x328] sm:$0xff]
    %v1372 = vld [vmem:[#allocation10 + $0x330] sm:$0xff]
    %v1373 = vld [vmem:[#allocation10 + $0x338] sm:$0xff]
    %v1374 = vld [vmem:[#allocation10 + $0x340] sm:$0xff]
    %v1375 = vld [vmem:[#allocation10 + $0x348] sm:$0xff]
    %v1376 = vld [vmem:[#allocation10 + $0x350] sm:$0xff]
    %v1377 = vld [vmem:[#allocation10 + $0x358] sm:$0xff]
    %v1378 = vld [vmem:[#allocation10 + $0x360] sm:$0xff]
    %v1379 = vld [vmem:[#allocation10 + $0x368] sm:$0xff]
    %v1380 = vld [vmem:[#allocation10 + $0x370] sm:$0xff]
    %v1381 = vld [vmem:[#allocation10 + $0x378] sm:$0xff]
    %v1382 = vld [vmem:[#allocation10 + $0x380] sm:$0xff]
    %v1383 = vld [vmem:[#allocation10 + $0x388] sm:$0xff]
    %v1384 = vld [vmem:[#allocation10 + $0x390] sm:$0xff]
    %v1385 = vld [vmem:[#allocation10 + $0x398] sm:$0xff]
    %v1386 = vld [vmem:[#allocation10 + $0x3a0] sm:$0xff]
    %v1387 = vld [vmem:[#allocation10 + $0x3a8] sm:$0xff]
    %v1388 = vld [vmem:[#allocation10 + $0x3b0] sm:$0xff]
    %v1389 = vld [vmem:[#allocation10 + $0x3b8] sm:$0xff]
    %v1390 = vld [vmem:[#allocation10 + $0x3c0] sm:$0xff]
    %v1391 = vld [vmem:[#allocation10 + $0x3c8] sm:$0xff]
    %v1392 = vld [vmem:[#allocation10 + $0x3d0] sm:$0xff]
    %v1393 = vld [vmem:[#allocation10 + $0x3d8] sm:$0xff]
    %v1394 = vld [vmem:[#allocation10 + $0x3e0] sm:$0xff]
    %v1395 = vld [vmem:[#allocation10 + $0x3e8] sm:$0xff]
    %v1396 = vld [vmem:[#allocation10 + $0x3f0] sm:$0xff]
    %v1397 = vld [vmem:[#allocation10 + $0x3f8] sm:$0xff]
    %v1398 = vld [vmem:[%s5] sm:$0xf]
    %v1400 = vlaneseq
    %v1401 = vshrl.u32 %v1400, 7
    %v1402 = vsub.s32 0, %v1401
    %v1403 = vrot.slane %v1398, %v1402
    %v1404 = vlaneseq
    %v1405 = vshrl.u32 %v1404, 7
    %v1406 = vsub.s32 1, %v1405
    %v1407 = vrot.slane %v1398, %v1406
    %v1408 = vlaneseq
    %v1409 = vshrl.u32 %v1408, 7
    %v1410 = vsub.s32 2, %v1409
    %v1411 = vrot.slane %v1398, %v1410
    %v1412 = vlaneseq
    %v1413 = vshrl.u32 %v1412, 7
    %v1414 = vsub.s32 3, %v1413
    %v1415 = vrot.slane %v1398, %v1414
    %v1422 = vunpack.c.l.s4 1983009808
    %v1423 = vunpack.c.0.s8 %v1422
    %v1424 = vlaneseq
    %v1425 = vshrl.u32 %v1424, 7
    %v1426 = vsub.s32 %v1423, %v1425
    %v1427 = vrot.slane %v1269, %v1426
    %v1428 = vcombine.high %v1427, %v1427
    %1431 = vmatprep.subr.mxu0 %v1271
    %1432 = vmatpush1.msra.mxu0 %v1270
    %1433 = vmatprep.subr.mxu0 %v1275
    %1434 = vmatpush1.msra.mxu0 %v1274
    %1435 = vmatprep.subr.mxu0 %v1279
    %1436 = vmatpush1.msra.mxu0 %v1278
    %1437 = vmatprep.subr.mxu0 %v1283
    %1438 = vmatpush1.msra.mxu0 %v1282
    %1439 = vmatprep.subr.mxu0 %v1287
    %1440 = vmatpush1.msra.mxu0 %v1286
    %1441 = vmatprep.subr.mxu0 %v1291
    %1442 = vmatpush1.msra.mxu0 %v1290
    %1443 = vmatprep.subr.mxu0 %v1295
    %1444 = vmatpush1.msra.mxu0 %v1294
    %1445 = vmatprep.subr.mxu0 %v1299
    %1446 = vmatpush1.msra.mxu0 %v1298
    %1447 = vmatprep.subr.mxu0 %v1303
    %1448 = vmatpush1.msra.mxu0 %v1302
    %1449 = vmatprep.subr.mxu0 %v1307
    %1450 = vmatpush1.msra.mxu0 %v1306
    %1451 = vmatprep.subr.mxu0 %v1311
    %1452 = vmatpush1.msra.mxu0 %v1310
    %1453 = vmatprep.subr.mxu0 %v1315
    %1454 = vmatpush1.msra.mxu0 %v1314
    %1455 = vmatprep.subr.mxu0 %v1319
    %1456 = vmatpush1.msra.mxu0 %v1318
    %1457 = vmatprep.subr.mxu0 %v1323
    %1458 = vmatpush1.msra.mxu0 %v1322
    %1459 = vmatprep.subr.mxu0 %v1327
    %1460 = vmatpush1.msra.mxu0 %v1326
    %1461 = vmatprep.subr.mxu0 %v1331
    %1462 = vmatpush1.msra.mxu0 %v1330
    %1463 = vmatprep.subr.mxu0 %v1335
    %1464 = vmatpush1.msra.mxu0 %v1334
    %1465 = vmatprep.subr.mxu0 %v1339
    %1466 = vmatpush1.msra.mxu0 %v1338
    %1467 = vmatprep.subr.mxu0 %v1343
    %1468 = vmatpush1.msra.mxu0 %v1342
    %1469 = vmatprep.subr.mxu0 %v1347
    %1470 = vmatpush1.msra.mxu0 %v1346
    %1471 = vmatprep.subr.mxu0 %v1351
    %1472 = vmatpush1.msra.mxu0 %v1350
    %1473 = vmatprep.subr.mxu0 %v1355
    %1474 = vmatpush1.msra.mxu0 %v1354
    %1475 = vmatprep.subr.mxu0 %v1359
    %1476 = vmatpush1.msra.mxu0 %v1358
    %1477 = vmatprep.subr.mxu0 %v1363
    %1478 = vmatpush1.msra.mxu0 %v1362
    %1479 = vmatprep.subr.mxu0 %v1367
    %1480 = vmatpush1.msra.mxu0 %v1366
    %1481 = vmatprep.subr.mxu0 %v1371
    %1482 = vmatpush1.msra.mxu0 %v1370
    %1483 = vmatprep.subr.mxu0 %v1375
    %1484 = vmatpush1.msra.mxu0 %v1374
    %1485 = vmatprep.subr.mxu0 %v1379
    %1486 = vmatpush1.msra.mxu0 %v1378
    %1487 = vmatprep.subr.mxu0 %v1383
    %1488 = vmatpush1.msra.mxu0 %v1382
    %1489 = vmatprep.subr.mxu0 %v1387
    %1490 = vmatpush1.msra.mxu0 %v1386
    %1491 = vmatprep.subr.mxu0 %v1391
    %1492 = vmatpush1.msra.mxu0 %v1390
    %1493 = vmatprep.subr.mxu0 %v1395
    %1494 = vmatpush1.msra.mxu0 %v1394
    %1495 = vmatprep.mubr.f32.mxu0 %v1428
    %1496 = vmatmul.mubr.f32.gmra.mrb[0].mxu0 %v1427
    %v1497 = vpop.f32.mrb[0].mxu0
    %v1498 = vadd.f32 %v1403, %v1497
    %v1499 = vpop.f32.mrb[0].mxu0
    %v1500 = vadd.f32 %v1407, %v1499
    %1501 = vdwg.mxu0
    %1502 = vmatprep.subr.mxu0 %v1273
    %1503 = vmatpush1.msra.mxu0 %v1272
    %1504 = vmatprep.subr.mxu0 %v1277
    %1505 = vmatpush1.msra.mxu0 %v1276
    %1506 = vmatprep.subr.mxu0 %v1281
    %1507 = vmatpush1.msra.mxu0 %v1280
    %1508 = vmatprep.subr.mxu0 %v1285
    %1509 = vmatpush1.msra.mxu0 %v1284
    %1510 = vmatprep.subr.mxu0 %v1289
    %1511 = vmatpush1.msra.mxu0 %v1288
    %1512 = vmatprep.subr.mxu0 %v1293
    %1513 = vmatpush1.msra.mxu0 %v1292
    %1514 = vmatprep.subr.mxu0 %v1297
    %1515 = vmatpush1.msra.mxu0 %v1296
    %1516 = vmatprep.subr.mxu0 %v1301
    %1517 = vmatpush1.msra.mxu0 %v1300
    %1518 = vmatprep.subr.mxu0 %v1305
    %1519 = vmatpush1.msra.mxu0 %v1304
    %1520 = vmatprep.subr.mxu0 %v1309
    %1521 = vmatpush1.msra.mxu0 %v1308
    %1522 = vmatprep.subr.mxu0 %v1313
    %1523 = vmatpush1.msra.mxu0 %v1312
    %1524 = vmatprep.subr.mxu0 %v1317
    %1525 = vmatpush1.msra.mxu0 %v1316
    %1526 = vmatprep.subr.mxu0 %v1321
    %1527 = vmatpush1.msra.mxu0 %v1320
    %1528 = vmatprep.subr.mxu0 %v1325
    %1529 = vmatpush1.msra.mxu0 %v1324
    %1530 = vmatprep.subr.mxu0 %v1329
    %1531 = vmatpush1.msra.mxu0 %v1328
    %1532 = vmatprep.subr.mxu0 %v1333
    %1533 = vmatpush1.msra.mxu0 %v1332
    %1534 = vmatprep.subr.mxu0 %v1337
    %1535 = vmatpush1.msra.mxu0 %v1336
    %1536 = vmatprep.subr.mxu0 %v1341
    %1537 = vmatpush1.msra.mxu0 %v1340
    %1538 = vmatprep.subr.mxu0 %v1345
    %1539 = vmatpush1.msra.mxu0 %v1344
    %1540 = vmatprep.subr.mxu0 %v1349
    %1541 = vmatpush1.msra.mxu0 %v1348
    %1542 = vmatprep.subr.mxu0 %v1353
    %1543 = vmatpush1.msra.mxu0 %v1352
    %1544 = vmatprep.subr.mxu0 %v1357
    %1545 = vmatpush1.msra.mxu0 %v1356
    %1546 = vmatprep.subr.mxu0 %v1361
    %1547 = vmatpush1.msra.mxu0 %v1360
    %1548 = vmatprep.subr.mxu0 %v1365
    %1549 = vmatpush1.msra.mxu0 %v1364
    %1550 = vmatprep.subr.mxu0 %v1369
    %1551 = vmatpush1.msra.mxu0 %v1368
    %1552 = vmatprep.subr.mxu0 %v1373
    %1553 = vmatpush1.msra.mxu0 %v1372
    %1554 = vmatprep.subr.mxu0 %v1377
    %1555 = vmatpush1.msra.mxu0 %v1376
    %1556 = vmatprep.subr.mxu0 %v1381
    %1557 = vmatpush1.msra.mxu0 %v1380
    %1558 = vmatprep.subr.mxu0 %v1385
    %1559 = vmatpush1.msra.mxu0 %v1384
    %1560 = vmatprep.subr.mxu0 %v1389
    %1561 = vmatpush1.msra.mxu0 %v1388
    %1562 = vmatprep.subr.mxu0 %v1393
    %1563 = vmatpush1.msra.mxu0 %v1392
    %1564 = vmatprep.subr.mxu0 %v1397
    %1565 = vmatpush1.msra.mxu0 %v1396
    %1566 = vmatprep.mubr.f32.mxu0 %v1428
    %1567 = vmatmul.mubr.f32.gmra.mrb[0].mxu0 %v1427
    %v1568 = vpop.f32.mrb[0].mxu0
    %v1569 = vadd.f32 %v1411, %v1568
    %v1570 = vpop.f32.mrb[0].mxu0
    %v1571 = vadd.f32 %v1415, %v1570
    %1572 = vdwg.mxu0
    %v1573 = vxor.u32 %v1498, 2147483648
    %v1574 = vmul.f32 %v1573, 1.442695
    %v1575 = vpow.pop %v1574
    %v1576 = vadd.f32 %v1575, 1.0
    %v1577 = vrcp.pop %v1576
    %v1578 = vmul.f32 1.0, %v1577
    %v1579 = vxor.u32 %v1500, 2147483648
    %v1580 = vmul.f32 %v1579, 1.442695
    %v1581 = vpow.pop %v1580
    %v1582 = vadd.f32 %v1581, 1.0
    %v1583 = vrcp.pop %v1582
    %v1584 = vmul.f32 1.0, %v1583
    %v1585 = vtanh.pop %v1569
    %v1586 = vxor.u32 %v1571, 2147483648
    %v1587 = vmul.f32 %v1586, 1.442695
    %v1588 = vpow.pop %v1587
    %v1589 = vadd.f32 %v1588, 1.0
    %v1590 = vrcp.pop %v1589
    %v1591 = vmul.f32 1.0, %v1590
    %v1592 = vld [vmem:[#allocation6] sm:$0x3]
    %v1593 = vmul.f32 %v1584, %v1592
    %v1594 = vmul.f32 %v1578, %v1585
    %v1595 = vadd.f32 %v1593, %v1594
    %v1596 = vtanh.pop %v1595
    %v1597 = vmul.f32 %v1591, %v1596
    %1598 = vst [vmem:[#allocation6] sm:$0x3] %v1595
    %1599 = vst [vmem:[#allocation4 + $0x2] sm:$0x3] %v1597
    %s1600 = scalar_lea.vmem [#allocation3], 2
    %1601 = vst [vmem:[%s1600] sm:$0x3] %v1597
    %s1602 = scalar_lea.vmem [#allocation2], 16
    %v1603 = vld [vmem:[%s1602] sm:$0xff]
    %v1604 = vld [vmem:[#allocation4] sm:$0x3]
    %v1605 = vld [vmem:[#allocation8] sm:$0xff]
    %v1606 = vld [vmem:[#allocation8 + $0x8] sm:$0xff]
    %v1607 = vld [vmem:[#allocation8 + $0x10] sm:$0xff]
    %v1608 = vld [vmem:[#allocation8 + $0x18] sm:$0xff]
    %v1609 = vld [vmem:[#allocation8 + $0x20] sm:$0xff]
    %v1610 = vld [vmem:[#allocation8 + $0x28] sm:$0xff]
    %v1611 = vld [vmem:[#allocation8 + $0x30] sm:$0xff]
    %v1612 = vld [vmem:[#allocation8 + $0x38] sm:$0xff]
    %v1613 = vld [vmem:[#allocation8 + $0x40] sm:$0xff]
    %v1614 = vld [vmem:[#allocation8 + $0x48] sm:$0xff]
    %v1615 = vld [vmem:[#allocation8 + $0x50] sm:$0xff]
    %v1616 = vld [vmem:[#allocation8 + $0x58] sm:$0xff]
    %v1617 = vld [vmem:[#allocation8 + $0x60] sm:$0xff]
    %v1618 = vld [vmem:[#allocation8 + $0x68] sm:$0xff]
    %v1619 = vld [vmem:[#allocation8 + $0x70] sm:$0xff]
    %v1620 = vld [vmem:[#allocation8 + $0x78] sm:$0xff]
    %v1621 = vld [vmem:[#allocation8 + $0x80] sm:$0xff]
    %v1622 = vld [vmem:[#allocation8 + $0x88] sm:$0xff]
    %v1623 = vld [vmem:[#allocation8 + $0x90] sm:$0xff]
    %v1624 = vld [vmem:[#allocation8 + $0x98] sm:$0xff]
    %v1625 = vld [vmem:[#allocation8 + $0xa0] sm:$0xff]
    %v1626 = vld [vmem:[#allocation8 + $0xa8] sm:$0xff]
    %v1627 = vld [vmem:[#allocation8 + $0xb0] sm:$0xff]
    %v1628 = vld [vmem:[#allocation8 + $0xb8] sm:$0xff]
    %v1629 = vld [vmem:[#allocation8 + $0xc0] sm:$0xff]
    %v1630 = vld [vmem:[#allocation8 + $0xc8] sm:$0xff]
    %v1631 = vld [vmem:[#allocation8 + $0xd0] sm:$0xff]
    %v1632 = vld [vmem:[#allocation8 + $0xd8] sm:$0xff]
    %v1633 = vld [vmem:[#allocation8 + $0xe0] sm:$0xff]
    %v1634 = vld [vmem:[#allocation8 + $0xe8] sm:$0xff]
    %v1635 = vld [vmem:[#allocation8 + $0xf0] sm:$0xff]
    %v1636 = vld [vmem:[#allocation8 + $0xf8] sm:$0xff]
    %v1637 = vld [vmem:[#allocation8 + $0x100] sm:$0xff]
    %v1638 = vld [vmem:[#allocation8 + $0x108] sm:$0xff]
    %v1639 = vld [vmem:[#allocation8 + $0x110] sm:$0xff]
    %v1640 = vld [vmem:[#allocation8 + $0x118] sm:$0xff]
    %v1641 = vld [vmem:[#allocation8 + $0x120] sm:$0xff]
    %v1642 = vld [vmem:[#allocation8 + $0x128] sm:$0xff]
    %v1643 = vld [vmem:[#allocation8 + $0x130] sm:$0xff]
    %v1644 = vld [vmem:[#allocation8 + $0x138] sm:$0xff]
    %v1645 = vld [vmem:[#allocation8 + $0x140] sm:$0xff]
    %v1646 = vld [vmem:[#allocation8 + $0x148] sm:$0xff]
    %v1647 = vld [vmem:[#allocation8 + $0x150] sm:$0xff]
    %v1648 = vld [vmem:[#allocation8 + $0x158] sm:$0xff]
    %v1649 = vld [vmem:[#allocation8 + $0x160] sm:$0xff]
    %v1650 = vld [vmem:[#allocation8 + $0x168] sm:$0xff]
    %v1651 = vld [vmem:[#allocation8 + $0x170] sm:$0xff]
    %v1652 = vld [vmem:[#allocation8 + $0x178] sm:$0xff]
    %v1653 = vld [vmem:[#allocation8 + $0x180] sm:$0xff]
    %v1654 = vld [vmem:[#allocation8 + $0x188] sm:$0xff]
    %v1655 = vld [vmem:[#allocation8 + $0x190] sm:$0xff]
    %v1656 = vld [vmem:[#allocation8 + $0x198] sm:$0xff]
    %v1657 = vld [vmem:[#allocation8 + $0x1a0] sm:$0xff]
    %v1658 = vld [vmem:[#allocation8 + $0x1a8] sm:$0xff]
    %v1659 = vld [vmem:[#allocation8 + $0x1b0] sm:$0xff]
    %v1660 = vld [vmem:[#allocation8 + $0x1b8] sm:$0xff]
    %v1661 = vld [vmem:[#allocation8 + $0x1c0] sm:$0xff]
    %v1662 = vld [vmem:[#allocation8 + $0x1c8] sm:$0xff]
    %v1663 = vld [vmem:[#allocation8 + $0x1d0] sm:$0xff]
    %v1664 = vld [vmem:[#allocation8 + $0x1d8] sm:$0xff]
    %v1665 = vld [vmem:[#allocation8 + $0x1e0] sm:$0xff]
    %v1666 = vld [vmem:[#allocation8 + $0x1e8] sm:$0xff]
    %v1667 = vld [vmem:[#allocation8 + $0x1f0] sm:$0xff]
    %v1668 = vld [vmem:[#allocation8 + $0x1f8] sm:$0xff]
    %1669 = vmatprep.subr.mxu0 %v1606
    %1670 = vmatpush1.msra.mxu0 %v1605
    %1671 = vmatprep.subr.mxu0 %v1610
    %1672 = vmatpush1.msra.mxu0 %v1609
    %1673 = vmatprep.subr.mxu0 %v1614
    %1674 = vmatpush1.msra.mxu0 %v1613
    %1675 = vmatprep.subr.mxu0 %v1618
    %1676 = vmatpush1.msra.mxu0 %v1617
    %1677 = vmatprep.subr.mxu0 %v1622
    %1678 = vmatpush1.msra.mxu0 %v1621
    %1679 = vmatprep.subr.mxu0 %v1626
    %1680 = vmatpush1.msra.mxu0 %v1625
    %1681 = vmatprep.subr.mxu0 %v1630
    %1682 = vmatpush1.msra.mxu0 %v1629
    %1683 = vmatprep.subr.mxu0 %v1634
    %1684 = vmatpush1.msra.mxu0 %v1633
    %1685 = vmatprep.subr.mxu0 %v1638
    %1686 = vmatpush1.msra.mxu0 %v1637
    %1687 = vmatprep.subr.mxu0 %v1642
    %1688 = vmatpush1.msra.mxu0 %v1641
    %1689 = vmatprep.subr.mxu0 %v1646
    %1690 = vmatpush1.msra.mxu0 %v1645
    %1691 = vmatprep.subr.mxu0 %v1650
    %1692 = vmatpush1.msra.mxu0 %v1649
    %1693 = vmatprep.subr.mxu0 %v1654
    %1694 = vmatpush1.msra.mxu0 %v1653
    %1695 = vmatprep.subr.mxu0 %v1658
    %1696 = vmatpush1.msra.mxu0 %v1657
    %1697 = vmatprep.subr.mxu0 %v1662
    %1698 = vmatpush1.msra.mxu0 %v1661
    %1699 = vmatprep.subr.mxu0 %v1666
    %1700 = vmatpush1.msra.mxu0 %v1665
    %1701 = vmatprep.subr.mxu0 0.0
    %1702 = vmatpush1.msra.mxu0 0.0
    %1703 = vmatprep.subr.mxu0 0.0
    %1704 = vmatpush1.msra.mxu0 0.0
    %1705 = vmatprep.subr.mxu0 0.0
    %1706 = vmatpush1.msra.mxu0 0.0
    %1707 = vmatprep.subr.mxu0 0.0
    %1708 = vmatpush1.msra.mxu0 0.0
    %1709 = vmatprep.subr.mxu0 0.0
    %1710 = vmatpush1.msra.mxu0 0.0
    %1711 = vmatprep.subr.mxu0 0.0
    %1712 = vmatpush1.msra.mxu0 0.0
    %1713 = vmatprep.subr.mxu0 0.0
    %1714 = vmatpush1.msra.mxu0 0.0
    %1715 = vmatprep.subr.mxu0 0.0
    %1716 = vmatpush1.msra.mxu0 0.0
    %1717 = vmatprep.subr.mxu0 0.0
    %1718 = vmatpush1.msra.mxu0 0.0
    %1719 = vmatprep.subr.mxu0 0.0
    %1720 = vmatpush1.msra.mxu0 0.0
    %1721 = vmatprep.subr.mxu0 0.0
    %1722 = vmatpush1.msra.mxu0 0.0
    %1723 = vmatprep.subr.mxu0 0.0
    %1724 = vmatpush1.msra.mxu0 0.0
    %1725 = vmatprep.subr.mxu0 0.0
    %1726 = vmatpush1.msra.mxu0 0.0
    %1727 = vmatprep.subr.mxu0 0.0
    %1728 = vmatpush1.msra.mxu0 0.0
    %1729 = vmatprep.subr.mxu0 0.0
    %1730 = vmatpush1.msra.mxu0 0.0
    %1731 = vmatprep.subr.mxu0 0.0
    %1732 = vmatpush1.msra.mxu0 0.0
    %1733 = vmatprep.mubr.f32.mxu0 0.0
    %1734 = vmatmul.mubr.f32.gmra.mrb[0].mxu0 %v1604
    %v1735 = vpop.f32.mrb[0].mxu0
    %v1736 = vadd.f32 0.0, %v1735
    %v1737 = vpop.f32.mrb[0].mxu0
    %v1738 = vadd.f32 0.0, %v1737
    %1739 = vdwg.mxu0
    %1740 = vmatprep.subr.mxu0 %v1608
    %1741 = vmatpush1.msra.mxu0 %v1607
    %1742 = vmatprep.subr.mxu0 %v1612
    %1743 = vmatpush1.msra.mxu0 %v1611
    %1744 = vmatprep.subr.mxu0 %v1616
    %1745 = vmatpush1.msra.mxu0 %v1615
    %1746 = vmatprep.subr.mxu0 %v1620
    %1747 = vmatpush1.msra.mxu0 %v1619
    %1748 = vmatprep.subr.mxu0 %v1624
    %1749 = vmatpush1.msra.mxu0 %v1623
    %1750 = vmatprep.subr.mxu0 %v1628
    %1751 = vmatpush1.msra.mxu0 %v1627
    %1752 = vmatprep.subr.mxu0 %v1632
    %1753 = vmatpush1.msra.mxu0 %v1631
    %1754 = vmatprep.subr.mxu0 %v1636
    %1755 = vmatpush1.msra.mxu0 %v1635
    %1756 = vmatprep.subr.mxu0 %v1640
    %1757 = vmatpush1.msra.mxu0 %v1639
    %1758 = vmatprep.subr.mxu0 %v1644
    %1759 = vmatpush1.msra.mxu0 %v1643
    %1760 = vmatprep.subr.mxu0 %v1648
    %1761 = vmatpush1.msra.mxu0 %v1647
    %1762 = vmatprep.subr.mxu0 %v1652
    %1763 = vmatpush1.msra.mxu0 %v1651
    %1764 = vmatprep.subr.mxu0 %v1656
    %1765 = vmatpush1.msra.mxu0 %v1655
    %1766 = vmatprep.subr.mxu0 %v1660
    %1767 = vmatpush1.msra.mxu0 %v1659
    %1768 = vmatprep.subr.mxu0 %v1664
    %1769 = vmatpush1.msra.mxu0 %v1663
    %1770 = vmatprep.subr.mxu0 %v1668
    %1771 = vmatpush1.msra.mxu0 %v1667
    %1772 = vmatprep.subr.mxu0 0.0
    %1773 = vmatpush1.msra.mxu0 0.0
    %1774 = vmatprep.subr.mxu0 0.0
    %1775 = vmatpush1.msra.mxu0 0.0
    %1776 = vmatprep.subr.mxu0 0.0
    %1777 = vmatpush1.msra.mxu0 0.0
    %1778 = vmatprep.subr.mxu0 0.0
    %1779 = vmatpush1.msra.mxu0 0.0
    %1780 = vmatprep.subr.mxu0 0.0
    %1781 = vmatpush1.msra.mxu0 0.0
    %1782 = vmatprep.subr.mxu0 0.0
    %1783 = vmatpush1.msra.mxu0 0.0
    %1784 = vmatprep.subr.mxu0 0.0
    %1785 = vmatpush1.msra.mxu0 0.0
    %1786 = vmatprep.subr.mxu0 0.0
    %1787 = vmatpush1.msra.mxu0 0.0
    %1788 = vmatprep.subr.mxu0 0.0
    %1789 = vmatpush1.msra.mxu0 0.0
    %1790 = vmatprep.subr.mxu0 0.0
    %1791 = vmatpush1.msra.mxu0 0.0
    %1792 = vmatprep.subr.mxu0 0.0
    %1793 = vmatpush1.msra.mxu0 0.0
    %1794 = vmatprep.subr.mxu0 0.0
    %1795 = vmatpush1.msra.mxu0 0.0
    %1796 = vmatprep.subr.mxu0 0.0
    %1797 = vmatpush1.msra.mxu0 0.0
    %1798 = vmatprep.subr.mxu0 0.0
    %1799 = vmatpush1.msra.mxu0 0.0
    %1800 = vmatprep.subr.mxu0 0.0
    %1801 = vmatpush1.msra.mxu0 0.0
    %1802 = vmatprep.subr.mxu0 0.0
    %1803 = vmatpush1.msra.mxu0 0.0
    %1804 = vmatprep.mubr.f32.mxu0 0.0
    %1805 = vmatmul.mubr.f32.gmra.mrb[0].mxu0 %v1604
    %v1806 = vpop.f32.mrb[0].mxu0
    %v1807 = vadd.f32 0.0, %v1806
    %v1808 = vpop.f32.mrb[0].mxu0
    %v1809 = vadd.f32 0.0, %v1808
    %1810 = vdwg.mxu0
    %v1815 = vcombine.low %v1736, %v1738
    %v1816 = vcombine.low %v1807, %v1809
    %v1818 = vunpack.c.l.s4 1983009808
    %v1819 = vunpack.c.0.s8 %v1818
    %v1820 = vlaneseq
    %v1821 = vshrl.u32 %v1820, 7
    %v1822 = vsub.s32 %v1819, %v1821
    %v1823 = vrot.slane %v1815, %v1822
    %v1825 = vunpack.c.l.s4 1983009808
    %v1826 = vunpack.c.0.s8 %v1825
    %v1827 = vlaneseq
    %v1828 = vshrl.u32 %v1827, 7
    %v1829 = vsub.s32 %v1826, %v1828
    %v1830 = vrot.slane %v1816, %v1829
    %v1831 = vcombine.low %v1823, %v1830
    %v1833 = vadd.f32 %v1603, %v1831
    %v1834 = vxor.u32 %v1833, 2147483648
    %v1835 = vmul.f32 %v1834, 1.442695
    %v1836 = vpow.pop %v1835
    %v1837 = vadd.f32 %v1836, 1.0
    %v1838 = vrcp.pop %v1837
    %v1839 = vmul.f32 1.0, %v1838
    %v1841 = vrot.slane %v1833, 2
    %v1843 = vxor.u32 %v1841, 2147483648
    %v1844 = vmul.f32 %v1843, 1.442695
    %v1845 = vpow.pop %v1844
    %v1846 = vadd.f32 %v1845, 1.0
    %v1847 = vrcp.pop %v1846
    %v1848 = vmul.f32 1.0, %v1847
    %v1849 = vrot.slane %v1833, 4
    %v1851 = vtanh.pop %v1849
    %v1852 = vrot.slane %v1833, 6
    %v1854 = vxor.u32 %v1852, 2147483648
    %v1855 = vmul.f32 %v1854, 1.442695
    %v1856 = vpow.pop %v1855
    %v1857 = vadd.f32 %v1856, 1.0
    %v1858 = vrcp.pop %v1857
    %v1859 = vmul.f32 1.0, %v1858
    %v1860 = vld [vmem:[#allocation5] sm:$0x3]
    %v1861 = vmul.f32 %v1848, %v1860
    %v1862 = vmul.f32 %v1839, %v1851
    %v1863 = vadd.f32 %v1861, %v1862
    %v1864 = vtanh.pop %v1863
    %v1865 = vmul.f32 %v1859, %v1864
    %1866 = vst [vmem:[#allocation5] sm:$0x3] %v1863
    %1867 = vst [vmem:[#allocation4] sm:$0x3] %v1865
    %v1868 = vld [vmem:[#allocation4] sm:$0xf]
    %v1869 = vld [vmem:[#allocation10] sm:$0xff]
    %v1870 = vld [vmem:[#allocation10 + $0x8] sm:$0xff]
    %v1871 = vld [vmem:[#allocation10 + $0x10] sm:$0xff]
    %v1872 = vld [vmem:[#allocation10 + $0x18] sm:$0xff]
    %v1873 = vld [vmem:[#allocation10 + $0x20] sm:$0xff]
    %v1874 = vld [vmem:[#allocation10 + $0x28] sm:$0xff]
    %v1875 = vld [vmem:[#allocation10 + $0x30] sm:$0xff]
    %v1876 = vld [vmem:[#allocation10 + $0x38] sm:$0xff]
    %v1877 = vld [vmem:[#allocation10 + $0x40] sm:$0xff]
    %v1878 = vld [vmem:[#allocation10 + $0x48] sm:$0xff]
    %v1879 = vld [vmem:[#allocation10 + $0x50] sm:$0xff]
    %v1880 = vld [vmem:[#allocation10 + $0x58] sm:$0xff]
    %v1881 = vld [vmem:[#allocation10 + $0x60] sm:$0xff]
    %v1882 = vld [vmem:[#allocation10 + $0x68] sm:$0xff]
    %v1883 = vld [vmem:[#allocation10 + $0x70] sm:$0xff]
    %v1884 = vld [vmem:[#allocation10 + $0x78] sm:$0xff]
    %v1885 = vld [vmem:[#allocation10 + $0x80] sm:$0xff]
    %v1886 = vld [vmem:[#allocation10 + $0x88] sm:$0xff]
    %v1887 = vld [vmem:[#allocation10 + $0x90] sm:$0xff]
    %v1888 = vld [vmem:[#allocation10 + $0x98] sm:$0xff]
    %v1889 = vld [vmem:[#allocation10 + $0xa0] sm:$0xff]
    %v1890 = vld [vmem:[#allocation10 + $0xa8] sm:$0xff]
    %v1891 = vld [vmem:[#allocation10 + $0xb0] sm:$0xff]
    %v1892 = vld [vmem:[#allocation10 + $0xb8] sm:$0xff]
    %v1893 = vld [vmem:[#allocation10 + $0xc0] sm:$0xff]
    %v1894 = vld [vmem:[#allocation10 + $0xc8] sm:$0xff]
    %v1895 = vld [vmem:[#allocation10 + $0xd0] sm:$0xff]
    %v1896 = vld [vmem:[#allocation10 + $0xd8] sm:$0xff]
    %v1897 = vld [vmem:[#allocation10 + $0xe0] sm:$0xff]
    %v1898 = vld [vmem:[#allocation10 + $0xe8] sm:$0xff]
    %v1899 = vld [vmem:[#allocation10 + $0xf0] sm:$0xff]
    %v1900 = vld [vmem:[#allocation10 + $0xf8] sm:$0xff]
    %v1901 = vld [vmem:[#allocation10 + $0x100] sm:$0xff]
    %v1902 = vld [vmem:[#allocation10 + $0x108] sm:$0xff]
    %v1903 = vld [vmem:[#allocation10 + $0x110] sm:$0xff]
    %v1904 = vld [vmem:[#allocation10 + $0x118] sm:$0xff]
    %v1905 = vld [vmem:[#allocation10 + $0x120] sm:$0xff]
    %v1906 = vld [vmem:[#allocation10 + $0x128] sm:$0xff]
    %v1907 = vld [vmem:[#allocation10 + $0x130] sm:$0xff]
    %v1908 = vld [vmem:[#allocation10 + $0x138] sm:$0xff]
    %v1909 = vld [vmem:[#allocation10 + $0x140] sm:$0xff]
    %v1910 = vld [vmem:[#allocation10 + $0x148] sm:$0xff]
    %v1911 = vld [vmem:[#allocation10 + $0x150] sm:$0xff]
    %v1912 = vld [vmem:[#allocation10 + $0x158] sm:$0xff]
    %v1913 = vld [vmem:[#allocation10 + $0x160] sm:$0xff]
    %v1914 = vld [vmem:[#allocation10 + $0x168] sm:$0xff]
    %v1915 = vld [vmem:[#allocation10 + $0x170] sm:$0xff]
    %v1916 = vld [vmem:[#allocation10 + $0x178] sm:$0xff]
    %v1917 = vld [vmem:[#allocation10 + $0x180] sm:$0xff]
    %v1918 = vld [vmem:[#allocation10 + $0x188] sm:$0xff]
    %v1919 = vld [vmem:[#allocation10 + $0x190] sm:$0xff]
    %v1920 = vld [vmem:[#allocation10 + $0x198] sm:$0xff]
    %v1921 = vld [vmem:[#allocation10 + $0x1a0] sm:$0xff]
    %v1922 = vld [vmem:[#allocation10 + $0x1a8] sm:$0xff]
    %v1923 = vld [vmem:[#allocation10 + $0x1b0] sm:$0xff]
    %v1924 = vld [vmem:[#allocation10 + $0x1b8] sm:$0xff]
    %v1925 = vld [vmem:[#allocation10 + $0x1c0] sm:$0xff]
    %v1926 = vld [vmem:[#allocation10 + $0x1c8] sm:$0xff]
    %v1927 = vld [vmem:[#allocation10 + $0x1d0] sm:$0xff]
    %v1928 = vld [vmem:[#allocation10 + $0x1d8] sm:$0xff]
    %v1929 = vld [vmem:[#allocation10 + $0x1e0] sm:$0xff]
    %v1930 = vld [vmem:[#allocation10 + $0x1e8] sm:$0xff]
    %v1931 = vld [vmem:[#allocation10 + $0x1f0] sm:$0xff]
    %v1932 = vld [vmem:[#allocation10 + $0x1f8] sm:$0xff]
    %v1933 = vld [vmem:[#allocation10 + $0x200] sm:$0xff]
    %v1934 = vld [vmem:[#allocation10 + $0x208] sm:$0xff]
    %v1935 = vld [vmem:[#allocation10 + $0x210] sm:$0xff]
    %v1936 = vld [vmem:[#allocation10 + $0x218] sm:$0xff]
    %v1937 = vld [vmem:[#allocation10 + $0x220] sm:$0xff]
    %v1938 = vld [vmem:[#allocation10 + $0x228] sm:$0xff]
    %v1939 = vld [vmem:[#allocation10 + $0x230] sm:$0xff]
    %v1940 = vld [vmem:[#allocation10 + $0x238] sm:$0xff]
    %v1941 = vld [vmem:[#allocation10 + $0x240] sm:$0xff]
    %v1942 = vld [vmem:[#allocation10 + $0x248] sm:$0xff]
    %v1943 = vld [vmem:[#allocation10 + $0x250] sm:$0xff]
    %v1944 = vld [vmem:[#allocation10 + $0x258] sm:$0xff]
    %v1945 = vld [vmem:[#allocation10 + $0x260] sm:$0xff]
    %v1946 = vld [vmem:[#allocation10 + $0x268] sm:$0xff]
    %v1947 = vld [vmem:[#allocation10 + $0x270] sm:$0xff]
    %v1948 = vld [vmem:[#allocation10 + $0x278] sm:$0xff]
    %v1949 = vld [vmem:[#allocation10 + $0x280] sm:$0xff]
    %v1950 = vld [vmem:[#allocation10 + $0x288] sm:$0xff]
    %v1951 = vld [vmem:[#allocation10 + $0x290] sm:$0xff]
    %v1952 = vld [vmem:[#allocation10 + $0x298] sm:$0xff]
    %v1953 = vld [vmem:[#allocation10 + $0x2a0] sm:$0xff]
    %v1954 = vld [vmem:[#allocation10 + $0x2a8] sm:$0xff]
    %v1955 = vld [vmem:[#allocation10 + $0x2b0] sm:$0xff]
    %v1956 = vld [vmem:[#allocation10 + $0x2b8] sm:$0xff]
    %v1957 = vld [vmem:[#allocation10 + $0x2c0] sm:$0xff]
    %v1958 = vld [vmem:[#allocation10 + $0x2c8] sm:$0xff]
    %v1959 = vld [vmem:[#allocation10 + $0x2d0] sm:$0xff]
    %v1960 = vld [vmem:[#allocation10 + $0x2d8] sm:$0xff]
    %v1961 = vld [vmem:[#allocation10 + $0x2e0] sm:$0xff]
    %v1962 = vld [vmem:[#allocation10 + $0x2e8] sm:$0xff]
    %v1963 = vld [vmem:[#allocation10 + $0x2f0] sm:$0xff]
    %v1964 = vld [vmem:[#allocation10 + $0x2f8] sm:$0xff]
    %v1965 = vld [vmem:[#allocation10 + $0x300] sm:$0xff]
    %v1966 = vld [vmem:[#allocation10 + $0x308] sm:$0xff]
    %v1967 = vld [vmem:[#allocation10 + $0x310] sm:$0xff]
    %v1968 = vld [vmem:[#allocation10 + $0x318] sm:$0xff]
    %v1969 = vld [vmem:[#allocation10 + $0x320] sm:$0xff]
    %v1970 = vld [vmem:[#allocation10 + $0x328] sm:$0xff]
    %v1971 = vld [vmem:[#allocation10 + $0x330] sm:$0xff]
    %v1972 = vld [vmem:[#allocation10 + $0x338] sm:$0xff]
    %v1973 = vld [vmem:[#allocation10 + $0x340] sm:$0xff]
    %v1974 = vld [vmem:[#allocation10 + $0x348] sm:$0xff]
    %v1975 = vld [vmem:[#allocation10 + $0x350] sm:$0xff]
    %v1976 = vld [vmem:[#allocation10 + $0x358] sm:$0xff]
    %v1977 = vld [vmem:[#allocation10 + $0x360] sm:$0xff]
    %v1978 = vld [vmem:[#allocation10 + $0x368] sm:$0xff]
    %v1979 = vld [vmem:[#allocation10 + $0x370] sm:$0xff]
    %v1980 = vld [vmem:[#allocation10 + $0x378] sm:$0xff]
    %v1981 = vld [vmem:[#allocation10 + $0x380] sm:$0xff]
    %v1982 = vld [vmem:[#allocation10 + $0x388] sm:$0xff]
    %v1983 = vld [vmem:[#allocation10 + $0x390] sm:$0xff]
    %v1984 = vld [vmem:[#allocation10 + $0x398] sm:$0xff]
    %v1985 = vld [vmem:[#allocation10 + $0x3a0] sm:$0xff]
    %v1986 = vld [vmem:[#allocation10 + $0x3a8] sm:$0xff]
    %v1987 = vld [vmem:[#allocation10 + $0x3b0] sm:$0xff]
    %v1988 = vld [vmem:[#allocation10 + $0x3b8] sm:$0xff]
    %v1989 = vld [vmem:[#allocation10 + $0x3c0] sm:$0xff]
    %v1990 = vld [vmem:[#allocation10 + $0x3c8] sm:$0xff]
    %v1991 = vld [vmem:[#allocation10 + $0x3d0] sm:$0xff]
    %v1992 = vld [vmem:[#allocation10 + $0x3d8] sm:$0xff]
    %v1993 = vld [vmem:[#allocation10 + $0x3e0] sm:$0xff]
    %v1994 = vld [vmem:[#allocation10 + $0x3e8] sm:$0xff]
    %v1995 = vld [vmem:[#allocation10 + $0x3f0] sm:$0xff]
    %v1996 = vld [vmem:[#allocation10 + $0x3f8] sm:$0xff]
    %v1997 = vld [vmem:[%s5] sm:$0xf]
    %v1999 = vlaneseq
    %v2000 = vshrl.u32 %v1999, 7
    %v2001 = vsub.s32 0, %v2000
    %v2002 = vrot.slane %v1997, %v2001
    %v2003 = vlaneseq
    %v2004 = vshrl.u32 %v2003, 7
    %v2005 = vsub.s32 1, %v2004
    %v2006 = vrot.slane %v1997, %v2005
    %v2007 = vlaneseq
    %v2008 = vshrl.u32 %v2007, 7
    %v2009 = vsub.s32 2, %v2008
    %v2010 = vrot.slane %v1997, %v2009
    %v2011 = vlaneseq
    %v2012 = vshrl.u32 %v2011, 7
    %v2013 = vsub.s32 3, %v2012
    %v2014 = vrot.slane %v1997, %v2013
    %v2021 = vunpack.c.l.s4 1983009808
    %v2022 = vunpack.c.0.s8 %v2021
    %v2023 = vlaneseq
    %v2024 = vshrl.u32 %v2023, 7
    %v2025 = vsub.s32 %v2022, %v2024
    %v2026 = vrot.slane %v1868, %v2025
    %v2027 = vcombine.high %v2026, %v2026
    %2030 = vmatprep.subr.mxu0 %v1870
    %2031 = vmatpush1.msra.mxu0 %v1869
    %2032 = vmatprep.subr.mxu0 %v1874
    %2033 = vmatpush1.msra.mxu0 %v1873
    %2034 = vmatprep.subr.mxu0 %v1878
    %2035 = vmatpush1.msra.mxu0 %v1877
    %2036 = vmatprep.subr.mxu0 %v1882
    %2037 = vmatpush1.msra.mxu0 %v1881
    %2038 = vmatprep.subr.mxu0 %v1886
    %2039 = vmatpush1.msra.mxu0 %v1885
    %2040 = vmatprep.subr.mxu0 %v1890
    %2041 = vmatpush1.msra.mxu0 %v1889
    %2042 = vmatprep.subr.mxu0 %v1894
    %2043 = vmatpush1.msra.mxu0 %v1893
    %2044 = vmatprep.subr.mxu0 %v1898
    %2045 = vmatpush1.msra.mxu0 %v1897
    %2046 = vmatprep.subr.mxu0 %v1902
    %2047 = vmatpush1.msra.mxu0 %v1901
    %2048 = vmatprep.subr.mxu0 %v1906
    %2049 = vmatpush1.msra.mxu0 %v1905
    %2050 = vmatprep.subr.mxu0 %v1910
    %2051 = vmatpush1.msra.mxu0 %v1909
    %2052 = vmatprep.subr.mxu0 %v1914
    %2053 = vmatpush1.msra.mxu0 %v1913
    %2054 = vmatprep.subr.mxu0 %v1918
    %2055 = vmatpush1.msra.mxu0 %v1917
    %2056 = vmatprep.subr.mxu0 %v1922
    %2057 = vmatpush1.msra.mxu0 %v1921
    %2058 = vmatprep.subr.mxu0 %v1926
    %2059 = vmatpush1.msra.mxu0 %v1925
    %2060 = vmatprep.subr.mxu0 %v1930
    %2061 = vmatpush1.msra.mxu0 %v1929
    %2062 = vmatprep.subr.mxu0 %v1934
    %2063 = vmatpush1.msra.mxu0 %v1933
    %2064 = vmatprep.subr.mxu0 %v1938
    %2065 = vmatpush1.msra.mxu0 %v1937
    %2066 = vmatprep.subr.mxu0 %v1942
    %2067 = vmatpush1.msra.mxu0 %v1941
    %2068 = vmatprep.subr.mxu0 %v1946
    %2069 = vmatpush1.msra.mxu0 %v1945
    %2070 = vmatprep.subr.mxu0 %v1950
    %2071 = vmatpush1.msra.mxu0 %v1949
    %2072 = vmatprep.subr.mxu0 %v1954
    %2073 = vmatpush1.msra.mxu0 %v1953
    %2074 = vmatprep.subr.mxu0 %v1958
    %2075 = vmatpush1.msra.mxu0 %v1957
    %2076 = vmatprep.subr.mxu0 %v1962
    %2077 = vmatpush1.msra.mxu0 %v1961
    %2078 = vmatprep.subr.mxu0 %v1966
    %2079 = vmatpush1.msra.mxu0 %v1965
    %2080 = vmatprep.subr.mxu0 %v1970
    %2081 = vmatpush1.msra.mxu0 %v1969
    %2082 = vmatprep.subr.mxu0 %v1974
    %2083 = vmatpush1.msra.mxu0 %v1973
    %2084 = vmatprep.subr.mxu0 %v1978
    %2085 = vmatpush1.msra.mxu0 %v1977
    %2086 = vmatprep.subr.mxu0 %v1982
    %2087 = vmatpush1.msra.mxu0 %v1981
    %2088 = vmatprep.subr.mxu0 %v1986
    %2089 = vmatpush1.msra.mxu0 %v1985
    %2090 = vmatprep.subr.mxu0 %v1990
    %2091 = vmatpush1.msra.mxu0 %v1989
    %2092 = vmatprep.subr.mxu0 %v1994
    %2093 = vmatpush1.msra.mxu0 %v1993
    %2094 = vmatprep.mubr.f32.mxu0 %v2027
    %2095 = vmatmul.mubr.f32.gmra.mrb[0].mxu0 %v2026
    %v2096 = vpop.f32.mrb[0].mxu0
    %v2097 = vadd.f32 %v2002, %v2096
    %v2098 = vpop.f32.mrb[0].mxu0
    %v2099 = vadd.f32 %v2006, %v2098
    %2100 = vdwg.mxu0
    %2101 = vmatprep.subr.mxu0 %v1872
    %2102 = vmatpush1.msra.mxu0 %v1871
    %2103 = vmatprep.subr.mxu0 %v1876
    %2104 = vmatpush1.msra.mxu0 %v1875
    %2105 = vmatprep.subr.mxu0 %v1880
    %2106 = vmatpush1.msra.mxu0 %v1879
    %2107 = vmatprep.subr.mxu0 %v1884
    %2108 = vmatpush1.msra.mxu0 %v1883
    %2109 = vmatprep.subr.mxu0 %v1888
    %2110 = vmatpush1.msra.mxu0 %v1887
    %2111 = vmatprep.subr.mxu0 %v1892
    %2112 = vmatpush1.msra.mxu0 %v1891
    %2113 = vmatprep.subr.mxu0 %v1896
    %2114 = vmatpush1.msra.mxu0 %v1895
    %2115 = vmatprep.subr.mxu0 %v1900
    %2116 = vmatpush1.msra.mxu0 %v1899
    %2117 = vmatprep.subr.mxu0 %v1904
    %2118 = vmatpush1.msra.mxu0 %v1903
    %2119 = vmatprep.subr.mxu0 %v1908
    %2120 = vmatpush1.msra.mxu0 %v1907
    %2121 = vmatprep.subr.mxu0 %v1912
    %2122 = vmatpush1.msra.mxu0 %v1911
    %2123 = vmatprep.subr.mxu0 %v1916
    %2124 = vmatpush1.msra.mxu0 %v1915
    %2125 = vmatprep.subr.mxu0 %v1920
    %2126 = vmatpush1.msra.mxu0 %v1919
    %2127 = vmatprep.subr.mxu0 %v1924
    %2128 = vmatpush1.msra.mxu0 %v1923
    %2129 = vmatprep.subr.mxu0 %v1928
    %2130 = vmatpush1.msra.mxu0 %v1927
    %2131 = vmatprep.subr.mxu0 %v1932
    %2132 = vmatpush1.msra.mxu0 %v1931
    %2133 = vmatprep.subr.mxu0 %v1936
    %2134 = vmatpush1.msra.mxu0 %v1935
    %2135 = vmatprep.subr.mxu0 %v1940
    %2136 = vmatpush1.msra.mxu0 %v1939
    %2137 = vmatprep.subr.mxu0 %v1944
    %2138 = vmatpush1.msra.mxu0 %v1943
    %2139 = vmatprep.subr.mxu0 %v1948
    %2140 = vmatpush1.msra.mxu0 %v1947
    %2141 = vmatprep.subr.mxu0 %v1952
    %2142 = vmatpush1.msra.mxu0 %v1951
    %2143 = vmatprep.subr.mxu0 %v1956
    %2144 = vmatpush1.msra.mxu0 %v1955
    %2145 = vmatprep.subr.mxu0 %v1960
    %2146 = vmatpush1.msra.mxu0 %v1959
    %2147 = vmatprep.subr.mxu0 %v1964
    %2148 = vmatpush1.msra.mxu0 %v1963
    %2149 = vmatprep.subr.mxu0 %v1968
    %2150 = vmatpush1.msra.mxu0 %v1967
    %2151 = vmatprep.subr.mxu0 %v1972
    %2152 = vmatpush1.msra.mxu0 %v1971
    %2153 = vmatprep.subr.mxu0 %v1976
    %2154 = vmatpush1.msra.mxu0 %v1975
    %2155 = vmatprep.subr.mxu0 %v1980
    %2156 = vmatpush1.msra.mxu0 %v1979
    %2157 = vmatprep.subr.mxu0 %v1984
    %2158 = vmatpush1.msra.mxu0 %v1983
    %2159 = vmatprep.subr.mxu0 %v1988
    %2160 = vmatpush1.msra.mxu0 %v1987
    %2161 = vmatprep.subr.mxu0 %v1992
    %2162 = vmatpush1.msra.mxu0 %v1991
    %2163 = vmatprep.subr.mxu0 %v1996
    %2164 = vmatpush1.msra.mxu0 %v1995
    %2165 = vmatprep.mubr.f32.mxu0 %v2027
    %2166 = vmatmul.mubr.f32.gmra.mrb[0].mxu0 %v2026
    %v2167 = vpop.f32.mrb[0].mxu0
    %v2168 = vadd.f32 %v2010, %v2167
    %v2169 = vpop.f32.mrb[0].mxu0
    %v2170 = vadd.f32 %v2014, %v2169
    %2171 = vdwg.mxu0
    %v2172 = vxor.u32 %v2097, 2147483648
    %v2173 = vmul.f32 %v2172, 1.442695
    %v2174 = vpow.pop %v2173
    %v2175 = vadd.f32 %v2174, 1.0
    %v2176 = vrcp.pop %v2175
    %v2177 = vmul.f32 1.0, %v2176
    %v2178 = vxor.u32 %v2099, 2147483648
    %v2179 = vmul.f32 %v2178, 1.442695
    %v2180 = vpow.pop %v2179
    %v2181 = vadd.f32 %v2180, 1.0
    %v2182 = vrcp.pop %v2181
    %v2183 = vmul.f32 1.0, %v2182
    %v2184 = vtanh.pop %v2168
    %v2185 = vxor.u32 %v2170, 2147483648
    %v2186 = vmul.f32 %v2185, 1.442695
    %v2187 = vpow.pop %v2186
    %v2188 = vadd.f32 %v2187, 1.0
    %v2189 = vrcp.pop %v2188
    %v2190 = vmul.f32 1.0, %v2189
    %v2191 = vld [vmem:[#allocation6] sm:$0x3]
    %v2192 = vmul.f32 %v2183, %v2191
    %v2193 = vmul.f32 %v2177, %v2184
    %v2194 = vadd.f32 %v2192, %v2193
    %v2195 = vtanh.pop %v2194
    %v2196 = vmul.f32 %v2190, %v2195
    %2197 = vst [vmem:[#allocation6] sm:$0x3] %v2194
    %2198 = vst [vmem:[#allocation4 + $0x2] sm:$0x3] %v2196
    %s2199 = scalar_lea.vmem [#allocation3], 4
    %2200 = vst [vmem:[%s2199] sm:$0x3] %v2196
    %s2201 = scalar_lea.vmem [#allocation2], 24
    %v2202 = vld [vmem:[%s2201] sm:$0xff]
    %v2203 = vld [vmem:[#allocation4] sm:$0x3]
    %v2204 = vld [vmem:[#allocation8] sm:$0xff]
    %v2205 = vld [vmem:[#allocation8 + $0x8] sm:$0xff]
    %v2206 = vld [vmem:[#allocation8 + $0x10] sm:$0xff]
    %v2207 = vld [vmem:[#allocation8 + $0x18] sm:$0xff]
    %v2208 = vld [vmem:[#allocation8 + $0x20] sm:$0xff]
    %v2209 = vld [vmem:[#allocation8 + $0x28] sm:$0xff]
    %v2210 = vld [vmem:[#allocation8 + $0x30] sm:$0xff]
    %v2211 = vld [vmem:[#allocation8 + $0x38] sm:$0xff]
    %v2212 = vld [vmem:[#allocation8 + $0x40] sm:$0xff]
    %v2213 = vld [vmem:[#allocation8 + $0x48] sm:$0xff]
    %v2214 = vld [vmem:[#allocation8 + $0x50] sm:$0xff]
    %v2215 = vld [vmem:[#allocation8 + $0x58] sm:$0xff]
    %v2216 = vld [vmem:[#allocation8 + $0x60] sm:$0xff]
    %v2217 = vld [vmem:[#allocation8 + $0x68] sm:$0xff]
    %v2218 = vld [vmem:[#allocation8 + $0x70] sm:$0xff]
    %v2219 = vld [vmem:[#allocation8 + $0x78] sm:$0xff]
    %v2220 = vld [vmem:[#allocation8 + $0x80] sm:$0xff]
    %v2221 = vld [vmem:[#allocation8 + $0x88] sm:$0xff]
    %v2222 = vld [vmem:[#allocation8 + $0x90] sm:$0xff]
    %v2223 = vld [vmem:[#allocation8 + $0x98] sm:$0xff]
    %v2224 = vld [vmem:[#allocation8 + $0xa0] sm:$0xff]
    %v2225 = vld [vmem:[#allocation8 + $0xa8] sm:$0xff]
    %v2226 = vld [vmem:[#allocation8 + $0xb0] sm:$0xff]
    %v2227 = vld [vmem:[#allocation8 + $0xb8] sm:$0xff]
    %v2228 = vld [vmem:[#allocation8 + $0xc0] sm:$0xff]
    %v2229 = vld [vmem:[#allocation8 + $0xc8] sm:$0xff]
    %v2230 = vld [vmem:[#allocation8 + $0xd0] sm:$0xff]
    %v2231 = vld [vmem:[#allocation8 + $0xd8] sm:$0xff]
    %v2232 = vld [vmem:[#allocation8 + $0xe0] sm:$0xff]
    %v2233 = vld [vmem:[#allocation8 + $0xe8] sm:$0xff]
    %v2234 = vld [vmem:[#allocation8 + $0xf0] sm:$0xff]
    %v2235 = vld [vmem:[#allocation8 + $0xf8] sm:$0xff]
    %v2236 = vld [vmem:[#allocation8 + $0x100] sm:$0xff]
    %v2237 = vld [vmem:[#allocation8 + $0x108] sm:$0xff]
    %v2238 = vld [vmem:[#allocation8 + $0x110] sm:$0xff]
    %v2239 = vld [vmem:[#allocation8 + $0x118] sm:$0xff]
    %v2240 = vld [vmem:[#allocation8 + $0x120] sm:$0xff]
    %v2241 = vld [vmem:[#allocation8 + $0x128] sm:$0xff]
    %v2242 = vld [vmem:[#allocation8 + $0x130] sm:$0xff]
    %v2243 = vld [vmem:[#allocation8 + $0x138] sm:$0xff]
    %v2244 = vld [vmem:[#allocation8 + $0x140] sm:$0xff]
    %v2245 = vld [vmem:[#allocation8 + $0x148] sm:$0xff]
    %v2246 = vld [vmem:[#allocation8 + $0x150] sm:$0xff]
    %v2247 = vld [vmem:[#allocation8 + $0x158] sm:$0xff]
    %v2248 = vld [vmem:[#allocation8 + $0x160] sm:$0xff]
    %v2249 = vld [vmem:[#allocation8 + $0x168] sm:$0xff]
    %v2250 = vld [vmem:[#allocation8 + $0x170] sm:$0xff]
    %v2251 = vld [vmem:[#allocation8 + $0x178] sm:$0xff]
    %v2252 = vld [vmem:[#allocation8 + $0x180] sm:$0xff]
    %v2253 = vld [vmem:[#allocation8 + $0x188] sm:$0xff]
    %v2254 = vld [vmem:[#allocation8 + $0x190] sm:$0xff]
    %v2255 = vld [vmem:[#allocation8 + $0x198] sm:$0xff]
    %v2256 = vld [vmem:[#allocation8 + $0x1a0] sm:$0xff]
    %v2257 = vld [vmem:[#allocation8 + $0x1a8] sm:$0xff]
    %v2258 = vld [vmem:[#allocation8 + $0x1b0] sm:$0xff]
    %v2259 = vld [vmem:[#allocation8 + $0x1b8] sm:$0xff]
    %v2260 = vld [vmem:[#allocation8 + $0x1c0] sm:$0xff]
    %v2261 = vld [vmem:[#allocation8 + $0x1c8] sm:$0xff]
    %v2262 = vld [vmem:[#allocation8 + $0x1d0] sm:$0xff]
    %v2263 = vld [vmem:[#allocation8 + $0x1d8] sm:$0xff]
    %v2264 = vld [vmem:[#allocation8 + $0x1e0] sm:$0xff]
    %v2265 = vld [vmem:[#allocation8 + $0x1e8] sm:$0xff]
    %v2266 = vld [vmem:[#allocation8 + $0x1f0] sm:$0xff]
    %v2267 = vld [vmem:[#allocation8 + $0x1f8] sm:$0xff]
    %2268 = vmatprep.subr.mxu0 %v2205
    %2269 = vmatpush1.msra.mxu0 %v2204
    %2270 = vmatprep.subr.mxu0 %v2209
    %2271 = vmatpush1.msra.mxu0 %v2208
    %2272 = vmatprep.subr.mxu0 %v2213
    %2273 = vmatpush1.msra.mxu0 %v2212
    %2274 = vmatprep.subr.mxu0 %v2217
    %2275 = vmatpush1.msra.mxu0 %v2216
    %2276 = vmatprep.subr.mxu0 %v2221
    %2277 = vmatpush1.msra.mxu0 %v2220
    %2278 = vmatprep.subr.mxu0 %v2225
    %2279 = vmatpush1.msra.mxu0 %v2224
    %2280 = vmatprep.subr.mxu0 %v2229
    %2281 = vmatpush1.msra.mxu0 %v2228
    %2282 = vmatprep.subr.mxu0 %v2233
    %2283 = vmatpush1.msra.mxu0 %v2232
    %2284 = vmatprep.subr.mxu0 %v2237
    %2285 = vmatpush1.msra.mxu0 %v2236
    %2286 = vmatprep.subr.mxu0 %v2241
    %2287 = vmatpush1.msra.mxu0 %v2240
    %2288 = vmatprep.subr.mxu0 %v2245
    %2289 = vmatpush1.msra.mxu0 %v2244
    %2290 = vmatprep.subr.mxu0 %v2249
    %2291 = vmatpush1.msra.mxu0 %v2248
    %2292 = vmatprep.subr.mxu0 %v2253
    %2293 = vmatpush1.msra.mxu0 %v2252
    %2294 = vmatprep.subr.mxu0 %v2257
    %2295 = vmatpush1.msra.mxu0 %v2256
    %2296 = vmatprep.subr.mxu0 %v2261
    %2297 = vmatpush1.msra.mxu0 %v2260
    %2298 = vmatprep.subr.mxu0 %v2265
    %2299 = vmatpush1.msra.mxu0 %v2264
    %2300 = vmatprep.subr.mxu0 0.0
    %2301 = vmatpush1.msra.mxu0 0.0
    %2302 = vmatprep.subr.mxu0 0.0
    %2303 = vmatpush1.msra.mxu0 0.0
    %2304 = vmatprep.subr.mxu0 0.0
    %2305 = vmatpush1.msra.mxu0 0.0
    %2306 = vmatprep.subr.mxu0 0.0
    %2307 = vmatpush1.msra.mxu0 0.0
    %2308 = vmatprep.subr.mxu0 0.0
    %2309 = vmatpush1.msra.mxu0 0.0
    %2310 = vmatprep.subr.mxu0 0.0
    %2311 = vmatpush1.msra.mxu0 0.0
    %2312 = vmatprep.subr.mxu0 0.0
    %2313 = vmatpush1.msra.mxu0 0.0
    %2314 = vmatprep.subr.mxu0 0.0
    %2315 = vmatpush1.msra.mxu0 0.0
    %2316 = vmatprep.subr.mxu0 0.0
    %2317 = vmatpush1.msra.mxu0 0.0
    %2318 = vmatprep.subr.mxu0 0.0
    %2319 = vmatpush1.msra.mxu0 0.0
    %2320 = vmatprep.subr.mxu0 0.0
    %2321 = vmatpush1.msra.mxu0 0.0
    %2322 = vmatprep.subr.mxu0 0.0
    %2323 = vmatpush1.msra.mxu0 0.0
    %2324 = vmatprep.subr.mxu0 0.0
    %2325 = vmatpush1.msra.mxu0 0.0
    %2326 = vmatprep.subr.mxu0 0.0
    %2327 = vmatpush1.msra.mxu0 0.0
    %2328 = vmatprep.subr.mxu0 0.0
    %2329 = vmatpush1.msra.mxu0 0.0
    %2330 = vmatprep.subr.mxu0 0.0
    %2331 = vmatpush1.msra.mxu0 0.0
    %2332 = vmatprep.mubr.f32.mxu0 0.0
    %2333 = vmatmul.mubr.f32.gmra.mrb[0].mxu0 %v2203
    %v2334 = vpop.f32.mrb[0].mxu0
    %v2335 = vadd.f32 0.0, %v2334
    %v2336 = vpop.f32.mrb[0].mxu0
    %v2337 = vadd.f32 0.0, %v2336
    %2338 = vdwg.mxu0
    %2339 = vmatprep.subr.mxu0 %v2207
    %2340 = vmatpush1.msra.mxu0 %v2206
    %2341 = vmatprep.subr.mxu0 %v2211
    %2342 = vmatpush1.msra.mxu0 %v2210
    %2343 = vmatprep.subr.mxu0 %v2215
    %2344 = vmatpush1.msra.mxu0 %v2214
    %2345 = vmatprep.subr.mxu0 %v2219
    %2346 = vmatpush1.msra.mxu0 %v2218
    %2347 = vmatprep.subr.mxu0 %v2223
    %2348 = vmatpush1.msra.mxu0 %v2222
    %2349 = vmatprep.subr.mxu0 %v2227
    %2350 = vmatpush1.msra.mxu0 %v2226
    %2351 = vmatprep.subr.mxu0 %v2231
    %2352 = vmatpush1.msra.mxu0 %v2230
    %2353 = vmatprep.subr.mxu0 %v2235
    %2354 = vmatpush1.msra.mxu0 %v2234
    %2355 = vmatprep.subr.mxu0 %v2239
    %2356 = vmatpush1.msra.mxu0 %v2238
    %2357 = vmatprep.subr.mxu0 %v2243
    %2358 = vmatpush1.msra.mxu0 %v2242
    %2359 = vmatprep.subr.mxu0 %v2247
    %2360 = vmatpush1.msra.mxu0 %v2246
    %2361 = vmatprep.subr.mxu0 %v2251
    %2362 = vmatpush1.msra.mxu0 %v2250
    %2363 = vmatprep.subr.mxu0 %v2255
    %2364 = vmatpush1.msra.mxu0 %v2254
    %2365 = vmatprep.subr.mxu0 %v2259
    %2366 = vmatpush1.msra.mxu0 %v2258
    %2367 = vmatprep.subr.mxu0 %v2263
    %2368 = vmatpush1.msra.mxu0 %v2262
    %2369 = vmatprep.subr.mxu0 %v2267
    %2370 = vmatpush1.msra.mxu0 %v2266
    %2371 = vmatprep.subr.mxu0 0.0
    %2372 = vmatpush1.msra.mxu0 0.0
    %2373 = vmatprep.subr.mxu0 0.0
    %2374 = vmatpush1.msra.mxu0 0.0
    %2375 = vmatprep.subr.mxu0 0.0
    %2376 = vmatpush1.msra.mxu0 0.0
    %2377 = vmatprep.subr.mxu0 0.0
    %2378 = vmatpush1.msra.mxu0 0.0
    %2379 = vmatprep.subr.mxu0 0.0
    %2380 = vmatpush1.msra.mxu0 0.0
    %2381 = vmatprep.subr.mxu0 0.0
    %2382 = vmatpush1.msra.mxu0 0.0
    %2383 = vmatprep.subr.mxu0 0.0
    %2384 = vmatpush1.msra.mxu0 0.0
    %2385 = vmatprep.subr.mxu0 0.0
    %2386 = vmatpush1.msra.mxu0 0.0
    %2387 = vmatprep.subr.mxu0 0.0
    %2388 = vmatpush1.msra.mxu0 0.0
    %2389 = vmatprep.subr.mxu0 0.0
    %2390 = vmatpush1.msra.mxu0 0.0
    %2391 = vmatprep.subr.mxu0 0.0
    %2392 = vmatpush1.msra.mxu0 0.0
    %2393 = vmatprep.subr.mxu0 0.0
    %2394 = vmatpush1.msra.mxu0 0.0
    %2395 = vmatprep.subr.mxu0 0.0
    %2396 = vmatpush1.msra.mxu0 0.0
    %2397 = vmatprep.subr.mxu0 0.0
    %2398 = vmatpush1.msra.mxu0 0.0
    %2399 = vmatprep.subr.mxu0 0.0
    %2400 = vmatpush1.msra.mxu0 0.0
    %2401 = vmatprep.subr.mxu0 0.0
    %2402 = vmatpush1.msra.mxu0 0.0
    %2403 = vmatprep.mubr.f32.mxu0 0.0
    %2404 = vmatmul.mubr.f32.gmra.mrb[0].mxu0 %v2203
    %v2405 = vpop.f32.mrb[0].mxu0
    %v2406 = vadd.f32 0.0, %v2405
    %v2407 = vpop.f32.mrb[0].mxu0
    %v2408 = vadd.f32 0.0, %v2407
    %2409 = vdwg.mxu0
    %v2414 = vcombine.low %v2335, %v2337
    %v2415 = vcombine.low %v2406, %v2408
    %v2417 = vunpack.c.l.s4 1983009808
    %v2418 = vunpack.c.0.s8 %v2417
    %v2419 = vlaneseq
    %v2420 = vshrl.u32 %v2419, 7
    %v2421 = vsub.s32 %v2418, %v2420
    %v2422 = vrot.slane %v2414, %v2421
    %v2424 = vunpack.c.l.s4 1983009808
    %v2425 = vunpack.c.0.s8 %v2424
    %v2426 = vlaneseq
    %v2427 = vshrl.u32 %v2426, 7
    %v2428 = vsub.s32 %v2425, %v2427
    %v2429 = vrot.slane %v2415, %v2428
    %v2430 = vcombine.low %v2422, %v2429
    %v2432 = vadd.f32 %v2202, %v2430
    %v2433 = vxor.u32 %v2432, 2147483648
    %v2434 = vmul.f32 %v2433, 1.442695
    %v2435 = vpow.pop %v2434
    %v2436 = vadd.f32 %v2435, 1.0
    %v2437 = vrcp.pop %v2436
    %v2438 = vmul.f32 1.0, %v2437
    %v2440 = vrot.slane %v2432, 2
    %v2442 = vxor.u32 %v2440, 2147483648
    %v2443 = vmul.f32 %v2442, 1.442695
    %v2444 = vpow.pop %v2443
    %v2445 = vadd.f32 %v2444, 1.0
    %v2446 = vrcp.pop %v2445
    %v2447 = vmul.f32 1.0, %v2446
    %v2448 = vrot.slane %v2432, 4
    %v2450 = vtanh.pop %v2448
    %v2451 = vrot.slane %v2432, 6
    %v2453 = vxor.u32 %v2451, 2147483648
    %v2454 = vmul.f32 %v2453, 1.442695
    %v2455 = vpow.pop %v2454
    %v2456 = vadd.f32 %v2455, 1.0
    %v2457 = vrcp.pop %v2456
    %v2458 = vmul.f32 1.0, %v2457
    %v2459 = vld [vmem:[#allocation5] sm:$0x3]
    %v2460 = vmul.f32 %v2447, %v2459
    %v2461 = vmul.f32 %v2438, %v2450
    %v2462 = vadd.f32 %v2460, %v2461
    %v2463 = vtanh.pop %v2462
    %v2464 = vmul.f32 %v2458, %v2463
    %2465 = vst [vmem:[#allocation5] sm:$0x3] %v2462
    %2466 = vst [vmem:[#allocation4] sm:$0x3] %v2464
    %v2467 = vld [vmem:[#allocation4] sm:$0xf]
    %v2468 = vld [vmem:[#allocation10] sm:$0xff]
    %v2469 = vld [vmem:[#allocation10 + $0x8] sm:$0xff]
    %v2470 = vld [vmem:[#allocation10 + $0x10] sm:$0xff]
    %v2471 = vld [vmem:[#allocation10 + $0x18] sm:$0xff]
    %v2472 = vld [vmem:[#allocation10 + $0x20] sm:$0xff]
    %v2473 = vld [vmem:[#allocation10 + $0x28] sm:$0xff]
    %v2474 = vld [vmem:[#allocation10 + $0x30] sm:$0xff]
    %v2475 = vld [vmem:[#allocation10 + $0x38] sm:$0xff]
    %v2476 = vld [vmem:[#allocation10 + $0x40] sm:$0xff]
    %v2477 = vld [vmem:[#allocation10 + $0x48] sm:$0xff]
    %v2478 = vld [vmem:[#allocation10 + $0x50] sm:$0xff]
    %v2479 = vld [vmem:[#allocation10 + $0x58] sm:$0xff]
    %v2480 = vld [vmem:[#allocation10 + $0x60] sm:$0xff]
    %v2481 = vld [vmem:[#allocation10 + $0x68] sm:$0xff]
    %v2482 = vld [vmem:[#allocation10 + $0x70] sm:$0xff]
    %v2483 = vld [vmem:[#allocation10 + $0x78] sm:$0xff]
    %v2484 = vld [vmem:[#allocation10 + $0x80] sm:$0xff]
    %v2485 = vld [vmem:[#allocation10 + $0x88] sm:$0xff]
    %v2486 = vld [vmem:[#allocation10 + $0x90] sm:$0xff]
    %v2487 = vld [vmem:[#allocation10 + $0x98] sm:$0xff]
    %v2488 = vld [vmem:[#allocation10 + $0xa0] sm:$0xff]
    %v2489 = vld [vmem:[#allocation10 + $0xa8] sm:$0xff]
    %v2490 = vld [vmem:[#allocation10 + $0xb0] sm:$0xff]
    %v2491 = vld [vmem:[#allocation10 + $0xb8] sm:$0xff]
    %v2492 = vld [vmem:[#allocation10 + $0xc0] sm:$0xff]
    %v2493 = vld [vmem:[#allocation10 + $0xc8] sm:$0xff]
    %v2494 = vld [vmem:[#allocation10 + $0xd0] sm:$0xff]
    %v2495 = vld [vmem:[#allocation10 + $0xd8] sm:$0xff]
    %v2496 = vld [vmem:[#allocation10 + $0xe0] sm:$0xff]
    %v2497 = vld [vmem:[#allocation10 + $0xe8] sm:$0xff]
    %v2498 = vld [vmem:[#allocation10 + $0xf0] sm:$0xff]
    %v2499 = vld [vmem:[#allocation10 + $0xf8] sm:$0xff]
    %v2500 = vld [vmem:[#allocation10 + $0x100] sm:$0xff]
    %v2501 = vld [vmem:[#allocation10 + $0x108] sm:$0xff]
    %v2502 = vld [vmem:[#allocation10 + $0x110] sm:$0xff]
    %v2503 = vld [vmem:[#allocation10 + $0x118] sm:$0xff]
    %v2504 = vld [vmem:[#allocation10 + $0x120] sm:$0xff]
    %v2505 = vld [vmem:[#allocation10 + $0x128] sm:$0xff]
    %v2506 = vld [vmem:[#allocation10 + $0x130] sm:$0xff]
    %v2507 = vld [vmem:[#allocation10 + $0x138] sm:$0xff]
    %v2508 = vld [vmem:[#allocation10 + $0x140] sm:$0xff]
    %v2509 = vld [vmem:[#allocation10 + $0x148] sm:$0xff]
    %v2510 = vld [vmem:[#allocation10 + $0x150] sm:$0xff]
    %v2511 = vld [vmem:[#allocation10 + $0x158] sm:$0xff]
    %v2512 = vld [vmem:[#allocation10 + $0x160] sm:$0xff]
    %v2513 = vld [vmem:[#allocation10 + $0x168] sm:$0xff]
    %v2514 = vld [vmem:[#allocation10 + $0x170] sm:$0xff]
    %v2515 = vld [vmem:[#allocation10 + $0x178] sm:$0xff]
    %v2516 = vld [vmem:[#allocation10 + $0x180] sm:$0xff]
    %v2517 = vld [vmem:[#allocation10 + $0x188] sm:$0xff]
    %v2518 = vld [vmem:[#allocation10 + $0x190] sm:$0xff]
    %v2519 = vld [vmem:[#allocation10 + $0x198] sm:$0xff]
    %v2520 = vld [vmem:[#allocation10 + $0x1a0] sm:$0xff]
    %v2521 = vld [vmem:[#allocation10 + $0x1a8] sm:$0xff]
    %v2522 = vld [vmem:[#allocation10 + $0x1b0] sm:$0xff]
    %v2523 = vld [vmem:[#allocation10 + $0x1b8] sm:$0xff]
    %v2524 = vld [vmem:[#allocation10 + $0x1c0] sm:$0xff]
    %v2525 = vld [vmem:[#allocation10 + $0x1c8] sm:$0xff]
    %v2526 = vld [vmem:[#allocation10 + $0x1d0] sm:$0xff]
    %v2527 = vld [vmem:[#allocation10 + $0x1d8] sm:$0xff]
    %v2528 = vld [vmem:[#allocation10 + $0x1e0] sm:$0xff]
    %v2529 = vld [vmem:[#allocation10 + $0x1e8] sm:$0xff]
    %v2530 = vld [vmem:[#allocation10 + $0x1f0] sm:$0xff]
    %v2531 = vld [vmem:[#allocation10 + $0x1f8] sm:$0xff]
    %v2532 = vld [vmem:[#allocation10 + $0x200] sm:$0xff]
    %v2533 = vld [vmem:[#allocation10 + $0x208] sm:$0xff]
    %v2534 = vld [vmem:[#allocation10 + $0x210] sm:$0xff]
    %v2535 = vld [vmem:[#allocation10 + $0x218] sm:$0xff]
    %v2536 = vld [vmem:[#allocation10 + $0x220] sm:$0xff]
    %v2537 = vld [vmem:[#allocation10 + $0x228] sm:$0xff]
    %v2538 = vld [vmem:[#allocation10 + $0x230] sm:$0xff]
    %v2539 = vld [vmem:[#allocation10 + $0x238] sm:$0xff]
    %v2540 = vld [vmem:[#allocation10 + $0x240] sm:$0xff]
    %v2541 = vld [vmem:[#allocation10 + $0x248] sm:$0xff]
    %v2542 = vld [vmem:[#allocation10 + $0x250] sm:$0xff]
    %v2543 = vld [vmem:[#allocation10 + $0x258] sm:$0xff]
    %v2544 = vld [vmem:[#allocation10 + $0x260] sm:$0xff]
    %v2545 = vld [vmem:[#allocation10 + $0x268] sm:$0xff]
    %v2546 = vld [vmem:[#allocation10 + $0x270] sm:$0xff]
    %v2547 = vld [vmem:[#allocation10 + $0x278] sm:$0xff]
    %v2548 = vld [vmem:[#allocation10 + $0x280] sm:$0xff]
    %v2549 = vld [vmem:[#allocation10 + $0x288] sm:$0xff]
    %v2550 = vld [vmem:[#allocation10 + $0x290] sm:$0xff]
    %v2551 = vld [vmem:[#allocation10 + $0x298] sm:$0xff]
    %v2552 = vld [vmem:[#allocation10 + $0x2a0] sm:$0xff]
    %v2553 = vld [vmem:[#allocation10 + $0x2a8] sm:$0xff]
    %v2554 = vld [vmem:[#allocation10 + $0x2b0] sm:$0xff]
    %v2555 = vld [vmem:[#allocation10 + $0x2b8] sm:$0xff]
    %v2556 = vld [vmem:[#allocation10 + $0x2c0] sm:$0xff]
    %v2557 = vld [vmem:[#allocation10 + $0x2c8] sm:$0xff]
    %v2558 = vld [vmem:[#allocation10 + $0x2d0] sm:$0xff]
    %v2559 = vld [vmem:[#allocation10 + $0x2d8] sm:$0xff]
    %v2560 = vld [vmem:[#allocation10 + $0x2e0] sm:$0xff]
    %v2561 = vld [vmem:[#allocation10 + $0x2e8] sm:$0xff]
    %v2562 = vld [vmem:[#allocation10 + $0x2f0] sm:$0xff]
    %v2563 = vld [vmem:[#allocation10 + $0x2f8] sm:$0xff]
    %v2564 = vld [vmem:[#allocation10 + $0x300] sm:$0xff]
    %v2565 = vld [vmem:[#allocation10 + $0x308] sm:$0xff]
    %v2566 = vld [vmem:[#allocation10 + $0x310] sm:$0xff]
    %v2567 = vld [vmem:[#allocation10 + $0x318] sm:$0xff]
    %v2568 = vld [vmem:[#allocation10 + $0x320] sm:$0xff]
    %v2569 = vld [vmem:[#allocation10 + $0x328] sm:$0xff]
    %v2570 = vld [vmem:[#allocation10 + $0x330] sm:$0xff]
    %v2571 = vld [vmem:[#allocation10 + $0x338] sm:$0xff]
    %v2572 = vld [vmem:[#allocation10 + $0x340] sm:$0xff]
    %v2573 = vld [vmem:[#allocation10 + $0x348] sm:$0xff]
    %v2574 = vld [vmem:[#allocation10 + $0x350] sm:$0xff]
    %v2575 = vld [vmem:[#allocation10 + $0x358] sm:$0xff]
    %v2576 = vld [vmem:[#allocation10 + $0x360] sm:$0xff]
    %v2577 = vld [vmem:[#allocation10 + $0x368] sm:$0xff]
    %v2578 = vld [vmem:[#allocation10 + $0x370] sm:$0xff]
    %v2579 = vld [vmem:[#allocation10 + $0x378] sm:$0xff]
    %v2580 = vld [vmem:[#allocation10 + $0x380] sm:$0xff]
    %v2581 = vld [vmem:[#allocation10 + $0x388] sm:$0xff]
    %v2582 = vld [vmem:[#allocation10 + $0x390] sm:$0xff]
    %v2583 = vld [vmem:[#allocation10 + $0x398] sm:$0xff]
    %v2584 = vld [vmem:[#allocation10 + $0x3a0] sm:$0xff]
    %v2585 = vld [vmem:[#allocation10 + $0x3a8] sm:$0xff]
    %v2586 = vld [vmem:[#allocation10 + $0x3b0] sm:$0xff]
    %v2587 = vld [vmem:[#allocation10 + $0x3b8] sm:$0xff]
    %v2588 = vld [vmem:[#allocation10 + $0x3c0] sm:$0xff]
    %v2589 = vld [vmem:[#allocation10 + $0x3c8] sm:$0xff]
    %v2590 = vld [vmem:[#allocation10 + $0x3d0] sm:$0xff]
    %v2591 = vld [vmem:[#allocation10 + $0x3d8] sm:$0xff]
    %v2592 = vld [vmem:[#allocation10 + $0x3e0] sm:$0xff]
    %v2593 = vld [vmem:[#allocation10 + $0x3e8] sm:$0xff]
    %v2594 = vld [vmem:[#allocation10 + $0x3f0] sm:$0xff]
    %v2595 = vld [vmem:[#allocation10 + $0x3f8] sm:$0xff]
    %v2596 = vld [vmem:[%s5] sm:$0xf]
    %v2598 = vlaneseq
    %v2599 = vshrl.u32 %v2598, 7
    %v2600 = vsub.s32 0, %v2599
    %v2601 = vrot.slane %v2596, %v2600
    %v2602 = vlaneseq
    %v2603 = vshrl.u32 %v2602, 7
    %v2604 = vsub.s32 1, %v2603
    %v2605 = vrot.slane %v2596, %v2604
    %v2606 = vlaneseq
    %v2607 = vshrl.u32 %v2606, 7
    %v2608 = vsub.s32 2, %v2607
    %v2609 = vrot.slane %v2596, %v2608
    %v2610 = vlaneseq
    %v2611 = vshrl.u32 %v2610, 7
    %v2612 = vsub.s32 3, %v2611
    %v2613 = vrot.slane %v2596, %v2612
    %v2620 = vunpack.c.l.s4 1983009808
    %v2621 = vunpack.c.0.s8 %v2620
    %v2622 = vlaneseq
    %v2623 = vshrl.u32 %v2622, 7
    %v2624 = vsub.s32 %v2621, %v2623
    %v2625 = vrot.slane %v2467, %v2624
    %v2626 = vcombine.high %v2625, %v2625
    %2629 = vmatprep.subr.mxu0 %v2469
    %2630 = vmatpush1.msra.mxu0 %v2468
    %2631 = vmatprep.subr.mxu0 %v2473
    %2632 = vmatpush1.msra.mxu0 %v2472
    %2633 = vmatprep.subr.mxu0 %v2477
    %2634 = vmatpush1.msra.mxu0 %v2476
    %2635 = vmatprep.subr.mxu0 %v2481
    %2636 = vmatpush1.msra.mxu0 %v2480
    %2637 = vmatprep.subr.mxu0 %v2485
    %2638 = vmatpush1.msra.mxu0 %v2484
    %2639 = vmatprep.subr.mxu0 %v2489
    %2640 = vmatpush1.msra.mxu0 %v2488
    %2641 = vmatprep.subr.mxu0 %v2493
    %2642 = vmatpush1.msra.mxu0 %v2492
    %2643 = vmatprep.subr.mxu0 %v2497
    %2644 = vmatpush1.msra.mxu0 %v2496
    %2645 = vmatprep.subr.mxu0 %v2501
    %2646 = vmatpush1.msra.mxu0 %v2500
    %2647 = vmatprep.subr.mxu0 %v2505
    %2648 = vmatpush1.msra.mxu0 %v2504
    %2649 = vmatprep.subr.mxu0 %v2509
    %2650 = vmatpush1.msra.mxu0 %v2508
    %2651 = vmatprep.subr.mxu0 %v2513
    %2652 = vmatpush1.msra.mxu0 %v2512
    %2653 = vmatprep.subr.mxu0 %v2517
    %2654 = vmatpush1.msra.mxu0 %v2516
    %2655 = vmatprep.subr.mxu0 %v2521
    %2656 = vmatpush1.msra.mxu0 %v2520
    %2657 = vmatprep.subr.mxu0 %v2525
    %2658 = vmatpush1.msra.mxu0 %v2524
    %2659 = vmatprep.subr.mxu0 %v2529
    %2660 = vmatpush1.msra.mxu0 %v2528
    %2661 = vmatprep.subr.mxu0 %v2533
    %2662 = vmatpush1.msra.mxu0 %v2532
    %2663 = vmatprep.subr.mxu0 %v2537
    %2664 = vmatpush1.msra.mxu0 %v2536
    %2665 = vmatprep.subr.mxu0 %v2541
    %2666 = vmatpush1.msra.mxu0 %v2540
    %2667 = vmatprep.subr.mxu0 %v2545
    %2668 = vmatpush1.msra.mxu0 %v2544
    %2669 = vmatprep.subr.mxu0 %v2549
    %2670 = vmatpush1.msra.mxu0 %v2548
    %2671 = vmatprep.subr.mxu0 %v2553
    %2672 = vmatpush1.msra.mxu0 %v2552
    %2673 = vmatprep.subr.mxu0 %v2557
    %2674 = vmatpush1.msra.mxu0 %v2556
    %2675 = vmatprep.subr.mxu0 %v2561
    %2676 = vmatpush1.msra.mxu0 %v2560
    %2677 = vmatprep.subr.mxu0 %v2565
    %2678 = vmatpush1.msra.mxu0 %v2564
    %2679 = vmatprep.subr.mxu0 %v2569
    %2680 = vmatpush1.msra.mxu0 %v2568
    %2681 = vmatprep.subr.mxu0 %v2573
    %2682 = vmatpush1.msra.mxu0 %v2572
    %2683 = vmatprep.subr.mxu0 %v2577
    %2684 = vmatpush1.msra.mxu0 %v2576
    %2685 = vmatprep.subr.mxu0 %v2581
    %2686 = vmatpush1.msra.mxu0 %v2580
    %2687 = vmatprep.subr.mxu0 %v2585
    %2688 = vmatpush1.msra.mxu0 %v2584
    %2689 = vmatprep.subr.mxu0 %v2589
    %2690 = vmatpush1.msra.mxu0 %v2588
    %2691 = vmatprep.subr.mxu0 %v2593
    %2692 = vmatpush1.msra.mxu0 %v2592
    %2693 = vmatprep.mubr.f32.mxu0 %v2626
    %2694 = vmatmul.mubr.f32.gmra.mrb[0].mxu0 %v2625
    %v2695 = vpop.f32.mrb[0].mxu0
    %v2696 = vadd.f32 %v2601, %v2695
    %v2697 = vpop.f32.mrb[0].mxu0
    %v2698 = vadd.f32 %v2605, %v2697
    %2699 = vdwg.mxu0
    %2700 = vmatprep.subr.mxu0 %v2471
    %2701 = vmatpush1.msra.mxu0 %v2470
    %2702 = vmatprep.subr.mxu0 %v2475
    %2703 = vmatpush1.msra.mxu0 %v2474
    %2704 = vmatprep.subr.mxu0 %v2479
    %2705 = vmatpush1.msra.mxu0 %v2478
    %2706 = vmatprep.subr.mxu0 %v2483
    %2707 = vmatpush1.msra.mxu0 %v2482
    %2708 = vmatprep.subr.mxu0 %v2487
    %2709 = vmatpush1.msra.mxu0 %v2486
    %2710 = vmatprep.subr.mxu0 %v2491
    %2711 = vmatpush1.msra.mxu0 %v2490
    %2712 = vmatprep.subr.mxu0 %v2495
    %2713 = vmatpush1.msra.mxu0 %v2494
    %2714 = vmatprep.subr.mxu0 %v2499
    %2715 = vmatpush1.msra.mxu0 %v2498
    %2716 = vmatprep.subr.mxu0 %v2503
    %2717 = vmatpush1.msra.mxu0 %v2502
    %2718 = vmatprep.subr.mxu0 %v2507
    %2719 = vmatpush1.msra.mxu0 %v2506
    %2720 = vmatprep.subr.mxu0 %v2511
    %2721 = vmatpush1.msra.mxu0 %v2510
    %2722 = vmatprep.subr.mxu0 %v2515
    %2723 = vmatpush1.msra.mxu0 %v2514
    %2724 = vmatprep.subr.mxu0 %v2519
    %2725 = vmatpush1.msra.mxu0 %v2518
    %2726 = vmatprep.subr.mxu0 %v2523
    %2727 = vmatpush1.msra.mxu0 %v2522
    %2728 = vmatprep.subr.mxu0 %v2527
    %2729 = vmatpush1.msra.mxu0 %v2526
    %2730 = vmatprep.subr.mxu0 %v2531
    %2731 = vmatpush1.msra.mxu0 %v2530
    %2732 = vmatprep.subr.mxu0 %v2535
    %2733 = vmatpush1.msra.mxu0 %v2534
    %2734 = vmatprep.subr.mxu0 %v2539
    %2735 = vmatpush1.msra.mxu0 %v2538
    %2736 = vmatprep.subr.mxu0 %v2543
    %2737 = vmatpush1.msra.mxu0 %v2542
    %2738 = vmatprep.subr.mxu0 %v2547
    %2739 = vmatpush1.msra.mxu0 %v2546
    %2740 = vmatprep.subr.mxu0 %v2551
    %2741 = vmatpush1.msra.mxu0 %v2550
    %2742 = vmatprep.subr.mxu0 %v2555
    %2743 = vmatpush1.msra.mxu0 %v2554
    %2744 = vmatprep.subr.mxu0 %v2559
    %2745 = vmatpush1.msra.mxu0 %v2558
    %2746 = vmatprep.subr.mxu0 %v2563
    %2747 = vmatpush1.msra.mxu0 %v2562
    %2748 = vmatprep.subr.mxu0 %v2567
    %2749 = vmatpush1.msra.mxu0 %v2566
    %2750 = vmatprep.subr.mxu0 %v2571
    %2751 = vmatpush1.msra.mxu0 %v2570
    %2752 = vmatprep.subr.mxu0 %v2575
    %2753 = vmatpush1.msra.mxu0 %v2574
    %2754 = vmatprep.subr.mxu0 %v2579
    %2755 = vmatpush1.msra.mxu0 %v2578
    %2756 = vmatprep.subr.mxu0 %v2583
    %2757 = vmatpush1.msra.mxu0 %v2582
    %2758 = vmatprep.subr.mxu0 %v2587
    %2759 = vmatpush1.msra.mxu0 %v2586
    %2760 = vmatprep.subr.mxu0 %v2591
    %2761 = vmatpush1.msra.mxu0 %v2590
    %2762 = vmatprep.subr.mxu0 %v2595
    %2763 = vmatpush1.msra.mxu0 %v2594
    %2764 = vmatprep.mubr.f32.mxu0 %v2626
    %2765 = vmatmul.mubr.f32.gmra.mrb[0].mxu0 %v2625
    %v2766 = vpop.f32.mrb[0].mxu0
    %v2767 = vadd.f32 %v2609, %v2766
    %v2768 = vpop.f32.mrb[0].mxu0
    %v2769 = vadd.f32 %v2613, %v2768
    %2770 = vdwg.mxu0
    %v2771 = vxor.u32 %v2696, 2147483648
    %v2772 = vmul.f32 %v2771, 1.442695
    %v2773 = vpow.pop %v2772
    %v2774 = vadd.f32 %v2773, 1.0
    %v2775 = vrcp.pop %v2774
    %v2776 = vmul.f32 1.0, %v2775
    %v2777 = vxor.u32 %v2698, 2147483648
    %v2778 = vmul.f32 %v2777, 1.442695
    %v2779 = vpow.pop %v2778
    %v2780 = vadd.f32 %v2779, 1.0
    %v2781 = vrcp.pop %v2780
    %v2782 = vmul.f32 1.0, %v2781
    %v2783 = vtanh.pop %v2767
    %v2784 = vxor.u32 %v2769, 2147483648
    %v2785 = vmul.f32 %v2784, 1.442695
    %v2786 = vpow.pop %v2785
    %v2787 = vadd.f32 %v2786, 1.0
    %v2788 = vrcp.pop %v2787
    %v2789 = vmul.f32 1.0, %v2788
    %v2790 = vld [vmem:[#allocation6] sm:$0x3]
    %v2791 = vmul.f32 %v2782, %v2790
    %v2792 = vmul.f32 %v2776, %v2783
    %v2793 = vadd.f32 %v2791, %v2792
    %v2794 = vtanh.pop %v2793
    %v2795 = vmul.f32 %v2789, %v2794
    %2796 = vst [vmem:[#allocation6] sm:$0x3] %v2793
    %2797 = vst [vmem:[#allocation4 + $0x2] sm:$0x3] %v2795
    %s2798 = scalar_lea.vmem [#allocation3], 6
    %2799 = vst [vmem:[%s2798] sm:$0x3] %v2795
    %s2800 = scalar_lea.vmem [#allocation2], 32
    %v2801 = vld [vmem:[%s2800] sm:$0xff]
    %v2802 = vld [vmem:[#allocation4] sm:$0x3]
    %v2803 = vld [vmem:[#allocation8] sm:$0xff]
    %v2804 = vld [vmem:[#allocation8 + $0x8] sm:$0xff]
    %v2805 = vld [vmem:[#allocation8 + $0x10] sm:$0xff]
    %v2806 = vld [vmem:[#allocation8 + $0x18] sm:$0xff]
    %v2807 = vld [vmem:[#allocation8 + $0x20] sm:$0xff]
    %v2808 = vld [vmem:[#allocation8 + $0x28] sm:$0xff]
    %v2809 = vld [vmem:[#allocation8 + $0x30] sm:$0xff]
    %v2810 = vld [vmem:[#allocation8 + $0x38] sm:$0xff]
    %v2811 = vld [vmem:[#allocation8 + $0x40] sm:$0xff]
    %v2812 = vld [vmem:[#allocation8 + $0x48] sm:$0xff]
    %v2813 = vld [vmem:[#allocation8 + $0x50] sm:$0xff]
    %v2814 = vld [vmem:[#allocation8 + $0x58] sm:$0xff]
    %v2815 = vld [vmem:[#allocation8 + $0x60] sm:$0xff]
    %v2816 = vld [vmem:[#allocation8 + $0x68] sm:$0xff]
    %v2817 = vld [vmem:[#allocation8 + $0x70] sm:$0xff]
    %v2818 = vld [vmem:[#allocation8 + $0x78] sm:$0xff]
    %v2819 = vld [vmem:[#allocation8 + $0x80] sm:$0xff]
    %v2820 = vld [vmem:[#allocation8 + $0x88] sm:$0xff]
    %v2821 = vld [vmem:[#allocation8 + $0x90] sm:$0xff]
    %v2822 = vld [vmem:[#allocation8 + $0x98] sm:$0xff]
    %v2823 = vld [vmem:[#allocation8 + $0xa0] sm:$0xff]
    %v2824 = vld [vmem:[#allocation8 + $0xa8] sm:$0xff]
    %v2825 = vld [vmem:[#allocation8 + $0xb0] sm:$0xff]
    %v2826 = vld [vmem:[#allocation8 + $0xb8] sm:$0xff]
    %v2827 = vld [vmem:[#allocation8 + $0xc0] sm:$0xff]
    %v2828 = vld [vmem:[#allocation8 + $0xc8] sm:$0xff]
    %v2829 = vld [vmem:[#allocation8 + $0xd0] sm:$0xff]
    %v2830 = vld [vmem:[#allocation8 + $0xd8] sm:$0xff]
    %v2831 = vld [vmem:[#allocation8 + $0xe0] sm:$0xff]
    %v2832 = vld [vmem:[#allocation8 + $0xe8] sm:$0xff]
    %v2833 = vld [vmem:[#allocation8 + $0xf0] sm:$0xff]
    %v2834 = vld [vmem:[#allocation8 + $0xf8] sm:$0xff]
    %v2835 = vld [vmem:[#allocation8 + $0x100] sm:$0xff]
    %v2836 = vld [vmem:[#allocation8 + $0x108] sm:$0xff]
    %v2837 = vld [vmem:[#allocation8 + $0x110] sm:$0xff]
    %v2838 = vld [vmem:[#allocation8 + $0x118] sm:$0xff]
    %v2839 = vld [vmem:[#allocation8 + $0x120] sm:$0xff]
    %v2840 = vld [vmem:[#allocation8 + $0x128] sm:$0xff]
    %v2841 = vld [vmem:[#allocation8 + $0x130] sm:$0xff]
    %v2842 = vld [vmem:[#allocation8 + $0x138] sm:$0xff]
    %v2843 = vld [vmem:[#allocation8 + $0x140] sm:$0xff]
    %v2844 = vld [vmem:[#allocation8 + $0x148] sm:$0xff]
    %v2845 = vld [vmem:[#allocation8 + $0x150] sm:$0xff]
    %v2846 = vld [vmem:[#allocation8 + $0x158] sm:$0xff]
    %v2847 = vld [vmem:[#allocation8 + $0x160] sm:$0xff]
    %v2848 = vld [vmem:[#allocation8 + $0x168] sm:$0xff]
    %v2849 = vld [vmem:[#allocation8 + $0x170] sm:$0xff]
    %v2850 = vld [vmem:[#allocation8 + $0x178] sm:$0xff]
    %v2851 = vld [vmem:[#allocation8 + $0x180] sm:$0xff]
    %v2852 = vld [vmem:[#allocation8 + $0x188] sm:$0xff]
    %v2853 = vld [vmem:[#allocation8 + $0x190] sm:$0xff]
    %v2854 = vld [vmem:[#allocation8 + $0x198] sm:$0xff]
    %v2855 = vld [vmem:[#allocation8 + $0x1a0] sm:$0xff]
    %v2856 = vld [vmem:[#allocation8 + $0x1a8] sm:$0xff]
    %v2857 = vld [vmem:[#allocation8 + $0x1b0] sm:$0xff]
    %v2858 = vld [vmem:[#allocation8 + $0x1b8] sm:$0xff]
    %v2859 = vld [vmem:[#allocation8 + $0x1c0] sm:$0xff]
    %v2860 = vld [vmem:[#allocation8 + $0x1c8] sm:$0xff]
    %v2861 = vld [vmem:[#allocation8 + $0x1d0] sm:$0xff]
    %v2862 = vld [vmem:[#allocation8 + $0x1d8] sm:$0xff]
    %v2863 = vld [vmem:[#allocation8 + $0x1e0] sm:$0xff]
    %v2864 = vld [vmem:[#allocation8 + $0x1e8] sm:$0xff]
    %v2865 = vld [vmem:[#allocation8 + $0x1f0] sm:$0xff]
    %v2866 = vld [vmem:[#allocation8 + $0x1f8] sm:$0xff]
    %2867 = vmatprep.subr.mxu0 %v2804
    %2868 = vmatpush1.msra.mxu0 %v2803
    %2869 = vmatprep.subr.mxu0 %v2808
    %2870 = vmatpush1.msra.mxu0 %v2807
    %2871 = vmatprep.subr.mxu0 %v2812
    %2872 = vmatpush1.msra.mxu0 %v2811
    %2873 = vmatprep.subr.mxu0 %v2816
    %2874 = vmatpush1.msra.mxu0 %v2815
    %2875 = vmatprep.subr.mxu0 %v2820
    %2876 = vmatpush1.msra.mxu0 %v2819
    %2877 = vmatprep.subr.mxu0 %v2824
    %2878 = vmatpush1.msra.mxu0 %v2823
    %2879 = vmatprep.subr.mxu0 %v2828
    %2880 = vmatpush1.msra.mxu0 %v2827
    %2881 = vmatprep.subr.mxu0 %v2832
    %2882 = vmatpush1.msra.mxu0 %v2831
    %2883 = vmatprep.subr.mxu0 %v2836
    %2884 = vmatpush1.msra.mxu0 %v2835
    %2885 = vmatprep.subr.mxu0 %v2840
    %2886 = vmatpush1.msra.mxu0 %v2839
    %2887 = vmatprep.subr.mxu0 %v2844
    %2888 = vmatpush1.msra.mxu0 %v2843
    %2889 = vmatprep.subr.mxu0 %v2848
    %2890 = vmatpush1.msra.mxu0 %v2847
    %2891 = vmatprep.subr.mxu0 %v2852
    %2892 = vmatpush1.msra.mxu0 %v2851
    %2893 = vmatprep.subr.mxu0 %v2856
    %2894 = vmatpush1.msra.mxu0 %v2855
    %2895 = vmatprep.subr.mxu0 %v2860
    %2896 = vmatpush1.msra.mxu0 %v2859
    %2897 = vmatprep.subr.mxu0 %v2864
    %2898 = vmatpush1.msra.mxu0 %v2863
    %2899 = vmatprep.subr.mxu0 0.0
    %2900 = vmatpush1.msra.mxu0 0.0
    %2901 = vmatprep.subr.mxu0 0.0
    %2902 = vmatpush1.msra.mxu0 0.0
    %2903 = vmatprep.subr.mxu0 0.0
    %2904 = vmatpush1.msra.mxu0 0.0
    %2905 = vmatprep.subr.mxu0 0.0
    %2906 = vmatpush1.msra.mxu0 0.0
    %2907 = vmatprep.subr.mxu0 0.0
    %2908 = vmatpush1.msra.mxu0 0.0
    %2909 = vmatprep.subr.mxu0 0.0
    %2910 = vmatpush1.msra.mxu0 0.0
    %2911 = vmatprep.subr.mxu0 0.0
    %2912 = vmatpush1.msra.mxu0 0.0
    %2913 = vmatprep.subr.mxu0 0.0
    %2914 = vmatpush1.msra.mxu0 0.0
    %2915 = vmatprep.subr.mxu0 0.0
    %2916 = vmatpush1.msra.mxu0 0.0
    %2917 = vmatprep.subr.mxu0 0.0
    %2918 = vmatpush1.msra.mxu0 0.0
    %2919 = vmatprep.subr.mxu0 0.0
    %2920 = vmatpush1.msra.mxu0 0.0
    %2921 = vmatprep.subr.mxu0 0.0
    %2922 = vmatpush1.msra.mxu0 0.0
    %2923 = vmatprep.subr.mxu0 0.0
    %2924 = vmatpush1.msra.mxu0 0.0
    %2925 = vmatprep.subr.mxu0 0.0
    %2926 = vmatpush1.msra.mxu0 0.0
    %2927 = vmatprep.subr.mxu0 0.0
    %2928 = vmatpush1.msra.mxu0 0.0
    %2929 = vmatprep.subr.mxu0 0.0
    %2930 = vmatpush1.msra.mxu0 0.0
    %2931 = vmatprep.mubr.f32.mxu0 0.0
    %2932 = vmatmul.mubr.f32.gmra.mrb[0].mxu0 %v2802
    %v2933 = vpop.f32.mrb[0].mxu0
    %v2934 = vadd.f32 0.0, %v2933
    %v2935 = vpop.f32.mrb[0].mxu0
    %v2936 = vadd.f32 0.0, %v2935
    %2937 = vdwg.mxu0
    %2938 = vmatprep.subr.mxu0 %v2806
    %2939 = vmatpush1.msra.mxu0 %v2805
    %2940 = vmatprep.subr.mxu0 %v2810
    %2941 = vmatpush1.msra.mxu0 %v2809
    %2942 = vmatprep.subr.mxu0 %v2814
    %2943 = vmatpush1.msra.mxu0 %v2813
    %2944 = vmatprep.subr.mxu0 %v2818
    %2945 = vmatpush1.msra.mxu0 %v2817
    %2946 = vmatprep.subr.mxu0 %v2822
    %2947 = vmatpush1.msra.mxu0 %v2821
    %2948 = vmatprep.subr.mxu0 %v2826
    %2949 = vmatpush1.msra.mxu0 %v2825
    %2950 = vmatprep.subr.mxu0 %v2830
    %2951 = vmatpush1.msra.mxu0 %v2829
    %2952 = vmatprep.subr.mxu0 %v2834
    %2953 = vmatpush1.msra.mxu0 %v2833
    %2954 = vmatprep.subr.mxu0 %v2838
    %2955 = vmatpush1.msra.mxu0 %v2837
    %2956 = vmatprep.subr.mxu0 %v2842
    %2957 = vmatpush1.msra.mxu0 %v2841
    %2958 = vmatprep.subr.mxu0 %v2846
    %2959 = vmatpush1.msra.mxu0 %v2845
    %2960 = vmatprep.subr.mxu0 %v2850
    %2961 = vmatpush1.msra.mxu0 %v2849
    %2962 = vmatprep.subr.mxu0 %v2854
    %2963 = vmatpush1.msra.mxu0 %v2853
    %2964 = vmatprep.subr.mxu0 %v2858
    %2965 = vmatpush1.msra.mxu0 %v2857
    %2966 = vmatprep.subr.mxu0 %v2862
    %2967 = vmatpush1.msra.mxu0 %v2861
    %2968 = vmatprep.subr.mxu0 %v2866
    %2969 = vmatpush1.msra.mxu0 %v2865
    %2970 = vmatprep.subr.mxu0 0.0
    %2971 = vmatpush1.msra.mxu0 0.0
    %2972 = vmatprep.subr.mxu0 0.0
    %2973 = vmatpush1.msra.mxu0 0.0
    %2974 = vmatprep.subr.mxu0 0.0
    %2975 = vmatpush1.msra.mxu0 0.0
    %2976 = vmatprep.subr.mxu0 0.0
    %2977 = vmatpush1.msra.mxu0 0.0
    %2978 = vmatprep.subr.mxu0 0.0
    %2979 = vmatpush1.msra.mxu0 0.0
    %2980 = vmatprep.subr.mxu0 0.0
    %2981 = vmatpush1.msra.mxu0 0.0
    %2982 = vmatprep.subr.mxu0 0.0
    %2983 = vmatpush1.msra.mxu0 0.0
    %2984 = vmatprep.subr.mxu0 0.0
    %2985 = vmatpush1.msra.mxu0 0.0
    %2986 = vmatprep.subr.mxu0 0.0
    %2987 = vmatpush1.msra.mxu0 0.0
    %2988 = vmatprep.subr.mxu0 0.0
    %2989 = vmatpush1.msra.mxu0 0.0
    %2990 = vmatprep.subr.mxu0 0.0
    %2991 = vmatpush1.msra.mxu0 0.0
    %2992 = vmatprep.subr.mxu0 0.0
    %2993 = vmatpush1.msra.mxu0 0.0
    %2994 = vmatprep.subr.mxu0 0.0
    %2995 = vmatpush1.msra.mxu0 0.0
    %2996 = vmatprep.subr.mxu0 0.0
    %2997 = vmatpush1.msra.mxu0 0.0
    %2998 = vmatprep.subr.mxu0 0.0
    %2999 = vmatpush1.msra.mxu0 0.0
    %3000 = vmatprep.subr.mxu0 0.0
    %3001 = vmatpush1.msra.mxu0 0.0
    %3002 = vmatprep.mubr.f32.mxu0 0.0
    %3003 = vmatmul.mubr.f32.gmra.mrb[0].mxu0 %v2802
    %v3004 = vpop.f32.mrb[0].mxu0
    %v3005 = vadd.f32 0.0, %v3004
    %v3006 = vpop.f32.mrb[0].mxu0
    %v3007 = vadd.f32 0.0, %v3006
    %3008 = vdwg.mxu0
    %v3013 = vcombine.low %v2934, %v2936
    %v3014 = vcombine.low %v3005, %v3007
    %v3016 = vunpack.c.l.s4 1983009808
    %v3017 = vunpack.c.0.s8 %v3016
    %v3018 = vlaneseq
    %v3019 = vshrl.u32 %v3018, 7
    %v3020 = vsub.s32 %v3017, %v3019
    %v3021 = vrot.slane %v3013, %v3020
    %v3023 = vunpack.c.l.s4 1983009808
    %v3024 = vunpack.c.0.s8 %v3023
    %v3025 = vlaneseq
    %v3026 = vshrl.u32 %v3025, 7
    %v3027 = vsub.s32 %v3024, %v3026
    %v3028 = vrot.slane %v3014, %v3027
    %v3029 = vcombine.low %v3021, %v3028
    %v3031 = vadd.f32 %v2801, %v3029
    %v3032 = vxor.u32 %v3031, 2147483648
    %v3033 = vmul.f32 %v3032, 1.442695
    %v3034 = vpow.pop %v3033
    %v3035 = vadd.f32 %v3034, 1.0
    %v3036 = vrcp.pop %v3035
    %v3037 = vmul.f32 1.0, %v3036
    %v3039 = vrot.slane %v3031, 2
    %v3041 = vxor.u32 %v3039, 2147483648
    %v3042 = vmul.f32 %v3041, 1.442695
    %v3043 = vpow.pop %v3042
    %v3044 = vadd.f32 %v3043, 1.0
    %v3045 = vrcp.pop %v3044
    %v3046 = vmul.f32 1.0, %v3045
    %v3047 = vrot.slane %v3031, 4
    %v3049 = vtanh.pop %v3047
    %v3050 = vrot.slane %v3031, 6
    %v3052 = vxor.u32 %v3050, 2147483648
    %v3053 = vmul.f32 %v3052, 1.442695
    %v3054 = vpow.pop %v3053
    %v3055 = vadd.f32 %v3054, 1.0
    %v3056 = vrcp.pop %v3055
    %v3057 = vmul.f32 1.0, %v3056
    %v3058 = vld [vmem:[#allocation5] sm:$0x3]
    %v3059 = vmul.f32 %v3046, %v3058
    %v3060 = vmul.f32 %v3037, %v3049
    %v3061 = vadd.f32 %v3059, %v3060
    %v3062 = vtanh.pop %v3061
    %v3063 = vmul.f32 %v3057, %v3062
    %3064 = vst [vmem:[#allocation5] sm:$0x3] %v3061
    %3065 = vst [vmem:[#allocation4] sm:$0x3] %v3063
    %v3066 = vld [vmem:[#allocation4] sm:$0xf]
    %v3067 = vld [vmem:[#allocation10] sm:$0xff]
    %v3068 = vld [vmem:[#allocation10 + $0x8] sm:$0xff]
    %v3069 = vld [vmem:[#allocation10 + $0x10] sm:$0xff]
    %v3070 = vld [vmem:[#allocation10 + $0x18] sm:$0xff]
    %v3071 = vld [vmem:[#allocation10 + $0x20] sm:$0xff]
    %v3072 = vld [vmem:[#allocation10 + $0x28] sm:$0xff]
    %v3073 = vld [vmem:[#allocation10 + $0x30] sm:$0xff]
    %v3074 = vld [vmem:[#allocation10 + $0x38] sm:$0xff]
    %v3075 = vld [vmem:[#allocation10 + $0x40] sm:$0xff]
    %v3076 = vld [vmem:[#allocation10 + $0x48] sm:$0xff]
    %v3077 = vld [vmem:[#allocation10 + $0x50] sm:$0xff]
    %v3078 = vld [vmem:[#allocation10 + $0x58] sm:$0xff]
    %v3079 = vld [vmem:[#allocation10 + $0x60] sm:$0xff]
    %v3080 = vld [vmem:[#allocation10 + $0x68] sm:$0xff]
    %v3081 = vld [vmem:[#allocation10 + $0x70] sm:$0xff]
    %v3082 = vld [vmem:[#allocation10 + $0x78] sm:$0xff]
    %v3083 = vld [vmem:[#allocation10 + $0x80] sm:$0xff]
    %v3084 = vld [vmem:[#allocation10 + $0x88] sm:$0xff]
    %v3085 = vld [vmem:[#allocation10 + $0x90] sm:$0xff]
    %v3086 = vld [vmem:[#allocation10 + $0x98] sm:$0xff]
    %v3087 = vld [vmem:[#allocation10 + $0xa0] sm:$0xff]
    %v3088 = vld [vmem:[#allocation10 + $0xa8] sm:$0xff]
    %v3089 = vld [vmem:[#allocation10 + $0xb0] sm:$0xff]
    %v3090 = vld [vmem:[#allocation10 + $0xb8] sm:$0xff]
    %v3091 = vld [vmem:[#allocation10 + $0xc0] sm:$0xff]
    %v3092 = vld [vmem:[#allocation10 + $0xc8] sm:$0xff]
    %v3093 = vld [vmem:[#allocation10 + $0xd0] sm:$0xff]
    %v3094 = vld [vmem:[#allocation10 + $0xd8] sm:$0xff]
    %v3095 = vld [vmem:[#allocation10 + $0xe0] sm:$0xff]
    %v3096 = vld [vmem:[#allocation10 + $0xe8] sm:$0xff]
    %v3097 = vld [vmem:[#allocation10 + $0xf0] sm:$0xff]
    %v3098 = vld [vmem:[#allocation10 + $0xf8] sm:$0xff]
    %v3099 = vld [vmem:[#allocation10 + $0x100] sm:$0xff]
    %v3100 = vld [vmem:[#allocation10 + $0x108] sm:$0xff]
    %v3101 = vld [vmem:[#allocation10 + $0x110] sm:$0xff]
    %v3102 = vld [vmem:[#allocation10 + $0x118] sm:$0xff]
    %v3103 = vld [vmem:[#allocation10 + $0x120] sm:$0xff]
    %v3104 = vld [vmem:[#allocation10 + $0x128] sm:$0xff]
    %v3105 = vld [vmem:[#allocation10 + $0x130] sm:$0xff]
    %v3106 = vld [vmem:[#allocation10 + $0x138] sm:$0xff]
    %v3107 = vld [vmem:[#allocation10 + $0x140] sm:$0xff]
    %v3108 = vld [vmem:[#allocation10 + $0x148] sm:$0xff]
    %v3109 = vld [vmem:[#allocation10 + $0x150] sm:$0xff]
    %v3110 = vld [vmem:[#allocation10 + $0x158] sm:$0xff]
    %v3111 = vld [vmem:[#allocation10 + $0x160] sm:$0xff]
    %v3112 = vld [vmem:[#allocation10 + $0x168] sm:$0xff]
    %v3113 = vld [vmem:[#allocation10 + $0x170] sm:$0xff]
    %v3114 = vld [vmem:[#allocation10 + $0x178] sm:$0xff]
    %v3115 = vld [vmem:[#allocation10 + $0x180] sm:$0xff]
    %v3116 = vld [vmem:[#allocation10 + $0x188] sm:$0xff]
    %v3117 = vld [vmem:[#allocation10 + $0x190] sm:$0xff]
    %v3118 = vld [vmem:[#allocation10 + $0x198] sm:$0xff]
    %v3119 = vld [vmem:[#allocation10 + $0x1a0] sm:$0xff]
    %v3120 = vld [vmem:[#allocation10 + $0x1a8] sm:$0xff]
    %v3121 = vld [vmem:[#allocation10 + $0x1b0] sm:$0xff]
    %v3122 = vld [vmem:[#allocation10 + $0x1b8] sm:$0xff]
    %v3123 = vld [vmem:[#allocation10 + $0x1c0] sm:$0xff]
    %v3124 = vld [vmem:[#allocation10 + $0x1c8] sm:$0xff]
    %v3125 = vld [vmem:[#allocation10 + $0x1d0] sm:$0xff]
    %v3126 = vld [vmem:[#allocation10 + $0x1d8] sm:$0xff]
    %v3127 = vld [vmem:[#allocation10 + $0x1e0] sm:$0xff]
    %v3128 = vld [vmem:[#allocation10 + $0x1e8] sm:$0xff]
    %v3129 = vld [vmem:[#allocation10 + $0x1f0] sm:$0xff]
    %v3130 = vld [vmem:[#allocation10 + $0x1f8] sm:$0xff]
    %v3131 = vld [vmem:[#allocation10 + $0x200] sm:$0xff]
    %v3132 = vld [vmem:[#allocation10 + $0x208] sm:$0xff]
    %v3133 = vld [vmem:[#allocation10 + $0x210] sm:$0xff]
    %v3134 = vld [vmem:[#allocation10 + $0x218] sm:$0xff]
    %v3135 = vld [vmem:[#allocation10 + $0x220] sm:$0xff]
    %v3136 = vld [vmem:[#allocation10 + $0x228] sm:$0xff]
    %v3137 = vld [vmem:[#allocation10 + $0x230] sm:$0xff]
    %v3138 = vld [vmem:[#allocation10 + $0x238] sm:$0xff]
    %v3139 = vld [vmem:[#allocation10 + $0x240] sm:$0xff]
    %v3140 = vld [vmem:[#allocation10 + $0x248] sm:$0xff]
    %v3141 = vld [vmem:[#allocation10 + $0x250] sm:$0xff]
    %v3142 = vld [vmem:[#allocation10 + $0x258] sm:$0xff]
    %v3143 = vld [vmem:[#allocation10 + $0x260] sm:$0xff]
    %v3144 = vld [vmem:[#allocation10 + $0x268] sm:$0xff]
    %v3145 = vld [vmem:[#allocation10 + $0x270] sm:$0xff]
    %v3146 = vld [vmem:[#allocation10 + $0x278] sm:$0xff]
    %v3147 = vld [vmem:[#allocation10 + $0x280] sm:$0xff]
    %v3148 = vld [vmem:[#allocation10 + $0x288] sm:$0xff]
    %v3149 = vld [vmem:[#allocation10 + $0x290] sm:$0xff]
    %v3150 = vld [vmem:[#allocation10 + $0x298] sm:$0xff]
    %v3151 = vld [vmem:[#allocation10 + $0x2a0] sm:$0xff]
    %v3152 = vld [vmem:[#allocation10 + $0x2a8] sm:$0xff]
    %v3153 = vld [vmem:[#allocation10 + $0x2b0] sm:$0xff]
    %v3154 = vld [vmem:[#allocation10 + $0x2b8] sm:$0xff]
    %v3155 = vld [vmem:[#allocation10 + $0x2c0] sm:$0xff]
    %v3156 = vld [vmem:[#allocation10 + $0x2c8] sm:$0xff]
    %v3157 = vld [vmem:[#allocation10 + $0x2d0] sm:$0xff]
    %v3158 = vld [vmem:[#allocation10 + $0x2d8] sm:$0xff]
    %v3159 = vld [vmem:[#allocation10 + $0x2e0] sm:$0xff]
    %v3160 = vld [vmem:[#allocation10 + $0x2e8] sm:$0xff]
    %v3161 = vld [vmem:[#allocation10 + $0x2f0] sm:$0xff]
    %v3162 = vld [vmem:[#allocation10 + $0x2f8] sm:$0xff]
    %v3163 = vld [vmem:[#allocation10 + $0x300] sm:$0xff]
    %v3164 = vld [vmem:[#allocation10 + $0x308] sm:$0xff]
    %v3165 = vld [vmem:[#allocation10 + $0x310] sm:$0xff]
    %v3166 = vld [vmem:[#allocation10 + $0x318] sm:$0xff]
    %v3167 = vld [vmem:[#allocation10 + $0x320] sm:$0xff]
    %v3168 = vld [vmem:[#allocation10 + $0x328] sm:$0xff]
    %v3169 = vld [vmem:[#allocation10 + $0x330] sm:$0xff]
    %v3170 = vld [vmem:[#allocation10 + $0x338] sm:$0xff]
    %v3171 = vld [vmem:[#allocation10 + $0x340] sm:$0xff]
    %v3172 = vld [vmem:[#allocation10 + $0x348] sm:$0xff]
    %v3173 = vld [vmem:[#allocation10 + $0x350] sm:$0xff]
    %v3174 = vld [vmem:[#allocation10 + $0x358] sm:$0xff]
    %v3175 = vld [vmem:[#allocation10 + $0x360] sm:$0xff]
    %v3176 = vld [vmem:[#allocation10 + $0x368] sm:$0xff]
    %v3177 = vld [vmem:[#allocation10 + $0x370] sm:$0xff]
    %v3178 = vld [vmem:[#allocation10 + $0x378] sm:$0xff]
    %v3179 = vld [vmem:[#allocation10 + $0x380] sm:$0xff]
    %v3180 = vld [vmem:[#allocation10 + $0x388] sm:$0xff]
    %v3181 = vld [vmem:[#allocation10 + $0x390] sm:$0xff]
    %v3182 = vld [vmem:[#allocation10 + $0x398] sm:$0xff]
    %v3183 = vld [vmem:[#allocation10 + $0x3a0] sm:$0xff]
    %v3184 = vld [vmem:[#allocation10 + $0x3a8] sm:$0xff]
    %v3185 = vld [vmem:[#allocation10 + $0x3b0] sm:$0xff]
    %v3186 = vld [vmem:[#allocation10 + $0x3b8] sm:$0xff]
    %v3187 = vld [vmem:[#allocation10 + $0x3c0] sm:$0xff]
    %v3188 = vld [vmem:[#allocation10 + $0x3c8] sm:$0xff]
    %v3189 = vld [vmem:[#allocation10 + $0x3d0] sm:$0xff]
    %v3190 = vld [vmem:[#allocation10 + $0x3d8] sm:$0xff]
    %v3191 = vld [vmem:[#allocation10 + $0x3e0] sm:$0xff]
    %v3192 = vld [vmem:[#allocation10 + $0x3e8] sm:$0xff]
    %v3193 = vld [vmem:[#allocation10 + $0x3f0] sm:$0xff]
    %v3194 = vld [vmem:[#allocation10 + $0x3f8] sm:$0xff]
    %v3195 = vld [vmem:[%s5] sm:$0xf]
    %v3197 = vlaneseq
    %v3198 = vshrl.u32 %v3197, 7
    %v3199 = vsub.s32 0, %v3198
    %v3200 = vrot.slane %v3195, %v3199
    %v3201 = vlaneseq
    %v3202 = vshrl.u32 %v3201, 7
    %v3203 = vsub.s32 1, %v3202
    %v3204 = vrot.slane %v3195, %v3203
    %v3205 = vlaneseq
    %v3206 = vshrl.u32 %v3205, 7
    %v3207 = vsub.s32 2, %v3206
    %v3208 = vrot.slane %v3195, %v3207
    %v3209 = vlaneseq
    %v3210 = vshrl.u32 %v3209, 7
    %v3211 = vsub.s32 3, %v3210
    %v3212 = vrot.slane %v3195, %v3211
    %v3219 = vunpack.c.l.s4 1983009808
    %v3220 = vunpack.c.0.s8 %v3219
    %v3221 = vlaneseq
    %v3222 = vshrl.u32 %v3221, 7
    %v3223 = vsub.s32 %v3220, %v3222
    %v3224 = vrot.slane %v3066, %v3223
    %v3225 = vcombine.high %v3224, %v3224
    %3228 = vmatprep.subr.mxu0 %v3068
    %3229 = vmatpush1.msra.mxu0 %v3067
    %3230 = vmatprep.subr.mxu0 %v3072
    %3231 = vmatpush1.msra.mxu0 %v3071
    %3232 = vmatprep.subr.mxu0 %v3076
    %3233 = vmatpush1.msra.mxu0 %v3075
    %3234 = vmatprep.subr.mxu0 %v3080
    %3235 = vmatpush1.msra.mxu0 %v3079
    %3236 = vmatprep.subr.mxu0 %v3084
    %3237 = vmatpush1.msra.mxu0 %v3083
    %3238 = vmatprep.subr.mxu0 %v3088
    %3239 = vmatpush1.msra.mxu0 %v3087
    %3240 = vmatprep.subr.mxu0 %v3092
    %3241 = vmatpush1.msra.mxu0 %v3091
    %3242 = vmatprep.subr.mxu0 %v3096
    %3243 = vmatpush1.msra.mxu0 %v3095
    %3244 = vmatprep.subr.mxu0 %v3100
    %3245 = vmatpush1.msra.mxu0 %v3099
    %3246 = vmatprep.subr.mxu0 %v3104
    %3247 = vmatpush1.msra.mxu0 %v3103
    %3248 = vmatprep.subr.mxu0 %v3108
    %3249 = vmatpush1.msra.mxu0 %v3107
    %3250 = vmatprep.subr.mxu0 %v3112
    %3251 = vmatpush1.msra.mxu0 %v3111
    %3252 = vmatprep.subr.mxu0 %v3116
    %3253 = vmatpush1.msra.mxu0 %v3115
    %3254 = vmatprep.subr.mxu0 %v3120
    %3255 = vmatpush1.msra.mxu0 %v3119
    %3256 = vmatprep.subr.mxu0 %v3124
    %3257 = vmatpush1.msra.mxu0 %v3123
    %3258 = vmatprep.subr.mxu0 %v3128
    %3259 = vmatpush1.msra.mxu0 %v3127
    %3260 = vmatprep.subr.mxu0 %v3132
    %3261 = vmatpush1.msra.mxu0 %v3131
    %3262 = vmatprep.subr.mxu0 %v3136
    %3263 = vmatpush1.msra.mxu0 %v3135
    %3264 = vmatprep.subr.mxu0 %v3140
    %3265 = vmatpush1.msra.mxu0 %v3139
    %3266 = vmatprep.subr.mxu0 %v3144
    %3267 = vmatpush1.msra.mxu0 %v3143
    %3268 = vmatprep.subr.mxu0 %v3148
    %3269 = vmatpush1.msra.mxu0 %v3147
    %3270 = vmatprep.subr.mxu0 %v3152
    %3271 = vmatpush1.msra.mxu0 %v3151
    %3272 = vmatprep.subr.mxu0 %v3156
    %3273 = vmatpush1.msra.mxu0 %v3155
    %3274 = vmatprep.subr.mxu0 %v3160
    %3275 = vmatpush1.msra.mxu0 %v3159
    %3276 = vmatprep.subr.mxu0 %v3164
    %3277 = vmatpush1.msra.mxu0 %v3163
    %3278 = vmatprep.subr.mxu0 %v3168
    %3279 = vmatpush1.msra.mxu0 %v3167
    %3280 = vmatprep.subr.mxu0 %v3172
    %3281 = vmatpush1.msra.mxu0 %v3171
    %3282 = vmatprep.subr.mxu0 %v3176
    %3283 = vmatpush1.msra.mxu0 %v3175
    %3284 = vmatprep.subr.mxu0 %v3180
    %3285 = vmatpush1.msra.mxu0 %v3179
    %3286 = vmatprep.subr.mxu0 %v3184
    %3287 = vmatpush1.msra.mxu0 %v3183
    %3288 = vmatprep.subr.mxu0 %v3188
    %3289 = vmatpush1.msra.mxu0 %v3187
    %3290 = vmatprep.subr.mxu0 %v3192
    %3291 = vmatpush1.msra.mxu0 %v3191
    %3292 = vmatprep.mubr.f32.mxu0 %v3225
    %3293 = vmatmul.mubr.f32.gmra.mrb[0].mxu0 %v3224
    %v3294 = vpop.f32.mrb[0].mxu0
    %v3295 = vadd.f32 %v3200, %v3294
    %v3296 = vpop.f32.mrb[0].mxu0
    %v3297 = vadd.f32 %v3204, %v3296
    %3298 = vdwg.mxu0
    %3299 = vmatprep.subr.mxu0 %v3070
    %3300 = vmatpush1.msra.mxu0 %v3069
    %3301 = vmatprep.subr.mxu0 %v3074
    %3302 = vmatpush1.msra.mxu0 %v3073
    %3303 = vmatprep.subr.mxu0 %v3078
    %3304 = vmatpush1.msra.mxu0 %v3077
    %3305 = vmatprep.subr.mxu0 %v3082
    %3306 = vmatpush1.msra.mxu0 %v3081
    %3307 = vmatprep.subr.mxu0 %v3086
    %3308 = vmatpush1.msra.mxu0 %v3085
    %3309 = vmatprep.subr.mxu0 %v3090
    %3310 = vmatpush1.msra.mxu0 %v3089
    %3311 = vmatprep.subr.mxu0 %v3094
    %3312 = vmatpush1.msra.mxu0 %v3093
    %3313 = vmatprep.subr.mxu0 %v3098
    %3314 = vmatpush1.msra.mxu0 %v3097
    %3315 = vmatprep.subr.mxu0 %v3102
    %3316 = vmatpush1.msra.mxu0 %v3101
    %3317 = vmatprep.subr.mxu0 %v3106
    %3318 = vmatpush1.msra.mxu0 %v3105
    %3319 = vmatprep.subr.mxu0 %v3110
    %3320 = vmatpush1.msra.mxu0 %v3109
    %3321 = vmatprep.subr.mxu0 %v3114
    %3322 = vmatpush1.msra.mxu0 %v3113
    %3323 = vmatprep.subr.mxu0 %v3118
    %3324 = vmatpush1.msra.mxu0 %v3117
    %3325 = vmatprep.subr.mxu0 %v3122
    %3326 = vmatpush1.msra.mxu0 %v3121
    %3327 = vmatprep.subr.mxu0 %v3126
    %3328 = vmatpush1.msra.mxu0 %v3125
    %3329 = vmatprep.subr.mxu0 %v3130
    %3330 = vmatpush1.msra.mxu0 %v3129
    %3331 = vmatprep.subr.mxu0 %v3134
    %3332 = vmatpush1.msra.mxu0 %v3133
    %3333 = vmatprep.subr.mxu0 %v3138
    %3334 = vmatpush1.msra.mxu0 %v3137
    %3335 = vmatprep.subr.mxu0 %v3142
    %3336 = vmatpush1.msra.mxu0 %v3141
    %3337 = vmatprep.subr.mxu0 %v3146
    %3338 = vmatpush1.msra.mxu0 %v3145
    %3339 = vmatprep.subr.mxu0 %v3150
    %3340 = vmatpush1.msra.mxu0 %v3149
    %3341 = vmatprep.subr.mxu0 %v3154
    %3342 = vmatpush1.msra.mxu0 %v3153
    %3343 = vmatprep.subr.mxu0 %v3158
    %3344 = vmatpush1.msra.mxu0 %v3157
    %3345 = vmatprep.subr.mxu0 %v3162
    %3346 = vmatpush1.msra.mxu0 %v3161
    %3347 = vmatprep.subr.mxu0 %v3166
    %3348 = vmatpush1.msra.mxu0 %v3165
    %3349 = vmatprep.subr.mxu0 %v3170
    %3350 = vmatpush1.msra.mxu0 %v3169
    %3351 = vmatprep.subr.mxu0 %v3174
    %3352 = vmatpush1.msra.mxu0 %v3173
    %3353 = vmatprep.subr.mxu0 %v3178
    %3354 = vmatpush1.msra.mxu0 %v3177
    %3355 = vmatprep.subr.mxu0 %v3182
    %3356 = vmatpush1.msra.mxu0 %v3181
    %3357 = vmatprep.subr.mxu0 %v3186
    %3358 = vmatpush1.msra.mxu0 %v3185
    %3359 = vmatprep.subr.mxu0 %v3190
    %3360 = vmatpush1.msra.mxu0 %v3189
    %3361 = vmatprep.subr.mxu0 %v3194
    %3362 = vmatpush1.msra.mxu0 %v3193
    %3363 = vmatprep.mubr.f32.mxu0 %v3225
    %3364 = vmatmul.mubr.f32.gmra.mrb[0].mxu0 %v3224
    %v3365 = vpop.f32.mrb[0].mxu0
    %v3366 = vadd.f32 %v3208, %v3365
    %v3367 = vpop.f32.mrb[0].mxu0
    %v3368 = vadd.f32 %v3212, %v3367
    %3369 = vdwg.mxu0
    %v3370 = vxor.u32 %v3295, 2147483648
    %v3371 = vmul.f32 %v3370, 1.442695
    %v3372 = vpow.pop %v3371
    %v3373 = vadd.f32 %v3372, 1.0
    %v3374 = vrcp.pop %v3373
    %v3375 = vmul.f32 1.0, %v3374
    %v3376 = vxor.u32 %v3297, 2147483648
    %v3377 = vmul.f32 %v3376, 1.442695
    %v3378 = vpow.pop %v3377
    %v3379 = vadd.f32 %v3378, 1.0
    %v3380 = vrcp.pop %v3379
    %v3381 = vmul.f32 1.0, %v3380
    %v3382 = vtanh.pop %v3366
    %v3383 = vxor.u32 %v3368, 2147483648
    %v3384 = vmul.f32 %v3383, 1.442695
    %v3385 = vpow.pop %v3384
    %v3386 = vadd.f32 %v3385, 1.0
    %v3387 = vrcp.pop %v3386
    %v3388 = vmul.f32 1.0, %v3387
    %v3389 = vld [vmem:[#allocation6] sm:$0x3]
    %v3390 = vmul.f32 %v3381, %v3389
    %v3391 = vmul.f32 %v3375, %v3382
    %v3392 = vadd.f32 %v3390, %v3391
    %v3393 = vtanh.pop %v3392
    %v3394 = vmul.f32 %v3388, %v3393
    %3395 = vst [vmem:[#allocation6] sm:$0x3] %v3392
    %3396 = vst [vmem:[#allocation4 + $0x2] sm:$0x3] %v3394
    %s3397 = scalar_lea.vmem [#allocation3], 8
    %3398 = vst [vmem:[%s3397] sm:$0x3] %v3394
    %s3399 = scalar_lea.vmem [#allocation2], 40
    %v3400 = vld [vmem:[%s3399] sm:$0xff]
    %v3401 = vld [vmem:[#allocation4] sm:$0x3]
    %v3402 = vld [vmem:[#allocation8] sm:$0xff]
    %v3403 = vld [vmem:[#allocation8 + $0x8] sm:$0xff]
    %v3404 = vld [vmem:[#allocation8 + $0x10] sm:$0xff]
    %v3405 = vld [vmem:[#allocation8 + $0x18] sm:$0xff]
    %v3406 = vld [vmem:[#allocation8 + $0x20] sm:$0xff]
    %v3407 = vld [vmem:[#allocation8 + $0x28] sm:$0xff]
    %v3408 = vld [vmem:[#allocation8 + $0x30] sm:$0xff]
    %v3409 = vld [vmem:[#allocation8 + $0x38] sm:$0xff]
    %v3410 = vld [vmem:[#allocation8 + $0x40] sm:$0xff]
    %v3411 = vld [vmem:[#allocation8 + $0x48] sm:$0xff]
    %v3412 = vld [vmem:[#allocation8 + $0x50] sm:$0xff]
    %v3413 = vld [vmem:[#allocation8 + $0x58] sm:$0xff]
    %v3414 = vld [vmem:[#allocation8 + $0x60] sm:$0xff]
    %v3415 = vld [vmem:[#allocation8 + $0x68] sm:$0xff]
    %v3416 = vld [vmem:[#allocation8 + $0x70] sm:$0xff]
    %v3417 = vld [vmem:[#allocation8 + $0x78] sm:$0xff]
    %v3418 = vld [vmem:[#allocation8 + $0x80] sm:$0xff]
    %v3419 = vld [vmem:[#allocation8 + $0x88] sm:$0xff]
    %v3420 = vld [vmem:[#allocation8 + $0x90] sm:$0xff]
    %v3421 = vld [vmem:[#allocation8 + $0x98] sm:$0xff]
    %v3422 = vld [vmem:[#allocation8 + $0xa0] sm:$0xff]
    %v3423 = vld [vmem:[#allocation8 + $0xa8] sm:$0xff]
    %v3424 = vld [vmem:[#allocation8 + $0xb0] sm:$0xff]
    %v3425 = vld [vmem:[#allocation8 + $0xb8] sm:$0xff]
    %v3426 = vld [vmem:[#allocation8 + $0xc0] sm:$0xff]
    %v3427 = vld [vmem:[#allocation8 + $0xc8] sm:$0xff]
    %v3428 = vld [vmem:[#allocation8 + $0xd0] sm:$0xff]
    %v3429 = vld [vmem:[#allocation8 + $0xd8] sm:$0xff]
    %v3430 = vld [vmem:[#allocation8 + $0xe0] sm:$0xff]
    %v3431 = vld [vmem:[#allocation8 + $0xe8] sm:$0xff]
    %v3432 = vld [vmem:[#allocation8 + $0xf0] sm:$0xff]
    %v3433 = vld [vmem:[#allocation8 + $0xf8] sm:$0xff]
    %v3434 = vld [vmem:[#allocation8 + $0x100] sm:$0xff]
    %v3435 = vld [vmem:[#allocation8 + $0x108] sm:$0xff]
    %v3436 = vld [vmem:[#allocation8 + $0x110] sm:$0xff]
    %v3437 = vld [vmem:[#allocation8 + $0x118] sm:$0xff]
    %v3438 = vld [vmem:[#allocation8 + $0x120] sm:$0xff]
    %v3439 = vld [vmem:[#allocation8 + $0x128] sm:$0xff]
    %v3440 = vld [vmem:[#allocation8 + $0x130] sm:$0xff]
    %v3441 = vld [vmem:[#allocation8 + $0x138] sm:$0xff]
    %v3442 = vld [vmem:[#allocation8 + $0x140] sm:$0xff]
    %v3443 = vld [vmem:[#allocation8 + $0x148] sm:$0xff]
    %v3444 = vld [vmem:[#allocation8 + $0x150] sm:$0xff]
    %v3445 = vld [vmem:[#allocation8 + $0x158] sm:$0xff]
    %v3446 = vld [vmem:[#allocation8 + $0x160] sm:$0xff]
    %v3447 = vld [vmem:[#allocation8 + $0x168] sm:$0xff]
    %v3448 = vld [vmem:[#allocation8 + $0x170] sm:$0xff]
    %v3449 = vld [vmem:[#allocation8 + $0x178] sm:$0xff]
    %v3450 = vld [vmem:[#allocation8 + $0x180] sm:$0xff]
    %v3451 = vld [vmem:[#allocation8 + $0x188] sm:$0xff]
    %v3452 = vld [vmem:[#allocation8 + $0x190] sm:$0xff]
    %v3453 = vld [vmem:[#allocation8 + $0x198] sm:$0xff]
    %v3454 = vld [vmem:[#allocation8 + $0x1a0] sm:$0xff]
    %v3455 = vld [vmem:[#allocation8 + $0x1a8] sm:$0xff]
    %v3456 = vld [vmem:[#allocation8 + $0x1b0] sm:$0xff]
    %v3457 = vld [vmem:[#allocation8 + $0x1b8] sm:$0xff]
    %v3458 = vld [vmem:[#allocation8 + $0x1c0] sm:$0xff]
    %v3459 = vld [vmem:[#allocation8 + $0x1c8] sm:$0xff]
    %v3460 = vld [vmem:[#allocation8 + $0x1d0] sm:$0xff]
    %v3461 = vld [vmem:[#allocation8 + $0x1d8] sm:$0xff]
    %v3462 = vld [vmem:[#allocation8 + $0x1e0] sm:$0xff]
    %v3463 = vld [vmem:[#allocation8 + $0x1e8] sm:$0xff]
    %v3464 = vld [vmem:[#allocation8 + $0x1f0] sm:$0xff]
    %v3465 = vld [vmem:[#allocation8 + $0x1f8] sm:$0xff]
    %3466 = vmatprep.subr.mxu0 %v3403
    %3467 = vmatpush1.msra.mxu0 %v3402
    %3468 = vmatprep.subr.mxu0 %v3407
    %3469 = vmatpush1.msra.mxu0 %v3406
    %3470 = vmatprep.subr.mxu0 %v3411
    %3471 = vmatpush1.msra.mxu0 %v3410
    %3472 = vmatprep.subr.mxu0 %v3415
    %3473 = vmatpush1.msra.mxu0 %v3414
    %3474 = vmatprep.subr.mxu0 %v3419
    %3475 = vmatpush1.msra.mxu0 %v3418
    %3476 = vmatprep.subr.mxu0 %v3423
    %3477 = vmatpush1.msra.mxu0 %v3422
    %3478 = vmatprep.subr.mxu0 %v3427
    %3479 = vmatpush1.msra.mxu0 %v3426
    %3480 = vmatprep.subr.mxu0 %v3431
    %3481 = vmatpush1.msra.mxu0 %v3430
    %3482 = vmatprep.subr.mxu0 %v3435
    %3483 = vmatpush1.msra.mxu0 %v3434
    %3484 = vmatprep.subr.mxu0 %v3439
    %3485 = vmatpush1.msra.mxu0 %v3438
    %3486 = vmatprep.subr.mxu0 %v3443
    %3487 = vmatpush1.msra.mxu0 %v3442
    %3488 = vmatprep.subr.mxu0 %v3447
    %3489 = vmatpush1.msra.mxu0 %v3446
    %3490 = vmatprep.subr.mxu0 %v3451
    %3491 = vmatpush1.msra.mxu0 %v3450
    %3492 = vmatprep.subr.mxu0 %v3455
    %3493 = vmatpush1.msra.mxu0 %v3454
    %3494 = vmatprep.subr.mxu0 %v3459
    %3495 = vmatpush1.msra.mxu0 %v3458
    %3496 = vmatprep.subr.mxu0 %v3463
    %3497 = vmatpush1.msra.mxu0 %v3462
    %3498 = vmatprep.subr.mxu0 0.0
    %3499 = vmatpush1.msra.mxu0 0.0
    %3500 = vmatprep.subr.mxu0 0.0
    %3501 = vmatpush1.msra.mxu0 0.0
    %3502 = vmatprep.subr.mxu0 0.0
    %3503 = vmatpush1.msra.mxu0 0.0
    %3504 = vmatprep.subr.mxu0 0.0
    %3505 = vmatpush1.msra.mxu0 0.0
    %3506 = vmatprep.subr.mxu0 0.0
    %3507 = vmatpush1.msra.mxu0 0.0
    %3508 = vmatprep.subr.mxu0 0.0
    %3509 = vmatpush1.msra.mxu0 0.0
    %3510 = vmatprep.subr.mxu0 0.0
    %3511 = vmatpush1.msra.mxu0 0.0
    %3512 = vmatprep.subr.mxu0 0.0
    %3513 = vmatpush1.msra.mxu0 0.0
    %3514 = vmatprep.subr.mxu0 0.0
    %3515 = vmatpush1.msra.mxu0 0.0
    %3516 = vmatprep.subr.mxu0 0.0
    %3517 = vmatpush1.msra.mxu0 0.0
    %3518 = vmatprep.subr.mxu0 0.0
    %3519 = vmatpush1.msra.mxu0 0.0
    %3520 = vmatprep.subr.mxu0 0.0
    %3521 = vmatpush1.msra.mxu0 0.0
    %3522 = vmatprep.subr.mxu0 0.0
    %3523 = vmatpush1.msra.mxu0 0.0
    %3524 = vmatprep.subr.mxu0 0.0
    %3525 = vmatpush1.msra.mxu0 0.0
    %3526 = vmatprep.subr.mxu0 0.0
    %3527 = vmatpush1.msra.mxu0 0.0
    %3528 = vmatprep.subr.mxu0 0.0
    %3529 = vmatpush1.msra.mxu0 0.0
    %3530 = vmatprep.mubr.f32.mxu0 0.0
    %3531 = vmatmul.mubr.f32.gmra.mrb[0].mxu0 %v3401
    %v3532 = vpop.f32.mrb[0].mxu0
    %v3533 = vadd.f32 0.0, %v3532
    %v3534 = vpop.f32.mrb[0].mxu0
    %v3535 = vadd.f32 0.0, %v3534
    %3536 = vdwg.mxu0
    %3537 = vmatprep.subr.mxu0 %v3405
    %3538 = vmatpush1.msra.mxu0 %v3404
    %3539 = vmatprep.subr.mxu0 %v3409
    %3540 = vmatpush1.msra.mxu0 %v3408
    %3541 = vmatprep.subr.mxu0 %v3413
    %3542 = vmatpush1.msra.mxu0 %v3412
    %3543 = vmatprep.subr.mxu0 %v3417
    %3544 = vmatpush1.msra.mxu0 %v3416
    %3545 = vmatprep.subr.mxu0 %v3421
    %3546 = vmatpush1.msra.mxu0 %v3420
    %3547 = vmatprep.subr.mxu0 %v3425
    %3548 = vmatpush1.msra.mxu0 %v3424
    %3549 = vmatprep.subr.mxu0 %v3429
    %3550 = vmatpush1.msra.mxu0 %v3428
    %3551 = vmatprep.subr.mxu0 %v3433
    %3552 = vmatpush1.msra.mxu0 %v3432
    %3553 = vmatprep.subr.mxu0 %v3437
    %3554 = vmatpush1.msra.mxu0 %v3436
    %3555 = vmatprep.subr.mxu0 %v3441
    %3556 = vmatpush1.msra.mxu0 %v3440
    %3557 = vmatprep.subr.mxu0 %v3445
    %3558 = vmatpush1.msra.mxu0 %v3444
    %3559 = vmatprep.subr.mxu0 %v3449
    %3560 = vmatpush1.msra.mxu0 %v3448
    %3561 = vmatprep.subr.mxu0 %v3453
    %3562 = vmatpush1.msra.mxu0 %v3452
    %3563 = vmatprep.subr.mxu0 %v3457
    %3564 = vmatpush1.msra.mxu0 %v3456
    %3565 = vmatprep.subr.mxu0 %v3461
    %3566 = vmatpush1.msra.mxu0 %v3460
    %3567 = vmatprep.subr.mxu0 %v3465
    %3568 = vmatpush1.msra.mxu0 %v3464
    %3569 = vmatprep.subr.mxu0 0.0
    %3570 = vmatpush1.msra.mxu0 0.0
    %3571 = vmatprep.subr.mxu0 0.0
    %3572 = vmatpush1.msra.mxu0 0.0
    %3573 = vmatprep.subr.mxu0 0.0
    %3574 = vmatpush1.msra.mxu0 0.0
    %3575 = vmatprep.subr.mxu0 0.0
    %3576 = vmatpush1.msra.mxu0 0.0
    %3577 = vmatprep.subr.mxu0 0.0
    %3578 = vmatpush1.msra.mxu0 0.0
    %3579 = vmatprep.subr.mxu0 0.0
    %3580 = vmatpush1.msra.mxu0 0.0
    %3581 = vmatprep.subr.mxu0 0.0
    %3582 = vmatpush1.msra.mxu0 0.0
    %3583 = vmatprep.subr.mxu0 0.0
    %3584 = vmatpush1.msra.mxu0 0.0
    %3585 = vmatprep.subr.mxu0 0.0
    %3586 = vmatpush1.msra.mxu0 0.0
    %3587 = vmatprep.subr.mxu0 0.0
    %3588 = vmatpush1.msra.mxu0 0.0
    %3589 = vmatprep.subr.mxu0 0.0
    %3590 = vmatpush1.msra.mxu0 0.0
    %3591 = vmatprep.subr.mxu0 0.0
    %3592 = vmatpush1.msra.mxu0 0.0
    %3593 = vmatprep.subr.mxu0 0.0
    %3594 = vmatpush1.msra.mxu0 0.0
    %3595 = vmatprep.subr.mxu0 0.0
    %3596 = vmatpush1.msra.mxu0 0.0
    %3597 = vmatprep.subr.mxu0 0.0
    %3598 = vmatpush1.msra.mxu0 0.0
    %3599 = vmatprep.subr.mxu0 0.0
    %3600 = vmatpush1.msra.mxu0 0.0
    %3601 = vmatprep.mubr.f32.mxu0 0.0
    %3602 = vmatmul.mubr.f32.gmra.mrb[0].mxu0 %v3401
    %v3603 = vpop.f32.mrb[0].mxu0
    %v3604 = vadd.f32 0.0, %v3603
    %v3605 = vpop.f32.mrb[0].mxu0
    %v3606 = vadd.f32 0.0, %v3605
    %3607 = vdwg.mxu0
    %v3612 = vcombine.low %v3533, %v3535
    %v3613 = vcombine.low %v3604, %v3606
    %v3615 = vunpack.c.l.s4 1983009808
    %v3616 = vunpack.c.0.s8 %v3615
    %v3617 = vlaneseq
    %v3618 = vshrl.u32 %v3617, 7
    %v3619 = vsub.s32 %v3616, %v3618
    %v3620 = vrot.slane %v3612, %v3619
    %v3622 = vunpack.c.l.s4 1983009808
    %v3623 = vunpack.c.0.s8 %v3622
    %v3624 = vlaneseq
    %v3625 = vshrl.u32 %v3624, 7
    %v3626 = vsub.s32 %v3623, %v3625
    %v3627 = vrot.slane %v3613, %v3626
    %v3628 = vcombine.low %v3620, %v3627
    %v3630 = vadd.f32 %v3400, %v3628
    %v3631 = vxor.u32 %v3630, 2147483648
    %v3632 = vmul.f32 %v3631, 1.442695
    %v3633 = vpow.pop %v3632
    %v3634 = vadd.f32 %v3633, 1.0
    %v3635 = vrcp.pop %v3634
    %v3636 = vmul.f32 1.0, %v3635
    %v3638 = vrot.slane %v3630, 2
    %v3640 = vxor.u32 %v3638, 2147483648
    %v3641 = vmul.f32 %v3640, 1.442695
    %v3642 = vpow.pop %v3641
    %v3643 = vadd.f32 %v3642, 1.0
    %v3644 = vrcp.pop %v3643
    %v3645 = vmul.f32 1.0, %v3644
    %v3646 = vrot.slane %v3630, 4
    %v3648 = vtanh.pop %v3646
    %v3649 = vrot.slane %v3630, 6
    %v3651 = vxor.u32 %v3649, 2147483648
    %v3652 = vmul.f32 %v3651, 1.442695
    %v3653 = vpow.pop %v3652
    %v3654 = vadd.f32 %v3653, 1.0
    %v3655 = vrcp.pop %v3654
    %v3656 = vmul.f32 1.0, %v3655
    %v3657 = vld [vmem:[#allocation5] sm:$0x3]
    %v3658 = vmul.f32 %v3645, %v3657
    %v3659 = vmul.f32 %v3636, %v3648
    %v3660 = vadd.f32 %v3658, %v3659
    %v3661 = vtanh.pop %v3660
    %v3662 = vmul.f32 %v3656, %v3661
    %3663 = vst [vmem:[#allocation5] sm:$0x3] %v3660
    %3664 = vst [vmem:[#allocation4] sm:$0x3] %v3662
    %v3665 = vld [vmem:[#allocation4] sm:$0xf]
    %v3666 = vld [vmem:[#allocation10] sm:$0xff]
    %v3667 = vld [vmem:[#allocation10 + $0x8] sm:$0xff]
    %v3668 = vld [vmem:[#allocation10 + $0x10] sm:$0xff]
    %v3669 = vld [vmem:[#allocation10 + $0x18] sm:$0xff]
    %v3670 = vld [vmem:[#allocation10 + $0x20] sm:$0xff]
    %v3671 = vld [vmem:[#allocation10 + $0x28] sm:$0xff]
    %v3672 = vld [vmem:[#allocation10 + $0x30] sm:$0xff]
    %v3673 = vld [vmem:[#allocation10 + $0x38] sm:$0xff]
    %v3674 = vld [vmem:[#allocation10 + $0x40] sm:$0xff]
    %v3675 = vld [vmem:[#allocation10 + $0x48] sm:$0xff]
    %v3676 = vld [vmem:[#allocation10 + $0x50] sm:$0xff]
    %v3677 = vld [vmem:[#allocation10 + $0x58] sm:$0xff]
    %v3678 = vld [vmem:[#allocation10 + $0x60] sm:$0xff]
    %v3679 = vld [vmem:[#allocation10 + $0x68] sm:$0xff]
    %v3680 = vld [vmem:[#allocation10 + $0x70] sm:$0xff]
    %v3681 = vld [vmem:[#allocation10 + $0x78] sm:$0xff]
    %v3682 = vld [vmem:[#allocation10 + $0x80] sm:$0xff]
    %v3683 = vld [vmem:[#allocation10 + $0x88] sm:$0xff]
    %v3684 = vld [vmem:[#allocation10 + $0x90] sm:$0xff]
    %v3685 = vld [vmem:[#allocation10 + $0x98] sm:$0xff]
    %v3686 = vld [vmem:[#allocation10 + $0xa0] sm:$0xff]
    %v3687 = vld [vmem:[#allocation10 + $0xa8] sm:$0xff]
    %v3688 = vld [vmem:[#allocation10 + $0xb0] sm:$0xff]
    %v3689 = vld [vmem:[#allocation10 + $0xb8] sm:$0xff]
    %v3690 = vld [vmem:[#allocation10 + $0xc0] sm:$0xff]
    %v3691 = vld [vmem:[#allocation10 + $0xc8] sm:$0xff]
    %v3692 = vld [vmem:[#allocation10 + $0xd0] sm:$0xff]
    %v3693 = vld [vmem:[#allocation10 + $0xd8] sm:$0xff]
    %v3694 = vld [vmem:[#allocation10 + $0xe0] sm:$0xff]
    %v3695 = vld [vmem:[#allocation10 + $0xe8] sm:$0xff]
    %v3696 = vld [vmem:[#allocation10 + $0xf0] sm:$0xff]
    %v3697 = vld [vmem:[#allocation10 + $0xf8] sm:$0xff]
    %v3698 = vld [vmem:[#allocation10 + $0x100] sm:$0xff]
    %v3699 = vld [vmem:[#allocation10 + $0x108] sm:$0xff]
    %v3700 = vld [vmem:[#allocation10 + $0x110] sm:$0xff]
    %v3701 = vld [vmem:[#allocation10 + $0x118] sm:$0xff]
    %v3702 = vld [vmem:[#allocation10 + $0x120] sm:$0xff]
    %v3703 = vld [vmem:[#allocation10 + $0x128] sm:$0xff]
    %v3704 = vld [vmem:[#allocation10 + $0x130] sm:$0xff]
    %v3705 = vld [vmem:[#allocation10 + $0x138] sm:$0xff]
    %v3706 = vld [vmem:[#allocation10 + $0x140] sm:$0xff]
    %v3707 = vld [vmem:[#allocation10 + $0x148] sm:$0xff]
    %v3708 = vld [vmem:[#allocation10 + $0x150] sm:$0xff]
    %v3709 = vld [vmem:[#allocation10 + $0x158] sm:$0xff]
    %v3710 = vld [vmem:[#allocation10 + $0x160] sm:$0xff]
    %v3711 = vld [vmem:[#allocation10 + $0x168] sm:$0xff]
    %v3712 = vld [vmem:[#allocation10 + $0x170] sm:$0xff]
    %v3713 = vld [vmem:[#allocation10 + $0x178] sm:$0xff]
    %v3714 = vld [vmem:[#allocation10 + $0x180] sm:$0xff]
    %v3715 = vld [vmem:[#allocation10 + $0x188] sm:$0xff]
    %v3716 = vld [vmem:[#allocation10 + $0x190] sm:$0xff]
    %v3717 = vld [vmem:[#allocation10 + $0x198] sm:$0xff]
    %v3718 = vld [vmem:[#allocation10 + $0x1a0] sm:$0xff]
    %v3719 = vld [vmem:[#allocation10 + $0x1a8] sm:$0xff]
    %v3720 = vld [vmem:[#allocation10 + $0x1b0] sm:$0xff]
    %v3721 = vld [vmem:[#allocation10 + $0x1b8] sm:$0xff]
    %v3722 = vld [vmem:[#allocation10 + $0x1c0] sm:$0xff]
    %v3723 = vld [vmem:[#allocation10 + $0x1c8] sm:$0xff]
    %v3724 = vld [vmem:[#allocation10 + $0x1d0] sm:$0xff]
    %v3725 = vld [vmem:[#allocation10 + $0x1d8] sm:$0xff]
    %v3726 = vld [vmem:[#allocation10 + $0x1e0] sm:$0xff]
    %v3727 = vld [vmem:[#allocation10 + $0x1e8] sm:$0xff]
    %v3728 = vld [vmem:[#allocation10 + $0x1f0] sm:$0xff]
    %v3729 = vld [vmem:[#allocation10 + $0x1f8] sm:$0xff]
    %v3730 = vld [vmem:[#allocation10 + $0x200] sm:$0xff]
    %v3731 = vld [vmem:[#allocation10 + $0x208] sm:$0xff]
    %v3732 = vld [vmem:[#allocation10 + $0x210] sm:$0xff]
    %v3733 = vld [vmem:[#allocation10 + $0x218] sm:$0xff]
    %v3734 = vld [vmem:[#allocation10 + $0x220] sm:$0xff]
    %v3735 = vld [vmem:[#allocation10 + $0x228] sm:$0xff]
    %v3736 = vld [vmem:[#allocation10 + $0x230] sm:$0xff]
    %v3737 = vld [vmem:[#allocation10 + $0x238] sm:$0xff]
    %v3738 = vld [vmem:[#allocation10 + $0x240] sm:$0xff]
    %v3739 = vld [vmem:[#allocation10 + $0x248] sm:$0xff]
    %v3740 = vld [vmem:[#allocation10 + $0x250] sm:$0xff]
    %v3741 = vld [vmem:[#allocation10 + $0x258] sm:$0xff]
    %v3742 = vld [vmem:[#allocation10 + $0x260] sm:$0xff]
    %v3743 = vld [vmem:[#allocation10 + $0x268] sm:$0xff]
    %v3744 = vld [vmem:[#allocation10 + $0x270] sm:$0xff]
    %v3745 = vld [vmem:[#allocation10 + $0x278] sm:$0xff]
    %v3746 = vld [vmem:[#allocation10 + $0x280] sm:$0xff]
    %v3747 = vld [vmem:[#allocation10 + $0x288] sm:$0xff]
    %v3748 = vld [vmem:[#allocation10 + $0x290] sm:$0xff]
    %v3749 = vld [vmem:[#allocation10 + $0x298] sm:$0xff]
    %v3750 = vld [vmem:[#allocation10 + $0x2a0] sm:$0xff]
    %v3751 = vld [vmem:[#allocation10 + $0x2a8] sm:$0xff]
    %v3752 = vld [vmem:[#allocation10 + $0x2b0] sm:$0xff]
    %v3753 = vld [vmem:[#allocation10 + $0x2b8] sm:$0xff]
    %v3754 = vld [vmem:[#allocation10 + $0x2c0] sm:$0xff]
    %v3755 = vld [vmem:[#allocation10 + $0x2c8] sm:$0xff]
    %v3756 = vld [vmem:[#allocation10 + $0x2d0] sm:$0xff]
    %v3757 = vld [vmem:[#allocation10 + $0x2d8] sm:$0xff]
    %v3758 = vld [vmem:[#allocation10 + $0x2e0] sm:$0xff]
    %v3759 = vld [vmem:[#allocation10 + $0x2e8] sm:$0xff]
    %v3760 = vld [vmem:[#allocation10 + $0x2f0] sm:$0xff]
    %v3761 = vld [vmem:[#allocation10 + $0x2f8] sm:$0xff]
    %v3762 = vld [vmem:[#allocation10 + $0x300] sm:$0xff]
    %v3763 = vld [vmem:[#allocation10 + $0x308] sm:$0xff]
    %v3764 = vld [vmem:[#allocation10 + $0x310] sm:$0xff]
    %v3765 = vld [vmem:[#allocation10 + $0x318] sm:$0xff]
    %v3766 = vld [vmem:[#allocation10 + $0x320] sm:$0xff]
    %v3767 = vld [vmem:[#allocation10 + $0x328] sm:$0xff]
    %v3768 = vld [vmem:[#allocation10 + $0x330] sm:$0xff]
    %v3769 = vld [vmem:[#allocation10 + $0x338] sm:$0xff]
    %v3770 = vld [vmem:[#allocation10 + $0x340] sm:$0xff]
    %v3771 = vld [vmem:[#allocation10 + $0x348] sm:$0xff]
    %v3772 = vld [vmem:[#allocation10 + $0x350] sm:$0xff]
    %v3773 = vld [vmem:[#allocation10 + $0x358] sm:$0xff]
    %v3774 = vld [vmem:[#allocation10 + $0x360] sm:$0xff]
    %v3775 = vld [vmem:[#allocation10 + $0x368] sm:$0xff]
    %v3776 = vld [vmem:[#allocation10 + $0x370] sm:$0xff]
    %v3777 = vld [vmem:[#allocation10 + $0x378] sm:$0xff]
    %v3778 = vld [vmem:[#allocation10 + $0x380] sm:$0xff]
    %v3779 = vld [vmem:[#allocation10 + $0x388] sm:$0xff]
    %v3780 = vld [vmem:[#allocation10 + $0x390] sm:$0xff]
    %v3781 = vld [vmem:[#allocation10 + $0x398] sm:$0xff]
    %v3782 = vld [vmem:[#allocation10 + $0x3a0] sm:$0xff]
    %v3783 = vld [vmem:[#allocation10 + $0x3a8] sm:$0xff]
    %v3784 = vld [vmem:[#allocation10 + $0x3b0] sm:$0xff]
    %v3785 = vld [vmem:[#allocation10 + $0x3b8] sm:$0xff]
    %v3786 = vld [vmem:[#allocation10 + $0x3c0] sm:$0xff]
    %v3787 = vld [vmem:[#allocation10 + $0x3c8] sm:$0xff]
    %v3788 = vld [vmem:[#allocation10 + $0x3d0] sm:$0xff]
    %v3789 = vld [vmem:[#allocation10 + $0x3d8] sm:$0xff]
    %v3790 = vld [vmem:[#allocation10 + $0x3e0] sm:$0xff]
    %v3791 = vld [vmem:[#allocation10 + $0x3e8] sm:$0xff]
    %v3792 = vld [vmem:[#allocation10 + $0x3f0] sm:$0xff]
    %v3793 = vld [vmem:[#allocation10 + $0x3f8] sm:$0xff]
    %v3794 = vld [vmem:[%s5] sm:$0xf]
    %v3796 = vlaneseq
    %v3797 = vshrl.u32 %v3796, 7
    %v3798 = vsub.s32 0, %v3797
    %v3799 = vrot.slane %v3794, %v3798
    %v3800 = vlaneseq
    %v3801 = vshrl.u32 %v3800, 7
    %v3802 = vsub.s32 1, %v3801
    %v3803 = vrot.slane %v3794, %v3802
    %v3804 = vlaneseq
    %v3805 = vshrl.u32 %v3804, 7
    %v3806 = vsub.s32 2, %v3805
    %v3807 = vrot.slane %v3794, %v3806
    %v3808 = vlaneseq
    %v3809 = vshrl.u32 %v3808, 7
    %v3810 = vsub.s32 3, %v3809
    %v3811 = vrot.slane %v3794, %v3810
    %v3818 = vunpack.c.l.s4 1983009808
    %v3819 = vunpack.c.0.s8 %v3818
    %v3820 = vlaneseq
    %v3821 = vshrl.u32 %v3820, 7
    %v3822 = vsub.s32 %v3819, %v3821
    %v3823 = vrot.slane %v3665, %v3822
    %v3824 = vcombine.high %v3823, %v3823
    %3827 = vmatprep.subr.mxu0 %v3667
    %3828 = vmatpush1.msra.mxu0 %v3666
    %3829 = vmatprep.subr.mxu0 %v3671
    %3830 = vmatpush1.msra.mxu0 %v3670
    %3831 = vmatprep.subr.mxu0 %v3675
    %3832 = vmatpush1.msra.mxu0 %v3674
    %3833 = vmatprep.subr.mxu0 %v3679
    %3834 = vmatpush1.msra.mxu0 %v3678
    %3835 = vmatprep.subr.mxu0 %v3683
    %3836 = vmatpush1.msra.mxu0 %v3682
    %3837 = vmatprep.subr.mxu0 %v3687
    %3838 = vmatpush1.msra.mxu0 %v3686
    %3839 = vmatprep.subr.mxu0 %v3691
    %3840 = vmatpush1.msra.mxu0 %v3690
    %3841 = vmatprep.subr.mxu0 %v3695
    %3842 = vmatpush1.msra.mxu0 %v3694
    %3843 = vmatprep.subr.mxu0 %v3699
    %3844 = vmatpush1.msra.mxu0 %v3698
    %3845 = vmatprep.subr.mxu0 %v3703
    %3846 = vmatpush1.msra.mxu0 %v3702
    %3847 = vmatprep.subr.mxu0 %v3707
    %3848 = vmatpush1.msra.mxu0 %v3706
    %3849 = vmatprep.subr.mxu0 %v3711
    %3850 = vmatpush1.msra.mxu0 %v3710
    %3851 = vmatprep.subr.mxu0 %v3715
    %3852 = vmatpush1.msra.mxu0 %v3714
    %3853 = vmatprep.subr.mxu0 %v3719
    %3854 = vmatpush1.msra.mxu0 %v3718
    %3855 = vmatprep.subr.mxu0 %v3723
    %3856 = vmatpush1.msra.mxu0 %v3722
    %3857 = vmatprep.subr.mxu0 %v3727
    %3858 = vmatpush1.msra.mxu0 %v3726
    %3859 = vmatprep.subr.mxu0 %v3731
    %3860 = vmatpush1.msra.mxu0 %v3730
    %3861 = vmatprep.subr.mxu0 %v3735
    %3862 = vmatpush1.msra.mxu0 %v3734
    %3863 = vmatprep.subr.mxu0 %v3739
    %3864 = vmatpush1.msra.mxu0 %v3738
    %3865 = vmatprep.subr.mxu0 %v3743
    %3866 = vmatpush1.msra.mxu0 %v3742
    %3867 = vmatprep.subr.mxu0 %v3747
    %3868 = vmatpush1.msra.mxu0 %v3746
    %3869 = vmatprep.subr.mxu0 %v3751
    %3870 = vmatpush1.msra.mxu0 %v3750
    %3871 = vmatprep.subr.mxu0 %v3755
    %3872 = vmatpush1.msra.mxu0 %v3754
    %3873 = vmatprep.subr.mxu0 %v3759
    %3874 = vmatpush1.msra.mxu0 %v3758
    %3875 = vmatprep.subr.mxu0 %v3763
    %3876 = vmatpush1.msra.mxu0 %v3762
    %3877 = vmatprep.subr.mxu0 %v3767
    %3878 = vmatpush1.msra.mxu0 %v3766
    %3879 = vmatprep.subr.mxu0 %v3771
    %3880 = vmatpush1.msra.mxu0 %v3770
    %3881 = vmatprep.subr.mxu0 %v3775
    %3882 = vmatpush1.msra.mxu0 %v3774
    %3883 = vmatprep.subr.mxu0 %v3779
    %3884 = vmatpush1.msra.mxu0 %v3778
    %3885 = vmatprep.subr.mxu0 %v3783
    %3886 = vmatpush1.msra.mxu0 %v3782
    %3887 = vmatprep.subr.mxu0 %v3787
    %3888 = vmatpush1.msra.mxu0 %v3786
    %3889 = vmatprep.subr.mxu0 %v3791
    %3890 = vmatpush1.msra.mxu0 %v3790
    %3891 = vmatprep.mubr.f32.mxu0 %v3824
    %3892 = vmatmul.mubr.f32.gmra.mrb[0].mxu0 %v3823
    %v3893 = vpop.f32.mrb[0].mxu0
    %v3894 = vadd.f32 %v3799, %v3893
    %v3895 = vpop.f32.mrb[0].mxu0
    %v3896 = vadd.f32 %v3803, %v3895
    %3897 = vdwg.mxu0
    %3898 = vmatprep.subr.mxu0 %v3669
    %3899 = vmatpush1.msra.mxu0 %v3668
    %3900 = vmatprep.subr.mxu0 %v3673
    %3901 = vmatpush1.msra.mxu0 %v3672
    %3902 = vmatprep.subr.mxu0 %v3677
    %3903 = vmatpush1.msra.mxu0 %v3676
    %3904 = vmatprep.subr.mxu0 %v3681
    %3905 = vmatpush1.msra.mxu0 %v3680
    %3906 = vmatprep.subr.mxu0 %v3685
    %3907 = vmatpush1.msra.mxu0 %v3684
    %3908 = vmatprep.subr.mxu0 %v3689
    %3909 = vmatpush1.msra.mxu0 %v3688
    %3910 = vmatprep.subr.mxu0 %v3693
    %3911 = vmatpush1.msra.mxu0 %v3692
    %3912 = vmatprep.subr.mxu0 %v3697
    %3913 = vmatpush1.msra.mxu0 %v3696
    %3914 = vmatprep.subr.mxu0 %v3701
    %3915 = vmatpush1.msra.mxu0 %v3700
    %3916 = vmatprep.subr.mxu0 %v3705
    %3917 = vmatpush1.msra.mxu0 %v3704
    %3918 = vmatprep.subr.mxu0 %v3709
    %3919 = vmatpush1.msra.mxu0 %v3708
    %3920 = vmatprep.subr.mxu0 %v3713
    %3921 = vmatpush1.msra.mxu0 %v3712
    %3922 = vmatprep.subr.mxu0 %v3717
    %3923 = vmatpush1.msra.mxu0 %v3716
    %3924 = vmatprep.subr.mxu0 %v3721
    %3925 = vmatpush1.msra.mxu0 %v3720
    %3926 = vmatprep.subr.mxu0 %v3725
    %3927 = vmatpush1.msra.mxu0 %v3724
    %3928 = vmatprep.subr.mxu0 %v3729
    %3929 = vmatpush1.msra.mxu0 %v3728
    %3930 = vmatprep.subr.mxu0 %v3733
    %3931 = vmatpush1.msra.mxu0 %v3732
    %3932 = vmatprep.subr.mxu0 %v3737
    %3933 = vmatpush1.msra.mxu0 %v3736
    %3934 = vmatprep.subr.mxu0 %v3741
    %3935 = vmatpush1.msra.mxu0 %v3740
    %3936 = vmatprep.subr.mxu0 %v3745
    %3937 = vmatpush1.msra.mxu0 %v3744
    %3938 = vmatprep.subr.mxu0 %v3749
    %3939 = vmatpush1.msra.mxu0 %v3748
    %3940 = vmatprep.subr.mxu0 %v3753
    %3941 = vmatpush1.msra.mxu0 %v3752
    %3942 = vmatprep.subr.mxu0 %v3757
    %3943 = vmatpush1.msra.mxu0 %v3756
    %3944 = vmatprep.subr.mxu0 %v3761
    %3945 = vmatpush1.msra.mxu0 %v3760
    %3946 = vmatprep.subr.mxu0 %v3765
    %3947 = vmatpush1.msra.mxu0 %v3764
    %3948 = vmatprep.subr.mxu0 %v3769
    %3949 = vmatpush1.msra.mxu0 %v3768
    %3950 = vmatprep.subr.mxu0 %v3773
    %3951 = vmatpush1.msra.mxu0 %v3772
    %3952 = vmatprep.subr.mxu0 %v3777
    %3953 = vmatpush1.msra.mxu0 %v3776
    %3954 = vmatprep.subr.mxu0 %v3781
    %3955 = vmatpush1.msra.mxu0 %v3780
    %3956 = vmatprep.subr.mxu0 %v3785
    %3957 = vmatpush1.msra.mxu0 %v3784
    %3958 = vmatprep.subr.mxu0 %v3789
    %3959 = vmatpush1.msra.mxu0 %v3788
    %3960 = vmatprep.subr.mxu0 %v3793
    %3961 = vmatpush1.msra.mxu0 %v3792
    %3962 = vmatprep.mubr.f32.mxu0 %v3824
    %3963 = vmatmul.mubr.f32.gmra.mrb[0].mxu0 %v3823
    %v3964 = vpop.f32.mrb[0].mxu0
    %v3965 = vadd.f32 %v3807, %v3964
    %v3966 = vpop.f32.mrb[0].mxu0
    %v3967 = vadd.f32 %v3811, %v3966
    %3968 = vdwg.mxu0
    %v3969 = vxor.u32 %v3894, 2147483648
    %v3970 = vmul.f32 %v3969, 1.442695
    %v3971 = vpow.pop %v3970
    %v3972 = vadd.f32 %v3971, 1.0
    %v3973 = vrcp.pop %v3972
    %v3974 = vmul.f32 1.0, %v3973
    %v3975 = vxor.u32 %v3896, 2147483648
    %v3976 = vmul.f32 %v3975, 1.442695
    %v3977 = vpow.pop %v3976
    %v3978 = vadd.f32 %v3977, 1.0
    %v3979 = vrcp.pop %v3978
    %v3980 = vmul.f32 1.0, %v3979
    %v3981 = vtanh.pop %v3965
    %v3982 = vxor.u32 %v3967, 2147483648
    %v3983 = vmul.f32 %v3982, 1.442695
    %v3984 = vpow.pop %v3983
    %v3985 = vadd.f32 %v3984, 1.0
    %v3986 = vrcp.pop %v3985
    %v3987 = vmul.f32 1.0, %v3986
    %v3988 = vld [vmem:[#allocation6] sm:$0x3]
    %v3989 = vmul.f32 %v3980, %v3988
    %v3990 = vmul.f32 %v3974, %v3981
    %v3991 = vadd.f32 %v3989, %v3990
    %v3992 = vtanh.pop %v3991
    %v3993 = vmul.f32 %v3987, %v3992
    %3994 = vst [vmem:[#allocation6] sm:$0x3] %v3991
    %3995 = vst [vmem:[#allocation4 + $0x2] sm:$0x3] %v3993
    %s3996 = scalar_lea.vmem [#allocation3], 10
    %3997 = vst [vmem:[%s3996] sm:$0x3] %v3993
    %s3998 = scalar_lea.vmem [#allocation2], 48
    %v3999 = vld [vmem:[%s3998] sm:$0xff]
    %v4000 = vld [vmem:[#allocation4] sm:$0x3]
    %v4001 = vld [vmem:[#allocation8] sm:$0xff]
    %v4002 = vld [vmem:[#allocation8 + $0x8] sm:$0xff]
    %v4003 = vld [vmem:[#allocation8 + $0x10] sm:$0xff]
    %v4004 = vld [vmem:[#allocation8 + $0x18] sm:$0xff]
    %v4005 = vld [vmem:[#allocation8 + $0x20] sm:$0xff]
    %v4006 = vld [vmem:[#allocation8 + $0x28] sm:$0xff]
    %v4007 = vld [vmem:[#allocation8 + $0x30] sm:$0xff]
    %v4008 = vld [vmem:[#allocation8 + $0x38] sm:$0xff]
    %v4009 = vld [vmem:[#allocation8 + $0x40] sm:$0xff]
    %v4010 = vld [vmem:[#allocation8 + $0x48] sm:$0xff]
    %v4011 = vld [vmem:[#allocation8 + $0x50] sm:$0xff]
    %v4012 = vld [vmem:[#allocation8 + $0x58] sm:$0xff]
    %v4013 = vld [vmem:[#allocation8 + $0x60] sm:$0xff]
    %v4014 = vld [vmem:[#allocation8 + $0x68] sm:$0xff]
    %v4015 = vld [vmem:[#allocation8 + $0x70] sm:$0xff]
    %v4016 = vld [vmem:[#allocation8 + $0x78] sm:$0xff]
    %v4017 = vld [vmem:[#allocation8 + $0x80] sm:$0xff]
    %v4018 = vld [vmem:[#allocation8 + $0x88] sm:$0xff]
    %v4019 = vld [vmem:[#allocation8 + $0x90] sm:$0xff]
    %v4020 = vld [vmem:[#allocation8 + $0x98] sm:$0xff]
    %v4021 = vld [vmem:[#allocation8 + $0xa0] sm:$0xff]
    %v4022 = vld [vmem:[#allocation8 + $0xa8] sm:$0xff]
    %v4023 = vld [vmem:[#allocation8 + $0xb0] sm:$0xff]
    %v4024 = vld [vmem:[#allocation8 + $0xb8] sm:$0xff]
    %v4025 = vld [vmem:[#allocation8 + $0xc0] sm:$0xff]
    %v4026 = vld [vmem:[#allocation8 + $0xc8] sm:$0xff]
    %v4027 = vld [vmem:[#allocation8 + $0xd0] sm:$0xff]
    %v4028 = vld [vmem:[#allocation8 + $0xd8] sm:$0xff]
    %v4029 = vld [vmem:[#allocation8 + $0xe0] sm:$0xff]
    %v4030 = vld [vmem:[#allocation8 + $0xe8] sm:$0xff]
    %v4031 = vld [vmem:[#allocation8 + $0xf0] sm:$0xff]
    %v4032 = vld [vmem:[#allocation8 + $0xf8] sm:$0xff]
    %v4033 = vld [vmem:[#allocation8 + $0x100] sm:$0xff]
    %v4034 = vld [vmem:[#allocation8 + $0x108] sm:$0xff]
    %v4035 = vld [vmem:[#allocation8 + $0x110] sm:$0xff]
    %v4036 = vld [vmem:[#allocation8 + $0x118] sm:$0xff]
    %v4037 = vld [vmem:[#allocation8 + $0x120] sm:$0xff]
    %v4038 = vld [vmem:[#allocation8 + $0x128] sm:$0xff]
    %v4039 = vld [vmem:[#allocation8 + $0x130] sm:$0xff]
    %v4040 = vld [vmem:[#allocation8 + $0x138] sm:$0xff]
    %v4041 = vld [vmem:[#allocation8 + $0x140] sm:$0xff]
    %v4042 = vld [vmem:[#allocation8 + $0x148] sm:$0xff]
    %v4043 = vld [vmem:[#allocation8 + $0x150] sm:$0xff]
    %v4044 = vld [vmem:[#allocation8 + $0x158] sm:$0xff]
    %v4045 = vld [vmem:[#allocation8 + $0x160] sm:$0xff]
    %v4046 = vld [vmem:[#allocation8 + $0x168] sm:$0xff]
    %v4047 = vld [vmem:[#allocation8 + $0x170] sm:$0xff]
    %v4048 = vld [vmem:[#allocation8 + $0x178] sm:$0xff]
    %v4049 = vld [vmem:[#allocation8 + $0x180] sm:$0xff]
    %v4050 = vld [vmem:[#allocation8 + $0x188] sm:$0xff]
    %v4051 = vld [vmem:[#allocation8 + $0x190] sm:$0xff]
    %v4052 = vld [vmem:[#allocation8 + $0x198] sm:$0xff]
    %v4053 = vld [vmem:[#allocation8 + $0x1a0] sm:$0xff]
    %v4054 = vld [vmem:[#allocation8 + $0x1a8] sm:$0xff]
    %v4055 = vld [vmem:[#allocation8 + $0x1b0] sm:$0xff]
    %v4056 = vld [vmem:[#allocation8 + $0x1b8] sm:$0xff]
    %v4057 = vld [vmem:[#allocation8 + $0x1c0] sm:$0xff]
    %v4058 = vld [vmem:[#allocation8 + $0x1c8] sm:$0xff]
    %v4059 = vld [vmem:[#allocation8 + $0x1d0] sm:$0xff]
    %v4060 = vld [vmem:[#allocation8 + $0x1d8] sm:$0xff]
    %v4061 = vld [vmem:[#allocation8 + $0x1e0] sm:$0xff]
    %v4062 = vld [vmem:[#allocation8 + $0x1e8] sm:$0xff]
    %v4063 = vld [vmem:[#allocation8 + $0x1f0] sm:$0xff]
    %v4064 = vld [vmem:[#allocation8 + $0x1f8] sm:$0xff]
    %4065 = vmatprep.subr.mxu0 %v4002
    %4066 = vmatpush1.msra.mxu0 %v4001
    %4067 = vmatprep.subr.mxu0 %v4006
    %4068 = vmatpush1.msra.mxu0 %v4005
    %4069 = vmatprep.subr.mxu0 %v4010
    %4070 = vmatpush1.msra.mxu0 %v4009
    %4071 = vmatprep.subr.mxu0 %v4014
    %4072 = vmatpush1.msra.mxu0 %v4013
    %4073 = vmatprep.subr.mxu0 %v4018
    %4074 = vmatpush1.msra.mxu0 %v4017
    %4075 = vmatprep.subr.mxu0 %v4022
    %4076 = vmatpush1.msra.mxu0 %v4021
    %4077 = vmatprep.subr.mxu0 %v4026
    %4078 = vmatpush1.msra.mxu0 %v4025
    %4079 = vmatprep.subr.mxu0 %v4030
    %4080 = vmatpush1.msra.mxu0 %v4029
    %4081 = vmatprep.subr.mxu0 %v4034
    %4082 = vmatpush1.msra.mxu0 %v4033
    %4083 = vmatprep.subr.mxu0 %v4038
    %4084 = vmatpush1.msra.mxu0 %v4037
    %4085 = vmatprep.subr.mxu0 %v4042
    %4086 = vmatpush1.msra.mxu0 %v4041
    %4087 = vmatprep.subr.mxu0 %v4046
    %4088 = vmatpush1.msra.mxu0 %v4045
    %4089 = vmatprep.subr.mxu0 %v4050
    %4090 = vmatpush1.msra.mxu0 %v4049
    %4091 = vmatprep.subr.mxu0 %v4054
    %4092 = vmatpush1.msra.mxu0 %v4053
    %4093 = vmatprep.subr.mxu0 %v4058
    %4094 = vmatpush1.msra.mxu0 %v4057
    %4095 = vmatprep.subr.mxu0 %v4062
    %4096 = vmatpush1.msra.mxu0 %v4061
    %4097 = vmatprep.subr.mxu0 0.0
    %4098 = vmatpush1.msra.mxu0 0.0
    %4099 = vmatprep.subr.mxu0 0.0
    %4100 = vmatpush1.msra.mxu0 0.0
    %4101 = vmatprep.subr.mxu0 0.0
    %4102 = vmatpush1.msra.mxu0 0.0
    %4103 = vmatprep.subr.mxu0 0.0
    %4104 = vmatpush1.msra.mxu0 0.0
    %4105 = vmatprep.subr.mxu0 0.0
    %4106 = vmatpush1.msra.mxu0 0.0
    %4107 = vmatprep.subr.mxu0 0.0
    %4108 = vmatpush1.msra.mxu0 0.0
    %4109 = vmatprep.subr.mxu0 0.0
    %4110 = vmatpush1.msra.mxu0 0.0
    %4111 = vmatprep.subr.mxu0 0.0
    %4112 = vmatpush1.msra.mxu0 0.0
    %4113 = vmatprep.subr.mxu0 0.0
    %4114 = vmatpush1.msra.mxu0 0.0
    %4115 = vmatprep.subr.mxu0 0.0
    %4116 = vmatpush1.msra.mxu0 0.0
    %4117 = vmatprep.subr.mxu0 0.0
    %4118 = vmatpush1.msra.mxu0 0.0
    %4119 = vmatprep.subr.mxu0 0.0
    %4120 = vmatpush1.msra.mxu0 0.0
    %4121 = vmatprep.subr.mxu0 0.0
    %4122 = vmatpush1.msra.mxu0 0.0
    %4123 = vmatprep.subr.mxu0 0.0
    %4124 = vmatpush1.msra.mxu0 0.0
    %4125 = vmatprep.subr.mxu0 0.0
    %4126 = vmatpush1.msra.mxu0 0.0
    %4127 = vmatprep.subr.mxu0 0.0
    %4128 = vmatpush1.msra.mxu0 0.0
    %4129 = vmatprep.mubr.f32.mxu0 0.0
    %4130 = vmatmul.mubr.f32.gmra.mrb[0].mxu0 %v4000
    %v4131 = vpop.f32.mrb[0].mxu0
    %v4132 = vadd.f32 0.0, %v4131
    %v4133 = vpop.f32.mrb[0].mxu0
    %v4134 = vadd.f32 0.0, %v4133
    %4135 = vdwg.mxu0
    %4136 = vmatprep.subr.mxu0 %v4004
    %4137 = vmatpush1.msra.mxu0 %v4003
    %4138 = vmatprep.subr.mxu0 %v4008
    %4139 = vmatpush1.msra.mxu0 %v4007
    %4140 = vmatprep.subr.mxu0 %v4012
    %4141 = vmatpush1.msra.mxu0 %v4011
    %4142 = vmatprep.subr.mxu0 %v4016
    %4143 = vmatpush1.msra.mxu0 %v4015
    %4144 = vmatprep.subr.mxu0 %v4020
    %4145 = vmatpush1.msra.mxu0 %v4019
    %4146 = vmatprep.subr.mxu0 %v4024
    %4147 = vmatpush1.msra.mxu0 %v4023
    %4148 = vmatprep.subr.mxu0 %v4028
    %4149 = vmatpush1.msra.mxu0 %v4027
    %4150 = vmatprep.subr.mxu0 %v4032
    %4151 = vmatpush1.msra.mxu0 %v4031
    %4152 = vmatprep.subr.mxu0 %v4036
    %4153 = vmatpush1.msra.mxu0 %v4035
    %4154 = vmatprep.subr.mxu0 %v4040
    %4155 = vmatpush1.msra.mxu0 %v4039
    %4156 = vmatprep.subr.mxu0 %v4044
    %4157 = vmatpush1.msra.mxu0 %v4043
    %4158 = vmatprep.subr.mxu0 %v4048
    %4159 = vmatpush1.msra.mxu0 %v4047
    %4160 = vmatprep.subr.mxu0 %v4052
    %4161 = vmatpush1.msra.mxu0 %v4051
    %4162 = vmatprep.subr.mxu0 %v4056
    %4163 = vmatpush1.msra.mxu0 %v4055
    %4164 = vmatprep.subr.mxu0 %v4060
    %4165 = vmatpush1.msra.mxu0 %v4059
    %4166 = vmatprep.subr.mxu0 %v4064
    %4167 = vmatpush1.msra.mxu0 %v4063
    %4168 = vmatprep.subr.mxu0 0.0
    %4169 = vmatpush1.msra.mxu0 0.0
    %4170 = vmatprep.subr.mxu0 0.0
    %4171 = vmatpush1.msra.mxu0 0.0
    %4172 = vmatprep.subr.mxu0 0.0
    %4173 = vmatpush1.msra.mxu0 0.0
    %4174 = vmatprep.subr.mxu0 0.0
    %4175 = vmatpush1.msra.mxu0 0.0
    %4176 = vmatprep.subr.mxu0 0.0
    %4177 = vmatpush1.msra.mxu0 0.0
    %4178 = vmatprep.subr.mxu0 0.0
    %4179 = vmatpush1.msra.mxu0 0.0
    %4180 = vmatprep.subr.mxu0 0.0
    %4181 = vmatpush1.msra.mxu0 0.0
    %4182 = vmatprep.subr.mxu0 0.0
    %4183 = vmatpush1.msra.mxu0 0.0
    %4184 = vmatprep.subr.mxu0 0.0
    %4185 = vmatpush1.msra.mxu0 0.0
    %4186 = vmatprep.subr.mxu0 0.0
    %4187 = vmatpush1.msra.mxu0 0.0
    %4188 = vmatprep.subr.mxu0 0.0
    %4189 = vmatpush1.msra.mxu0 0.0
    %4190 = vmatprep.subr.mxu0 0.0
    %4191 = vmatpush1.msra.mxu0 0.0
    %4192 = vmatprep.subr.mxu0 0.0
    %4193 = vmatpush1.msra.mxu0 0.0
    %4194 = vmatprep.subr.mxu0 0.0
    %4195 = vmatpush1.msra.mxu0 0.0
    %4196 = vmatprep.subr.mxu0 0.0
    %4197 = vmatpush1.msra.mxu0 0.0
    %4198 = vmatprep.subr.mxu0 0.0
    %4199 = vmatpush1.msra.mxu0 0.0
    %4200 = vmatprep.mubr.f32.mxu0 0.0
    %4201 = vmatmul.mubr.f32.gmra.mrb[0].mxu0 %v4000
    %v4202 = vpop.f32.mrb[0].mxu0
    %v4203 = vadd.f32 0.0, %v4202
    %v4204 = vpop.f32.mrb[0].mxu0
    %v4205 = vadd.f32 0.0, %v4204
    %4206 = vdwg.mxu0
    %v4211 = vcombine.low %v4132, %v4134
    %v4212 = vcombine.low %v4203, %v4205
    %v4214 = vunpack.c.l.s4 1983009808
    %v4215 = vunpack.c.0.s8 %v4214
    %v4216 = vlaneseq
    %v4217 = vshrl.u32 %v4216, 7
    %v4218 = vsub.s32 %v4215, %v4217
    %v4219 = vrot.slane %v4211, %v4218
    %v4221 = vunpack.c.l.s4 1983009808
    %v4222 = vunpack.c.0.s8 %v4221
    %v4223 = vlaneseq
    %v4224 = vshrl.u32 %v4223, 7
    %v4225 = vsub.s32 %v4222, %v4224
    %v4226 = vrot.slane %v4212, %v4225
    %v4227 = vcombine.low %v4219, %v4226
    %v4229 = vadd.f32 %v3999, %v4227
    %v4230 = vxor.u32 %v4229, 2147483648
    %v4231 = vmul.f32 %v4230, 1.442695
    %v4232 = vpow.pop %v4231
    %v4233 = vadd.f32 %v4232, 1.0
    %v4234 = vrcp.pop %v4233
    %v4235 = vmul.f32 1.0, %v4234
    %v4237 = vrot.slane %v4229, 2
    %v4239 = vxor.u32 %v4237, 2147483648
    %v4240 = vmul.f32 %v4239, 1.442695
    %v4241 = vpow.pop %v4240
    %v4242 = vadd.f32 %v4241, 1.0
    %v4243 = vrcp.pop %v4242
    %v4244 = vmul.f32 1.0, %v4243
    %v4245 = vrot.slane %v4229, 4
    %v4247 = vtanh.pop %v4245
    %v4248 = vrot.slane %v4229, 6
    %v4250 = vxor.u32 %v4248, 2147483648
    %v4251 = vmul.f32 %v4250, 1.442695
    %v4252 = vpow.pop %v4251
    %v4253 = vadd.f32 %v4252, 1.0
    %v4254 = vrcp.pop %v4253
    %v4255 = vmul.f32 1.0, %v4254
    %v4256 = vld [vmem:[#allocation5] sm:$0x3]
    %v4257 = vmul.f32 %v4244, %v4256
    %v4258 = vmul.f32 %v4235, %v4247
    %v4259 = vadd.f32 %v4257, %v4258
    %v4260 = vtanh.pop %v4259
    %v4261 = vmul.f32 %v4255, %v4260
    %4262 = vst [vmem:[#allocation5] sm:$0x3] %v4259
    %4263 = vst [vmem:[#allocation4] sm:$0x3] %v4261
    %v4264 = vld [vmem:[#allocation4] sm:$0xf]
    %v4265 = vld [vmem:[#allocation10] sm:$0xff]
    %v4266 = vld [vmem:[#allocation10 + $0x8] sm:$0xff]
    %v4267 = vld [vmem:[#allocation10 + $0x10] sm:$0xff]
    %v4268 = vld [vmem:[#allocation10 + $0x18] sm:$0xff]
    %v4269 = vld [vmem:[#allocation10 + $0x20] sm:$0xff]
    %v4270 = vld [vmem:[#allocation10 + $0x28] sm:$0xff]
    %v4271 = vld [vmem:[#allocation10 + $0x30] sm:$0xff]
    %v4272 = vld [vmem:[#allocation10 + $0x38] sm:$0xff]
    %v4273 = vld [vmem:[#allocation10 + $0x40] sm:$0xff]
    %v4274 = vld [vmem:[#allocation10 + $0x48] sm:$0xff]
    %v4275 = vld [vmem:[#allocation10 + $0x50] sm:$0xff]
    %v4276 = vld [vmem:[#allocation10 + $0x58] sm:$0xff]
    %v4277 = vld [vmem:[#allocation10 + $0x60] sm:$0xff]
    %v4278 = vld [vmem:[#allocation10 + $0x68] sm:$0xff]
    %v4279 = vld [vmem:[#allocation10 + $0x70] sm:$0xff]
    %v4280 = vld [vmem:[#allocation10 + $0x78] sm:$0xff]
    %v4281 = vld [vmem:[#allocation10 + $0x80] sm:$0xff]
    %v4282 = vld [vmem:[#allocation10 + $0x88] sm:$0xff]
    %v4283 = vld [vmem:[#allocation10 + $0x90] sm:$0xff]
    %v4284 = vld [vmem:[#allocation10 + $0x98] sm:$0xff]
    %v4285 = vld [vmem:[#allocation10 + $0xa0] sm:$0xff]
    %v4286 = vld [vmem:[#allocation10 + $0xa8] sm:$0xff]
    %v4287 = vld [vmem:[#allocation10 + $0xb0] sm:$0xff]
    %v4288 = vld [vmem:[#allocation10 + $0xb8] sm:$0xff]
    %v4289 = vld [vmem:[#allocation10 + $0xc0] sm:$0xff]
    %v4290 = vld [vmem:[#allocation10 + $0xc8] sm:$0xff]
    %v4291 = vld [vmem:[#allocation10 + $0xd0] sm:$0xff]
    %v4292 = vld [vmem:[#allocation10 + $0xd8] sm:$0xff]
    %v4293 = vld [vmem:[#allocation10 + $0xe0] sm:$0xff]
    %v4294 = vld [vmem:[#allocation10 + $0xe8] sm:$0xff]
    %v4295 = vld [vmem:[#allocation10 + $0xf0] sm:$0xff]
    %v4296 = vld [vmem:[#allocation10 + $0xf8] sm:$0xff]
    %v4297 = vld [vmem:[#allocation10 + $0x100] sm:$0xff]
    %v4298 = vld [vmem:[#allocation10 + $0x108] sm:$0xff]
    %v4299 = vld [vmem:[#allocation10 + $0x110] sm:$0xff]
    %v4300 = vld [vmem:[#allocation10 + $0x118] sm:$0xff]
    %v4301 = vld [vmem:[#allocation10 + $0x120] sm:$0xff]
    %v4302 = vld [vmem:[#allocation10 + $0x128] sm:$0xff]
    %v4303 = vld [vmem:[#allocation10 + $0x130] sm:$0xff]
    %v4304 = vld [vmem:[#allocation10 + $0x138] sm:$0xff]
    %v4305 = vld [vmem:[#allocation10 + $0x140] sm:$0xff]
    %v4306 = vld [vmem:[#allocation10 + $0x148] sm:$0xff]
    %v4307 = vld [vmem:[#allocation10 + $0x150] sm:$0xff]
    %v4308 = vld [vmem:[#allocation10 + $0x158] sm:$0xff]
    %v4309 = vld [vmem:[#allocation10 + $0x160] sm:$0xff]
    %v4310 = vld [vmem:[#allocation10 + $0x168] sm:$0xff]
    %v4311 = vld [vmem:[#allocation10 + $0x170] sm:$0xff]
    %v4312 = vld [vmem:[#allocation10 + $0x178] sm:$0xff]
    %v4313 = vld [vmem:[#allocation10 + $0x180] sm:$0xff]
    %v4314 = vld [vmem:[#allocation10 + $0x188] sm:$0xff]
    %v4315 = vld [vmem:[#allocation10 + $0x190] sm:$0xff]
    %v4316 = vld [vmem:[#allocation10 + $0x198] sm:$0xff]
    %v4317 = vld [vmem:[#allocation10 + $0x1a0] sm:$0xff]
    %v4318 = vld [vmem:[#allocation10 + $0x1a8] sm:$0xff]
    %v4319 = vld [vmem:[#allocation10 + $0x1b0] sm:$0xff]
    %v4320 = vld [vmem:[#allocation10 + $0x1b8] sm:$0xff]
    %v4321 = vld [vmem:[#allocation10 + $0x1c0] sm:$0xff]
    %v4322 = vld [vmem:[#allocation10 + $0x1c8] sm:$0xff]
    %v4323 = vld [vmem:[#allocation10 + $0x1d0] sm:$0xff]
    %v4324 = vld [vmem:[#allocation10 + $0x1d8] sm:$0xff]
    %v4325 = vld [vmem:[#allocation10 + $0x1e0] sm:$0xff]
    %v4326 = vld [vmem:[#allocation10 + $0x1e8] sm:$0xff]
    %v4327 = vld [vmem:[#allocation10 + $0x1f0] sm:$0xff]
    %v4328 = vld [vmem:[#allocation10 + $0x1f8] sm:$0xff]
    %v4329 = vld [vmem:[#allocation10 + $0x200] sm:$0xff]
    %v4330 = vld [vmem:[#allocation10 + $0x208] sm:$0xff]
    %v4331 = vld [vmem:[#allocation10 + $0x210] sm:$0xff]
    %v4332 = vld [vmem:[#allocation10 + $0x218] sm:$0xff]
    %v4333 = vld [vmem:[#allocation10 + $0x220] sm:$0xff]
    %v4334 = vld [vmem:[#allocation10 + $0x228] sm:$0xff]
    %v4335 = vld [vmem:[#allocation10 + $0x230] sm:$0xff]
    %v4336 = vld [vmem:[#allocation10 + $0x238] sm:$0xff]
    %v4337 = vld [vmem:[#allocation10 + $0x240] sm:$0xff]
    %v4338 = vld [vmem:[#allocation10 + $0x248] sm:$0xff]
    %v4339 = vld [vmem:[#allocation10 + $0x250] sm:$0xff]
    %v4340 = vld [vmem:[#allocation10 + $0x258] sm:$0xff]
    %v4341 = vld [vmem:[#allocation10 + $0x260] sm:$0xff]
    %v4342 = vld [vmem:[#allocation10 + $0x268] sm:$0xff]
    %v4343 = vld [vmem:[#allocation10 + $0x270] sm:$0xff]
    %v4344 = vld [vmem:[#allocation10 + $0x278] sm:$0xff]
    %v4345 = vld [vmem:[#allocation10 + $0x280] sm:$0xff]
    %v4346 = vld [vmem:[#allocation10 + $0x288] sm:$0xff]
    %v4347 = vld [vmem:[#allocation10 + $0x290] sm:$0xff]
    %v4348 = vld [vmem:[#allocation10 + $0x298] sm:$0xff]
    %v4349 = vld [vmem:[#allocation10 + $0x2a0] sm:$0xff]
    %v4350 = vld [vmem:[#allocation10 + $0x2a8] sm:$0xff]
    %v4351 = vld [vmem:[#allocation10 + $0x2b0] sm:$0xff]
    %v4352 = vld [vmem:[#allocation10 + $0x2b8] sm:$0xff]
    %v4353 = vld [vmem:[#allocation10 + $0x2c0] sm:$0xff]
    %v4354 = vld [vmem:[#allocation10 + $0x2c8] sm:$0xff]
    %v4355 = vld [vmem:[#allocation10 + $0x2d0] sm:$0xff]
    %v4356 = vld [vmem:[#allocation10 + $0x2d8] sm:$0xff]
    %v4357 = vld [vmem:[#allocation10 + $0x2e0] sm:$0xff]
    %v4358 = vld [vmem:[#allocation10 + $0x2e8] sm:$0xff]
    %v4359 = vld [vmem:[#allocation10 + $0x2f0] sm:$0xff]
    %v4360 = vld [vmem:[#allocation10 + $0x2f8] sm:$0xff]
    %v4361 = vld [vmem:[#allocation10 + $0x300] sm:$0xff]
    %v4362 = vld [vmem:[#allocation10 + $0x308] sm:$0xff]
    %v4363 = vld [vmem:[#allocation10 + $0x310] sm:$0xff]
    %v4364 = vld [vmem:[#allocation10 + $0x318] sm:$0xff]
    %v4365 = vld [vmem:[#allocation10 + $0x320] sm:$0xff]
    %v4366 = vld [vmem:[#allocation10 + $0x328] sm:$0xff]
    %v4367 = vld [vmem:[#allocation10 + $0x330] sm:$0xff]
    %v4368 = vld [vmem:[#allocation10 + $0x338] sm:$0xff]
    %v4369 = vld [vmem:[#allocation10 + $0x340] sm:$0xff]
    %v4370 = vld [vmem:[#allocation10 + $0x348] sm:$0xff]
    %v4371 = vld [vmem:[#allocation10 + $0x350] sm:$0xff]
    %v4372 = vld [vmem:[#allocation10 + $0x358] sm:$0xff]
    %v4373 = vld [vmem:[#allocation10 + $0x360] sm:$0xff]
    %v4374 = vld [vmem:[#allocation10 + $0x368] sm:$0xff]
    %v4375 = vld [vmem:[#allocation10 + $0x370] sm:$0xff]
    %v4376 = vld [vmem:[#allocation10 + $0x378] sm:$0xff]
    %v4377 = vld [vmem:[#allocation10 + $0x380] sm:$0xff]
    %v4378 = vld [vmem:[#allocation10 + $0x388] sm:$0xff]
    %v4379 = vld [vmem:[#allocation10 + $0x390] sm:$0xff]
    %v4380 = vld [vmem:[#allocation10 + $0x398] sm:$0xff]
    %v4381 = vld [vmem:[#allocation10 + $0x3a0] sm:$0xff]
    %v4382 = vld [vmem:[#allocation10 + $0x3a8] sm:$0xff]
    %v4383 = vld [vmem:[#allocation10 + $0x3b0] sm:$0xff]
    %v4384 = vld [vmem:[#allocation10 + $0x3b8] sm:$0xff]
    %v4385 = vld [vmem:[#allocation10 + $0x3c0] sm:$0xff]
    %v4386 = vld [vmem:[#allocation10 + $0x3c8] sm:$0xff]
    %v4387 = vld [vmem:[#allocation10 + $0x3d0] sm:$0xff]
    %v4388 = vld [vmem:[#allocation10 + $0x3d8] sm:$0xff]
    %v4389 = vld [vmem:[#allocation10 + $0x3e0] sm:$0xff]
    %v4390 = vld [vmem:[#allocation10 + $0x3e8] sm:$0xff]
    %v4391 = vld [vmem:[#allocation10 + $0x3f0] sm:$0xff]
    %v4392 = vld [vmem:[#allocation10 + $0x3f8] sm:$0xff]
    %v4393 = vld [vmem:[%s5] sm:$0xf]
    %v4395 = vlaneseq
    %v4396 = vshrl.u32 %v4395, 7
    %v4397 = vsub.s32 0, %v4396
    %v4398 = vrot.slane %v4393, %v4397
    %v4399 = vlaneseq
    %v4400 = vshrl.u32 %v4399, 7
    %v4401 = vsub.s32 1, %v4400
    %v4402 = vrot.slane %v4393, %v4401
    %v4403 = vlaneseq
    %v4404 = vshrl.u32 %v4403, 7
    %v4405 = vsub.s32 2, %v4404
    %v4406 = vrot.slane %v4393, %v4405
    %v4407 = vlaneseq
    %v4408 = vshrl.u32 %v4407, 7
    %v4409 = vsub.s32 3, %v4408
    %v4410 = vrot.slane %v4393, %v4409
    %v4417 = vunpack.c.l.s4 1983009808
    %v4418 = vunpack.c.0.s8 %v4417
    %v4419 = vlaneseq
    %v4420 = vshrl.u32 %v4419, 7
    %v4421 = vsub.s32 %v4418, %v4420
    %v4422 = vrot.slane %v4264, %v4421
    %v4423 = vcombine.high %v4422, %v4422
    %4426 = vmatprep.subr.mxu0 %v4266
    %4427 = vmatpush1.msra.mxu0 %v4265
    %4428 = vmatprep.subr.mxu0 %v4270
    %4429 = vmatpush1.msra.mxu0 %v4269
    %4430 = vmatprep.subr.mxu0 %v4274
    %4431 = vmatpush1.msra.mxu0 %v4273
    %4432 = vmatprep.subr.mxu0 %v4278
    %4433 = vmatpush1.msra.mxu0 %v4277
    %4434 = vmatprep.subr.mxu0 %v4282
    %4435 = vmatpush1.msra.mxu0 %v4281
    %4436 = vmatprep.subr.mxu0 %v4286
    %4437 = vmatpush1.msra.mxu0 %v4285
    %4438 = vmatprep.subr.mxu0 %v4290
    %4439 = vmatpush1.msra.mxu0 %v4289
    %4440 = vmatprep.subr.mxu0 %v4294
    %4441 = vmatpush1.msra.mxu0 %v4293
    %4442 = vmatprep.subr.mxu0 %v4298
    %4443 = vmatpush1.msra.mxu0 %v4297
    %4444 = vmatprep.subr.mxu0 %v4302
    %4445 = vmatpush1.msra.mxu0 %v4301
    %4446 = vmatprep.subr.mxu0 %v4306
    %4447 = vmatpush1.msra.mxu0 %v4305
    %4448 = vmatprep.subr.mxu0 %v4310
    %4449 = vmatpush1.msra.mxu0 %v4309
    %4450 = vmatprep.subr.mxu0 %v4314
    %4451 = vmatpush1.msra.mxu0 %v4313
    %4452 = vmatprep.subr.mxu0 %v4318
    %4453 = vmatpush1.msra.mxu0 %v4317
    %4454 = vmatprep.subr.mxu0 %v4322
    %4455 = vmatpush1.msra.mxu0 %v4321
    %4456 = vmatprep.subr.mxu0 %v4326
    %4457 = vmatpush1.msra.mxu0 %v4325
    %4458 = vmatprep.subr.mxu0 %v4330
    %4459 = vmatpush1.msra.mxu0 %v4329
    %4460 = vmatprep.subr.mxu0 %v4334
    %4461 = vmatpush1.msra.mxu0 %v4333
    %4462 = vmatprep.subr.mxu0 %v4338
    %4463 = vmatpush1.msra.mxu0 %v4337
    %4464 = vmatprep.subr.mxu0 %v4342
    %4465 = vmatpush1.msra.mxu0 %v4341
    %4466 = vmatprep.subr.mxu0 %v4346
    %4467 = vmatpush1.msra.mxu0 %v4345
    %4468 = vmatprep.subr.mxu0 %v4350
    %4469 = vmatpush1.msra.mxu0 %v4349
    %4470 = vmatprep.subr.mxu0 %v4354
    %4471 = vmatpush1.msra.mxu0 %v4353
    %4472 = vmatprep.subr.mxu0 %v4358
    %4473 = vmatpush1.msra.mxu0 %v4357
    %4474 = vmatprep.subr.mxu0 %v4362
    %4475 = vmatpush1.msra.mxu0 %v4361
    %4476 = vmatprep.subr.mxu0 %v4366
    %4477 = vmatpush1.msra.mxu0 %v4365
    %4478 = vmatprep.subr.mxu0 %v4370
    %4479 = vmatpush1.msra.mxu0 %v4369
    %4480 = vmatprep.subr.mxu0 %v4374
    %4481 = vmatpush1.msra.mxu0 %v4373
    %4482 = vmatprep.subr.mxu0 %v4378
    %4483 = vmatpush1.msra.mxu0 %v4377
    %4484 = vmatprep.subr.mxu0 %v4382
    %4485 = vmatpush1.msra.mxu0 %v4381
    %4486 = vmatprep.subr.mxu0 %v4386
    %4487 = vmatpush1.msra.mxu0 %v4385
    %4488 = vmatprep.subr.mxu0 %v4390
    %4489 = vmatpush1.msra.mxu0 %v4389
    %4490 = vmatprep.mubr.f32.mxu0 %v4423
    %4491 = vmatmul.mubr.f32.gmra.mrb[0].mxu0 %v4422
    %v4492 = vpop.f32.mrb[0].mxu0
    %v4493 = vadd.f32 %v4398, %v4492
    %v4494 = vpop.f32.mrb[0].mxu0
    %v4495 = vadd.f32 %v4402, %v4494
    %4496 = vdwg.mxu0
    %4497 = vmatprep.subr.mxu0 %v4268
    %4498 = vmatpush1.msra.mxu0 %v4267
    %4499 = vmatprep.subr.mxu0 %v4272
    %4500 = vmatpush1.msra.mxu0 %v4271
    %4501 = vmatprep.subr.mxu0 %v4276
    %4502 = vmatpush1.msra.mxu0 %v4275
    %4503 = vmatprep.subr.mxu0 %v4280
    %4504 = vmatpush1.msra.mxu0 %v4279
    %4505 = vmatprep.subr.mxu0 %v4284
    %4506 = vmatpush1.msra.mxu0 %v4283
    %4507 = vmatprep.subr.mxu0 %v4288
    %4508 = vmatpush1.msra.mxu0 %v4287
    %4509 = vmatprep.subr.mxu0 %v4292
    %4510 = vmatpush1.msra.mxu0 %v4291
    %4511 = vmatprep.subr.mxu0 %v4296
    %4512 = vmatpush1.msra.mxu0 %v4295
    %4513 = vmatprep.subr.mxu0 %v4300
    %4514 = vmatpush1.msra.mxu0 %v4299
    %4515 = vmatprep.subr.mxu0 %v4304
    %4516 = vmatpush1.msra.mxu0 %v4303
    %4517 = vmatprep.subr.mxu0 %v4308
    %4518 = vmatpush1.msra.mxu0 %v4307
    %4519 = vmatprep.subr.mxu0 %v4312
    %4520 = vmatpush1.msra.mxu0 %v4311
    %4521 = vmatprep.subr.mxu0 %v4316
    %4522 = vmatpush1.msra.mxu0 %v4315
    %4523 = vmatprep.subr.mxu0 %v4320
    %4524 = vmatpush1.msra.mxu0 %v4319
    %4525 = vmatprep.subr.mxu0 %v4324
    %4526 = vmatpush1.msra.mxu0 %v4323
    %4527 = vmatprep.subr.mxu0 %v4328
    %4528 = vmatpush1.msra.mxu0 %v4327
    %4529 = vmatprep.subr.mxu0 %v4332
    %4530 = vmatpush1.msra.mxu0 %v4331
    %4531 = vmatprep.subr.mxu0 %v4336
    %4532 = vmatpush1.msra.mxu0 %v4335
    %4533 = vmatprep.subr.mxu0 %v4340
    %4534 = vmatpush1.msra.mxu0 %v4339
    %4535 = vmatprep.subr.mxu0 %v4344
    %4536 = vmatpush1.msra.mxu0 %v4343
    %4537 = vmatprep.subr.mxu0 %v4348
    %4538 = vmatpush1.msra.mxu0 %v4347
    %4539 = vmatprep.subr.mxu0 %v4352
    %4540 = vmatpush1.msra.mxu0 %v4351
    %4541 = vmatprep.subr.mxu0 %v4356
    %4542 = vmatpush1.msra.mxu0 %v4355
    %4543 = vmatprep.subr.mxu0 %v4360
    %4544 = vmatpush1.msra.mxu0 %v4359
    %4545 = vmatprep.subr.mxu0 %v4364
    %4546 = vmatpush1.msra.mxu0 %v4363
    %4547 = vmatprep.subr.mxu0 %v4368
    %4548 = vmatpush1.msra.mxu0 %v4367
    %4549 = vmatprep.subr.mxu0 %v4372
    %4550 = vmatpush1.msra.mxu0 %v4371
    %4551 = vmatprep.subr.mxu0 %v4376
    %4552 = vmatpush1.msra.mxu0 %v4375
    %4553 = vmatprep.subr.mxu0 %v4380
    %4554 = vmatpush1.msra.mxu0 %v4379
    %4555 = vmatprep.subr.mxu0 %v4384
    %4556 = vmatpush1.msra.mxu0 %v4383
    %4557 = vmatprep.subr.mxu0 %v4388
    %4558 = vmatpush1.msra.mxu0 %v4387
    %4559 = vmatprep.subr.mxu0 %v4392
    %4560 = vmatpush1.msra.mxu0 %v4391
    %4561 = vmatprep.mubr.f32.mxu0 %v4423
    %4562 = vmatmul.mubr.f32.gmra.mrb[0].mxu0 %v4422
    %v4563 = vpop.f32.mrb[0].mxu0
    %v4564 = vadd.f32 %v4406, %v4563
    %v4565 = vpop.f32.mrb[0].mxu0
    %v4566 = vadd.f32 %v4410, %v4565
    %4567 = vdwg.mxu0
    %v4568 = vxor.u32 %v4493, 2147483648
    %v4569 = vmul.f32 %v4568, 1.442695
    %v4570 = vpow.pop %v4569
    %v4571 = vadd.f32 %v4570, 1.0
    %v4572 = vrcp.pop %v4571
    %v4573 = vmul.f32 1.0, %v4572
    %v4574 = vxor.u32 %v4495, 2147483648
    %v4575 = vmul.f32 %v4574, 1.442695
    %v4576 = vpow.pop %v4575
    %v4577 = vadd.f32 %v4576, 1.0
    %v4578 = vrcp.pop %v4577
    %v4579 = vmul.f32 1.0, %v4578
    %v4580 = vtanh.pop %v4564
    %v4581 = vxor.u32 %v4566, 2147483648
    %v4582 = vmul.f32 %v4581, 1.442695
    %v4583 = vpow.pop %v4582
    %v4584 = vadd.f32 %v4583, 1.0
    %v4585 = vrcp.pop %v4584
    %v4586 = vmul.f32 1.0, %v4585
    %v4587 = vld [vmem:[#allocation6] sm:$0x3]
    %v4588 = vmul.f32 %v4579, %v4587
    %v4589 = vmul.f32 %v4573, %v4580
    %v4590 = vadd.f32 %v4588, %v4589
    %v4591 = vtanh.pop %v4590
    %v4592 = vmul.f32 %v4586, %v4591
    %4593 = vst [vmem:[#allocation6] sm:$0x3] %v4590
    %4594 = vst [vmem:[#allocation4 + $0x2] sm:$0x3] %v4592
    %s4595 = scalar_lea.vmem [#allocation3], 12
    %4596 = vst [vmem:[%s4595] sm:$0x3] %v4592
    %s4597 = scalar_lea.vmem [#allocation2], 56
    %v4598 = vld [vmem:[%s4597] sm:$0xff]
    %v4599 = vld [vmem:[#allocation4] sm:$0x3]
    %v4600 = vld [vmem:[#allocation8] sm:$0xff]
    %v4601 = vld [vmem:[#allocation8 + $0x8] sm:$0xff]
    %v4602 = vld [vmem:[#allocation8 + $0x10] sm:$0xff]
    %v4603 = vld [vmem:[#allocation8 + $0x18] sm:$0xff]
    %v4604 = vld [vmem:[#allocation8 + $0x20] sm:$0xff]
    %v4605 = vld [vmem:[#allocation8 + $0x28] sm:$0xff]
    %v4606 = vld [vmem:[#allocation8 + $0x30] sm:$0xff]
    %v4607 = vld [vmem:[#allocation8 + $0x38] sm:$0xff]
    %v4608 = vld [vmem:[#allocation8 + $0x40] sm:$0xff]
    %v4609 = vld [vmem:[#allocation8 + $0x48] sm:$0xff]
    %v4610 = vld [vmem:[#allocation8 + $0x50] sm:$0xff]
    %v4611 = vld [vmem:[#allocation8 + $0x58] sm:$0xff]
    %v4612 = vld [vmem:[#allocation8 + $0x60] sm:$0xff]
    %v4613 = vld [vmem:[#allocation8 + $0x68] sm:$0xff]
    %v4614 = vld [vmem:[#allocation8 + $0x70] sm:$0xff]
    %v4615 = vld [vmem:[#allocation8 + $0x78] sm:$0xff]
    %v4616 = vld [vmem:[#allocation8 + $0x80] sm:$0xff]
    %v4617 = vld [vmem:[#allocation8 + $0x88] sm:$0xff]
    %v4618 = vld [vmem:[#allocation8 + $0x90] sm:$0xff]
    %v4619 = vld [vmem:[#allocation8 + $0x98] sm:$0xff]
    %v4620 = vld [vmem:[#allocation8 + $0xa0] sm:$0xff]
    %v4621 = vld [vmem:[#allocation8 + $0xa8] sm:$0xff]
    %v4622 = vld [vmem:[#allocation8 + $0xb0] sm:$0xff]
    %v4623 = vld [vmem:[#allocation8 + $0xb8] sm:$0xff]
    %v4624 = vld [vmem:[#allocation8 + $0xc0] sm:$0xff]
    %v4625 = vld [vmem:[#allocation8 + $0xc8] sm:$0xff]
    %v4626 = vld [vmem:[#allocation8 + $0xd0] sm:$0xff]
    %v4627 = vld [vmem:[#allocation8 + $0xd8] sm:$0xff]
    %v4628 = vld [vmem:[#allocation8 + $0xe0] sm:$0xff]
    %v4629 = vld [vmem:[#allocation8 + $0xe8] sm:$0xff]
    %v4630 = vld [vmem:[#allocation8 + $0xf0] sm:$0xff]
    %v4631 = vld [vmem:[#allocation8 + $0xf8] sm:$0xff]
    %v4632 = vld [vmem:[#allocation8 + $0x100] sm:$0xff]
    %v4633 = vld [vmem:[#allocation8 + $0x108] sm:$0xff]
    %v4634 = vld [vmem:[#allocation8 + $0x110] sm:$0xff]
    %v4635 = vld [vmem:[#allocation8 + $0x118] sm:$0xff]
    %v4636 = vld [vmem:[#allocation8 + $0x120] sm:$0xff]
    %v4637 = vld [vmem:[#allocation8 + $0x128] sm:$0xff]
    %v4638 = vld [vmem:[#allocation8 + $0x130] sm:$0xff]
    %v4639 = vld [vmem:[#allocation8 + $0x138] sm:$0xff]
    %v4640 = vld [vmem:[#allocation8 + $0x140] sm:$0xff]
    %v4641 = vld [vmem:[#allocation8 + $0x148] sm:$0xff]
    %v4642 = vld [vmem:[#allocation8 + $0x150] sm:$0xff]
    %v4643 = vld [vmem:[#allocation8 + $0x158] sm:$0xff]
    %v4644 = vld [vmem:[#allocation8 + $0x160] sm:$0xff]
    %v4645 = vld [vmem:[#allocation8 + $0x168] sm:$0xff]
    %v4646 = vld [vmem:[#allocation8 + $0x170] sm:$0xff]
    %v4647 = vld [vmem:[#allocation8 + $0x178] sm:$0xff]
    %v4648 = vld [vmem:[#allocation8 + $0x180] sm:$0xff]
    %v4649 = vld [vmem:[#allocation8 + $0x188] sm:$0xff]
    %v4650 = vld [vmem:[#allocation8 + $0x190] sm:$0xff]
    %v4651 = vld [vmem:[#allocation8 + $0x198] sm:$0xff]
    %v4652 = vld [vmem:[#allocation8 + $0x1a0] sm:$0xff]
    %v4653 = vld [vmem:[#allocation8 + $0x1a8] sm:$0xff]
    %v4654 = vld [vmem:[#allocation8 + $0x1b0] sm:$0xff]
    %v4655 = vld [vmem:[#allocation8 + $0x1b8] sm:$0xff]
    %v4656 = vld [vmem:[#allocation8 + $0x1c0] sm:$0xff]
    %v4657 = vld [vmem:[#allocation8 + $0x1c8] sm:$0xff]
    %v4658 = vld [vmem:[#allocation8 + $0x1d0] sm:$0xff]
    %v4659 = vld [vmem:[#allocation8 + $0x1d8] sm:$0xff]
    %v4660 = vld [vmem:[#allocation8 + $0x1e0] sm:$0xff]
    %v4661 = vld [vmem:[#allocation8 + $0x1e8] sm:$0xff]
    %v4662 = vld [vmem:[#allocation8 + $0x1f0] sm:$0xff]
    %v4663 = vld [vmem:[#allocation8 + $0x1f8] sm:$0xff]
    %4664 = vmatprep.subr.mxu0 %v4601
    %4665 = vmatpush1.msra.mxu0 %v4600
    %4666 = vmatprep.subr.mxu0 %v4605
    %4667 = vmatpush1.msra.mxu0 %v4604
    %4668 = vmatprep.subr.mxu0 %v4609
    %4669 = vmatpush1.msra.mxu0 %v4608
    %4670 = vmatprep.subr.mxu0 %v4613
    %4671 = vmatpush1.msra.mxu0 %v4612
    %4672 = vmatprep.subr.mxu0 %v4617
    %4673 = vmatpush1.msra.mxu0 %v4616
    %4674 = vmatprep.subr.mxu0 %v4621
    %4675 = vmatpush1.msra.mxu0 %v4620
    %4676 = vmatprep.subr.mxu0 %v4625
    %4677 = vmatpush1.msra.mxu0 %v4624
    %4678 = vmatprep.subr.mxu0 %v4629
    %4679 = vmatpush1.msra.mxu0 %v4628
    %4680 = vmatprep.subr.mxu0 %v4633
    %4681 = vmatpush1.msra.mxu0 %v4632
    %4682 = vmatprep.subr.mxu0 %v4637
    %4683 = vmatpush1.msra.mxu0 %v4636
    %4684 = vmatprep.subr.mxu0 %v4641
    %4685 = vmatpush1.msra.mxu0 %v4640
    %4686 = vmatprep.subr.mxu0 %v4645
    %4687 = vmatpush1.msra.mxu0 %v4644
    %4688 = vmatprep.subr.mxu0 %v4649
    %4689 = vmatpush1.msra.mxu0 %v4648
    %4690 = vmatprep.subr.mxu0 %v4653
    %4691 = vmatpush1.msra.mxu0 %v4652
    %4692 = vmatprep.subr.mxu0 %v4657
    %4693 = vmatpush1.msra.mxu0 %v4656
    %4694 = vmatprep.subr.mxu0 %v4661
    %4695 = vmatpush1.msra.mxu0 %v4660
    %4696 = vmatprep.subr.mxu0 0.0
    %4697 = vmatpush1.msra.mxu0 0.0
    %4698 = vmatprep.subr.mxu0 0.0
    %4699 = vmatpush1.msra.mxu0 0.0
    %4700 = vmatprep.subr.mxu0 0.0
    %4701 = vmatpush1.msra.mxu0 0.0
    %4702 = vmatprep.subr.mxu0 0.0
    %4703 = vmatpush1.msra.mxu0 0.0
    %4704 = vmatprep.subr.mxu0 0.0
    %4705 = vmatpush1.msra.mxu0 0.0
    %4706 = vmatprep.subr.mxu0 0.0
    %4707 = vmatpush1.msra.mxu0 0.0
    %4708 = vmatprep.subr.mxu0 0.0
    %4709 = vmatpush1.msra.mxu0 0.0
    %4710 = vmatprep.subr.mxu0 0.0
    %4711 = vmatpush1.msra.mxu0 0.0
    %4712 = vmatprep.subr.mxu0 0.0
    %4713 = vmatpush1.msra.mxu0 0.0
    %4714 = vmatprep.subr.mxu0 0.0
    %4715 = vmatpush1.msra.mxu0 0.0
    %4716 = vmatprep.subr.mxu0 0.0
    %4717 = vmatpush1.msra.mxu0 0.0
    %4718 = vmatprep.subr.mxu0 0.0
    %4719 = vmatpush1.msra.mxu0 0.0
    %4720 = vmatprep.subr.mxu0 0.0
    %4721 = vmatpush1.msra.mxu0 0.0
    %4722 = vmatprep.subr.mxu0 0.0
    %4723 = vmatpush1.msra.mxu0 0.0
    %4724 = vmatprep.subr.mxu0 0.0
    %4725 = vmatpush1.msra.mxu0 0.0
    %4726 = vmatprep.subr.mxu0 0.0
    %4727 = vmatpush1.msra.mxu0 0.0
    %4728 = vmatprep.mubr.f32.mxu0 0.0
    %4729 = vmatmul.mubr.f32.gmra.mrb[0].mxu0 %v4599
    %v4730 = vpop.f32.mrb[0].mxu0
    %v4731 = vadd.f32 0.0, %v4730
    %v4732 = vpop.f32.mrb[0].mxu0
    %v4733 = vadd.f32 0.0, %v4732
    %4734 = vdwg.mxu0
    %4735 = vmatprep.subr.mxu0 %v4603
    %4736 = vmatpush1.msra.mxu0 %v4602
    %4737 = vmatprep.subr.mxu0 %v4607
    %4738 = vmatpush1.msra.mxu0 %v4606
    %4739 = vmatprep.subr.mxu0 %v4611
    %4740 = vmatpush1.msra.mxu0 %v4610
    %4741 = vmatprep.subr.mxu0 %v4615
    %4742 = vmatpush1.msra.mxu0 %v4614
    %4743 = vmatprep.subr.mxu0 %v4619
    %4744 = vmatpush1.msra.mxu0 %v4618
    %4745 = vmatprep.subr.mxu0 %v4623
    %4746 = vmatpush1.msra.mxu0 %v4622
    %4747 = vmatprep.subr.mxu0 %v4627
    %4748 = vmatpush1.msra.mxu0 %v4626
    %4749 = vmatprep.subr.mxu0 %v4631
    %4750 = vmatpush1.msra.mxu0 %v4630
    %4751 = vmatprep.subr.mxu0 %v4635
    %4752 = vmatpush1.msra.mxu0 %v4634
    %4753 = vmatprep.subr.mxu0 %v4639
    %4754 = vmatpush1.msra.mxu0 %v4638
    %4755 = vmatprep.subr.mxu0 %v4643
    %4756 = vmatpush1.msra.mxu0 %v4642
    %4757 = vmatprep.subr.mxu0 %v4647
    %4758 = vmatpush1.msra.mxu0 %v4646
    %4759 = vmatprep.subr.mxu0 %v4651
    %4760 = vmatpush1.msra.mxu0 %v4650
    %4761 = vmatprep.subr.mxu0 %v4655
    %4762 = vmatpush1.msra.mxu0 %v4654
    %4763 = vmatprep.subr.mxu0 %v4659
    %4764 = vmatpush1.msra.mxu0 %v4658
    %4765 = vmatprep.subr.mxu0 %v4663
    %4766 = vmatpush1.msra.mxu0 %v4662
    %4767 = vmatprep.subr.mxu0 0.0
    %4768 = vmatpush1.msra.mxu0 0.0
    %4769 = vmatprep.subr.mxu0 0.0
    %4770 = vmatpush1.msra.mxu0 0.0
    %4771 = vmatprep.subr.mxu0 0.0
    %4772 = vmatpush1.msra.mxu0 0.0
    %4773 = vmatprep.subr.mxu0 0.0
    %4774 = vmatpush1.msra.mxu0 0.0
    %4775 = vmatprep.subr.mxu0 0.0
    %4776 = vmatpush1.msra.mxu0 0.0
    %4777 = vmatprep.subr.mxu0 0.0
    %4778 = vmatpush1.msra.mxu0 0.0
    %4779 = vmatprep.subr.mxu0 0.0
    %4780 = vmatpush1.msra.mxu0 0.0
    %4781 = vmatprep.subr.mxu0 0.0
    %4782 = vmatpush1.msra.mxu0 0.0
    %4783 = vmatprep.subr.mxu0 0.0
    %4784 = vmatpush1.msra.mxu0 0.0
    %4785 = vmatprep.subr.mxu0 0.0
    %4786 = vmatpush1.msra.mxu0 0.0
    %4787 = vmatprep.subr.mxu0 0.0
    %4788 = vmatpush1.msra.mxu0 0.0
    %4789 = vmatprep.subr.mxu0 0.0
    %4790 = vmatpush1.msra.mxu0 0.0
    %4791 = vmatprep.subr.mxu0 0.0
    %4792 = vmatpush1.msra.mxu0 0.0
    %4793 = vmatprep.subr.mxu0 0.0
    %4794 = vmatpush1.msra.mxu0 0.0
    %4795 = vmatprep.subr.mxu0 0.0
    %4796 = vmatpush1.msra.mxu0 0.0
    %4797 = vmatprep.subr.mxu0 0.0
    %4798 = vmatpush1.msra.mxu0 0.0
    %4799 = vmatprep.mubr.f32.mxu0 0.0
    %4800 = vmatmul.mubr.f32.gmra.mrb[0].mxu0 %v4599
    %v4801 = vpop.f32.mrb[0].mxu0
    %v4802 = vadd.f32 0.0, %v4801
    %v4803 = vpop.f32.mrb[0].mxu0
    %v4804 = vadd.f32 0.0, %v4803
    %4805 = vdwg.mxu0
    %v4810 = vcombine.low %v4731, %v4733
    %v4811 = vcombine.low %v4802, %v4804
    %v4813 = vunpack.c.l.s4 1983009808
    %v4814 = vunpack.c.0.s8 %v4813
    %v4815 = vlaneseq
    %v4816 = vshrl.u32 %v4815, 7
    %v4817 = vsub.s32 %v4814, %v4816
    %v4818 = vrot.slane %v4810, %v4817
    %v4820 = vunpack.c.l.s4 1983009808
    %v4821 = vunpack.c.0.s8 %v4820
    %v4822 = vlaneseq
    %v4823 = vshrl.u32 %v4822, 7
    %v4824 = vsub.s32 %v4821, %v4823
    %v4825 = vrot.slane %v4811, %v4824
    %v4826 = vcombine.low %v4818, %v4825
    %v4828 = vadd.f32 %v4598, %v4826
    %v4829 = vxor.u32 %v4828, 2147483648
    %v4830 = vmul.f32 %v4829, 1.442695
    %v4831 = vpow.pop %v4830
    %v4832 = vadd.f32 %v4831, 1.0
    %v4833 = vrcp.pop %v4832
    %v4834 = vmul.f32 1.0, %v4833
    %v4836 = vrot.slane %v4828, 2
    %v4838 = vxor.u32 %v4836, 2147483648
    %v4839 = vmul.f32 %v4838, 1.442695
    %v4840 = vpow.pop %v4839
    %v4841 = vadd.f32 %v4840, 1.0
    %v4842 = vrcp.pop %v4841
    %v4843 = vmul.f32 1.0, %v4842
    %v4844 = vrot.slane %v4828, 4
    %v4846 = vtanh.pop %v4844
    %v4847 = vrot.slane %v4828, 6
    %v4849 = vxor.u32 %v4847, 2147483648
    %v4850 = vmul.f32 %v4849, 1.442695
    %v4851 = vpow.pop %v4850
    %v4852 = vadd.f32 %v4851, 1.0
    %v4853 = vrcp.pop %v4852
    %v4854 = vmul.f32 1.0, %v4853
    %v4855 = vld [vmem:[#allocation5] sm:$0x3]
    %v4856 = vmul.f32 %v4843, %v4855
    %v4857 = vmul.f32 %v4834, %v4846
    %v4858 = vadd.f32 %v4856, %v4857
    %v4859 = vtanh.pop %v4858
    %v4860 = vmul.f32 %v4854, %v4859
    %4861 = vst [vmem:[#allocation5] sm:$0x3] %v4858
    %4862 = vst [vmem:[#allocation4] sm:$0x3] %v4860
    %v4863 = vld [vmem:[#allocation4] sm:$0xf]
    %v4864 = vld [vmem:[#allocation10] sm:$0xff]
    %v4865 = vld [vmem:[#allocation10 + $0x8] sm:$0xff]
    %v4866 = vld [vmem:[#allocation10 + $0x10] sm:$0xff]
    %v4867 = vld [vmem:[#allocation10 + $0x18] sm:$0xff]
    %v4868 = vld [vmem:[#allocation10 + $0x20] sm:$0xff]
    %v4869 = vld [vmem:[#allocation10 + $0x28] sm:$0xff]
    %v4870 = vld [vmem:[#allocation10 + $0x30] sm:$0xff]
    %v4871 = vld [vmem:[#allocation10 + $0x38] sm:$0xff]
    %v4872 = vld [vmem:[#allocation10 + $0x40] sm:$0xff]
    %v4873 = vld [vmem:[#allocation10 + $0x48] sm:$0xff]
    %v4874 = vld [vmem:[#allocation10 + $0x50] sm:$0xff]
    %v4875 = vld [vmem:[#allocation10 + $0x58] sm:$0xff]
    %v4876 = vld [vmem:[#allocation10 + $0x60] sm:$0xff]
    %v4877 = vld [vmem:[#allocation10 + $0x68] sm:$0xff]
    %v4878 = vld [vmem:[#allocation10 + $0x70] sm:$0xff]
    %v4879 = vld [vmem:[#allocation10 + $0x78] sm:$0xff]
    %v4880 = vld [vmem:[#allocation10 + $0x80] sm:$0xff]
    %v4881 = vld [vmem:[#allocation10 + $0x88] sm:$0xff]
    %v4882 = vld [vmem:[#allocation10 + $0x90] sm:$0xff]
    %v4883 = vld [vmem:[#allocation10 + $0x98] sm:$0xff]
    %v4884 = vld [vmem:[#allocation10 + $0xa0] sm:$0xff]
    %v4885 = vld [vmem:[#allocation10 + $0xa8] sm:$0xff]
    %v4886 = vld [vmem:[#allocation10 + $0xb0] sm:$0xff]
    %v4887 = vld [vmem:[#allocation10 + $0xb8] sm:$0xff]
    %v4888 = vld [vmem:[#allocation10 + $0xc0] sm:$0xff]
    %v4889 = vld [vmem:[#allocation10 + $0xc8] sm:$0xff]
    %v4890 = vld [vmem:[#allocation10 + $0xd0] sm:$0xff]
    %v4891 = vld [vmem:[#allocation10 + $0xd8] sm:$0xff]
    %v4892 = vld [vmem:[#allocation10 + $0xe0] sm:$0xff]
    %v4893 = vld [vmem:[#allocation10 + $0xe8] sm:$0xff]
    %v4894 = vld [vmem:[#allocation10 + $0xf0] sm:$0xff]
    %v4895 = vld [vmem:[#allocation10 + $0xf8] sm:$0xff]
    %v4896 = vld [vmem:[#allocation10 + $0x100] sm:$0xff]
    %v4897 = vld [vmem:[#allocation10 + $0x108] sm:$0xff]
    %v4898 = vld [vmem:[#allocation10 + $0x110] sm:$0xff]
    %v4899 = vld [vmem:[#allocation10 + $0x118] sm:$0xff]
    %v4900 = vld [vmem:[#allocation10 + $0x120] sm:$0xff]
    %v4901 = vld [vmem:[#allocation10 + $0x128] sm:$0xff]
    %v4902 = vld [vmem:[#allocation10 + $0x130] sm:$0xff]
    %v4903 = vld [vmem:[#allocation10 + $0x138] sm:$0xff]
    %v4904 = vld [vmem:[#allocation10 + $0x140] sm:$0xff]
    %v4905 = vld [vmem:[#allocation10 + $0x148] sm:$0xff]
    %v4906 = vld [vmem:[#allocation10 + $0x150] sm:$0xff]
    %v4907 = vld [vmem:[#allocation10 + $0x158] sm:$0xff]
    %v4908 = vld [vmem:[#allocation10 + $0x160] sm:$0xff]
    %v4909 = vld [vmem:[#allocation10 + $0x168] sm:$0xff]
    %v4910 = vld [vmem:[#allocation10 + $0x170] sm:$0xff]
    %v4911 = vld [vmem:[#allocation10 + $0x178] sm:$0xff]
    %v4912 = vld [vmem:[#allocation10 + $0x180] sm:$0xff]
    %v4913 = vld [vmem:[#allocation10 + $0x188] sm:$0xff]
    %v4914 = vld [vmem:[#allocation10 + $0x190] sm:$0xff]
    %v4915 = vld [vmem:[#allocation10 + $0x198] sm:$0xff]
    %v4916 = vld [vmem:[#allocation10 + $0x1a0] sm:$0xff]
    %v4917 = vld [vmem:[#allocation10 + $0x1a8] sm:$0xff]
    %v4918 = vld [vmem:[#allocation10 + $0x1b0] sm:$0xff]
    %v4919 = vld [vmem:[#allocation10 + $0x1b8] sm:$0xff]
    %v4920 = vld [vmem:[#allocation10 + $0x1c0] sm:$0xff]
    %v4921 = vld [vmem:[#allocation10 + $0x1c8] sm:$0xff]
    %v4922 = vld [vmem:[#allocation10 + $0x1d0] sm:$0xff]
    %v4923 = vld [vmem:[#allocation10 + $0x1d8] sm:$0xff]
    %v4924 = vld [vmem:[#allocation10 + $0x1e0] sm:$0xff]
    %v4925 = vld [vmem:[#allocation10 + $0x1e8] sm:$0xff]
    %v4926 = vld [vmem:[#allocation10 + $0x1f0] sm:$0xff]
    %v4927 = vld [vmem:[#allocation10 + $0x1f8] sm:$0xff]
    %v4928 = vld [vmem:[#allocation10 + $0x200] sm:$0xff]
    %v4929 = vld [vmem:[#allocation10 + $0x208] sm:$0xff]
    %v4930 = vld [vmem:[#allocation10 + $0x210] sm:$0xff]
    %v4931 = vld [vmem:[#allocation10 + $0x218] sm:$0xff]
    %v4932 = vld [vmem:[#allocation10 + $0x220] sm:$0xff]
    %v4933 = vld [vmem:[#allocation10 + $0x228] sm:$0xff]
    %v4934 = vld [vmem:[#allocation10 + $0x230] sm:$0xff]
    %v4935 = vld [vmem:[#allocation10 + $0x238] sm:$0xff]
    %v4936 = vld [vmem:[#allocation10 + $0x240] sm:$0xff]
    %v4937 = vld [vmem:[#allocation10 + $0x248] sm:$0xff]
    %v4938 = vld [vmem:[#allocation10 + $0x250] sm:$0xff]
    %v4939 = vld [vmem:[#allocation10 + $0x258] sm:$0xff]
    %v4940 = vld [vmem:[#allocation10 + $0x260] sm:$0xff]
    %v4941 = vld [vmem:[#allocation10 + $0x268] sm:$0xff]
    %v4942 = vld [vmem:[#allocation10 + $0x270] sm:$0xff]
    %v4943 = vld [vmem:[#allocation10 + $0x278] sm:$0xff]
    %v4944 = vld [vmem:[#allocation10 + $0x280] sm:$0xff]
    %v4945 = vld [vmem:[#allocation10 + $0x288] sm:$0xff]
    %v4946 = vld [vmem:[#allocation10 + $0x290] sm:$0xff]
    %v4947 = vld [vmem:[#allocation10 + $0x298] sm:$0xff]
    %v4948 = vld [vmem:[#allocation10 + $0x2a0] sm:$0xff]
    %v4949 = vld [vmem:[#allocation10 + $0x2a8] sm:$0xff]
    %v4950 = vld [vmem:[#allocation10 + $0x2b0] sm:$0xff]
    %v4951 = vld [vmem:[#allocation10 + $0x2b8] sm:$0xff]
    %v4952 = vld [vmem:[#allocation10 + $0x2c0] sm:$0xff]
    %v4953 = vld [vmem:[#allocation10 + $0x2c8] sm:$0xff]
    %v4954 = vld [vmem:[#allocation10 + $0x2d0] sm:$0xff]
    %v4955 = vld [vmem:[#allocation10 + $0x2d8] sm:$0xff]
    %v4956 = vld [vmem:[#allocation10 + $0x2e0] sm:$0xff]
    %v4957 = vld [vmem:[#allocation10 + $0x2e8] sm:$0xff]
    %v4958 = vld [vmem:[#allocation10 + $0x2f0] sm:$0xff]
    %v4959 = vld [vmem:[#allocation10 + $0x2f8] sm:$0xff]
    %v4960 = vld [vmem:[#allocation10 + $0x300] sm:$0xff]
    %v4961 = vld [vmem:[#allocation10 + $0x308] sm:$0xff]
    %v4962 = vld [vmem:[#allocation10 + $0x310] sm:$0xff]
    %v4963 = vld [vmem:[#allocation10 + $0x318] sm:$0xff]
    %v4964 = vld [vmem:[#allocation10 + $0x320] sm:$0xff]
    %v4965 = vld [vmem:[#allocation10 + $0x328] sm:$0xff]
    %v4966 = vld [vmem:[#allocation10 + $0x330] sm:$0xff]
    %v4967 = vld [vmem:[#allocation10 + $0x338] sm:$0xff]
    %v4968 = vld [vmem:[#allocation10 + $0x340] sm:$0xff]
    %v4969 = vld [vmem:[#allocation10 + $0x348] sm:$0xff]
    %v4970 = vld [vmem:[#allocation10 + $0x350] sm:$0xff]
    %v4971 = vld [vmem:[#allocation10 + $0x358] sm:$0xff]
    %v4972 = vld [vmem:[#allocation10 + $0x360] sm:$0xff]
    %v4973 = vld [vmem:[#allocation10 + $0x368] sm:$0xff]
    %v4974 = vld [vmem:[#allocation10 + $0x370] sm:$0xff]
    %v4975 = vld [vmem:[#allocation10 + $0x378] sm:$0xff]
    %v4976 = vld [vmem:[#allocation10 + $0x380] sm:$0xff]
    %v4977 = vld [vmem:[#allocation10 + $0x388] sm:$0xff]
    %v4978 = vld [vmem:[#allocation10 + $0x390] sm:$0xff]
    %v4979 = vld [vmem:[#allocation10 + $0x398] sm:$0xff]
    %v4980 = vld [vmem:[#allocation10 + $0x3a0] sm:$0xff]
    %v4981 = vld [vmem:[#allocation10 + $0x3a8] sm:$0xff]
    %v4982 = vld [vmem:[#allocation10 + $0x3b0] sm:$0xff]
    %v4983 = vld [vmem:[#allocation10 + $0x3b8] sm:$0xff]
    %v4984 = vld [vmem:[#allocation10 + $0x3c0] sm:$0xff]
    %v4985 = vld [vmem:[#allocation10 + $0x3c8] sm:$0xff]
    %v4986 = vld [vmem:[#allocation10 + $0x3d0] sm:$0xff]
    %v4987 = vld [vmem:[#allocation10 + $0x3d8] sm:$0xff]
    %v4988 = vld [vmem:[#allocation10 + $0x3e0] sm:$0xff]
    %v4989 = vld [vmem:[#allocation10 + $0x3e8] sm:$0xff]
    %v4990 = vld [vmem:[#allocation10 + $0x3f0] sm:$0xff]
    %v4991 = vld [vmem:[#allocation10 + $0x3f8] sm:$0xff]
    %v4992 = vld [vmem:[%s5] sm:$0xf]
    %v4994 = vlaneseq
    %v4995 = vshrl.u32 %v4994, 7
    %v4996 = vsub.s32 0, %v4995
    %v4997 = vrot.slane %v4992, %v4996
    %v4998 = vlaneseq
    %v4999 = vshrl.u32 %v4998, 7
    %v5000 = vsub.s32 1, %v4999
    %v5001 = vrot.slane %v4992, %v5000
    %v5002 = vlaneseq
    %v5003 = vshrl.u32 %v5002, 7
    %v5004 = vsub.s32 2, %v5003
    %v5005 = vrot.slane %v4992, %v5004
    %v5006 = vlaneseq
    %v5007 = vshrl.u32 %v5006, 7
    %v5008 = vsub.s32 3, %v5007
    %v5009 = vrot.slane %v4992, %v5008
    %v5016 = vunpack.c.l.s4 1983009808
    %v5017 = vunpack.c.0.s8 %v5016
    %v5018 = vlaneseq
    %v5019 = vshrl.u32 %v5018, 7
    %v5020 = vsub.s32 %v5017, %v5019
    %v5021 = vrot.slane %v4863, %v5020
    %v5022 = vcombine.high %v5021, %v5021
    %5025 = vmatprep.subr.mxu0 %v4865
    %5026 = vmatpush1.msra.mxu0 %v4864
    %5027 = vmatprep.subr.mxu0 %v4869
    %5028 = vmatpush1.msra.mxu0 %v4868
    %5029 = vmatprep.subr.mxu0 %v4873
    %5030 = vmatpush1.msra.mxu0 %v4872
    %5031 = vmatprep.subr.mxu0 %v4877
    %5032 = vmatpush1.msra.mxu0 %v4876
    %5033 = vmatprep.subr.mxu0 %v4881
    %5034 = vmatpush1.msra.mxu0 %v4880
    %5035 = vmatprep.subr.mxu0 %v4885
    %5036 = vmatpush1.msra.mxu0 %v4884
    %5037 = vmatprep.subr.mxu0 %v4889
    %5038 = vmatpush1.msra.mxu0 %v4888
    %5039 = vmatprep.subr.mxu0 %v4893
    %5040 = vmatpush1.msra.mxu0 %v4892
    %5041 = vmatprep.subr.mxu0 %v4897
    %5042 = vmatpush1.msra.mxu0 %v4896
    %5043 = vmatprep.subr.mxu0 %v4901
    %5044 = vmatpush1.msra.mxu0 %v4900
    %5045 = vmatprep.subr.mxu0 %v4905
    %5046 = vmatpush1.msra.mxu0 %v4904
    %5047 = vmatprep.subr.mxu0 %v4909
    %5048 = vmatpush1.msra.mxu0 %v4908
    %5049 = vmatprep.subr.mxu0 %v4913
    %5050 = vmatpush1.msra.mxu0 %v4912
    %5051 = vmatprep.subr.mxu0 %v4917
    %5052 = vmatpush1.msra.mxu0 %v4916
    %5053 = vmatprep.subr.mxu0 %v4921
    %5054 = vmatpush1.msra.mxu0 %v4920
    %5055 = vmatprep.subr.mxu0 %v4925
    %5056 = vmatpush1.msra.mxu0 %v4924
    %5057 = vmatprep.subr.mxu0 %v4929
    %5058 = vmatpush1.msra.mxu0 %v4928
    %5059 = vmatprep.subr.mxu0 %v4933
    %5060 = vmatpush1.msra.mxu0 %v4932
    %5061 = vmatprep.subr.mxu0 %v4937
    %5062 = vmatpush1.msra.mxu0 %v4936
    %5063 = vmatprep.subr.mxu0 %v4941
    %5064 = vmatpush1.msra.mxu0 %v4940
    %5065 = vmatprep.subr.mxu0 %v4945
    %5066 = vmatpush1.msra.mxu0 %v4944
    %5067 = vmatprep.subr.mxu0 %v4949
    %5068 = vmatpush1.msra.mxu0 %v4948
    %5069 = vmatprep.subr.mxu0 %v4953
    %5070 = vmatpush1.msra.mxu0 %v4952
    %5071 = vmatprep.subr.mxu0 %v4957
    %5072 = vmatpush1.msra.mxu0 %v4956
    %5073 = vmatprep.subr.mxu0 %v4961
    %5074 = vmatpush1.msra.mxu0 %v4960
    %5075 = vmatprep.subr.mxu0 %v4965
    %5076 = vmatpush1.msra.mxu0 %v4964
    %5077 = vmatprep.subr.mxu0 %v4969
    %5078 = vmatpush1.msra.mxu0 %v4968
    %5079 = vmatprep.subr.mxu0 %v4973
    %5080 = vmatpush1.msra.mxu0 %v4972
    %5081 = vmatprep.subr.mxu0 %v4977
    %5082 = vmatpush1.msra.mxu0 %v4976
    %5083 = vmatprep.subr.mxu0 %v4981
    %5084 = vmatpush1.msra.mxu0 %v4980
    %5085 = vmatprep.subr.mxu0 %v4985
    %5086 = vmatpush1.msra.mxu0 %v4984
    %5087 = vmatprep.subr.mxu0 %v4989
    %5088 = vmatpush1.msra.mxu0 %v4988
    %5089 = vmatprep.mubr.f32.mxu0 %v5022
    %5090 = vmatmul.mubr.f32.gmra.mrb[0].mxu0 %v5021
    %v5091 = vpop.f32.mrb[0].mxu0
    %v5092 = vadd.f32 %v4997, %v5091
    %v5093 = vpop.f32.mrb[0].mxu0
    %v5094 = vadd.f32 %v5001, %v5093
    %5095 = vdwg.mxu0
    %5096 = vmatprep.subr.mxu0 %v4867
    %5097 = vmatpush1.msra.mxu0 %v4866
    %5098 = vmatprep.subr.mxu0 %v4871
    %5099 = vmatpush1.msra.mxu0 %v4870
    %5100 = vmatprep.subr.mxu0 %v4875
    %5101 = vmatpush1.msra.mxu0 %v4874
    %5102 = vmatprep.subr.mxu0 %v4879
    %5103 = vmatpush1.msra.mxu0 %v4878
    %5104 = vmatprep.subr.mxu0 %v4883
    %5105 = vmatpush1.msra.mxu0 %v4882
    %5106 = vmatprep.subr.mxu0 %v4887
    %5107 = vmatpush1.msra.mxu0 %v4886
    %5108 = vmatprep.subr.mxu0 %v4891
    %5109 = vmatpush1.msra.mxu0 %v4890
    %5110 = vmatprep.subr.mxu0 %v4895
    %5111 = vmatpush1.msra.mxu0 %v4894
    %5112 = vmatprep.subr.mxu0 %v4899
    %5113 = vmatpush1.msra.mxu0 %v4898
    %5114 = vmatprep.subr.mxu0 %v4903
    %5115 = vmatpush1.msra.mxu0 %v4902
    %5116 = vmatprep.subr.mxu0 %v4907
    %5117 = vmatpush1.msra.mxu0 %v4906
    %5118 = vmatprep.subr.mxu0 %v4911
    %5119 = vmatpush1.msra.mxu0 %v4910
    %5120 = vmatprep.subr.mxu0 %v4915
    %5121 = vmatpush1.msra.mxu0 %v4914
    %5122 = vmatprep.subr.mxu0 %v4919
    %5123 = vmatpush1.msra.mxu0 %v4918
    %5124 = vmatprep.subr.mxu0 %v4923
    %5125 = vmatpush1.msra.mxu0 %v4922
    %5126 = vmatprep.subr.mxu0 %v4927
    %5127 = vmatpush1.msra.mxu0 %v4926
    %5128 = vmatprep.subr.mxu0 %v4931
    %5129 = vmatpush1.msra.mxu0 %v4930
    %5130 = vmatprep.subr.mxu0 %v4935
    %5131 = vmatpush1.msra.mxu0 %v4934
    %5132 = vmatprep.subr.mxu0 %v4939
    %5133 = vmatpush1.msra.mxu0 %v4938
    %5134 = vmatprep.subr.mxu0 %v4943
    %5135 = vmatpush1.msra.mxu0 %v4942
    %5136 = vmatprep.subr.mxu0 %v4947
    %5137 = vmatpush1.msra.mxu0 %v4946
    %5138 = vmatprep.subr.mxu0 %v4951
    %5139 = vmatpush1.msra.mxu0 %v4950
    %5140 = vmatprep.subr.mxu0 %v4955
    %5141 = vmatpush1.msra.mxu0 %v4954
    %5142 = vmatprep.subr.mxu0 %v4959
    %5143 = vmatpush1.msra.mxu0 %v4958
    %5144 = vmatprep.subr.mxu0 %v4963
    %5145 = vmatpush1.msra.mxu0 %v4962
    %5146 = vmatprep.subr.mxu0 %v4967
    %5147 = vmatpush1.msra.mxu0 %v4966
    %5148 = vmatprep.subr.mxu0 %v4971
    %5149 = vmatpush1.msra.mxu0 %v4970
    %5150 = vmatprep.subr.mxu0 %v4975
    %5151 = vmatpush1.msra.mxu0 %v4974
    %5152 = vmatprep.subr.mxu0 %v4979
    %5153 = vmatpush1.msra.mxu0 %v4978
    %5154 = vmatprep.subr.mxu0 %v4983
    %5155 = vmatpush1.msra.mxu0 %v4982
    %5156 = vmatprep.subr.mxu0 %v4987
    %5157 = vmatpush1.msra.mxu0 %v4986
    %5158 = vmatprep.subr.mxu0 %v4991
    %5159 = vmatpush1.msra.mxu0 %v4990
    %5160 = vmatprep.mubr.f32.mxu0 %v5022
    %5161 = vmatmul.mubr.f32.gmra.mrb[0].mxu0 %v5021
    %v5162 = vpop.f32.mrb[0].mxu0
    %v5163 = vadd.f32 %v5005, %v5162
    %v5164 = vpop.f32.mrb[0].mxu0
    %v5165 = vadd.f32 %v5009, %v5164
    %5166 = vdwg.mxu0
    %v5167 = vxor.u32 %v5092, 2147483648
    %v5168 = vmul.f32 %v5167, 1.442695
    %v5169 = vpow.pop %v5168
    %v5170 = vadd.f32 %v5169, 1.0
    %v5171 = vrcp.pop %v5170
    %v5172 = vmul.f32 1.0, %v5171
    %v5173 = vxor.u32 %v5094, 2147483648
    %v5174 = vmul.f32 %v5173, 1.442695
    %v5175 = vpow.pop %v5174
    %v5176 = vadd.f32 %v5175, 1.0
    %v5177 = vrcp.pop %v5176
    %v5178 = vmul.f32 1.0, %v5177
    %v5179 = vtanh.pop %v5163
    %v5180 = vxor.u32 %v5165, 2147483648
    %v5181 = vmul.f32 %v5180, 1.442695
    %v5182 = vpow.pop %v5181
    %v5183 = vadd.f32 %v5182, 1.0
    %v5184 = vrcp.pop %v5183
    %v5185 = vmul.f32 1.0, %v5184
    %v5186 = vld [vmem:[#allocation6] sm:$0x3]
    %v5187 = vmul.f32 %v5178, %v5186
    %v5188 = vmul.f32 %v5172, %v5179
    %v5189 = vadd.f32 %v5187, %v5188
    %v5190 = vtanh.pop %v5189
    %v5191 = vmul.f32 %v5185, %v5190
    %5192 = vst [vmem:[#allocation6] sm:$0x3] %v5189
    %5193 = vst [vmem:[#allocation4 + $0x2] sm:$0x3] %v5191
    %s5194 = scalar_lea.vmem [#allocation3], 14
    %5195 = vst [vmem:[%s5194] sm:$0x3] %v5191
    %v5196 = vld [vmem:[#allocation3] sm:$0x3]
    %v5197 = vld [vmem:[#allocation3 + $0x2] sm:$0x3]
    %v5198 = vld [vmem:[#allocation3 + $0x4] sm:$0x3]
    %v5199 = vld [vmem:[#allocation3 + $0x6] sm:$0x3]
    %v5200 = vld [vmem:[#allocation3 + $0x8] sm:$0x3]
    %v5201 = vld [vmem:[#allocation3 + $0xa] sm:$0x3]
    %v5202 = vld [vmem:[#allocation3 + $0xc] sm:$0x3]
    %v5203 = vld [vmem:[#allocation3 + $0xe] sm:$0x3]
    %v5204 = vld [vmem:[%s6] sm:$0x1]
    %v5206 = vlaneseq
    %v5207 = vshrl.u32 %v5206, 7
    %v5208 = vsub.s32 0, %v5207
    %v5209 = vrot.slane %v5204, %v5208
    %v5211 = vmul.f32 %v5196, %v5209
    %v5212 = vmul.f32 %v5197, %v5209
    %v5213 = vmul.f32 %v5198, %v5209
    %v5214 = vmul.f32 %v5199, %v5209
    %v5215 = vmul.f32 %v5200, %v5209
    %v5216 = vmul.f32 %v5201, %v5209
    %v5217 = vmul.f32 %v5202, %v5209
    %v5218 = vmul.f32 %v5203, %v5209
    %vm5219 = vcmask 1041408
    %v5220 = vsel %vm5219, %v5211, 0.0
    %5221 = vadd.xlane.f32.xlu0 %v5220
    %v5222 = vpop.xlane.xlu0 %5221
    %v5223 = vsel %vm5219, %v5212, 0.0
    %5224 = vadd.xlane.f32.xlu0 %v5223
    %v5225 = vpop.xlane.xlu0 %5224
    %v5226 = vsel %vm5219, %v5213, 0.0
    %5227 = vadd.xlane.f32.xlu0 %v5226
    %v5228 = vpop.xlane.xlu0 %5227
    %v5229 = vsel %vm5219, %v5214, 0.0
    %5230 = vadd.xlane.f32.xlu0 %v5229
    %v5231 = vpop.xlane.xlu0 %5230
    %v5232 = vsel %vm5219, %v5215, 0.0
    %5233 = vadd.xlane.f32.xlu0 %v5232
    %v5234 = vpop.xlane.xlu0 %5233
    %v5235 = vsel %vm5219, %v5216, 0.0
    %5236 = vadd.xlane.f32.xlu0 %v5235
    %v5237 = vpop.xlane.xlu0 %5236
    %v5238 = vsel %vm5219, %v5217, 0.0
    %5239 = vadd.xlane.f32.xlu0 %v5238
    %v5240 = vpop.xlane.xlu0 %5239
    %v5241 = vsel %vm5219, %v5218, 0.0
    %5242 = vadd.xlane.f32.xlu0 %v5241
    %v5243 = vpop.xlane.xlu0 %5242
    %v5244 = vld [vmem:[#allocation7] sm:$0x1]
    %v5246 = vlaneseq
    %v5247 = vshrl.u32 %v5246, 7
    %v5248 = vsub.s32 0, %v5247
    %v5249 = vrot.slane %v5244, %v5248
    %5250 = vset.pattern.permute.xlu0 0
    %5251 = vperm.xlu0 %5250, %v5249
    %v5252 = vpop.permute.xlu0 %5251
    %v5254 = vadd.f32 %v5222, %v5252
    %v5255 = vadd.f32 %v5225, %v5252
    %v5256 = vadd.f32 %v5228, %v5252
    %v5257 = vadd.f32 %v5231, %v5252
    %v5258 = vadd.f32 %v5234, %v5252
    %v5259 = vadd.f32 %v5237, %v5252
    %v5260 = vadd.f32 %v5240, %v5252
    %v5261 = vadd.f32 %v5243, %v5252
    %v5270 = vlaneseq
    %v5271 = vand.u32 %v5270, 127
    %v5272 = vlaneseq
    %v5273 = vshrl.u32 %v5272, 7
    %v5274 = vsub.s32 %v5271, %v5273
    %v5275 = vrot.slane %v5254, %v5274
    %v5276 = vlaneseq
    %v5277 = vshrl.u32 %v5276, 7
    %v5278 = vsub.s32 %v5271, %v5277
    %v5279 = vrot.slane %v5255, %v5278
    %v5280 = vlaneseq
    %v5281 = vshrl.u32 %v5280, 7
    %v5282 = vsub.s32 %v5271, %v5281
    %v5283 = vrot.slane %v5256, %v5282
    %v5284 = vlaneseq
    %v5285 = vshrl.u32 %v5284, 7
    %v5286 = vsub.s32 %v5271, %v5285
    %v5287 = vrot.slane %v5257, %v5286
    %v5288 = vlaneseq
    %v5289 = vshrl.u32 %v5288, 7
    %v5290 = vsub.s32 %v5271, %v5289
    %v5291 = vrot.slane %v5258, %v5290
    %v5292 = vlaneseq
    %v5293 = vshrl.u32 %v5292, 7
    %v5294 = vsub.s32 %v5271, %v5293
    %v5295 = vrot.slane %v5259, %v5294
    %v5296 = vlaneseq
    %v5297 = vshrl.u32 %v5296, 7
    %v5298 = vsub.s32 %v5271, %v5297
    %v5299 = vrot.slane %v5260, %v5298
    %v5300 = vlaneseq
    %v5301 = vshrl.u32 %v5300, 7
    %v5302 = vsub.s32 %v5271, %v5301
    %v5303 = vrot.slane %v5261, %v5302
    %vm5304 = vcmask 1041409
    %v5305 = vsel %vm5304, %v5279, %v5275
    %vm5306 = vcmask 1042434
    %v5307 = vsel %vm5306, %v5283, %v5305
    %vm5308 = vcmask 1043459
    %v5309 = vsel %vm5308, %v5287, %v5307
    %vm5310 = vcmask 1044484
    %v5311 = vsel %vm5310, %v5291, %v5309
    %vm5312 = vcmask 1045509
    %v5313 = vsel %vm5312, %v5295, %v5311
    %vm5314 = vcmask 1046534
    %v5315 = vsel %vm5314, %v5299, %v5313
    %vm5316 = vcmask 1047559
    %v5317 = vsel %vm5316, %v5303, %v5315
    %vm5319 = vcmask 15360
    %5320 = vst.msk [vmem:[%s8] sm:$0xff] %vm5319, %v5317
    // Predicated region
    $region46: #{tpu_custom_call.1} parent=1 // pred_check
      _
    $region47: #{tpu_custom_call.1} parent=1 // pred_check_branch
      %5322 = sbr.rel (0) target = $region49
    $region48: #{tpu_custom_call.1} parent=1 // pred_region
      _
    $region49: #{tpu_custom_call.1} parent=1 // pred_fallthru
      _
    // Predicated region
    $region50: #{tpu_custom_call.1} parent=1 // pred_check
      _
    $region51: #{tpu_custom_call.1} parent=1 // pred_check_branch
      %5324 = sbr.rel (0) target = $region53
    $region52: #{tpu_custom_call.1} parent=1 // pred_region
      _
    $region53: #{tpu_custom_call.1} parent=1 // pred_fallthru
      _
    %5325 = vsyncpa [#allocation9], 1
    %5326 = vsyncpa [#allocation11], 1

</llo_original>
